<compile_context>
chip_gen: v7x
topology: tpu7x:2x2x1
jax: 0.10.0
libtpu: 0.0.40
codegen_flags: <defaults>
</compile_context>

<pallas_src>
import functools

import jax
import jax.numpy as jnp
from jax.experimental import pallas as pl
from jax.experimental.pallas import tpu as pltpu

EPS = 1e-5


def _vmem_limit_bytes():
    """~75% of physical VMEM, capped at 96 MiB (=> ~48 MiB on v7x)."""
    try:
        cap = int(pltpu.get_tpu_info().vmem_capacity_bytes)
    except Exception:  # conservative fallback = smallest generation (v7x)
        cap = 64 * 1024 * 1024
    return min(96 * 1024 * 1024, (cap * 3) // 4)


_VMEM_LIMIT = _vmem_limit_bytes()


# ---------------------------------------------------------------------------
# Kernel A/B: (optional affine+ReLU prologue) -> pad -> 3x3 conv -> BN stats
# ---------------------------------------------------------------------------
def _conv_bn_stats_kernel(x_ref, scale_ref, bias_ref, w_ref,
                          y_ref, stats_ref, pad_ref,
                          *, H, W, Cin, Cout, relu, input_chw):
    # x_ref:     (1, Cin, H*W) NCHW (conv1) or (1, H*W, Cin) HWC (conv2)
    # scale_ref: (1, Cin) f32   per-channel scale (folded BN; ones for conv1)
    # bias_ref:  (1, Cin) f32   per-channel bias  (zeros for conv1)
    # w_ref:     (9*Cin, Cout)  bf16 conv weights, (ky, kx, cin) flattened
    # y_ref:     (1, H*W, Cout) pre-BN conv output (bf16)
    # stats_ref: (1, 2, Cout)   per-sample [sum, sum_sq] of the conv output
    # pad_ref:   (H+2, W+2, Cin) f32 VMEM scratch (halo-padded input)
    if input_chw:
        # NCHW tile: (Cin, H*W) -> (H*W, Cin); in-VMEM transpose (XLU slack)
        x = x_ref[0].astype(jnp.float32).T
    else:
        x = x_ref[0].astype(jnp.float32)                     # (H*W, Cin)
    x = x * scale_ref[...] + bias_ref[...]
    if relu:
        x = jnp.maximum(x, 0.0)

    # Halo-padded activation: write the interior, zero only the borders
    # (no full-scratch memset per step).
    pad_ref[1:H + 1, 1:W + 1, :] = x.reshape(H, W, Cin)
    zrow = jnp.zeros((1, W + 2, Cin), pad_ref.dtype)
    zcol = jnp.zeros((H + 2, 1, Cin), pad_ref.dtype)
    pad_ref[0:1, :, :] = zrow
    pad_ref[H + 1:H + 2, :, :] = zrow
    pad_ref[:, 0:1, :] = zcol
    pad_ref[:, W + 1:W + 2, :] = zcol

    # 3x3 conv = 9 accumulating K=Cin matmuls straight off the padded scratch
    # (no im2col concat / materialization; this kernel is mem-bound, not
    # MXU-bound at BasicBlock shapes).
    acc = jnp.zeros((H * W, Cout), jnp.float32)
    for idx in range(9):
        dy, dx = idx // 3, idx % 3
        tap = pad_ref[dy:dy + H, dx:dx + W, :].reshape(H * W, Cin)
        acc = acc + jnp.dot(tap.astype(jnp.bfloat16),
                            w_ref[idx * Cin:(idx + 1) * Cin, :],
                            preferred_element_type=jnp.float32)

    y_ref[0] = acc.astype(y_ref.dtype)

    s = jnp.sum(acc, axis=0, keepdims=True)                  # (1, Cout)
    ss = jnp.sum(acc * acc, axis=0, keepdims=True)           # (1, Cout)
    stats_ref[0] = jnp.concatenate([s, ss], axis=0)          # (2, Cout)


def _conv_bn_stats(x, scale, bias, w_flat, *, H, W, Cin, Cout, relu, input_chw):
    N = x.shape[0]
    HW = H * W
    kernel = functools.partial(_conv_bn_stats_kernel,
                               H=H, W=W, Cin=Cin, Cout=Cout,
                               relu=relu, input_chw=input_chw)
    x_block = (1, Cin, HW) if input_chw else (1, HW, Cin)
    flops = 2 * N * HW * 9 * Cin * Cout + 6 * N * HW * Cin + 3 * N * HW * Cout
    bytes_accessed = (N * HW * Cin * x.dtype.itemsize
                      + 9 * Cin * Cout * 2
                      + N * HW * Cout * 2
                      + N * 2 * Cout * 4
                      + 2 * Cin * 4)
    return pl.pallas_call(
        kernel,
        out_shape=(jax.ShapeDtypeStruct((N, HW, Cout), jnp.bfloat16),
                   jax.ShapeDtypeStruct((N, 2, Cout), jnp.float32)),
        grid=(N,),
        in_specs=[
            pl.BlockSpec(x_block, lambda n: (n, 0, 0)),
            pl.BlockSpec((1, Cin), lambda n: (0, 0)),
            pl.BlockSpec((1, Cin), lambda n: (0, 0)),
            pl.BlockSpec((9 * Cin, Cout), lambda n: (0, 0)),
        ],
        out_specs=(
            pl.BlockSpec((1, HW, Cout), lambda n: (n, 0, 0)),
            pl.BlockSpec((1, 2, Cout), lambda n: (n, 0, 0)),
        ),
        scratch_shapes=[pltpu.VMEM((H + 2, W + 2, Cin), jnp.float32)],
        compiler_params=pltpu.CompilerParams(
            dimension_semantics=("parallel",),
            vmem_limit_bytes=_VMEM_LIMIT),
        cost_estimate=pl.CostEstimate(flops=flops, transcendentals=0,
                                      bytes_accessed=bytes_accessed),
    )(x, scale, bias, w_flat)


# ---------------------------------------------------------------------------
# Kernel C: bn2-apply + residual add + ReLU, written straight to NCHW layout
# ---------------------------------------------------------------------------
def _bn_add_relu_kernel(y_ref, scale_ref, bias_ref, res_ref, o_ref):
    # y_ref:      (1, H*W, C) bf16   conv2 output (pre-BN)
    # scale/bias: (C, 1) f32         folded bn2 scale / bias
    # res_ref:    (1, C, H*W) f32    residual = original NCHW input
    # o_ref:      (1, C, H*W) f32    NCHW output (lane-dense along H*W)
    y_chw = y_ref[0].astype(jnp.float32).T                   # (C, H*W)
    out = y_chw * scale_ref[...] + bias_ref[...] + res_ref[0].astype(jnp.float32)
    o_ref[0] = jnp.maximum(out, 0.0)


def _bn_add_relu(y_hwc, scale_c1, bias_c1, res_chw, *, H, W, C):
    N = y_hwc.shape[0]
    HW = H * W
    flops = 4 * N * HW * C
    bytes_accessed = (N * HW * C * (y_hwc.dtype.itemsize
                                    + res_chw.dtype.itemsize + 4)
                      + 2 * C * 4)
    return pl.pallas_call(
        _bn_add_relu_kernel,
        out_shape=jax.ShapeDtypeStruct((N, C, HW), jnp.float32),
        grid=(N,),
        in_specs=[
            pl.BlockSpec((1, HW, C), lambda n: (n, 0, 0)),
            pl.BlockSpec((C, 1), lambda n: (0, 0)),
            pl.BlockSpec((C, 1), lambda n: (0, 0)),
            pl.BlockSpec((1, C, HW), lambda n: (n, 0, 0)),
        ],
        out_specs=pl.BlockSpec((1, C, HW), lambda n: (n, 0, 0)),
        compiler_params=pltpu.CompilerParams(
            dimension_semantics=("parallel",),
            vmem_limit_bytes=_VMEM_LIMIT),
        cost_estimate=pl.CostEstimate(flops=flops, transcendentals=0,
                                      bytes_accessed=bytes_accessed),
    )(y_hwc, scale_c1, bias_c1, res_chw)


# ---------------------------------------------------------------------------
# BatchNorm fold: partial per-sample stats -> per-channel scale / bias
# ---------------------------------------------------------------------------
def _bn_fold(stats, gamma, beta, count):
    total = jnp.sum(stats[:, 0, :], axis=0)
    total_sq = jnp.sum(stats[:, 1, :], axis=0)
    mean = total / count
    # TODO(synk): E[x^2]-E[x]^2 in f32; switch to shifted/Welford accumulation
    # if activation magnitudes ever make cancellation an issue.
    var = jnp.maximum(total_sq / count - mean * mean, 0.0)
    scale = gamma * jax.lax.rsqrt(var + EPS)
    bias = beta - mean * scale
    return scale, bias                                       # (C,), (C,)


# ---------------------------------------------------------------------------
# Module wrapper
# ---------------------------------------------------------------------------
def init_basic_block_params(key, inplanes, planes):
    """Deterministic synthetic parameters (shapes match the PyTorch module)."""
    k1, k2 = jax.random.split(key)
    return {
        "w1": 0.1 * jax.random.normal(k1, (planes, inplanes, 3, 3), jnp.float32),
        "w2": 0.1 * jax.random.normal(k2, (planes, planes, 3, 3), jnp.float32),
        # nn.BatchNorm2d default affine init: weight=1, bias=0
        "gamma1": jnp.ones((planes,), jnp.float32),
        "beta1": jnp.zeros((planes,), jnp.float32),
        "gamma2": jnp.ones((planes,), jnp.float32),
        "beta2": jnp.zeros((planes,), jnp.float32),
    }


@jax.jit
def basic_block_forward(x_nchw, params):
    """BasicBlock forward, stride=1, downsample=None (module defaults).

    x_nchw: (N, Cin, H, W) in PyTorch layout; returns (N, planes, H, W).
    """
    N, Cin, H, W = x_nchw.shape
    Cout = params["w1"].shape[0]
    if Cin != Cout:
        # TODO(synk): stride>1 / downsample path not implemented (module
        # defaults are stride=1, downsample=None => inplanes == planes).
        raise NotImplementedError("residual add requires inplanes == planes")
    HW = H * W

    # Stay in NCHW in HBM (no wrapper transposes): conv1 transposes its
    # per-sample (Cin, H*W) tile in VMEM; the final kernel reads the NCHW
    # residual and writes NCHW directly.
    x_flat = x_nchw.reshape(N, Cin, HW)

    # (Cout, Cin, 3, 3) -> (ky, kx, Cin, Cout) -> (9*Cin, Cout), bf16 for MXU.
    w1 = jnp.transpose(params["w1"], (2, 3, 1, 0)).reshape(9 * Cin, Cout)
    w2 = jnp.transpose(params["w2"], (2, 3, 1, 0)).reshape(9 * Cout, Cout)
    w1 = w1.astype(jnp.bfloat16)
    w2 = w2.astype(jnp.bfloat16)

    count = N * HW
    one = jnp.ones((1, Cin), jnp.float32)
    zero = jnp.zeros((1, Cin), jnp.float32)

    # conv1 + partial bn1 stats (reads the NCHW input directly)
    y1, st1 = _conv_bn_stats(x_flat, one, zero, w1, H=H, W=W, Cin=Cin,
                             Cout=Cout, relu=False, input_chw=True)
    s1, b1 = _bn_fold(st1, params["gamma1"], params["beta1"], count)

    # bn1-apply + ReLU + pad + conv2 + partial bn2 stats (y1 never hits HBM
    # in normalized form; stored once as bf16)
    y2, st2 = _conv_bn_stats(y1, s1.reshape(1, -1), b1.reshape(1, -1), w2,
                             H=H, W=W, Cin=Cout, Cout=Cout,
                             relu=True, input_chw=False)
    s2, b2 = _bn_fold(st2, params["gamma2"], params["beta2"], count)

    # bn2-apply + residual add + ReLU, written straight to NCHW layout.
    out = _bn_add_relu(y2, s2.reshape(-1, 1), b2.reshape(-1, 1), x_flat,
                       H=H, W=W, C=Cout)

    # TODO(synk): nn.BatchNorm2d running_mean/running_var updates not emitted
    # (forward output matches training-mode batch-stat normalization).
    return out.reshape(N, Cout, H, W)


if __name__ == "__main__":
    N, inplanes, planes, H, W = 2, 4, 4, 16, 16

    key = jax.random.PRNGKey(0)
    kx, kp = jax.random.split(key)
    x = jax.random.normal(kx, (N, inplanes, H, W), jnp.float32)
    params = init_basic_block_params(kp, inplanes, planes)

    out = basic_block_forward(x, params)
    out = jax.block_until_ready(out)

    assert out.shape == (N, planes, H, W), out.shape
    assert bool(jnp.all(jnp.isfinite(out)))
    assert bool(jnp.all(out >= 0.0))  # final ReLU

    print("KERNEL_OK")
</pallas_src>

<mosaic_0001>
module attributes {stable_mosaic.version = 11 : i64} {
  func.func @_conv_bn_stats_kernel(%arg0: i32, %arg1: memref<1x4x256xf32, #tpu.memory_space<vmem>>, %arg2: memref<1x4xf32, #tpu.memory_space<vmem>>, %arg3: memref<1x4xf32, #tpu.memory_space<vmem>>, %arg4: memref<36x4xbf16, #tpu.memory_space<vmem>>, %arg5: memref<1x256x4xbf16, #tpu.memory_space<vmem>>, %arg6: memref<1x2x4xf32, #tpu.memory_space<vmem>>, %arg7: memref<18x18x4xf32, #tpu.memory_space<vmem>>) attributes {dimension_semantics = [#tpu.dimension_semantics<parallel>], iteration_bounds = array<i64: 2>, scalar_prefetch = 0 : i64, scratch_operands = 1 : i64, tpu.core_type = #tpu.core_type<tc>, window_params = [{transform_indices = @transform_0, window_bounds = array<i64: 1, 4, 256>}, {pipeline_mode = #tpu.pipeline_mode<synchronous>, transform_indices = @transform_1, window_bounds = array<i64: 1, 4>}, {pipeline_mode = #tpu.pipeline_mode<synchronous>, transform_indices = @transform_2, window_bounds = array<i64: 1, 4>}, {pipeline_mode = #tpu.pipeline_mode<synchronous>, transform_indices = @transform_3, window_bounds = array<i64: 36, 4>}, {transform_indices = @transform_4, window_bounds = array<i64: 1, 256, 4>}, {transform_indices = @transform_5, window_bounds = array<i64: 1, 2, 4>}]} {
    %c0 = arith.constant 0 : index
    %c0_0 = arith.constant 0 : index
    %c0_1 = arith.constant 0 : index
    %0 = vector.load %arg1[%c0, %c0_0, %c0_1] : memref<1x4x256xf32, #tpu.memory_space<vmem>>, vector<1x4x256xf32>
    %1 = vector.shape_cast %0 : vector<1x4x256xf32> to vector<4x256xf32>
    %2 = tpu.transpose %1, [1, 0] : vector<4x256xf32> -> vector<256x4xf32>
    %c0_2 = arith.constant 0 : index
    %c0_3 = arith.constant 0 : index
    %3 = vector.load %arg2[%c0_2, %c0_3] : memref<1x4xf32, #tpu.memory_space<vmem>>, vector<1x4xf32>
    %4 = vector.broadcast %3 : vector<1x4xf32> to vector<256x4xf32>
    %5 = arith.mulf %2, %4 : vector<256x4xf32>
    %c0_4 = arith.constant 0 : index
    %c0_5 = arith.constant 0 : index
    %6 = vector.load %arg3[%c0_4, %c0_5] : memref<1x4xf32, #tpu.memory_space<vmem>>, vector<1x4xf32>
    %7 = vector.broadcast %6 : vector<1x4xf32> to vector<256x4xf32>
    %8 = arith.addf %5, %7 : vector<256x4xf32>
    %9 = vector.shape_cast %8 : vector<256x4xf32> to vector<16x16x4xf32>
    %c1 = arith.constant 1 : index
    %c1_6 = arith.constant 1 : index
    %c0_7 = arith.constant 0 : index
    %10 = vector.load %arg7[%c1, %c1_6, %c0_7] : memref<18x18x4xf32, #tpu.memory_space<vmem>>, vector<16x16x4xf32>
    tpu.vector_store %arg7[%c1, %c1_6, %c0_7], %9 {strides = array<i32>} : memref<18x18x4xf32, #tpu.memory_space<vmem>>, vector<16x16x4xf32>,
    %cst = arith.constant 0.000000e+00 : f32
    %11 = vector.broadcast %cst : f32 to vector<1x18x4xf32>
    %cst_8 = arith.constant 0.000000e+00 : f32
    %12 = vector.broadcast %cst_8 : f32 to vector<18x1x4xf32>
    %c0_9 = arith.constant 0 : index
    %c0_10 = arith.constant 0 : index
    %c0_11 = arith.constant 0 : index
    %13 = vector.load %arg7[%c0_9, %c0_10, %c0_11] : memref<18x18x4xf32, #tpu.memory_space<vmem>>, vector<1x18x4xf32>
    tpu.vector_store %arg7[%c0_9, %c0_10, %c0_11], %11 {strides = array<i32>} : memref<18x18x4xf32, #tpu.memory_space<vmem>>, vector<1x18x4xf32>,
    %c17 = arith.constant 17 : index
    %c0_12 = arith.constant 0 : index
    %c0_13 = arith.constant 0 : index
    %14 = vector.load %arg7[%c17, %c0_12, %c0_13] : memref<18x18x4xf32, #tpu.memory_space<vmem>>, vector<1x18x4xf32>
    tpu.vector_store %arg7[%c17, %c0_12, %c0_13], %11 {strides = array<i32>} : memref<18x18x4xf32, #tpu.memory_space<vmem>>, vector<1x18x4xf32>,
    %c0_14 = arith.constant 0 : index
    %c0_15 = arith.constant 0 : index
    %c0_16 = arith.constant 0 : index
    %15 = vector.load %arg7[%c0_14, %c0_15, %c0_16] : memref<18x18x4xf32, #tpu.memory_space<vmem>>, vector<18x1x4xf32>
    tpu.vector_store %arg7[%c0_14, %c0_15, %c0_16], %12 {strides = array<i32>} : memref<18x18x4xf32, #tpu.memory_space<vmem>>, vector<18x1x4xf32>,
    %c0_17 = arith.constant 0 : index
    %c17_18 = arith.constant 17 : index
    %c0_19 = arith.constant 0 : index
    %16 = vector.load %arg7[%c0_17, %c17_18, %c0_19] : memref<18x18x4xf32, #tpu.memory_space<vmem>>, vector<18x1x4xf32>
    tpu.vector_store %arg7[%c0_17, %c17_18, %c0_19], %12 {strides = array<i32>} : memref<18x18x4xf32, #tpu.memory_space<vmem>>, vector<18x1x4xf32>,
    %cst_20 = arith.constant 0.000000e+00 : f32
    %17 = vector.broadcast %cst_20 : f32 to vector<256x4xf32>
    %c0_21 = arith.constant 0 : index
    %c0_22 = arith.constant 0 : index
    %c0_23 = arith.constant 0 : index
    %18 = vector.load %arg7[%c0_21, %c0_22, %c0_23] : memref<18x18x4xf32, #tpu.memory_space<vmem>>, vector<16x16x4xf32>
    %19 = vector.shape_cast %18 : vector<16x16x4xf32> to vector<256x4xf32>
    %20 = arith.truncf %19 : vector<256x4xf32> to vector<256x4xbf16>
    %c0_24 = arith.constant 0 : index
    %c0_25 = arith.constant 0 : index
    %21 = vector.load %arg4[%c0_24, %c0_25] : memref<36x4xbf16, #tpu.memory_space<vmem>>, vector<4x4xbf16>
    %cst_26 = arith.constant dense<0.000000e+00> : vector<256x4xf32>
    %22 = tpu.matmul %20, %21, %cst_26 {dimension_numbers = #tpu.dot_dimension_numbers<[1], [0], [0], [1], [0, 0, 1, 1], [], []>} : vector<256x4xbf16>, vector<4x4xbf16>, vector<256x4xf32> -> vector<256x4xf32>
    %23 = arith.addf %17, %22 : vector<256x4xf32>
    %c0_27 = arith.constant 0 : index
    %c1_28 = arith.constant 1 : index
    %c0_29 = arith.constant 0 : index
    %24 = vector.load %arg7[%c0_27, %c1_28, %c0_29] : memref<18x18x4xf32, #tpu.memory_space<vmem>>, vector<16x16x4xf32>
    %25 = vector.shape_cast %24 : vector<16x16x4xf32> to vector<256x4xf32>
    %26 = arith.truncf %25 : vector<256x4xf32> to vector<256x4xbf16>
    %c4 = arith.constant 4 : index
    %c0_30 = arith.constant 0 : index
    %27 = vector.load %arg4[%c4, %c0_30] : memref<36x4xbf16, #tpu.memory_space<vmem>>, vector<4x4xbf16>
    %cst_31 = arith.constant dense<0.000000e+00> : vector<256x4xf32>
    %28 = tpu.matmul %26, %27, %cst_31 {dimension_numbers = #tpu.dot_dimension_numbers<[1], [0], [0], [1], [0, 0, 1, 1], [], []>} : vector<256x4xbf16>, vector<4x4xbf16>, vector<256x4xf32> -> vector<256x4xf32>
    %29 = arith.addf %23, %28 : vector<256x4xf32>
    %c0_32 = arith.constant 0 : index
    %c2 = arith.constant 2 : index
    %c0_33 = arith.constant 0 : index
    %30 = vector.load %arg7[%c0_32, %c2, %c0_33] : memref<18x18x4xf32, #tpu.memory_space<vmem>>, vector<16x16x4xf32>
    %31 = vector.shape_cast %30 : vector<16x16x4xf32> to vector<256x4xf32>
    %32 = arith.truncf %31 : vector<256x4xf32> to vector<256x4xbf16>
    %c8 = arith.constant 8 : index
    %c0_34 = arith.constant 0 : index
    %33 = vector.load %arg4[%c8, %c0_34] : memref<36x4xbf16, #tpu.memory_space<vmem>>, vector<4x4xbf16>
    %cst_35 = arith.constant dense<0.000000e+00> : vector<256x4xf32>
    %34 = tpu.matmul %32, %33, %cst_35 {dimension_numbers = #tpu.dot_dimension_numbers<[1], [0], [0], [1], [0, 0, 1, 1], [], []>} : vector<256x4xbf16>, vector<4x4xbf16>, vector<256x4xf32> -> vector<256x4xf32>
    %35 = arith.addf %29, %34 : vector<256x4xf32>
    %c1_36 = arith.constant 1 : index
    %c0_37 = arith.constant 0 : index
    %c0_38 = arith.constant 0 : index
    %36 = vector.load %arg7[%c1_36, %c0_37, %c0_38] : memref<18x18x4xf32, #tpu.memory_space<vmem>>, vector<16x16x4xf32>
    %37 = vector.shape_cast %36 : vector<16x16x4xf32> to vector<256x4xf32>
    %38 = arith.truncf %37 : vector<256x4xf32> to vector<256x4xbf16>
    %c12 = arith.constant 12 : index
    %c0_39 = arith.constant 0 : index
    %39 = vector.load %arg4[%c12, %c0_39] : memref<36x4xbf16, #tpu.memory_space<vmem>>, vector<4x4xbf16>
    %cst_40 = arith.constant dense<0.000000e+00> : vector<256x4xf32>
    %40 = tpu.matmul %38, %39, %cst_40 {dimension_numbers = #tpu.dot_dimension_numbers<[1], [0], [0], [1], [0, 0, 1, 1], [], []>} : vector<256x4xbf16>, vector<4x4xbf16>, vector<256x4xf32> -> vector<256x4xf32>
    %41 = arith.addf %35, %40 : vector<256x4xf32>
    %c1_41 = arith.constant 1 : index
    %c1_42 = arith.constant 1 : index
    %c0_43 = arith.constant 0 : index
    %42 = vector.load %arg7[%c1_41, %c1_42, %c0_43] : memref<18x18x4xf32, #tpu.memory_space<vmem>>, vector<16x16x4xf32>
    %43 = vector.shape_cast %42 : vector<16x16x4xf32> to vector<256x4xf32>
    %44 = arith.truncf %43 : vector<256x4xf32> to vector<256x4xbf16>
    %c16 = arith.constant 16 : index
    %c0_44 = arith.constant 0 : index
    %45 = vector.load %arg4[%c16, %c0_44] : memref<36x4xbf16, #tpu.memory_space<vmem>>, vector<4x4xbf16>
    %cst_45 = arith.constant dense<0.000000e+00> : vector<256x4xf32>
    %46 = tpu.matmul %44, %45, %cst_45 {dimension_numbers = #tpu.dot_dimension_numbers<[1], [0], [0], [1], [0, 0, 1, 1], [], []>} : vector<256x4xbf16>, vector<4x4xbf16>, vector<256x4xf32> -> vector<256x4xf32>
    %47 = arith.addf %41, %46 : vector<256x4xf32>
    %c1_46 = arith.constant 1 : index
    %c2_47 = arith.constant 2 : index
    %c0_48 = arith.constant 0 : index
    %48 = vector.load %arg7[%c1_46, %c2_47, %c0_48] : memref<18x18x4xf32, #tpu.memory_space<vmem>>, vector<16x16x4xf32>
    %49 = vector.shape_cast %48 : vector<16x16x4xf32> to vector<256x4xf32>
    %50 = arith.truncf %49 : vector<256x4xf32> to vector<256x4xbf16>
    %c20 = arith.constant 20 : index
    %c0_49 = arith.constant 0 : index
    %51 = vector.load %arg4[%c20, %c0_49] : memref<36x4xbf16, #tpu.memory_space<vmem>>, vector<4x4xbf16>
    %cst_50 = arith.constant dense<0.000000e+00> : vector<256x4xf32>
    %52 = tpu.matmul %50, %51, %cst_50 {dimension_numbers = #tpu.dot_dimension_numbers<[1], [0], [0], [1], [0, 0, 1, 1], [], []>} : vector<256x4xbf16>, vector<4x4xbf16>, vector<256x4xf32> -> vector<256x4xf32>
    %53 = arith.addf %47, %52 : vector<256x4xf32>
    %c2_51 = arith.constant 2 : index
    %c0_52 = arith.constant 0 : index
    %c0_53 = arith.constant 0 : index
    %54 = vector.load %arg7[%c2_51, %c0_52, %c0_53] : memref<18x18x4xf32, #tpu.memory_space<vmem>>, vector<16x16x4xf32>
    %55 = vector.shape_cast %54 : vector<16x16x4xf32> to vector<256x4xf32>
    %56 = arith.truncf %55 : vector<256x4xf32> to vector<256x4xbf16>
    %c24 = arith.constant 24 : index
    %c0_54 = arith.constant 0 : index
    %57 = vector.load %arg4[%c24, %c0_54] : memref<36x4xbf16, #tpu.memory_space<vmem>>, vector<4x4xbf16>
    %cst_55 = arith.constant dense<0.000000e+00> : vector<256x4xf32>
    %58 = tpu.matmul %56, %57, %cst_55 {dimension_numbers = #tpu.dot_dimension_numbers<[1], [0], [0], [1], [0, 0, 1, 1], [], []>} : vector<256x4xbf16>, vector<4x4xbf16>, vector<256x4xf32> -> vector<256x4xf32>
    %59 = arith.addf %53, %58 : vector<256x4xf32>
    %c2_56 = arith.constant 2 : index
    %c1_57 = arith.constant 1 : index
    %c0_58 = arith.constant 0 : index
    %60 = vector.load %arg7[%c2_56, %c1_57, %c0_58] : memref<18x18x4xf32, #tpu.memory_space<vmem>>, vector<16x16x4xf32>
    %61 = vector.shape_cast %60 : vector<16x16x4xf32> to vector<256x4xf32>
    %62 = arith.truncf %61 : vector<256x4xf32> to vector<256x4xbf16>
    %c28 = arith.constant 28 : index
    %c0_59 = arith.constant 0 : index
    %63 = vector.load %arg4[%c28, %c0_59] : memref<36x4xbf16, #tpu.memory_space<vmem>>, vector<4x4xbf16>
    %cst_60 = arith.constant dense<0.000000e+00> : vector<256x4xf32>
    %64 = tpu.matmul %62, %63, %cst_60 {dimension_numbers = #tpu.dot_dimension_numbers<[1], [0], [0], [1], [0, 0, 1, 1], [], []>} : vector<256x4xbf16>, vector<4x4xbf16>, vector<256x4xf32> -> vector<256x4xf32>
    %65 = arith.addf %59, %64 : vector<256x4xf32>
    %c2_61 = arith.constant 2 : index
    %c2_62 = arith.constant 2 : index
    %c0_63 = arith.constant 0 : index
    %66 = vector.load %arg7[%c2_61, %c2_62, %c0_63] : memref<18x18x4xf32, #tpu.memory_space<vmem>>, vector<16x16x4xf32>
    %67 = vector.shape_cast %66 : vector<16x16x4xf32> to vector<256x4xf32>
    %68 = arith.truncf %67 : vector<256x4xf32> to vector<256x4xbf16>
    %c32 = arith.constant 32 : index
    %c0_64 = arith.constant 0 : index
    %69 = vector.load %arg4[%c32, %c0_64] : memref<36x4xbf16, #tpu.memory_space<vmem>>, vector<4x4xbf16>
    %cst_65 = arith.constant dense<0.000000e+00> : vector<256x4xf32>
    %70 = tpu.matmul %68, %69, %cst_65 {dimension_numbers = #tpu.dot_dimension_numbers<[1], [0], [0], [1], [0, 0, 1, 1], [], []>} : vector<256x4xbf16>, vector<4x4xbf16>, vector<256x4xf32> -> vector<256x4xf32>
    %71 = arith.addf %65, %70 : vector<256x4xf32>
    %72 = arith.truncf %71 : vector<256x4xf32> to vector<256x4xbf16>
    %c0_66 = arith.constant 0 : index
    %c0_67 = arith.constant 0 : index
    %c0_68 = arith.constant 0 : index
    %73 = vector.load %arg5[%c0_66, %c0_67, %c0_68] : memref<1x256x4xbf16, #tpu.memory_space<vmem>>, vector<1x256x4xbf16>
    %74 = vector.shape_cast %73 : vector<1x256x4xbf16> to vector<256x4xbf16>
    %75 = vector.shape_cast %72 : vector<256x4xbf16> to vector<1x256x4xbf16>
    tpu.vector_store %arg5[%c0_66, %c0_67, %c0_68], %75 {strides = array<i32>} : memref<1x256x4xbf16, #tpu.memory_space<vmem>>, vector<1x256x4xbf16>,
    %cst_69 = arith.constant dense<0.000000e+00> : vector<4xf32>
    %76 = vector.multi_reduction <add>, %71, %cst_69 [0] : vector<256x4xf32> to vector<4xf32>
    %77 = vector.shape_cast %76 : vector<4xf32> to vector<1x4xf32>
    %78 = arith.mulf %71, %71 : vector<256x4xf32>
    %cst_70 = arith.constant dense<0.000000e+00> : vector<4xf32>
    %79 = vector.multi_reduction <add>, %78, %cst_70 [0] : vector<256x4xf32> to vector<4xf32>
    %80 = vector.shape_cast %79 : vector<4xf32> to vector<1x4xf32>
    %81 = tpu.concatenate %77, %80 in 0 : vector<1x4xf32>, vector<1x4xf32> -> vector<2x4xf32>
    %c0_71 = arith.constant 0 : index
    %c0_72 = arith.constant 0 : index
    %c0_73 = arith.constant 0 : index
    %82 = vector.load %arg6[%c0_71, %c0_72, %c0_73] : memref<1x2x4xf32, #tpu.memory_space<vmem>>, vector<1x2x4xf32>
    %83 = vector.shape_cast %82 : vector<1x2x4xf32> to vector<2x4xf32>
    %84 = vector.shape_cast %81 : vector<2x4xf32> to vector<1x2x4xf32>
    tpu.vector_store %arg6[%c0_71, %c0_72, %c0_73], %84 {strides = array<i32>} : memref<1x2x4xf32, #tpu.memory_space<vmem>>, vector<1x2x4xf32>,
    return
  }
  func.func @transform_0(%arg0: i32) -> (i32, i32, i32) {
    %c0_i32 = arith.constant 0 : i32
    %c0_i32_0 = arith.constant 0 : i32
    %c0_i32_1 = arith.constant 0 : i32
    return %arg0, %c0_i32, %c0_i32_0 : i32, i32, i32
  }
  func.func @transform_1(%arg0: i32) -> (i32, i32) {
    %c0_i32 = arith.constant 0 : i32
    %c0_i32_0 = arith.constant 0 : i32
    %c0_i32_1 = arith.constant 0 : i32
    return %c0_i32, %c0_i32_0 : i32, i32
  }
  func.func @transform_2(%arg0: i32) -> (i32, i32) {
    %c0_i32 = arith.constant 0 : i32
    %c0_i32_0 = arith.constant 0 : i32
    %c0_i32_1 = arith.constant 0 : i32
    return %c0_i32, %c0_i32_0 : i32, i32
  }
  func.func @transform_3(%arg0: i32) -> (i32, i32) {
    %c0_i32 = arith.constant 0 : i32
    %c0_i32_0 = arith.constant 0 : i32
    %c0_i32_1 = arith.constant 0 : i32
    return %c0_i32, %c0_i32_0 : i32, i32
  }
  func.func @transform_4(%arg0: i32) -> (i32, i32, i32) {
    %c0_i32 = arith.constant 0 : i32
    %c0_i32_0 = arith.constant 0 : i32
    %c0_i32_1 = arith.constant 0 : i32
    return %arg0, %c0_i32, %c0_i32_0 : i32, i32, i32
  }
  func.func @transform_5(%arg0: i32) -> (i32, i32, i32) {
    %c0_i32 = arith.constant 0 : i32
    %c0_i32_0 = arith.constant 0 : i32
    %c0_i32_1 = arith.constant 0 : i32
    return %arg0, %c0_i32, %c0_i32_0 : i32, i32, i32
  }
}

module attributes {stable_mosaic.version = 11 : i64} {
  func.func @_bn_add_relu_kernel(%arg0: i32, %arg1: memref<1x256x4xbf16, #tpu.memory_space<vmem>>, %arg2: memref<4x1xf32, #tpu.memory_space<vmem>>, %arg3: memref<4x1xf32, #tpu.memory_space<vmem>>, %arg4: memref<1x4x256xf32, #tpu.memory_space<vmem>>, %arg5: memref<1x4x256xf32, #tpu.memory_space<vmem>>) attributes {dimension_semantics = [#tpu.dimension_semantics<parallel>], iteration_bounds = array<i64: 2>, scalar_prefetch = 0 : i64, scratch_operands = 0 : i64, tpu.core_type = #tpu.core_type<tc>, window_params = [{transform_indices = @transform_0, window_bounds = array<i64: 1, 256, 4>}, {pipeline_mode = #tpu.pipeline_mode<synchronous>, transform_indices = @transform_1, window_bounds = array<i64: 4, 1>}, {pipeline_mode = #tpu.pipeline_mode<synchronous>, transform_indices = @transform_2, window_bounds = array<i64: 4, 1>}, {transform_indices = @transform_3, window_bounds = array<i64: 1, 4, 256>}, {transform_indices = @transform_4, window_bounds = array<i64: 1, 4, 256>}]} {
    %c0 = arith.constant 0 : index
    %c0_0 = arith.constant 0 : index
    %c0_1 = arith.constant 0 : index
    %0 = vector.load %arg1[%c0, %c0_0, %c0_1] : memref<1x256x4xbf16, #tpu.memory_space<vmem>>, vector<1x256x4xbf16>
    %1 = vector.shape_cast %0 : vector<1x256x4xbf16> to vector<256x4xbf16>
    %2 = arith.extf %1 : vector<256x4xbf16> to vector<256x4xf32>
    %3 = tpu.transpose %2, [1, 0] : vector<256x4xf32> -> vector<4x256xf32>
    %c0_2 = arith.constant 0 : index
    %c0_3 = arith.constant 0 : index
    %4 = vector.load %arg2[%c0_2, %c0_3] : memref<4x1xf32, #tpu.memory_space<vmem>>, vector<4x1xf32>
    %5 = vector.broadcast %4 : vector<4x1xf32> to vector<4x256xf32>
    %6 = arith.mulf %3, %5 : vector<4x256xf32>
    %c0_4 = arith.constant 0 : index
    %c0_5 = arith.constant 0 : index
    %7 = vector.load %arg3[%c0_4, %c0_5] : memref<4x1xf32, #tpu.memory_space<vmem>>, vector<4x1xf32>
    %8 = vector.broadcast %7 : vector<4x1xf32> to vector<4x256xf32>
    %9 = arith.addf %6, %8 : vector<4x256xf32>
    %c0_6 = arith.constant 0 : index
    %c0_7 = arith.constant 0 : index
    %c0_8 = arith.constant 0 : index
    %10 = vector.load %arg4[%c0_6, %c0_7, %c0_8] : memref<1x4x256xf32, #tpu.memory_space<vmem>>, vector<1x4x256xf32>
    %11 = vector.shape_cast %10 : vector<1x4x256xf32> to vector<4x256xf32>
    %12 = arith.addf %9, %11 : vector<4x256xf32>
    %cst = arith.constant 0.000000e+00 : f32
    %13 = vector.broadcast %cst : f32 to vector<4x256xf32>
    %14 = arith.maximumf %12, %13 : vector<4x256xf32>
    %c0_9 = arith.constant 0 : index
    %c0_10 = arith.constant 0 : index
    %c0_11 = arith.constant 0 : index
    %15 = vector.load %arg5[%c0_9, %c0_10, %c0_11] : memref<1x4x256xf32, #tpu.memory_space<vmem>>, vector<1x4x256xf32>
    %16 = vector.shape_cast %15 : vector<1x4x256xf32> to vector<4x256xf32>
    %17 = vector.shape_cast %14 : vector<4x256xf32> to vector<1x4x256xf32>
    tpu.vector_store %arg5[%c0_9, %c0_10, %c0_11], %17 {strides = array<i32>} : memref<1x4x256xf32, #tpu.memory_space<vmem>>, vector<1x4x256xf32>,
    return
  }
  func.func @transform_0(%arg0: i32) -> (i32, i32, i32) {
    %c0_i32 = arith.constant 0 : i32
    %c0_i32_0 = arith.constant 0 : i32
    %c0_i32_1 = arith.constant 0 : i32
    return %arg0, %c0_i32, %c0_i32_0 : i32, i32, i32
  }
  func.func @transform_1(%arg0: i32) -> (i32, i32) {
    %c0_i32 = arith.constant 0 : i32
    %c0_i32_0 = arith.constant 0 : i32
    %c0_i32_1 = arith.constant 0 : i32
    return %c0_i32, %c0_i32_0 : i32, i32
  }
  func.func @transform_2(%arg0: i32) -> (i32, i32) {
    %c0_i32 = arith.constant 0 : i32
    %c0_i32_0 = arith.constant 0 : i32
    %c0_i32_1 = arith.constant 0 : i32
    return %c0_i32, %c0_i32_0 : i32, i32
  }
  func.func @transform_3(%arg0: i32) -> (i32, i32, i32) {
    %c0_i32 = arith.constant 0 : i32
    %c0_i32_0 = arith.constant 0 : i32
    %c0_i32_1 = arith.constant 0 : i32
    return %arg0, %c0_i32, %c0_i32_0 : i32, i32, i32
  }
  func.func @transform_4(%arg0: i32) -> (i32, i32, i32) {
    %c0_i32 = arith.constant 0 : i32
    %c0_i32_0 = arith.constant 0 : i32
    %c0_i32_1 = arith.constant 0 : i32
    return %arg0, %c0_i32, %c0_i32_0 : i32, i32, i32
  }
}

module attributes {stable_mosaic.version = 11 : i64} {
  func.func @_conv_bn_stats_kernel(%arg0: i32, %arg1: memref<1x256x4xbf16, #tpu.memory_space<vmem>>, %arg2: memref<1x4xf32, #tpu.memory_space<vmem>>, %arg3: memref<1x4xf32, #tpu.memory_space<vmem>>, %arg4: memref<36x4xbf16, #tpu.memory_space<vmem>>, %arg5: memref<1x256x4xbf16, #tpu.memory_space<vmem>>, %arg6: memref<1x2x4xf32, #tpu.memory_space<vmem>>, %arg7: memref<18x18x4xf32, #tpu.memory_space<vmem>>) attributes {dimension_semantics = [#tpu.dimension_semantics<parallel>], iteration_bounds = array<i64: 2>, scalar_prefetch = 0 : i64, scratch_operands = 1 : i64, tpu.core_type = #tpu.core_type<tc>, window_params = [{transform_indices = @transform_0, window_bounds = array<i64: 1, 256, 4>}, {pipeline_mode = #tpu.pipeline_mode<synchronous>, transform_indices = @transform_1, window_bounds = array<i64: 1, 4>}, {pipeline_mode = #tpu.pipeline_mode<synchronous>, transform_indices = @transform_2, window_bounds = array<i64: 1, 4>}, {pipeline_mode = #tpu.pipeline_mode<synchronous>, transform_indices = @transform_3, window_bounds = array<i64: 36, 4>}, {transform_indices = @transform_4, window_bounds = array<i64: 1, 256, 4>}, {transform_indices = @transform_5, window_bounds = array<i64: 1, 2, 4>}]} {
    %c0 = arith.constant 0 : index
    %c0_0 = arith.constant 0 : index
    %c0_1 = arith.constant 0 : index
    %0 = vector.load %arg1[%c0, %c0_0, %c0_1] : memref<1x256x4xbf16, #tpu.memory_space<vmem>>, vector<1x256x4xbf16>
    %1 = vector.shape_cast %0 : vector<1x256x4xbf16> to vector<256x4xbf16>
    %2 = arith.extf %1 : vector<256x4xbf16> to vector<256x4xf32>
    %c0_2 = arith.constant 0 : index
    %c0_3 = arith.constant 0 : index
    %3 = vector.load %arg2[%c0_2, %c0_3] : memref<1x4xf32, #tpu.memory_space<vmem>>, vector<1x4xf32>
    %4 = vector.broadcast %3 : vector<1x4xf32> to vector<256x4xf32>
    %5 = arith.mulf %2, %4 : vector<256x4xf32>
    %c0_4 = arith.constant 0 : index
    %c0_5 = arith.constant 0 : index
    %6 = vector.load %arg3[%c0_4, %c0_5] : memref<1x4xf32, #tpu.memory_space<vmem>>, vector<1x4xf32>
    %7 = vector.broadcast %6 : vector<1x4xf32> to vector<256x4xf32>
    %8 = arith.addf %5, %7 : vector<256x4xf32>
    %cst = arith.constant 0.000000e+00 : f32
    %9 = vector.broadcast %cst : f32 to vector<256x4xf32>
    %10 = arith.maximumf %8, %9 : vector<256x4xf32>
    %11 = vector.shape_cast %10 : vector<256x4xf32> to vector<16x16x4xf32>
    %c1 = arith.constant 1 : index
    %c1_6 = arith.constant 1 : index
    %c0_7 = arith.constant 0 : index
    %12 = vector.load %arg7[%c1, %c1_6, %c0_7] : memref<18x18x4xf32, #tpu.memory_space<vmem>>, vector<16x16x4xf32>
    tpu.vector_store %arg7[%c1, %c1_6, %c0_7], %11 {strides = array<i32>} : memref<18x18x4xf32, #tpu.memory_space<vmem>>, vector<16x16x4xf32>,
    %cst_8 = arith.constant 0.000000e+00 : f32
    %13 = vector.broadcast %cst_8 : f32 to vector<1x18x4xf32>
    %cst_9 = arith.constant 0.000000e+00 : f32
    %14 = vector.broadcast %cst_9 : f32 to vector<18x1x4xf32>
    %c0_10 = arith.constant 0 : index
    %c0_11 = arith.constant 0 : index
    %c0_12 = arith.constant 0 : index
    %15 = vector.load %arg7[%c0_10, %c0_11, %c0_12] : memref<18x18x4xf32, #tpu.memory_space<vmem>>, vector<1x18x4xf32>
    tpu.vector_store %arg7[%c0_10, %c0_11, %c0_12], %13 {strides = array<i32>} : memref<18x18x4xf32, #tpu.memory_space<vmem>>, vector<1x18x4xf32>,
    %c17 = arith.constant 17 : index
    %c0_13 = arith.constant 0 : index
    %c0_14 = arith.constant 0 : index
    %16 = vector.load %arg7[%c17, %c0_13, %c0_14] : memref<18x18x4xf32, #tpu.memory_space<vmem>>, vector<1x18x4xf32>
    tpu.vector_store %arg7[%c17, %c0_13, %c0_14], %13 {strides = array<i32>} : memref<18x18x4xf32, #tpu.memory_space<vmem>>, vector<1x18x4xf32>,
    %c0_15 = arith.constant 0 : index
    %c0_16 = arith.constant 0 : index
    %c0_17 = arith.constant 0 : index
    %17 = vector.load %arg7[%c0_15, %c0_16, %c0_17] : memref<18x18x4xf32, #tpu.memory_space<vmem>>, vector<18x1x4xf32>
    tpu.vector_store %arg7[%c0_15, %c0_16, %c0_17], %14 {strides = array<i32>} : memref<18x18x4xf32, #tpu.memory_space<vmem>>, vector<18x1x4xf32>,
    %c0_18 = arith.constant 0 : index
    %c17_19 = arith.constant 17 : index
    %c0_20 = arith.constant 0 : index
    %18 = vector.load %arg7[%c0_18, %c17_19, %c0_20] : memref<18x18x4xf32, #tpu.memory_space<vmem>>, vector<18x1x4xf32>
    tpu.vector_store %arg7[%c0_18, %c17_19, %c0_20], %14 {strides = array<i32>} : memref<18x18x4xf32, #tpu.memory_space<vmem>>, vector<18x1x4xf32>,
    %cst_21 = arith.constant 0.000000e+00 : f32
    %19 = vector.broadcast %cst_21 : f32 to vector<256x4xf32>
    %c0_22 = arith.constant 0 : index
    %c0_23 = arith.constant 0 : index
    %c0_24 = arith.constant 0 : index
    %20 = vector.load %arg7[%c0_22, %c0_23, %c0_24] : memref<18x18x4xf32, #tpu.memory_space<vmem>>, vector<16x16x4xf32>
    %21 = vector.shape_cast %20 : vector<16x16x4xf32> to vector<256x4xf32>
    %22 = arith.truncf %21 : vector<256x4xf32> to vector<256x4xbf16>
    %c0_25 = arith.constant 0 : index
    %c0_26 = arith.constant 0 : index
    %23 = vector.load %arg4[%c0_25, %c0_26] : memref<36x4xbf16, #tpu.memory_space<vmem>>, vector<4x4xbf16>
    %cst_27 = arith.constant dense<0.000000e+00> : vector<256x4xf32>
    %24 = tpu.matmul %22, %23, %cst_27 {dimension_numbers = #tpu.dot_dimension_numbers<[1], [0], [0], [1], [0, 0, 1, 1], [], []>} : vector<256x4xbf16>, vector<4x4xbf16>, vector<256x4xf32> -> vector<256x4xf32>
    %25 = arith.addf %19, %24 : vector<256x4xf32>
    %c0_28 = arith.constant 0 : index
    %c1_29 = arith.constant 1 : index
    %c0_30 = arith.constant 0 : index
    %26 = vector.load %arg7[%c0_28, %c1_29, %c0_30] : memref<18x18x4xf32, #tpu.memory_space<vmem>>, vector<16x16x4xf32>
    %27 = vector.shape_cast %26 : vector<16x16x4xf32> to vector<256x4xf32>
    %28 = arith.truncf %27 : vector<256x4xf32> to vector<256x4xbf16>
    %c4 = arith.constant 4 : index
    %c0_31 = arith.constant 0 : index
    %29 = vector.load %arg4[%c4, %c0_31] : memref<36x4xbf16, #tpu.memory_space<vmem>>, vector<4x4xbf16>
    %cst_32 = arith.constant dense<0.000000e+00> : vector<256x4xf32>
    %30 = tpu.matmul %28, %29, %cst_32 {dimension_numbers = #tpu.dot_dimension_numbers<[1], [0], [0], [1], [0, 0, 1, 1], [], []>} : vector<256x4xbf16>, vector<4x4xbf16>, vector<256x4xf32> -> vector<256x4xf32>
    %31 = arith.addf %25, %30 : vector<256x4xf32>
    %c0_33 = arith.constant 0 : index
    %c2 = arith.constant 2 : index
    %c0_34 = arith.constant 0 : index
    %32 = vector.load %arg7[%c0_33, %c2, %c0_34] : memref<18x18x4xf32, #tpu.memory_space<vmem>>, vector<16x16x4xf32>
    %33 = vector.shape_cast %32 : vector<16x16x4xf32> to vector<256x4xf32>
    %34 = arith.truncf %33 : vector<256x4xf32> to vector<256x4xbf16>
    %c8 = arith.constant 8 : index
    %c0_35 = arith.constant 0 : index
    %35 = vector.load %arg4[%c8, %c0_35] : memref<36x4xbf16, #tpu.memory_space<vmem>>, vector<4x4xbf16>
    %cst_36 = arith.constant dense<0.000000e+00> : vector<256x4xf32>
    %36 = tpu.matmul %34, %35, %cst_36 {dimension_numbers = #tpu.dot_dimension_numbers<[1], [0], [0], [1], [0, 0, 1, 1], [], []>} : vector<256x4xbf16>, vector<4x4xbf16>, vector<256x4xf32> -> vector<256x4xf32>
    %37 = arith.addf %31, %36 : vector<256x4xf32>
    %c1_37 = arith.constant 1 : index
    %c0_38 = arith.constant 0 : index
    %c0_39 = arith.constant 0 : index
    %38 = vector.load %arg7[%c1_37, %c0_38, %c0_39] : memref<18x18x4xf32, #tpu.memory_space<vmem>>, vector<16x16x4xf32>
    %39 = vector.shape_cast %38 : vector<16x16x4xf32> to vector<256x4xf32>
    %40 = arith.truncf %39 : vector<256x4xf32> to vector<256x4xbf16>
    %c12 = arith.constant 12 : index
    %c0_40 = arith.constant 0 : index
    %41 = vector.load %arg4[%c12, %c0_40] : memref<36x4xbf16, #tpu.memory_space<vmem>>, vector<4x4xbf16>
    %cst_41 = arith.constant dense<0.000000e+00> : vector<256x4xf32>
    %42 = tpu.matmul %40, %41, %cst_41 {dimension_numbers = #tpu.dot_dimension_numbers<[1], [0], [0], [1], [0, 0, 1, 1], [], []>} : vector<256x4xbf16>, vector<4x4xbf16>, vector<256x4xf32> -> vector<256x4xf32>
    %43 = arith.addf %37, %42 : vector<256x4xf32>
    %c1_42 = arith.constant 1 : index
    %c1_43 = arith.constant 1 : index
    %c0_44 = arith.constant 0 : index
    %44 = vector.load %arg7[%c1_42, %c1_43, %c0_44] : memref<18x18x4xf32, #tpu.memory_space<vmem>>, vector<16x16x4xf32>
    %45 = vector.shape_cast %44 : vector<16x16x4xf32> to vector<256x4xf32>
    %46 = arith.truncf %45 : vector<256x4xf32> to vector<256x4xbf16>
    %c16 = arith.constant 16 : index
    %c0_45 = arith.constant 0 : index
    %47 = vector.load %arg4[%c16, %c0_45] : memref<36x4xbf16, #tpu.memory_space<vmem>>, vector<4x4xbf16>
    %cst_46 = arith.constant dense<0.000000e+00> : vector<256x4xf32>
    %48 = tpu.matmul %46, %47, %cst_46 {dimension_numbers = #tpu.dot_dimension_numbers<[1], [0], [0], [1], [0, 0, 1, 1], [], []>} : vector<256x4xbf16>, vector<4x4xbf16>, vector<256x4xf32> -> vector<256x4xf32>
    %49 = arith.addf %43, %48 : vector<256x4xf32>
    %c1_47 = arith.constant 1 : index
    %c2_48 = arith.constant 2 : index
    %c0_49 = arith.constant 0 : index
    %50 = vector.load %arg7[%c1_47, %c2_48, %c0_49] : memref<18x18x4xf32, #tpu.memory_space<vmem>>, vector<16x16x4xf32>
    %51 = vector.shape_cast %50 : vector<16x16x4xf32> to vector<256x4xf32>
    %52 = arith.truncf %51 : vector<256x4xf32> to vector<256x4xbf16>
    %c20 = arith.constant 20 : index
    %c0_50 = arith.constant 0 : index
    %53 = vector.load %arg4[%c20, %c0_50] : memref<36x4xbf16, #tpu.memory_space<vmem>>, vector<4x4xbf16>
    %cst_51 = arith.constant dense<0.000000e+00> : vector<256x4xf32>
    %54 = tpu.matmul %52, %53, %cst_51 {dimension_numbers = #tpu.dot_dimension_numbers<[1], [0], [0], [1], [0, 0, 1, 1], [], []>} : vector<256x4xbf16>, vector<4x4xbf16>, vector<256x4xf32> -> vector<256x4xf32>
    %55 = arith.addf %49, %54 : vector<256x4xf32>
    %c2_52 = arith.constant 2 : index
    %c0_53 = arith.constant 0 : index
    %c0_54 = arith.constant 0 : index
    %56 = vector.load %arg7[%c2_52, %c0_53, %c0_54] : memref<18x18x4xf32, #tpu.memory_space<vmem>>, vector<16x16x4xf32>
    %57 = vector.shape_cast %56 : vector<16x16x4xf32> to vector<256x4xf32>
    %58 = arith.truncf %57 : vector<256x4xf32> to vector<256x4xbf16>
    %c24 = arith.constant 24 : index
    %c0_55 = arith.constant 0 : index
    %59 = vector.load %arg4[%c24, %c0_55] : memref<36x4xbf16, #tpu.memory_space<vmem>>, vector<4x4xbf16>
    %cst_56 = arith.constant dense<0.000000e+00> : vector<256x4xf32>
    %60 = tpu.matmul %58, %59, %cst_56 {dimension_numbers = #tpu.dot_dimension_numbers<[1], [0], [0], [1], [0, 0, 1, 1], [], []>} : vector<256x4xbf16>, vector<4x4xbf16>, vector<256x4xf32> -> vector<256x4xf32>
    %61 = arith.addf %55, %60 : vector<256x4xf32>
    %c2_57 = arith.constant 2 : index
    %c1_58 = arith.constant 1 : index
    %c0_59 = arith.constant 0 : index
    %62 = vector.load %arg7[%c2_57, %c1_58, %c0_59] : memref<18x18x4xf32, #tpu.memory_space<vmem>>, vector<16x16x4xf32>
    %63 = vector.shape_cast %62 : vector<16x16x4xf32> to vector<256x4xf32>
    %64 = arith.truncf %63 : vector<256x4xf32> to vector<256x4xbf16>
    %c28 = arith.constant 28 : index
    %c0_60 = arith.constant 0 : index
    %65 = vector.load %arg4[%c28, %c0_60] : memref<36x4xbf16, #tpu.memory_space<vmem>>, vector<4x4xbf16>
    %cst_61 = arith.constant dense<0.000000e+00> : vector<256x4xf32>
    %66 = tpu.matmul %64, %65, %cst_61 {dimension_numbers = #tpu.dot_dimension_numbers<[1], [0], [0], [1], [0, 0, 1, 1], [], []>} : vector<256x4xbf16>, vector<4x4xbf16>, vector<256x4xf32> -> vector<256x4xf32>
    %67 = arith.addf %61, %66 : vector<256x4xf32>
    %c2_62 = arith.constant 2 : index
    %c2_63 = arith.constant 2 : index
    %c0_64 = arith.constant 0 : index
    %68 = vector.load %arg7[%c2_62, %c2_63, %c0_64] : memref<18x18x4xf32, #tpu.memory_space<vmem>>, vector<16x16x4xf32>
    %69 = vector.shape_cast %68 : vector<16x16x4xf32> to vector<256x4xf32>
    %70 = arith.truncf %69 : vector<256x4xf32> to vector<256x4xbf16>
    %c32 = arith.constant 32 : index
    %c0_65 = arith.constant 0 : index
    %71 = vector.load %arg4[%c32, %c0_65] : memref<36x4xbf16, #tpu.memory_space<vmem>>, vector<4x4xbf16>
    %cst_66 = arith.constant dense<0.000000e+00> : vector<256x4xf32>
    %72 = tpu.matmul %70, %71, %cst_66 {dimension_numbers = #tpu.dot_dimension_numbers<[1], [0], [0], [1], [0, 0, 1, 1], [], []>} : vector<256x4xbf16>, vector<4x4xbf16>, vector<256x4xf32> -> vector<256x4xf32>
    %73 = arith.addf %67, %72 : vector<256x4xf32>
    %74 = arith.truncf %73 : vector<256x4xf32> to vector<256x4xbf16>
    %c0_67 = arith.constant 0 : index
    %c0_68 = arith.constant 0 : index
    %c0_69 = arith.constant 0 : index
    %75 = vector.load %arg5[%c0_67, %c0_68, %c0_69] : memref<1x256x4xbf16, #tpu.memory_space<vmem>>, vector<1x256x4xbf16>
    %76 = vector.shape_cast %75 : vector<1x256x4xbf16> to vector<256x4xbf16>
    %77 = vector.shape_cast %74 : vector<256x4xbf16> to vector<1x256x4xbf16>
    tpu.vector_store %arg5[%c0_67, %c0_68, %c0_69], %77 {strides = array<i32>} : memref<1x256x4xbf16, #tpu.memory_space<vmem>>, vector<1x256x4xbf16>,
    %cst_70 = arith.constant dense<0.000000e+00> : vector<4xf32>
    %78 = vector.multi_reduction <add>, %73, %cst_70 [0] : vector<256x4xf32> to vector<4xf32>
    %79 = vector.shape_cast %78 : vector<4xf32> to vector<1x4xf32>
    %80 = arith.mulf %73, %73 : vector<256x4xf32>
    %cst_71 = arith.constant dense<0.000000e+00> : vector<4xf32>
    %81 = vector.multi_reduction <add>, %80, %cst_71 [0] : vector<256x4xf32> to vector<4xf32>
    %82 = vector.shape_cast %81 : vector<4xf32> to vector<1x4xf32>
    %83 = tpu.concatenate %79, %82 in 0 : vector<1x4xf32>, vector<1x4xf32> -> vector<2x4xf32>
    %c0_72 = arith.constant 0 : index
    %c0_73 = arith.constant 0 : index
    %c0_74 = arith.constant 0 : index
    %84 = vector.load %arg6[%c0_72, %c0_73, %c0_74] : memref<1x2x4xf32, #tpu.memory_space<vmem>>, vector<1x2x4xf32>
    %85 = vector.shape_cast %84 : vector<1x2x4xf32> to vector<2x4xf32>
    %86 = vector.shape_cast %83 : vector<2x4xf32> to vector<1x2x4xf32>
    tpu.vector_store %arg6[%c0_72, %c0_73, %c0_74], %86 {strides = array<i32>} : memref<1x2x4xf32, #tpu.memory_space<vmem>>, vector<1x2x4xf32>,
    return
  }
  func.func @transform_0(%arg0: i32) -> (i32, i32, i32) {
    %c0_i32 = arith.constant 0 : i32
    %c0_i32_0 = arith.constant 0 : i32
    %c0_i32_1 = arith.constant 0 : i32
    return %arg0, %c0_i32, %c0_i32_0 : i32, i32, i32
  }
  func.func @transform_1(%arg0: i32) -> (i32, i32) {
    %c0_i32 = arith.constant 0 : i32
    %c0_i32_0 = arith.constant 0 : i32
    %c0_i32_1 = arith.constant 0 : i32
    return %c0_i32, %c0_i32_0 : i32, i32
  }
  func.func @transform_2(%arg0: i32) -> (i32, i32) {
    %c0_i32 = arith.constant 0 : i32
    %c0_i32_0 = arith.constant 0 : i32
    %c0_i32_1 = arith.constant 0 : i32
    return %c0_i32, %c0_i32_0 : i32, i32
  }
  func.func @transform_3(%arg0: i32) -> (i32, i32) {
    %c0_i32 = arith.constant 0 : i32
    %c0_i32_0 = arith.constant 0 : i32
    %c0_i32_1 = arith.constant 0 : i32
    return %c0_i32, %c0_i32_0 : i32, i32
  }
  func.func @transform_4(%arg0: i32) -> (i32, i32, i32) {
    %c0_i32 = arith.constant 0 : i32
    %c0_i32_0 = arith.constant 0 : i32
    %c0_i32_1 = arith.constant 0 : i32
    return %arg0, %c0_i32, %c0_i32_0 : i32, i32, i32
  }
  func.func @transform_5(%arg0: i32) -> (i32, i32, i32) {
    %c0_i32 = arith.constant 0 : i32
    %c0_i32_0 = arith.constant 0 : i32
    %c0_i32_1 = arith.constant 0 : i32
    return %arg0, %c0_i32, %c0_i32_0 : i32, i32, i32
  }
}

</mosaic_0001>

<llo_original>
// kernel: basic_block_forward.5
$region0: #{basic_block_forward.5}
  #allocation0 [shape = 'u32[]', space=smem, size = 0x4, offset = 0x4, fixed_abs, tag = 'smem constant byte address 0x4 - core index']
  #allocation1 [shape = 'u32[144,128]{1,0:T(1,128)}', space=vmem, size = 0x12000, scoped, tag = 'internal scratch']
  %s0 = inlined_call_operand.vmem [shape: bf16[2,256,4], index: 0, kind: input, shape index: {}]
  %s1 = inlined_call_operand.vmem [shape: f32[4,1], index: 1, kind: input, shape index: {}]
  %s2 = inlined_call_operand.vmem [shape: f32[4,1], index: 2, kind: input, shape index: {}]
  %s3 = inlined_call_operand.vmem [shape: f32[2,4,256], index: 3, kind: input, shape index: {}]
  %s4 = inlined_call_operand.vmem [shape: f32[2,4,256], index: 4, kind: output, shape index: {}]
  %s5 = sld [smem:[#allocation0]]
  $region49: #{basic_block_forward.5} parent=0
    _
  %s7 = ssub.s32 1, %s5
  %s8 = scalar_select 0, %s7, %s5
  loop: start=0, step=1, limit=4
  $region2: #{basic_block_forward.5} parent=0 // loop_pre_header
    _
  $region3: #{basic_block_forward.5} parent=0 // loop_header
    %s10 = sphi 0, %s14
    %p11 = scmp.ge.s32.totalorder %s10, 4
    %s20 = sphi 0, %s22
    %s23 = sphi 0, %s20
    %s24 = sphi 0, %s23
    %s40 = sphi 0, %s24
    %s44 = sphi 0, %s44
    %s46 = sphi 0, %s44
    %s47 = sphi 0, %s46
    %s61 = sphi 0, %s47
    %s65 = sphi 0, %s65
    %s67 = sphi 0, %s65
    %s68 = sphi 0, %s67
    %s82 = sphi 0, %s68
    %s88 = sphi 0, %s90
    %s91 = sphi 0, %s88
    %s92 = sphi 0, %s91
    %s108 = sphi 0, %s92
    %s114 = sphi 0, %s116
    %s117 = sphi 0, %s114
    %s118 = sphi 0, %s117
    %s134 = sphi 0, %s118
  $region4: #{basic_block_forward.5} parent=0 // loop_header_branch
    %13 = sbr.rel (%p11) target = $region8
  $region5: #{basic_block_forward.5} parent=0 // loop_body
    %s15 = ssub.s32 %s10, 1
    %s16 = ssub.s32 %s10, 2
    %s17 = sadd.s32 %s10, 1
    %s18 = ssub.s32 %s10, %s17
    %p19 = scmp.eq.s32.totalorder %s18, 0
    %s21 = sadd.s32 %s20, 1
    %s22 = scalar_select %p19, %s20, %s21
    %p25 = pneg %p19
    %p26 = scmp.eq.s32.totalorder %s10, 1
    %p27 = por %p25, %p26
    %p28 = scmp.ne.s32.totalorder %s20, %s23
    %p29 = scmp.eq.s32.totalorder %s10, 0
    %p30 = por %p28, %p29
    %p31 = scmp.ne.s32.totalorder %s20, %s23
    %p32 = scmp.eq.s32.totalorder %s15, 1
    %p33 = por %p31, %p32
    %p34 = scmp.ne.s32.totalorder %s23, %s24
    %p35 = scmp.eq.s32.totalorder %s15, 0
    %p36 = por %p34, %p35
    %p37 = scmp.ne.s32.totalorder %s23, %s24
    %p38 = scmp.eq.s32.totalorder %s16, 1
    %p39 = por %p37, %p38
    %p41 = scmp.ne.s32.totalorder %s24, %s40
    %p42 = scmp.eq.s32.totalorder %s16, 0
    %p43 = por %p41, %p42
    %s45 = sadd.s32 %s44, 1
    %p48 = scmp.eq.s32.totalorder %s10, 1
    %p49 = scmp.ne.s32.totalorder %s44, %s46
    %p50 = scmp.eq.s32.totalorder %s10, 0
    %p51 = por %p49, %p50
    %p52 = scmp.ne.s32.totalorder %s44, %s46
    %p53 = scmp.eq.s32.totalorder %s15, 1
    %p54 = por %p52, %p53
    %p55 = scmp.ne.s32.totalorder %s46, %s47
    %p56 = scmp.eq.s32.totalorder %s15, 0
    %p57 = por %p55, %p56
    %p58 = scmp.ne.s32.totalorder %s46, %s47
    %p59 = scmp.eq.s32.totalorder %s16, 1
    %p60 = por %p58, %p59
    %p62 = scmp.ne.s32.totalorder %s47, %s61
    %p63 = scmp.eq.s32.totalorder %s16, 0
    %p64 = por %p62, %p63
    %s66 = sadd.s32 %s65, 1
    %p69 = scmp.eq.s32.totalorder %s10, 1
    %p70 = scmp.ne.s32.totalorder %s65, %s67
    %p71 = scmp.eq.s32.totalorder %s10, 0
    %p72 = por %p70, %p71
    %p73 = scmp.ne.s32.totalorder %s65, %s67
    %p74 = scmp.eq.s32.totalorder %s15, 1
    %p75 = por %p73, %p74
    %p76 = scmp.ne.s32.totalorder %s67, %s68
    %p77 = scmp.eq.s32.totalorder %s15, 0
    %p78 = por %p76, %p77
    %p79 = scmp.ne.s32.totalorder %s67, %s68
    %p80 = scmp.eq.s32.totalorder %s16, 1
    %p81 = por %p79, %p80
    %p83 = scmp.ne.s32.totalorder %s68, %s82
    %p84 = scmp.eq.s32.totalorder %s16, 0
    %p85 = por %p83, %p84
    %s86 = ssub.s32 %s10, %s17
    %p87 = scmp.eq.s32.totalorder %s86, 0
    %s89 = sadd.s32 %s88, 1
    %s90 = scalar_select %p87, %s88, %s89
    %p93 = pneg %p87
    %p94 = scmp.eq.s32.totalorder %s10, 1
    %p95 = por %p93, %p94
    %p96 = scmp.ne.s32.totalorder %s88, %s91
    %p97 = scmp.eq.s32.totalorder %s10, 0
    %p98 = por %p96, %p97
    %p99 = scmp.ne.s32.totalorder %s88, %s91
    %p100 = scmp.eq.s32.totalorder %s15, 1
    %p101 = por %p99, %p100
    %p102 = scmp.ne.s32.totalorder %s91, %s92
    %p103 = scmp.eq.s32.totalorder %s15, 0
    %p104 = por %p102, %p103
    %p105 = scmp.ne.s32.totalorder %s91, %s92
    %p106 = scmp.eq.s32.totalorder %s16, 1
    %p107 = por %p105, %p106
    %p109 = scmp.ne.s32.totalorder %s92, %s108
    %p110 = scmp.eq.s32.totalorder %s16, 0
    %p111 = por %p109, %p110
    %s112 = ssub.s32 %s10, %s17
    %p113 = scmp.eq.s32.totalorder %s112, 0
    %s115 = sadd.s32 %s114, 1
    %s116 = scalar_select %p113, %s114, %s115
    %p119 = pneg %p113
    %p120 = scmp.eq.s32.totalorder %s10, 1
    %p121 = por %p119, %p120
    %p122 = scmp.ne.s32.totalorder %s114, %s117
    %p123 = scmp.eq.s32.totalorder %s10, 0
    %p124 = por %p122, %p123
    %p125 = scmp.ne.s32.totalorder %s114, %s117
    %p126 = scmp.eq.s32.totalorder %s15, 1
    %p127 = por %p125, %p126
    %p128 = scmp.ne.s32.totalorder %s117, %s118
    %p129 = scmp.eq.s32.totalorder %s15, 0
    %p130 = por %p128, %p129
    %p131 = scmp.ne.s32.totalorder %s117, %s118
    %p132 = scmp.eq.s32.totalorder %s16, 1
    %p133 = por %p131, %p132
    %p135 = scmp.ne.s32.totalorder %s118, %s134
    %p136 = scmp.eq.s32.totalorder %s16, 0
    %p137 = por %p135, %p136
    %p138 = scmp.le.s32.totalorder 1, %s10
    %p139 = scmp.lt.s32.totalorder %s10, 3
    %p140 = pnand %p138, %p139
    %p141 = pneg %p140
    // Predicated region
    $region9: #{basic_block_forward.5} parent=5 // pred_check
      _
    $region10: #{basic_block_forward.5} parent=5 // pred_check_branch
      %143 = sbr.rel (%p140) target = $region12
    $region11: #{basic_block_forward.5} parent=5 // pred_region
      %s144 = ssub.s32 %s10, 1
      // Predicated region
      $region13: #{basic_block_forward.5} parent=11 // pred_check
        %p145 = pneg %p57
      $region14: #{basic_block_forward.5} parent=11 // pred_check_branch
        %147 = sbr.rel (%p145) target = $region16
      $region15: #{basic_block_forward.5} parent=11 // pred_region
        _
      $region16: #{basic_block_forward.5} parent=11 // pred_fallthru
        _
      // Predicated region
      $region17: #{basic_block_forward.5} parent=11 // pred_check
        %p148 = pneg %p78
      $region18: #{basic_block_forward.5} parent=11 // pred_check_branch
        %150 = sbr.rel (%p148) target = $region20
      $region19: #{basic_block_forward.5} parent=11 // pred_region
        _
      $region20: #{basic_block_forward.5} parent=11 // pred_fallthru
        _
    $region12: #{basic_block_forward.5} parent=5 // pred_fallthru
      _
    %p151 = scmp.lt.s32.totalorder %s10, 2
    // Predicated region
    $region21: #{basic_block_forward.5} parent=5 // pred_check
      %p152 = pneg %p151
    $region22: #{basic_block_forward.5} parent=5 // pred_check_branch
      %154 = sbr.rel (%p152) target = $region24
    $region23: #{basic_block_forward.5} parent=5 // pred_region
      // Predicated region
      $region25: #{basic_block_forward.5} parent=23 // pred_check
        %p155 = pneg %p30
      $region26: #{basic_block_forward.5} parent=23 // pred_check_branch
        %157 = sbr.rel (%p155) target = $region28
      $region27: #{basic_block_forward.5} parent=23 // pred_region
        %p158 = scmp.lt.s32.totalorder %s10, 1
        %s159 = scalar_select %p158, %s10, 1
        %s160 = smul.addr %s159, 32
        %s161 = smul.addr %s160, 4
        %s162 = scalar_lea.vmem %s0, %s161
      $region28: #{basic_block_forward.5} parent=23 // pred_fallthru
        _
      // Predicated region
      $region29: #{basic_block_forward.5} parent=23 // pred_check
        %p163 = pneg %p98
      $region30: #{basic_block_forward.5} parent=23 // pred_check_branch
        %165 = sbr.rel (%p163) target = $region32
      $region31: #{basic_block_forward.5} parent=23 // pred_region
        %p166 = scmp.lt.s32.totalorder %s10, 1
        %s167 = scalar_select %p166, %s10, 1
        %s168 = smul.addr %s167, 2
        %s169 = smul.addr %s168, 4
        %s170 = scalar_lea.vmem %s3, %s169
      $region32: #{basic_block_forward.5} parent=23 // pred_fallthru
        _
    $region24: #{basic_block_forward.5} parent=5 // pred_fallthru
      _
    %p171 = scmp.le.s32.totalorder 1, %s10
    %p172 = scmp.lt.s32.totalorder %s10, 3
    %p173 = pnand %p171, %p172
    %p174 = pneg %p173
    // Predicated region
    $region33: #{basic_block_forward.5} parent=5 // pred_check
      _
    $region34: #{basic_block_forward.5} parent=5 // pred_check_branch
      %176 = sbr.rel (%p173) target = $region36
    $region35: #{basic_block_forward.5} parent=5 // pred_region
      %s177 = ssub.s32 %s10, 1
      %p178 = scmp.lt.s32.totalorder %s15, 1
      %s179 = scalar_select %p178, %s15, 1
      %s180 = smul.addr %s179, 32
      %s181 = smul.addr %s180, 4
      %s182 = scalar_lea.vmem %s0, %s181
      %p183 = pneg %p36
      %p184 = pneg %p33
      %p185 = pneg %p57
      %p186 = pneg %p54
      %p187 = pneg %p78
      %p188 = pneg %p75
      %p189 = scmp.lt.s32.totalorder %s15, 1
      %s190 = scalar_select %p189, %s15, 1
      %s191 = smul.addr %s190, 2
      %s192 = smul.addr %s191, 4
      %s193 = scalar_lea.vmem %s3, %s192
      %p194 = pneg %p104
      %p195 = pneg %p101
      %p196 = pneg %p130
      %p197 = pneg %p127
      %p198 = scmp.lt.s32.totalorder %s15, 1
      %s199 = scalar_select %p198, %s15, 1
      %s200 = smul.addr %s199, 2
      %s201 = smul.addr %s200, 4
      %s202 = scalar_lea.vmem %s4, %s201
      %p203 = scmp.lt.s32.totalorder %s15, 1
      %s204 = scalar_select %p203, %s15, 1
      %s205 = smul.addr %s204, 32
      %s206 = smul.addr %s205, 4
      %s207 = scalar_lea.vmem %s0, %s206
      %p208 = scmp.lt.s32.totalorder %s15, 1
      %s209 = scalar_select %p208, %s15, 1
      %s210 = smul.addr %s209, 2
      %s211 = smul.addr %s210, 4
      %s212 = scalar_lea.vmem %s3, %s211
      %p213 = scmp.lt.s32.totalorder %s15, 1
      %s214 = scalar_select %p213, %s15, 1
      %s215 = smul.addr %s214, 2
      %s216 = smul.addr %s215, 4
      %s217 = scalar_lea.vmem %s4, %s216
      %v218 = vld [vmem:[%s207] sm:$0xf]
      %v219 = vld [vmem:[%s207 + $0x4] sm:$0xf]
      %v220 = vld [vmem:[%s207 + $0x8] sm:$0xf]
      %v221 = vld [vmem:[%s207 + $0xc] sm:$0xf]
      %v222 = vld [vmem:[%s207 + $0x10] sm:$0xf]
      %v223 = vld [vmem:[%s207 + $0x14] sm:$0xf]
      %v224 = vld [vmem:[%s207 + $0x18] sm:$0xf]
      %v225 = vld [vmem:[%s207 + $0x1c] sm:$0xf]
      %v226 = vld [vmem:[%s207 + $0x20] sm:$0xf]
      %v227 = vld [vmem:[%s207 + $0x24] sm:$0xf]
      %v228 = vld [vmem:[%s207 + $0x28] sm:$0xf]
      %v229 = vld [vmem:[%s207 + $0x2c] sm:$0xf]
      %v230 = vld [vmem:[%s207 + $0x30] sm:$0xf]
      %v231 = vld [vmem:[%s207 + $0x34] sm:$0xf]
      %v232 = vld [vmem:[%s207 + $0x38] sm:$0xf]
      %v233 = vld [vmem:[%s207 + $0x3c] sm:$0xf]
      %v234 = vld [vmem:[%s207 + $0x40] sm:$0xf]
      %v235 = vld [vmem:[%s207 + $0x44] sm:$0xf]
      %v236 = vld [vmem:[%s207 + $0x48] sm:$0xf]
      %v237 = vld [vmem:[%s207 + $0x4c] sm:$0xf]
      %v238 = vld [vmem:[%s207 + $0x50] sm:$0xf]
      %v239 = vld [vmem:[%s207 + $0x54] sm:$0xf]
      %v240 = vld [vmem:[%s207 + $0x58] sm:$0xf]
      %v241 = vld [vmem:[%s207 + $0x5c] sm:$0xf]
      %v242 = vld [vmem:[%s207 + $0x60] sm:$0xf]
      %v243 = vld [vmem:[%s207 + $0x64] sm:$0xf]
      %v244 = vld [vmem:[%s207 + $0x68] sm:$0xf]
      %v245 = vld [vmem:[%s207 + $0x6c] sm:$0xf]
      %v246 = vld [vmem:[%s207 + $0x70] sm:$0xf]
      %v247 = vld [vmem:[%s207 + $0x74] sm:$0xf]
      %v248 = vld [vmem:[%s207 + $0x78] sm:$0xf]
      %v249 = vld [vmem:[%s207 + $0x7c] sm:$0xf]
      %v250 = vunpack.c.l.bf16 %v218
      %v251 = vunpack.c.l.bf16 %v219
      %v252 = vunpack.c.l.bf16 %v220
      %v253 = vunpack.c.l.bf16 %v221
      %v254 = vunpack.c.l.bf16 %v222
      %v255 = vunpack.c.l.bf16 %v223
      %v256 = vunpack.c.l.bf16 %v224
      %v257 = vunpack.c.l.bf16 %v225
      %v258 = vunpack.c.l.bf16 %v226
      %v259 = vunpack.c.l.bf16 %v227
      %v260 = vunpack.c.l.bf16 %v228
      %v261 = vunpack.c.l.bf16 %v229
      %v262 = vunpack.c.l.bf16 %v230
      %v263 = vunpack.c.l.bf16 %v231
      %v264 = vunpack.c.l.bf16 %v232
      %v265 = vunpack.c.l.bf16 %v233
      %v266 = vunpack.c.l.bf16 %v234
      %v267 = vunpack.c.l.bf16 %v235
      %v268 = vunpack.c.l.bf16 %v236
      %v269 = vunpack.c.l.bf16 %v237
      %v270 = vunpack.c.l.bf16 %v238
      %v271 = vunpack.c.l.bf16 %v239
      %v272 = vunpack.c.l.bf16 %v240
      %v273 = vunpack.c.l.bf16 %v241
      %v274 = vunpack.c.l.bf16 %v242
      %v275 = vunpack.c.l.bf16 %v243
      %v276 = vunpack.c.l.bf16 %v244
      %v277 = vunpack.c.l.bf16 %v245
      %v278 = vunpack.c.l.bf16 %v246
      %v279 = vunpack.c.l.bf16 %v247
      %v280 = vunpack.c.l.bf16 %v248
      %v281 = vunpack.c.l.bf16 %v249
      %282 = vxpose.xlu0.b32.start [1/16] %v250, 128
      %283 = vxpose.xlu0.b32.cont [2/16] %v251, 128
      %284 = vxpose.xlu0.b32.cont [3/16] %v252, 128
      %285 = vxpose.xlu0.b32.cont [4/16] %v253, 128
      %286 = vxpose.xlu0.b32.cont [5/16] %v254, 128
      %287 = vxpose.xlu0.b32.cont [6/16] %v255, 128
      %288 = vxpose.xlu0.b32.cont [7/16] %v256, 128
      %289 = vxpose.xlu0.b32.cont [8/16] %v257, 128
      %290 = vxpose.xlu0.b32.cont [9/16] %v258, 128
      %291 = vxpose.xlu0.b32.cont [10/16] %v259, 128
      %292 = vxpose.xlu0.b32.cont [11/16] %v260, 128
      %293 = vxpose.xlu0.b32.cont [12/16] %v261, 128
      %294 = vxpose.xlu0.b32.cont [13/16] %v262, 128
      %295 = vxpose.xlu0.b32.cont [14/16] %v263, 128
      %296 = vxpose.xlu0.b32.cont [15/16] %v264, 128
      %297 = vxpose.xlu0.b32.end [16/16] %v265, 128
      %v298 = vpop.trf.xlu0
      %v299 = vpop.trf.xlu0
      %v300 = vpop.trf.xlu0
      %v301 = vpop.trf.xlu0
      %v302 = vpop.trf.xlu0
      %v303 = vpop.trf.xlu0
      %v304 = vpop.trf.xlu0
      %v305 = vpop.trf.xlu0
      %v306 = vpop.trf.xlu0
      %v307 = vpop.trf.xlu0
      %v308 = vpop.trf.xlu0
      %v309 = vpop.trf.xlu0
      %v310 = vpop.trf.xlu0
      %v311 = vpop.trf.xlu0
      %v312 = vpop.trf.xlu0
      %v313 = vpop.trf.xlu0
      %314 = vxpose.xlu0.b32.start [1/16] %v266, 128
      %315 = vxpose.xlu0.b32.cont [2/16] %v267, 128
      %316 = vxpose.xlu0.b32.cont [3/16] %v268, 128
      %317 = vxpose.xlu0.b32.cont [4/16] %v269, 128
      %318 = vxpose.xlu0.b32.cont [5/16] %v270, 128
      %319 = vxpose.xlu0.b32.cont [6/16] %v271, 128
      %320 = vxpose.xlu0.b32.cont [7/16] %v272, 128
      %321 = vxpose.xlu0.b32.cont [8/16] %v273, 128
      %322 = vxpose.xlu0.b32.cont [9/16] %v274, 128
      %323 = vxpose.xlu0.b32.cont [10/16] %v275, 128
      %324 = vxpose.xlu0.b32.cont [11/16] %v276, 128
      %325 = vxpose.xlu0.b32.cont [12/16] %v277, 128
      %326 = vxpose.xlu0.b32.cont [13/16] %v278, 128
      %327 = vxpose.xlu0.b32.cont [14/16] %v279, 128
      %328 = vxpose.xlu0.b32.cont [15/16] %v280, 128
      %329 = vxpose.xlu0.b32.end [16/16] %v281, 128
      %v330 = vpop.trf.xlu0
      %v331 = vpop.trf.xlu0
      %v332 = vpop.trf.xlu0
      %v333 = vpop.trf.xlu0
      %v334 = vpop.trf.xlu0
      %v335 = vpop.trf.xlu0
      %v336 = vpop.trf.xlu0
      %v337 = vpop.trf.xlu0
      %v338 = vpop.trf.xlu0
      %v339 = vpop.trf.xlu0
      %v340 = vpop.trf.xlu0
      %v341 = vpop.trf.xlu0
      %v342 = vpop.trf.xlu0
      %v343 = vpop.trf.xlu0
      %v344 = vpop.trf.xlu0
      %v345 = vpop.trf.xlu0
      %v346 = vld [vmem:[%s1] sm:$0xf]
      %348 = vset.pattern.permute.xlu0 0
      %349 = vperm.xlu0 %348, %v346
      %v350 = vpop.permute.xlu0 %349
      %v352 = vmul.f32 %v298, %v350
      %v353 = vmul.f32 %v330, %v350
      %v354 = vld [vmem:[%s2] sm:$0xf]
      %356 = vset.pattern.permute.xlu0 0
      %357 = vperm.xlu0 %356, %v354
      %v358 = vpop.permute.xlu0 %357
      %v360 = vadd.f32 %v352, %v358
      %v361 = vadd.f32 %v353, %v358
      %v362 = vld [vmem:[%s212] sm:$0xff]
      %v364 = vcombine.high %v362, %v362
      %v366 = vadd.f32 %v360, %v362
      %v367 = vadd.f32 %v361, %v364
      %v368 = vmax.f32 %v366, 0.0
      %v369 = vmax.f32 %v367, 0.0
      %v372 = vcombine.low %v368, %v369
      %374 = vst [vmem:[%s217] sm:$0xff] %v372
      %p375 = scmp.lt.s32.totalorder %s15, 1
      %s376 = scalar_select %p375, %s15, 1
      %s377 = smul.addr %s376, 2
      %s378 = smul.addr %s377, 4
      %s379 = scalar_lea.vmem %s4, %s378
      // Predicated region
      $region37: #{basic_block_forward.5} parent=35 // pred_check
        %p380 = pneg %p127
      $region38: #{basic_block_forward.5} parent=35 // pred_check_branch
        %382 = sbr.rel (%p380) target = $region40
      $region39: #{basic_block_forward.5} parent=35 // pred_region
        _
      $region40: #{basic_block_forward.5} parent=35 // pred_fallthru
        _
    $region36: #{basic_block_forward.5} parent=5 // pred_fallthru
      _
    %p383 = scmp.le.s32.totalorder 2, %s10
    // Predicated region
    $region41: #{basic_block_forward.5} parent=5 // pred_check
      %p384 = pneg %p383
    $region42: #{basic_block_forward.5} parent=5 // pred_check_branch
      %386 = sbr.rel (%p384) target = $region44
    $region43: #{basic_block_forward.5} parent=5 // pred_region
      %s387 = ssub.s32 %s10, 2
      // Predicated region
      $region45: #{basic_block_forward.5} parent=43 // pred_check
        %p388 = pneg %p133
      $region46: #{basic_block_forward.5} parent=43 // pred_check_branch
        %390 = sbr.rel (%p388) target = $region48
      $region47: #{basic_block_forward.5} parent=43 // pred_region
        %p391 = scmp.lt.s32.totalorder %s16, 1
        %s392 = scalar_select %p391, %s16, 1
        %s393 = smul.addr %s392, 2
        %s394 = smul.addr %s393, 4
        %s395 = scalar_lea.vmem %s4, %s394
      $region48: #{basic_block_forward.5} parent=43 // pred_fallthru
        _
    $region44: #{basic_block_forward.5} parent=5 // pred_fallthru
      _
  $region6: #{basic_block_forward.5} parent=0 // loop_footer
    %s14 = sadd.s32 1, %s10
  $region7: #{basic_block_forward.5} parent=0 // loop_footer_branch
    %9 = sbr.rel target = $region3
  $region8: #{basic_block_forward.5} parent=0 // loop_exit
    _

// kernel: basic_block_forward.3
$region0: #{basic_block_forward.3}
  #allocation0 [shape = 'u32[]', space=smem, size = 0x4, offset = 0x4, fixed_abs, tag = 'smem constant byte address 0x4 - core index']
  #allocation1 [shape = 'u32[144,128]{1,0:T(1,128)}', space=vmem, size = 0x12000, scoped, tag = 'internal scratch']
  #allocation2 [shape = 'f32[18,18,4]{2,1,0:T(8,128)}', space=vmem, size = 0x36000, scoped, tag = 'scratch operand']
  %s0 = inlined_call_operand.vmem [shape: f32[2,4,256], index: 0, kind: input, shape index: {}]
  %s1 = inlined_call_operand.vmem [shape: f32[1,4], index: 1, kind: input, shape index: {}]
  %s2 = inlined_call_operand.vmem [shape: f32[1,4], index: 2, kind: input, shape index: {}]
  %s3 = inlined_call_operand.vmem [shape: bf16[36,4], index: 3, kind: input, shape index: {}]
  %s4 = inlined_call_operand.vmem [shape: bf16[2,256,4], index: 4, kind: output, shape index: {0}]
  %s5 = inlined_call_operand.vmem [shape: f32[2,2,4], index: 5, kind: output, shape index: {1}]
  %6 = xla_tuple %s4, %s5
  %s7 = sld [smem:[#allocation0]]
  $region57: #{basic_block_forward.3} parent=0
    _
  %s9 = ssub.s32 1, %s7
  %s10 = scalar_select 0, %s9, %s7
  loop: start=0, step=1, limit=4
  $region2: #{basic_block_forward.3} parent=0 // loop_pre_header
    _
  $region3: #{basic_block_forward.3} parent=0 // loop_header
    %s12 = sphi 0, %s16
    %p13 = scmp.ge.s32.totalorder %s12, 4
    %s22 = sphi 0, %s24
    %s25 = sphi 0, %s22
    %s26 = sphi 0, %s25
    %s42 = sphi 0, %s26
    %s46 = sphi 0, %s46
    %s48 = sphi 0, %s46
    %s49 = sphi 0, %s48
    %s63 = sphi 0, %s49
    %s67 = sphi 0, %s67
    %s69 = sphi 0, %s67
    %s70 = sphi 0, %s69
    %s84 = sphi 0, %s70
    %s88 = sphi 0, %s88
    %s90 = sphi 0, %s88
    %s91 = sphi 0, %s90
    %s105 = sphi 0, %s91
    %s111 = sphi 0, %s113
    %s114 = sphi 0, %s111
    %s115 = sphi 0, %s114
    %s131 = sphi 0, %s115
    %s137 = sphi 0, %s139
    %s140 = sphi 0, %s137
    %s141 = sphi 0, %s140
    %s157 = sphi 0, %s141
  $region4: #{basic_block_forward.3} parent=0 // loop_header_branch
    %15 = sbr.rel (%p13) target = $region8
  $region5: #{basic_block_forward.3} parent=0 // loop_body
    %s17 = ssub.s32 %s12, 1
    %s18 = ssub.s32 %s12, 2
    %s19 = sadd.s32 %s12, 1
    %s20 = ssub.s32 %s12, %s19
    %p21 = scmp.eq.s32.totalorder %s20, 0
    %s23 = sadd.s32 %s22, 1
    %s24 = scalar_select %p21, %s22, %s23
    %p27 = pneg %p21
    %p28 = scmp.eq.s32.totalorder %s12, 1
    %p29 = por %p27, %p28
    %p30 = scmp.ne.s32.totalorder %s22, %s25
    %p31 = scmp.eq.s32.totalorder %s12, 0
    %p32 = por %p30, %p31
    %p33 = scmp.ne.s32.totalorder %s22, %s25
    %p34 = scmp.eq.s32.totalorder %s17, 1
    %p35 = por %p33, %p34
    %p36 = scmp.ne.s32.totalorder %s25, %s26
    %p37 = scmp.eq.s32.totalorder %s17, 0
    %p38 = por %p36, %p37
    %p39 = scmp.ne.s32.totalorder %s25, %s26
    %p40 = scmp.eq.s32.totalorder %s18, 1
    %p41 = por %p39, %p40
    %p43 = scmp.ne.s32.totalorder %s26, %s42
    %p44 = scmp.eq.s32.totalorder %s18, 0
    %p45 = por %p43, %p44
    %s47 = sadd.s32 %s46, 1
    %p50 = scmp.eq.s32.totalorder %s12, 1
    %p51 = scmp.ne.s32.totalorder %s46, %s48
    %p52 = scmp.eq.s32.totalorder %s12, 0
    %p53 = por %p51, %p52
    %p54 = scmp.ne.s32.totalorder %s46, %s48
    %p55 = scmp.eq.s32.totalorder %s17, 1
    %p56 = por %p54, %p55
    %p57 = scmp.ne.s32.totalorder %s48, %s49
    %p58 = scmp.eq.s32.totalorder %s17, 0
    %p59 = por %p57, %p58
    %p60 = scmp.ne.s32.totalorder %s48, %s49
    %p61 = scmp.eq.s32.totalorder %s18, 1
    %p62 = por %p60, %p61
    %p64 = scmp.ne.s32.totalorder %s49, %s63
    %p65 = scmp.eq.s32.totalorder %s18, 0
    %p66 = por %p64, %p65
    %s68 = sadd.s32 %s67, 1
    %p71 = scmp.eq.s32.totalorder %s12, 1
    %p72 = scmp.ne.s32.totalorder %s67, %s69
    %p73 = scmp.eq.s32.totalorder %s12, 0
    %p74 = por %p72, %p73
    %p75 = scmp.ne.s32.totalorder %s67, %s69
    %p76 = scmp.eq.s32.totalorder %s17, 1
    %p77 = por %p75, %p76
    %p78 = scmp.ne.s32.totalorder %s69, %s70
    %p79 = scmp.eq.s32.totalorder %s17, 0
    %p80 = por %p78, %p79
    %p81 = scmp.ne.s32.totalorder %s69, %s70
    %p82 = scmp.eq.s32.totalorder %s18, 1
    %p83 = por %p81, %p82
    %p85 = scmp.ne.s32.totalorder %s70, %s84
    %p86 = scmp.eq.s32.totalorder %s18, 0
    %p87 = por %p85, %p86
    %s89 = sadd.s32 %s88, 1
    %p92 = scmp.eq.s32.totalorder %s12, 1
    %p93 = scmp.ne.s32.totalorder %s88, %s90
    %p94 = scmp.eq.s32.totalorder %s12, 0
    %p95 = por %p93, %p94
    %p96 = scmp.ne.s32.totalorder %s88, %s90
    %p97 = scmp.eq.s32.totalorder %s17, 1
    %p98 = por %p96, %p97
    %p99 = scmp.ne.s32.totalorder %s90, %s91
    %p100 = scmp.eq.s32.totalorder %s17, 0
    %p101 = por %p99, %p100
    %p102 = scmp.ne.s32.totalorder %s90, %s91
    %p103 = scmp.eq.s32.totalorder %s18, 1
    %p104 = por %p102, %p103
    %p106 = scmp.ne.s32.totalorder %s91, %s105
    %p107 = scmp.eq.s32.totalorder %s18, 0
    %p108 = por %p106, %p107
    %s109 = ssub.s32 %s12, %s19
    %p110 = scmp.eq.s32.totalorder %s109, 0
    %s112 = sadd.s32 %s111, 1
    %s113 = scalar_select %p110, %s111, %s112
    %p116 = pneg %p110
    %p117 = scmp.eq.s32.totalorder %s12, 1
    %p118 = por %p116, %p117
    %p119 = scmp.ne.s32.totalorder %s111, %s114
    %p120 = scmp.eq.s32.totalorder %s12, 0
    %p121 = por %p119, %p120
    %p122 = scmp.ne.s32.totalorder %s111, %s114
    %p123 = scmp.eq.s32.totalorder %s17, 1
    %p124 = por %p122, %p123
    %p125 = scmp.ne.s32.totalorder %s114, %s115
    %p126 = scmp.eq.s32.totalorder %s17, 0
    %p127 = por %p125, %p126
    %p128 = scmp.ne.s32.totalorder %s114, %s115
    %p129 = scmp.eq.s32.totalorder %s18, 1
    %p130 = por %p128, %p129
    %p132 = scmp.ne.s32.totalorder %s115, %s131
    %p133 = scmp.eq.s32.totalorder %s18, 0
    %p134 = por %p132, %p133
    %s135 = ssub.s32 %s12, %s19
    %p136 = scmp.eq.s32.totalorder %s135, 0
    %s138 = sadd.s32 %s137, 1
    %s139 = scalar_select %p136, %s137, %s138
    %p142 = pneg %p136
    %p143 = scmp.eq.s32.totalorder %s12, 1
    %p144 = por %p142, %p143
    %p145 = scmp.ne.s32.totalorder %s137, %s140
    %p146 = scmp.eq.s32.totalorder %s12, 0
    %p147 = por %p145, %p146
    %p148 = scmp.ne.s32.totalorder %s137, %s140
    %p149 = scmp.eq.s32.totalorder %s17, 1
    %p150 = por %p148, %p149
    %p151 = scmp.ne.s32.totalorder %s140, %s141
    %p152 = scmp.eq.s32.totalorder %s17, 0
    %p153 = por %p151, %p152
    %p154 = scmp.ne.s32.totalorder %s140, %s141
    %p155 = scmp.eq.s32.totalorder %s18, 1
    %p156 = por %p154, %p155
    %p158 = scmp.ne.s32.totalorder %s141, %s157
    %p159 = scmp.eq.s32.totalorder %s18, 0
    %p160 = por %p158, %p159
    %p161 = scmp.le.s32.totalorder 1, %s12
    %p162 = scmp.lt.s32.totalorder %s12, 3
    %p163 = pnand %p161, %p162
    %p164 = pneg %p163
    // Predicated region
    $region9: #{basic_block_forward.3} parent=5 // pred_check
      _
    $region10: #{basic_block_forward.3} parent=5 // pred_check_branch
      %166 = sbr.rel (%p163) target = $region12
    $region11: #{basic_block_forward.3} parent=5 // pred_region
      %s167 = ssub.s32 %s12, 1
      // Predicated region
      $region13: #{basic_block_forward.3} parent=11 // pred_check
        %p168 = pneg %p59
      $region14: #{basic_block_forward.3} parent=11 // pred_check_branch
        %170 = sbr.rel (%p168) target = $region16
      $region15: #{basic_block_forward.3} parent=11 // pred_region
        _
      $region16: #{basic_block_forward.3} parent=11 // pred_fallthru
        _
      // Predicated region
      $region17: #{basic_block_forward.3} parent=11 // pred_check
        %p171 = pneg %p80
      $region18: #{basic_block_forward.3} parent=11 // pred_check_branch
        %173 = sbr.rel (%p171) target = $region20
      $region19: #{basic_block_forward.3} parent=11 // pred_region
        _
      $region20: #{basic_block_forward.3} parent=11 // pred_fallthru
        _
      // Predicated region
      $region21: #{basic_block_forward.3} parent=11 // pred_check
        %p174 = pneg %p101
      $region22: #{basic_block_forward.3} parent=11 // pred_check_branch
        %176 = sbr.rel (%p174) target = $region24
      $region23: #{basic_block_forward.3} parent=11 // pred_region
        _
      $region24: #{basic_block_forward.3} parent=11 // pred_fallthru
        _
    $region12: #{basic_block_forward.3} parent=5 // pred_fallthru
      _
    %p177 = scmp.lt.s32.totalorder %s12, 2
    // Predicated region
    $region25: #{basic_block_forward.3} parent=5 // pred_check
      %p178 = pneg %p177
    $region26: #{basic_block_forward.3} parent=5 // pred_check_branch
      %180 = sbr.rel (%p178) target = $region28
    $region27: #{basic_block_forward.3} parent=5 // pred_region
      // Predicated region
      $region29: #{basic_block_forward.3} parent=27 // pred_check
        %p181 = pneg %p32
      $region30: #{basic_block_forward.3} parent=27 // pred_check_branch
        %183 = sbr.rel (%p181) target = $region32
      $region31: #{basic_block_forward.3} parent=27 // pred_region
        %p184 = scmp.lt.s32.totalorder %s12, 1
        %s185 = scalar_select %p184, %s12, 1
        %s186 = smul.addr %s185, 2
        %s187 = smul.addr %s186, 4
        %s188 = scalar_lea.vmem %s0, %s187
      $region32: #{basic_block_forward.3} parent=27 // pred_fallthru
        _
    $region28: #{basic_block_forward.3} parent=5 // pred_fallthru
      _
    %p189 = scmp.le.s32.totalorder 1, %s12
    %p190 = scmp.lt.s32.totalorder %s12, 3
    %p191 = pnand %p189, %p190
    %p192 = pneg %p191
    // Predicated region
    $region33: #{basic_block_forward.3} parent=5 // pred_check
      _
    $region34: #{basic_block_forward.3} parent=5 // pred_check_branch
      %194 = sbr.rel (%p191) target = $region36
    $region35: #{basic_block_forward.3} parent=5 // pred_region
      %s195 = ssub.s32 %s12, 1
      %p196 = scmp.lt.s32.totalorder %s17, 1
      %s197 = scalar_select %p196, %s17, 1
      %s198 = smul.addr %s197, 2
      %s199 = smul.addr %s198, 4
      %s200 = scalar_lea.vmem %s0, %s199
      %p201 = pneg %p38
      %p202 = pneg %p35
      %p203 = pneg %p59
      %p204 = pneg %p56
      %p205 = pneg %p80
      %p206 = pneg %p77
      %p207 = pneg %p101
      %p208 = pneg %p98
      %p209 = pneg %p127
      %p210 = pneg %p124
      %p211 = scmp.lt.s32.totalorder %s17, 1
      %s212 = scalar_select %p211, %s17, 1
      %s213 = smul.addr %s212, 32
      %s214 = smul.addr %s213, 4
      %s215 = scalar_lea.vmem %s4, %s214
      %p216 = pneg %p153
      %p217 = pneg %p150
      %p218 = scmp.lt.s32.totalorder %s17, 1
      %s219 = scalar_select %p218, %s17, 1
      %s220 = smul.addr %s219, 2
      %s221 = scalar_lea.vmem %s5, %s220
      %p222 = scmp.lt.s32.totalorder %s17, 1
      %s223 = scalar_select %p222, %s17, 1
      %s224 = smul.addr %s223, 2
      %s225 = smul.addr %s224, 4
      %s226 = scalar_lea.vmem %s0, %s225
      %p227 = scmp.lt.s32.totalorder %s17, 1
      %s228 = scalar_select %p227, %s17, 1
      %s229 = smul.addr %s228, 32
      %s230 = smul.addr %s229, 4
      %s231 = scalar_lea.vmem %s4, %s230
      %p232 = scmp.lt.s32.totalorder %s17, 1
      %s233 = scalar_select %p232, %s17, 1
      %s234 = smul.addr %s233, 2
      %s235 = scalar_lea.vmem %s5, %s234
      %v237 = vld [vmem:[%s226] sm:$0xff]
      %v239 = vcombine.high %v237, %v237
      %241 = vxpose.xlu0.b32.start [1/16] %v237, 128
      %242 = vxpose.xlu0.b32.cont [2/16] 0.0, 128
      %243 = vxpose.xlu0.b32.cont [3/16] 0.0, 128
      %244 = vxpose.xlu0.b32.cont [4/16] 0.0, 128
      %245 = vxpose.xlu0.b32.cont [5/16] 0.0, 128
      %246 = vxpose.xlu0.b32.cont [6/16] 0.0, 128
      %247 = vxpose.xlu0.b32.cont [7/16] 0.0, 128
      %248 = vxpose.xlu0.b32.cont [8/16] 0.0, 128
      %249 = vxpose.xlu0.b32.cont [9/16] 0.0, 128
      %250 = vxpose.xlu0.b32.cont [10/16] 0.0, 128
      %251 = vxpose.xlu0.b32.cont [11/16] 0.0, 128
      %252 = vxpose.xlu0.b32.cont [12/16] 0.0, 128
      %253 = vxpose.xlu0.b32.cont [13/16] 0.0, 128
      %254 = vxpose.xlu0.b32.cont [14/16] 0.0, 128
      %255 = vxpose.xlu0.b32.cont [15/16] 0.0, 128
      %256 = vxpose.xlu0.b32.end [16/16] 0.0, 128
      %v257 = vpop.trf.xlu0
      %v258 = vpop.trf.xlu0
      %v259 = vpop.trf.xlu0
      %v260 = vpop.trf.xlu0
      %v261 = vpop.trf.xlu0
      %v262 = vpop.trf.xlu0
      %v263 = vpop.trf.xlu0
      %v264 = vpop.trf.xlu0
      %v265 = vpop.trf.xlu0
      %v266 = vpop.trf.xlu0
      %v267 = vpop.trf.xlu0
      %v268 = vpop.trf.xlu0
      %v269 = vpop.trf.xlu0
      %v270 = vpop.trf.xlu0
      %v271 = vpop.trf.xlu0
      %v272 = vpop.trf.xlu0
      %273 = vxpose.xlu0.b32.start [1/16] %v239, 128
      %274 = vxpose.xlu0.b32.cont [2/16] 0.0, 128
      %275 = vxpose.xlu0.b32.cont [3/16] 0.0, 128
      %276 = vxpose.xlu0.b32.cont [4/16] 0.0, 128
      %277 = vxpose.xlu0.b32.cont [5/16] 0.0, 128
      %278 = vxpose.xlu0.b32.cont [6/16] 0.0, 128
      %279 = vxpose.xlu0.b32.cont [7/16] 0.0, 128
      %280 = vxpose.xlu0.b32.cont [8/16] 0.0, 128
      %281 = vxpose.xlu0.b32.cont [9/16] 0.0, 128
      %282 = vxpose.xlu0.b32.cont [10/16] 0.0, 128
      %283 = vxpose.xlu0.b32.cont [11/16] 0.0, 128
      %284 = vxpose.xlu0.b32.cont [12/16] 0.0, 128
      %285 = vxpose.xlu0.b32.cont [13/16] 0.0, 128
      %286 = vxpose.xlu0.b32.cont [14/16] 0.0, 128
      %287 = vxpose.xlu0.b32.cont [15/16] 0.0, 128
      %288 = vxpose.xlu0.b32.end [16/16] 0.0, 128
      %v289 = vpop.trf.xlu0
      %v290 = vpop.trf.xlu0
      %v291 = vpop.trf.xlu0
      %v292 = vpop.trf.xlu0
      %v293 = vpop.trf.xlu0
      %v294 = vpop.trf.xlu0
      %v295 = vpop.trf.xlu0
      %v296 = vpop.trf.xlu0
      %v297 = vpop.trf.xlu0
      %v298 = vpop.trf.xlu0
      %v299 = vpop.trf.xlu0
      %v300 = vpop.trf.xlu0
      %v301 = vpop.trf.xlu0
      %v302 = vpop.trf.xlu0
      %v303 = vpop.trf.xlu0
      %v304 = vpop.trf.xlu0
      %v305 = vld [vmem:[%s1] sm:$0x1]
      %v307 = vlaneseq
      %v308 = vshrl.u32 %v307, 7
      %v309 = vsub.s32 0, %v308
      %v310 = vrot.slane %v305, %v309
      %v312 = vmul.f32 %v257, %v310
      %v313 = vmul.f32 %v258, %v310
      %v314 = vmul.f32 %v259, %v310
      %v315 = vmul.f32 %v260, %v310
      %v316 = vmul.f32 %v261, %v310
      %v317 = vmul.f32 %v262, %v310
      %v318 = vmul.f32 %v263, %v310
      %v319 = vmul.f32 %v264, %v310
      %v320 = vmul.f32 %v265, %v310
      %v321 = vmul.f32 %v266, %v310
      %v322 = vmul.f32 %v267, %v310
      %v323 = vmul.f32 %v268, %v310
      %v324 = vmul.f32 %v269, %v310
      %v325 = vmul.f32 %v270, %v310
      %v326 = vmul.f32 %v271, %v310
      %v327 = vmul.f32 %v272, %v310
      %v328 = vmul.f32 %v289, %v310
      %v329 = vmul.f32 %v290, %v310
      %v330 = vmul.f32 %v291, %v310
      %v331 = vmul.f32 %v292, %v310
      %v332 = vmul.f32 %v293, %v310
      %v333 = vmul.f32 %v294, %v310
      %v334 = vmul.f32 %v295, %v310
      %v335 = vmul.f32 %v296, %v310
      %v336 = vmul.f32 %v297, %v310
      %v337 = vmul.f32 %v298, %v310
      %v338 = vmul.f32 %v299, %v310
      %v339 = vmul.f32 %v300, %v310
      %v340 = vmul.f32 %v301, %v310
      %v341 = vmul.f32 %v302, %v310
      %v342 = vmul.f32 %v303, %v310
      %v343 = vmul.f32 %v304, %v310
      %v344 = vld [vmem:[%s2] sm:$0x1]
      %v346 = vlaneseq
      %v347 = vshrl.u32 %v346, 7
      %v348 = vsub.s32 0, %v347
      %v349 = vrot.slane %v344, %v348
      %v351 = vadd.f32 %v312, %v349
      %v352 = vadd.f32 %v313, %v349
      %v353 = vadd.f32 %v314, %v349
      %v354 = vadd.f32 %v315, %v349
      %v355 = vadd.f32 %v316, %v349
      %v356 = vadd.f32 %v317, %v349
      %v357 = vadd.f32 %v318, %v349
      %v358 = vadd.f32 %v319, %v349
      %v359 = vadd.f32 %v320, %v349
      %v360 = vadd.f32 %v321, %v349
      %v361 = vadd.f32 %v322, %v349
      %v362 = vadd.f32 %v323, %v349
      %v363 = vadd.f32 %v324, %v349
      %v364 = vadd.f32 %v325, %v349
      %v365 = vadd.f32 %v326, %v349
      %v366 = vadd.f32 %v327, %v349
      %v367 = vadd.f32 %v328, %v349
      %v368 = vadd.f32 %v329, %v349
      %v369 = vadd.f32 %v330, %v349
      %v370 = vadd.f32 %v331, %v349
      %v371 = vadd.f32 %v332, %v349
      %v372 = vadd.f32 %v333, %v349
      %v373 = vadd.f32 %v334, %v349
      %v374 = vadd.f32 %v335, %v349
      %v375 = vadd.f32 %v336, %v349
      %v376 = vadd.f32 %v337, %v349
      %v377 = vadd.f32 %v338, %v349
      %v378 = vadd.f32 %v339, %v349
      %v379 = vadd.f32 %v340, %v349
      %v380 = vadd.f32 %v341, %v349
      %v381 = vadd.f32 %v342, %v349
      %v382 = vadd.f32 %v343, %v349
      %s383 = scalar_lea.vmem [#allocation2], 24
      %vm384 = vcmask 31744
      %385 = vst.msk [vmem:[%s383 + $0x1] sm:$0xff] %vm384, %v351
      %386 = vst.msk [vmem:[%s383 + $0x9] sm:$0xff] %vm384, %v352
      %387 = vst.msk [vmem:[%s383 + $0x19] sm:$0xff] %vm384, %v353
      %388 = vst.msk [vmem:[%s383 + $0x21] sm:$0xff] %vm384, %v354
      %389 = vst.msk [vmem:[%s383 + $0x31] sm:$0xff] %vm384, %v355
      %390 = vst.msk [vmem:[%s383 + $0x39] sm:$0xff] %vm384, %v356
      %391 = vst.msk [vmem:[%s383 + $0x49] sm:$0xff] %vm384, %v357
      %392 = vst.msk [vmem:[%s383 + $0x51] sm:$0xff] %vm384, %v358
      %393 = vst.msk [vmem:[%s383 + $0x61] sm:$0xff] %vm384, %v359
      %394 = vst.msk [vmem:[%s383 + $0x69] sm:$0xff] %vm384, %v360
      %395 = vst.msk [vmem:[%s383 + $0x79] sm:$0xff] %vm384, %v361
      %396 = vst.msk [vmem:[%s383 + $0x81] sm:$0xff] %vm384, %v362
      %397 = vst.msk [vmem:[%s383 + $0x91] sm:$0xff] %vm384, %v363
      %398 = vst.msk [vmem:[%s383 + $0x99] sm:$0xff] %vm384, %v364
      %399 = vst.msk [vmem:[%s383 + $0xa9] sm:$0xff] %vm384, %v365
      %400 = vst.msk [vmem:[%s383 + $0xb1] sm:$0xff] %vm384, %v366
      %401 = vst.msk [vmem:[%s383 + $0xc1] sm:$0xff] %vm384, %v367
      %402 = vst.msk [vmem:[%s383 + $0xc9] sm:$0xff] %vm384, %v368
      %403 = vst.msk [vmem:[%s383 + $0xd9] sm:$0xff] %vm384, %v369
      %404 = vst.msk [vmem:[%s383 + $0xe1] sm:$0xff] %vm384, %v370
      %405 = vst.msk [vmem:[%s383 + $0xf1] sm:$0xff] %vm384, %v371
      %406 = vst.msk [vmem:[%s383 + $0xf9] sm:$0xff] %vm384, %v372
      %407 = vst.msk [vmem:[%s383 + $0x109] sm:$0xff] %vm384, %v373
      %408 = vst.msk [vmem:[%s383 + $0x111] sm:$0xff] %vm384, %v374
      %409 = vst.msk [vmem:[%s383 + $0x121] sm:$0xff] %vm384, %v375
      %410 = vst.msk [vmem:[%s383 + $0x129] sm:$0xff] %vm384, %v376
      %411 = vst.msk [vmem:[%s383 + $0x139] sm:$0xff] %vm384, %v377
      %412 = vst.msk [vmem:[%s383 + $0x141] sm:$0xff] %vm384, %v378
      %413 = vst.msk [vmem:[%s383 + $0x151] sm:$0xff] %vm384, %v379
      %414 = vst.msk [vmem:[%s383 + $0x159] sm:$0xff] %vm384, %v380
      %415 = vst.msk [vmem:[%s383 + $0x169] sm:$0xff] %vm384, %v381
      %416 = vst.msk [vmem:[%s383 + $0x171] sm:$0xff] %vm384, %v382
      %417 = vst.msk [vmem:[#allocation2] sm:$0xff] %vm384, 0.0
      %418 = vst.msk [vmem:[#allocation2 + $0x8] sm:$0xff] %vm384, 0.0
      %vm419 = vcmask 25600
      %420 = vst.msk [vmem:[#allocation2 + $0x10] sm:$0x3] %vm419, 0.0
      %s421 = scalar_lea.vmem [#allocation2], 408
      %422 = vst.msk [vmem:[%s421] sm:$0xff] %vm384, 0.0
      %423 = vst.msk [vmem:[%s421 + $0x8] sm:$0xff] %vm384, 0.0
      %424 = vst.msk [vmem:[%s421 + $0x10] sm:$0x3] %vm419, 0.0
      %vm425 = vcmask 24576
      %426 = vst.msk [vmem:[#allocation2] sm:$0x1] %vm425, 0.0
      %427 = vst.msk [vmem:[#allocation2 + $0x18] sm:$0x1] %vm425, 0.0
      %428 = vst.msk [vmem:[#allocation2 + $0x30] sm:$0x1] %vm425, 0.0
      %429 = vst.msk [vmem:[#allocation2 + $0x48] sm:$0x1] %vm425, 0.0
      %430 = vst.msk [vmem:[#allocation2 + $0x60] sm:$0x1] %vm425, 0.0
      %431 = vst.msk [vmem:[#allocation2 + $0x78] sm:$0x1] %vm425, 0.0
      %432 = vst.msk [vmem:[#allocation2 + $0x90] sm:$0x1] %vm425, 0.0
      %433 = vst.msk [vmem:[#allocation2 + $0xa8] sm:$0x1] %vm425, 0.0
      %434 = vst.msk [vmem:[#allocation2 + $0xc0] sm:$0x1] %vm425, 0.0
      %435 = vst.msk [vmem:[#allocation2 + $0xd8] sm:$0x1] %vm425, 0.0
      %436 = vst.msk [vmem:[#allocation2 + $0xf0] sm:$0x1] %vm425, 0.0
      %437 = vst.msk [vmem:[#allocation2 + $0x108] sm:$0x1] %vm425, 0.0
      %438 = vst.msk [vmem:[#allocation2 + $0x120] sm:$0x1] %vm425, 0.0
      %439 = vst.msk [vmem:[#allocation2 + $0x138] sm:$0x1] %vm425, 0.0
      %440 = vst.msk [vmem:[#allocation2 + $0x150] sm:$0x1] %vm425, 0.0
      %441 = vst.msk [vmem:[#allocation2 + $0x168] sm:$0x1] %vm425, 0.0
      %442 = vst.msk [vmem:[#allocation2 + $0x180] sm:$0x1] %vm425, 0.0
      %443 = vst.msk [vmem:[#allocation2 + $0x198] sm:$0x1] %vm425, 0.0
      %444 = vst.msk [vmem:[#allocation2 + $0x11] sm:$0x1] %vm425, 0.0
      %445 = vst.msk [vmem:[#allocation2 + $0x29] sm:$0x1] %vm425, 0.0
      %446 = vst.msk [vmem:[#allocation2 + $0x41] sm:$0x1] %vm425, 0.0
      %447 = vst.msk [vmem:[#allocation2 + $0x59] sm:$0x1] %vm425, 0.0
      %448 = vst.msk [vmem:[#allocation2 + $0x71] sm:$0x1] %vm425, 0.0
      %449 = vst.msk [vmem:[#allocation2 + $0x89] sm:$0x1] %vm425, 0.0
      %450 = vst.msk [vmem:[#allocation2 + $0xa1] sm:$0x1] %vm425, 0.0
      %451 = vst.msk [vmem:[#allocation2 + $0xb9] sm:$0x1] %vm425, 0.0
      %452 = vst.msk [vmem:[#allocation2 + $0xd1] sm:$0x1] %vm425, 0.0
      %453 = vst.msk [vmem:[#allocation2 + $0xe9] sm:$0x1] %vm425, 0.0
      %454 = vst.msk [vmem:[#allocation2 + $0x101] sm:$0x1] %vm425, 0.0
      %455 = vst.msk [vmem:[#allocation2 + $0x119] sm:$0x1] %vm425, 0.0
      %456 = vst.msk [vmem:[#allocation2 + $0x131] sm:$0x1] %vm425, 0.0
      %457 = vst.msk [vmem:[#allocation2 + $0x149] sm:$0x1] %vm425, 0.0
      %458 = vst.msk [vmem:[#allocation2 + $0x161] sm:$0x1] %vm425, 0.0
      %459 = vst.msk [vmem:[#allocation2 + $0x179] sm:$0x1] %vm425, 0.0
      %460 = vst.msk [vmem:[#allocation2 + $0x191] sm:$0x1] %vm425, 0.0
      %461 = vst.msk [vmem:[#allocation2 + $0x1a9] sm:$0x1] %vm425, 0.0
      %v462 = vld [vmem:[#allocation2] sm:$0xff]
      %v463 = vld [vmem:[#allocation2 + $0x8] sm:$0xff]
      %v464 = vld [vmem:[#allocation2 + $0x18] sm:$0xff]
      %v465 = vld [vmem:[#allocation2 + $0x20] sm:$0xff]
      %v466 = vld [vmem:[#allocation2 + $0x30] sm:$0xff]
      %v467 = vld [vmem:[#allocation2 + $0x38] sm:$0xff]
      %v468 = vld [vmem:[#allocation2 + $0x48] sm:$0xff]
      %v469 = vld [vmem:[#allocation2 + $0x50] sm:$0xff]
      %v470 = vld [vmem:[#allocation2 + $0x60] sm:$0xff]
      %v471 = vld [vmem:[#allocation2 + $0x68] sm:$0xff]
      %v472 = vld [vmem:[#allocation2 + $0x78] sm:$0xff]
      %v473 = vld [vmem:[#allocation2 + $0x80] sm:$0xff]
      %v474 = vld [vmem:[#allocation2 + $0x90] sm:$0xff]
      %v475 = vld [vmem:[#allocation2 + $0x98] sm:$0xff]
      %v476 = vld [vmem:[#allocation2 + $0xa8] sm:$0xff]
      %v477 = vld [vmem:[#allocation2 + $0xb0] sm:$0xff]
      %v478 = vld [vmem:[#allocation2 + $0xc0] sm:$0xff]
      %v479 = vld [vmem:[#allocation2 + $0xc8] sm:$0xff]
      %v480 = vld [vmem:[#allocation2 + $0xd8] sm:$0xff]
      %v481 = vld [vmem:[#allocation2 + $0xe0] sm:$0xff]
      %v482 = vld [vmem:[#allocation2 + $0xf0] sm:$0xff]
      %v483 = vld [vmem:[#allocation2 + $0xf8] sm:$0xff]
      %v484 = vld [vmem:[#allocation2 + $0x108] sm:$0xff]
      %v485 = vld [vmem:[#allocation2 + $0x110] sm:$0xff]
      %v486 = vld [vmem:[#allocation2 + $0x120] sm:$0xff]
      %v487 = vld [vmem:[#allocation2 + $0x128] sm:$0xff]
      %v488 = vld [vmem:[#allocation2 + $0x138] sm:$0xff]
      %v489 = vld [vmem:[#allocation2 + $0x140] sm:$0xff]
      %v490 = vld [vmem:[#allocation2 + $0x150] sm:$0xff]
      %v491 = vld [vmem:[#allocation2 + $0x158] sm:$0xff]
      %v492 = vld [vmem:[#allocation2 + $0x168] sm:$0xff]
      %v493 = vld [vmem:[#allocation2 + $0x170] sm:$0xff]
      %v494 = vpack.c.bf16 %v463, %v462
      %v495 = vpack.c.bf16 %v465, %v464
      %v496 = vpack.c.bf16 %v467, %v466
      %v497 = vpack.c.bf16 %v469, %v468
      %v498 = vpack.c.bf16 %v471, %v470
      %v499 = vpack.c.bf16 %v473, %v472
      %v500 = vpack.c.bf16 %v475, %v474
      %v501 = vpack.c.bf16 %v477, %v476
      %v502 = vpack.c.bf16 %v479, %v478
      %v503 = vpack.c.bf16 %v481, %v480
      %v504 = vpack.c.bf16 %v483, %v482
      %v505 = vpack.c.bf16 %v485, %v484
      %v506 = vpack.c.bf16 %v487, %v486
      %v507 = vpack.c.bf16 %v489, %v488
      %v508 = vpack.c.bf16 %v491, %v490
      %v509 = vpack.c.bf16 %v493, %v492
      %v510 = vld [vmem:[%s3] sm:$0x3]
      %v511 = vld [vmem:[#allocation2 + $0x1] sm:$0xff]
      %v512 = vld [vmem:[#allocation2 + $0x9] sm:$0xff]
      %v513 = vld [vmem:[#allocation2 + $0x19] sm:$0xff]
      %v514 = vld [vmem:[#allocation2 + $0x21] sm:$0xff]
      %v515 = vld [vmem:[#allocation2 + $0x31] sm:$0xff]
      %v516 = vld [vmem:[#allocation2 + $0x39] sm:$0xff]
      %v517 = vld [vmem:[#allocation2 + $0x49] sm:$0xff]
      %v518 = vld [vmem:[#allocation2 + $0x51] sm:$0xff]
      %v519 = vld [vmem:[#allocation2 + $0x61] sm:$0xff]
      %v520 = vld [vmem:[#allocation2 + $0x69] sm:$0xff]
      %v521 = vld [vmem:[#allocation2 + $0x79] sm:$0xff]
      %v522 = vld [vmem:[#allocation2 + $0x81] sm:$0xff]
      %v523 = vld [vmem:[#allocation2 + $0x91] sm:$0xff]
      %v524 = vld [vmem:[#allocation2 + $0x99] sm:$0xff]
      %v525 = vld [vmem:[#allocation2 + $0xa9] sm:$0xff]
      %v526 = vld [vmem:[#allocation2 + $0xb1] sm:$0xff]
      %v527 = vld [vmem:[#allocation2 + $0xc1] sm:$0xff]
      %v528 = vld [vmem:[#allocation2 + $0xc9] sm:$0xff]
      %v529 = vld [vmem:[#allocation2 + $0xd9] sm:$0xff]
      %v530 = vld [vmem:[#allocation2 + $0xe1] sm:$0xff]
      %v531 = vld [vmem:[#allocation2 + $0xf1] sm:$0xff]
      %v532 = vld [vmem:[#allocation2 + $0xf9] sm:$0xff]
      %v533 = vld [vmem:[#allocation2 + $0x109] sm:$0xff]
      %v534 = vld [vmem:[#allocation2 + $0x111] sm:$0xff]
      %v535 = vld [vmem:[#allocation2 + $0x121] sm:$0xff]
      %v536 = vld [vmem:[#allocation2 + $0x129] sm:$0xff]
      %v537 = vld [vmem:[#allocation2 + $0x139] sm:$0xff]
      %v538 = vld [vmem:[#allocation2 + $0x141] sm:$0xff]
      %v539 = vld [vmem:[#allocation2 + $0x151] sm:$0xff]
      %v540 = vld [vmem:[#allocation2 + $0x159] sm:$0xff]
      %v541 = vld [vmem:[#allocation2 + $0x169] sm:$0xff]
      %v542 = vld [vmem:[#allocation2 + $0x171] sm:$0xff]
      %v543 = vpack.c.bf16 %v512, %v511
      %v544 = vpack.c.bf16 %v514, %v513
      %v545 = vpack.c.bf16 %v516, %v515
      %v546 = vpack.c.bf16 %v518, %v517
      %v547 = vpack.c.bf16 %v520, %v519
      %v548 = vpack.c.bf16 %v522, %v521
      %v549 = vpack.c.bf16 %v524, %v523
      %v550 = vpack.c.bf16 %v526, %v525
      %v551 = vpack.c.bf16 %v528, %v527
      %v552 = vpack.c.bf16 %v530, %v529
      %v553 = vpack.c.bf16 %v532, %v531
      %v554 = vpack.c.bf16 %v534, %v533
      %v555 = vpack.c.bf16 %v536, %v535
      %v556 = vpack.c.bf16 %v538, %v537
      %v557 = vpack.c.bf16 %v540, %v539
      %v558 = vpack.c.bf16 %v542, %v541
      %v559 = vld [vmem:[%s3] sm:$0xc]
      %v561 = vunpack.c.l.b16 %v559
      %v562 = vpack.c.b16 %v561, %v561
      %v563 = vrot.slane %v562, 2
      %v565 = vsel %vm384, %v543, 0
      %v568 = vsel %vm384, %v544, 0
      %v571 = vsel %vm384, %v545, 0
      %v574 = vsel %vm384, %v546, 0
      %v577 = vsel %vm384, %v547, 0
      %v580 = vsel %vm384, %v548, 0
      %v583 = vsel %vm384, %v549, 0
      %v586 = vsel %vm384, %v550, 0
      %v589 = vsel %vm384, %v551, 0
      %v592 = vsel %vm384, %v552, 0
      %v595 = vsel %vm384, %v553, 0
      %v598 = vsel %vm384, %v554, 0
      %v601 = vsel %vm384, %v555, 0
      %v604 = vsel %vm384, %v556, 0
      %v607 = vsel %vm384, %v557, 0
      %v610 = vsel %vm384, %v558, 0
      %vm612 = vcmask 1041408
      %v614 = vsel %vm612, %v563, 0
      %616 = vmatprep.subr.bf16.mxu0 0
      %617 = vmatpush1.bf16.msra.mxu0 %v614
      %618 = vmatprep.subr.bf16.mxu0 0
      %619 = vmatpush1.bf16.msra.mxu0 0
      %620 = vmatprep.subr.bf16.mxu0 0
      %621 = vmatpush1.bf16.msra.mxu0 0
      %622 = vmatprep.subr.bf16.mxu0 0
      %623 = vmatpush1.bf16.msra.mxu0 0
      %624 = vmatprep.subr.bf16.mxu0 0
      %625 = vmatpush1.bf16.msra.mxu0 0
      %626 = vmatprep.subr.bf16.mxu0 0
      %627 = vmatpush1.bf16.msra.mxu0 0
      %628 = vmatprep.subr.bf16.mxu0 0
      %629 = vmatpush1.bf16.msra.mxu0 0
      %630 = vmatprep.subr.bf16.mxu0 0
      %631 = vmatpush1.bf16.msra.mxu0 0
      %632 = vmatprep.subr.bf16.mxu0 0
      %633 = vmatpush1.bf16.msra.mxu0 0
      %634 = vmatprep.subr.bf16.mxu0 0
      %635 = vmatpush1.bf16.msra.mxu0 0
      %636 = vmatprep.subr.bf16.mxu0 0
      %637 = vmatpush1.bf16.msra.mxu0 0
      %638 = vmatprep.subr.bf16.mxu0 0
      %639 = vmatpush1.bf16.msra.mxu0 0
      %640 = vmatprep.subr.bf16.mxu0 0
      %641 = vmatpush1.bf16.msra.mxu0 0
      %642 = vmatprep.subr.bf16.mxu0 0
      %643 = vmatpush1.bf16.msra.mxu0 0
      %644 = vmatprep.subr.bf16.mxu0 0
      %645 = vmatpush1.bf16.msra.mxu0 0
      %646 = vmatprep.subr.bf16.mxu0 0
      %647 = vmatpush1.bf16.msra.mxu0 0
      %648 = vmatprep.mubr.bf16.mxu0 0
      %649 = vmatmul.mubr.bf16.gmra.mrb[0].mxu0 %v565
      %v650 = vpop.f32.mrb[0].mxu0
      %v651 = vadd.f32 0.0, %v650
      %v652 = vpop.f32.mrb[0].mxu0
      %v653 = vpop.f32.mrb[0].mxu0
      %v654 = vadd.f32 0.0, %v653
      %v655 = vpop.f32.mrb[0].mxu0
      %656 = vmatprep.mubr.bf16.mxu0 0
      %657 = vmatmul.mubr.bf16.gmra.mrb[0].mxu0 %v568
      %v658 = vpop.f32.mrb[0].mxu0
      %v659 = vadd.f32 0.0, %v658
      %v660 = vpop.f32.mrb[0].mxu0
      %v661 = vpop.f32.mrb[0].mxu0
      %v662 = vadd.f32 0.0, %v661
      %v663 = vpop.f32.mrb[0].mxu0
      %664 = vmatprep.mubr.bf16.mxu0 0
      %665 = vmatmul.mubr.bf16.gmra.mrb[0].mxu0 %v571
      %v666 = vpop.f32.mrb[0].mxu0
      %v667 = vadd.f32 0.0, %v666
      %v668 = vpop.f32.mrb[0].mxu0
      %v669 = vpop.f32.mrb[0].mxu0
      %v670 = vadd.f32 0.0, %v669
      %v671 = vpop.f32.mrb[0].mxu0
      %672 = vmatprep.mubr.bf16.mxu0 0
      %673 = vmatmul.mubr.bf16.gmra.mrb[0].mxu0 %v574
      %v674 = vpop.f32.mrb[0].mxu0
      %v675 = vadd.f32 0.0, %v674
      %v676 = vpop.f32.mrb[0].mxu0
      %v677 = vpop.f32.mrb[0].mxu0
      %v678 = vadd.f32 0.0, %v677
      %v679 = vpop.f32.mrb[0].mxu0
      %680 = vmatprep.mubr.bf16.mxu0 0
      %681 = vmatmul.mubr.bf16.gmra.mrb[0].mxu0 %v577
      %v682 = vpop.f32.mrb[0].mxu0
      %v683 = vadd.f32 0.0, %v682
      %v684 = vpop.f32.mrb[0].mxu0
      %v685 = vpop.f32.mrb[0].mxu0
      %v686 = vadd.f32 0.0, %v685
      %v687 = vpop.f32.mrb[0].mxu0
      %688 = vmatprep.mubr.bf16.mxu0 0
      %689 = vmatmul.mubr.bf16.gmra.mrb[0].mxu0 %v580
      %v690 = vpop.f32.mrb[0].mxu0
      %v691 = vadd.f32 0.0, %v690
      %v692 = vpop.f32.mrb[0].mxu0
      %v693 = vpop.f32.mrb[0].mxu0
      %v694 = vadd.f32 0.0, %v693
      %v695 = vpop.f32.mrb[0].mxu0
      %696 = vmatprep.mubr.bf16.mxu0 0
      %697 = vmatmul.mubr.bf16.gmra.mrb[0].mxu0 %v583
      %v698 = vpop.f32.mrb[0].mxu0
      %v699 = vadd.f32 0.0, %v698
      %v700 = vpop.f32.mrb[0].mxu0
      %v701 = vpop.f32.mrb[0].mxu0
      %v702 = vadd.f32 0.0, %v701
      %v703 = vpop.f32.mrb[0].mxu0
      %704 = vmatprep.mubr.bf16.mxu0 0
      %705 = vmatmul.mubr.bf16.gmra.mrb[0].mxu0 %v586
      %v706 = vpop.f32.mrb[0].mxu0
      %v707 = vadd.f32 0.0, %v706
      %v708 = vpop.f32.mrb[0].mxu0
      %v709 = vpop.f32.mrb[0].mxu0
      %v710 = vadd.f32 0.0, %v709
      %v711 = vpop.f32.mrb[0].mxu0
      %712 = vmatprep.mubr.bf16.mxu0 0
      %713 = vmatmul.mubr.bf16.gmra.mrb[0].mxu0 %v589
      %v714 = vpop.f32.mrb[0].mxu0
      %v715 = vadd.f32 0.0, %v714
      %v716 = vpop.f32.mrb[0].mxu0
      %v717 = vpop.f32.mrb[0].mxu0
      %v718 = vadd.f32 0.0, %v717
      %v719 = vpop.f32.mrb[0].mxu0
      %720 = vmatprep.mubr.bf16.mxu0 0
      %721 = vmatmul.mubr.bf16.gmra.mrb[0].mxu0 %v592
      %v722 = vpop.f32.mrb[0].mxu0
      %v723 = vadd.f32 0.0, %v722
      %v724 = vpop.f32.mrb[0].mxu0
      %v725 = vpop.f32.mrb[0].mxu0
      %v726 = vadd.f32 0.0, %v725
      %v727 = vpop.f32.mrb[0].mxu0
      %728 = vmatprep.mubr.bf16.mxu0 0
      %729 = vmatmul.mubr.bf16.gmra.mrb[0].mxu0 %v595
      %v730 = vpop.f32.mrb[0].mxu0
      %v731 = vadd.f32 0.0, %v730
      %v732 = vpop.f32.mrb[0].mxu0
      %v733 = vpop.f32.mrb[0].mxu0
      %v734 = vadd.f32 0.0, %v733
      %v735 = vpop.f32.mrb[0].mxu0
      %736 = vmatprep.mubr.bf16.mxu0 0
      %737 = vmatmul.mubr.bf16.gmra.mrb[0].mxu0 %v598
      %v738 = vpop.f32.mrb[0].mxu0
      %v739 = vadd.f32 0.0, %v738
      %v740 = vpop.f32.mrb[0].mxu0
      %v741 = vpop.f32.mrb[0].mxu0
      %v742 = vadd.f32 0.0, %v741
      %v743 = vpop.f32.mrb[0].mxu0
      %744 = vmatprep.mubr.bf16.mxu0 0
      %745 = vmatmul.mubr.bf16.gmra.mrb[0].mxu0 %v601
      %v746 = vpop.f32.mrb[0].mxu0
      %v747 = vadd.f32 0.0, %v746
      %v748 = vpop.f32.mrb[0].mxu0
      %v749 = vpop.f32.mrb[0].mxu0
      %v750 = vadd.f32 0.0, %v749
      %v751 = vpop.f32.mrb[0].mxu0
      %752 = vmatprep.mubr.bf16.mxu0 0
      %753 = vmatmul.mubr.bf16.gmra.mrb[0].mxu0 %v604
      %v754 = vpop.f32.mrb[0].mxu0
      %v755 = vadd.f32 0.0, %v754
      %v756 = vpop.f32.mrb[0].mxu0
      %v757 = vpop.f32.mrb[0].mxu0
      %v758 = vadd.f32 0.0, %v757
      %v759 = vpop.f32.mrb[0].mxu0
      %760 = vmatprep.mubr.bf16.mxu0 0
      %761 = vmatmul.mubr.bf16.gmra.mrb[0].mxu0 %v607
      %v762 = vpop.f32.mrb[0].mxu0
      %v763 = vadd.f32 0.0, %v762
      %v764 = vpop.f32.mrb[0].mxu0
      %v765 = vpop.f32.mrb[0].mxu0
      %v766 = vadd.f32 0.0, %v765
      %v767 = vpop.f32.mrb[0].mxu0
      %768 = vmatprep.mubr.bf16.mxu0 0
      %769 = vmatmul.mubr.bf16.gmra.mrb[0].mxu0 %v610
      %v770 = vpop.f32.mrb[0].mxu0
      %v771 = vadd.f32 0.0, %v770
      %v772 = vpop.f32.mrb[0].mxu0
      %v773 = vpop.f32.mrb[0].mxu0
      %v774 = vadd.f32 0.0, %v773
      %v775 = vpop.f32.mrb[0].mxu0
      %776 = vdwg.mxu0
      %v778 = vsel %vm384, %v494, 0
      %v781 = vsel %vm384, %v495, 0
      %v784 = vsel %vm384, %v496, 0
      %v787 = vsel %vm384, %v497, 0
      %v790 = vsel %vm384, %v498, 0
      %v793 = vsel %vm384, %v499, 0
      %v796 = vsel %vm384, %v500, 0
      %v799 = vsel %vm384, %v501, 0
      %v802 = vsel %vm384, %v502, 0
      %v805 = vsel %vm384, %v503, 0
      %v808 = vsel %vm384, %v504, 0
      %v811 = vsel %vm384, %v505, 0
      %v814 = vsel %vm384, %v506, 0
      %v817 = vsel %vm384, %v507, 0
      %v820 = vsel %vm384, %v508, 0
      %v823 = vsel %vm384, %v509, 0
      %v826 = vsel %vm612, %v510, 0
      %828 = vmatprep.subr.bf16.mxu0 0
      %829 = vmatpush1.bf16.msra.mxu0 %v826
      %830 = vmatprep.subr.bf16.mxu0 0
      %831 = vmatpush1.bf16.msra.mxu0 0
      %832 = vmatprep.subr.bf16.mxu0 0
      %833 = vmatpush1.bf16.msra.mxu0 0
      %834 = vmatprep.subr.bf16.mxu0 0
      %835 = vmatpush1.bf16.msra.mxu0 0
      %836 = vmatprep.subr.bf16.mxu0 0
      %837 = vmatpush1.bf16.msra.mxu0 0
      %838 = vmatprep.subr.bf16.mxu0 0
      %839 = vmatpush1.bf16.msra.mxu0 0
      %840 = vmatprep.subr.bf16.mxu0 0
      %841 = vmatpush1.bf16.msra.mxu0 0
      %842 = vmatprep.subr.bf16.mxu0 0
      %843 = vmatpush1.bf16.msra.mxu0 0
      %844 = vmatprep.subr.bf16.mxu0 0
      %845 = vmatpush1.bf16.msra.mxu0 0
      %846 = vmatprep.subr.bf16.mxu0 0
      %847 = vmatpush1.bf16.msra.mxu0 0
      %848 = vmatprep.subr.bf16.mxu0 0
      %849 = vmatpush1.bf16.msra.mxu0 0
      %850 = vmatprep.subr.bf16.mxu0 0
      %851 = vmatpush1.bf16.msra.mxu0 0
      %852 = vmatprep.subr.bf16.mxu0 0
      %853 = vmatpush1.bf16.msra.mxu0 0
      %854 = vmatprep.subr.bf16.mxu0 0
      %855 = vmatpush1.bf16.msra.mxu0 0
      %856 = vmatprep.subr.bf16.mxu0 0
      %857 = vmatpush1.bf16.msra.mxu0 0
      %858 = vmatprep.subr.bf16.mxu0 0
      %859 = vmatpush1.bf16.msra.mxu0 0
      %860 = vmatprep.mubr.bf16.mxu0 0
      %861 = vmatmul.mubr.bf16.gmra.mrb[0].mxu0 %v778
      %v862 = vpop.f32.mrb[0].mxu0
      %v863 = vadd.f32 %v651, %v862
      %v864 = vpop.f32.mrb[0].mxu0
      %v865 = vpop.f32.mrb[0].mxu0
      %v866 = vadd.f32 %v654, %v865
      %v867 = vpop.f32.mrb[0].mxu0
      %868 = vmatprep.mubr.bf16.mxu0 0
      %869 = vmatmul.mubr.bf16.gmra.mrb[0].mxu0 %v781
      %v870 = vpop.f32.mrb[0].mxu0
      %v871 = vadd.f32 %v659, %v870
      %v872 = vpop.f32.mrb[0].mxu0
      %v873 = vpop.f32.mrb[0].mxu0
      %v874 = vadd.f32 %v662, %v873
      %v875 = vpop.f32.mrb[0].mxu0
      %876 = vmatprep.mubr.bf16.mxu0 0
      %877 = vmatmul.mubr.bf16.gmra.mrb[0].mxu0 %v784
      %v878 = vpop.f32.mrb[0].mxu0
      %v879 = vadd.f32 %v667, %v878
      %v880 = vpop.f32.mrb[0].mxu0
      %v881 = vpop.f32.mrb[0].mxu0
      %v882 = vadd.f32 %v670, %v881
      %v883 = vpop.f32.mrb[0].mxu0
      %884 = vmatprep.mubr.bf16.mxu0 0
      %885 = vmatmul.mubr.bf16.gmra.mrb[0].mxu0 %v787
      %v886 = vpop.f32.mrb[0].mxu0
      %v887 = vadd.f32 %v675, %v886
      %v888 = vpop.f32.mrb[0].mxu0
      %v889 = vpop.f32.mrb[0].mxu0
      %v890 = vadd.f32 %v678, %v889
      %v891 = vpop.f32.mrb[0].mxu0
      %892 = vmatprep.mubr.bf16.mxu0 0
      %893 = vmatmul.mubr.bf16.gmra.mrb[0].mxu0 %v790
      %v894 = vpop.f32.mrb[0].mxu0
      %v895 = vadd.f32 %v683, %v894
      %v896 = vpop.f32.mrb[0].mxu0
      %v897 = vpop.f32.mrb[0].mxu0
      %v898 = vadd.f32 %v686, %v897
      %v899 = vpop.f32.mrb[0].mxu0
      %900 = vmatprep.mubr.bf16.mxu0 0
      %901 = vmatmul.mubr.bf16.gmra.mrb[0].mxu0 %v793
      %v902 = vpop.f32.mrb[0].mxu0
      %v903 = vadd.f32 %v691, %v902
      %v904 = vpop.f32.mrb[0].mxu0
      %v905 = vpop.f32.mrb[0].mxu0
      %v906 = vadd.f32 %v694, %v905
      %v907 = vpop.f32.mrb[0].mxu0
      %908 = vmatprep.mubr.bf16.mxu0 0
      %909 = vmatmul.mubr.bf16.gmra.mrb[0].mxu0 %v796
      %v910 = vpop.f32.mrb[0].mxu0
      %v911 = vadd.f32 %v699, %v910
      %v912 = vpop.f32.mrb[0].mxu0
      %v913 = vpop.f32.mrb[0].mxu0
      %v914 = vadd.f32 %v702, %v913
      %v915 = vpop.f32.mrb[0].mxu0
      %916 = vmatprep.mubr.bf16.mxu0 0
      %917 = vmatmul.mubr.bf16.gmra.mrb[0].mxu0 %v799
      %v918 = vpop.f32.mrb[0].mxu0
      %v919 = vadd.f32 %v707, %v918
      %v920 = vpop.f32.mrb[0].mxu0
      %v921 = vpop.f32.mrb[0].mxu0
      %v922 = vadd.f32 %v710, %v921
      %v923 = vpop.f32.mrb[0].mxu0
      %924 = vmatprep.mubr.bf16.mxu0 0
      %925 = vmatmul.mubr.bf16.gmra.mrb[0].mxu0 %v802
      %v926 = vpop.f32.mrb[0].mxu0
      %v927 = vadd.f32 %v715, %v926
      %v928 = vpop.f32.mrb[0].mxu0
      %v929 = vpop.f32.mrb[0].mxu0
      %v930 = vadd.f32 %v718, %v929
      %v931 = vpop.f32.mrb[0].mxu0
      %932 = vmatprep.mubr.bf16.mxu0 0
      %933 = vmatmul.mubr.bf16.gmra.mrb[0].mxu0 %v805
      %v934 = vpop.f32.mrb[0].mxu0
      %v935 = vadd.f32 %v723, %v934
      %v936 = vpop.f32.mrb[0].mxu0
      %v937 = vpop.f32.mrb[0].mxu0
      %v938 = vadd.f32 %v726, %v937
      %v939 = vpop.f32.mrb[0].mxu0
      %940 = vmatprep.mubr.bf16.mxu0 0
      %941 = vmatmul.mubr.bf16.gmra.mrb[0].mxu0 %v808
      %v942 = vpop.f32.mrb[0].mxu0
      %v943 = vadd.f32 %v731, %v942
      %v944 = vpop.f32.mrb[0].mxu0
      %v945 = vpop.f32.mrb[0].mxu0
      %v946 = vadd.f32 %v734, %v945
      %v947 = vpop.f32.mrb[0].mxu0
      %948 = vmatprep.mubr.bf16.mxu0 0
      %949 = vmatmul.mubr.bf16.gmra.mrb[0].mxu0 %v811
      %v950 = vpop.f32.mrb[0].mxu0
      %v951 = vadd.f32 %v739, %v950
      %v952 = vpop.f32.mrb[0].mxu0
      %v953 = vpop.f32.mrb[0].mxu0
      %v954 = vadd.f32 %v742, %v953
      %v955 = vpop.f32.mrb[0].mxu0
      %956 = vmatprep.mubr.bf16.mxu0 0
      %957 = vmatmul.mubr.bf16.gmra.mrb[0].mxu0 %v814
      %v958 = vpop.f32.mrb[0].mxu0
      %v959 = vadd.f32 %v747, %v958
      %v960 = vpop.f32.mrb[0].mxu0
      %v961 = vpop.f32.mrb[0].mxu0
      %v962 = vadd.f32 %v750, %v961
      %v963 = vpop.f32.mrb[0].mxu0
      %964 = vmatprep.mubr.bf16.mxu0 0
      %965 = vmatmul.mubr.bf16.gmra.mrb[0].mxu0 %v817
      %v966 = vpop.f32.mrb[0].mxu0
      %v967 = vadd.f32 %v755, %v966
      %v968 = vpop.f32.mrb[0].mxu0
      %v969 = vpop.f32.mrb[0].mxu0
      %v970 = vadd.f32 %v758, %v969
      %v971 = vpop.f32.mrb[0].mxu0
      %972 = vmatprep.mubr.bf16.mxu0 0
      %973 = vmatmul.mubr.bf16.gmra.mrb[0].mxu0 %v820
      %v974 = vpop.f32.mrb[0].mxu0
      %v975 = vadd.f32 %v763, %v974
      %v976 = vpop.f32.mrb[0].mxu0
      %v977 = vpop.f32.mrb[0].mxu0
      %v978 = vadd.f32 %v766, %v977
      %v979 = vpop.f32.mrb[0].mxu0
      %980 = vmatprep.mubr.bf16.mxu0 0
      %981 = vmatmul.mubr.bf16.gmra.mrb[0].mxu0 %v823
      %v982 = vpop.f32.mrb[0].mxu0
      %v983 = vadd.f32 %v771, %v982
      %v984 = vpop.f32.mrb[0].mxu0
      %v985 = vpop.f32.mrb[0].mxu0
      %v986 = vadd.f32 %v774, %v985
      %v987 = vpop.f32.mrb[0].mxu0
      %988 = vdwg.mxu0
      %v989 = vld [vmem:[#allocation2 + $0x2] sm:$0xff]
      %v990 = vld [vmem:[#allocation2 + $0xa] sm:$0xff]
      %v991 = vld [vmem:[#allocation2 + $0x1a] sm:$0xff]
      %v992 = vld [vmem:[#allocation2 + $0x22] sm:$0xff]
      %v993 = vld [vmem:[#allocation2 + $0x32] sm:$0xff]
      %v994 = vld [vmem:[#allocation2 + $0x3a] sm:$0xff]
      %v995 = vld [vmem:[#allocation2 + $0x4a] sm:$0xff]
      %v996 = vld [vmem:[#allocation2 + $0x52] sm:$0xff]
      %v997 = vld [vmem:[#allocation2 + $0x62] sm:$0xff]
      %v998 = vld [vmem:[#allocation2 + $0x6a] sm:$0xff]
      %v999 = vld [vmem:[#allocation2 + $0x7a] sm:$0xff]
      %v1000 = vld [vmem:[#allocation2 + $0x82] sm:$0xff]
      %v1001 = vld [vmem:[#allocation2 + $0x92] sm:$0xff]
      %v1002 = vld [vmem:[#allocation2 + $0x9a] sm:$0xff]
      %v1003 = vld [vmem:[#allocation2 + $0xaa] sm:$0xff]
      %v1004 = vld [vmem:[#allocation2 + $0xb2] sm:$0xff]
      %v1005 = vld [vmem:[#allocation2 + $0xc2] sm:$0xff]
      %v1006 = vld [vmem:[#allocation2 + $0xca] sm:$0xff]
      %v1007 = vld [vmem:[#allocation2 + $0xda] sm:$0xff]
      %v1008 = vld [vmem:[#allocation2 + $0xe2] sm:$0xff]
      %v1009 = vld [vmem:[#allocation2 + $0xf2] sm:$0xff]
      %v1010 = vld [vmem:[#allocation2 + $0xfa] sm:$0xff]
      %v1011 = vld [vmem:[#allocation2 + $0x10a] sm:$0xff]
      %v1012 = vld [vmem:[#allocation2 + $0x112] sm:$0xff]
      %v1013 = vld [vmem:[#allocation2 + $0x122] sm:$0xff]
      %v1014 = vld [vmem:[#allocation2 + $0x12a] sm:$0xff]
      %v1015 = vld [vmem:[#allocation2 + $0x13a] sm:$0xff]
      %v1016 = vld [vmem:[#allocation2 + $0x142] sm:$0xff]
      %v1017 = vld [vmem:[#allocation2 + $0x152] sm:$0xff]
      %v1018 = vld [vmem:[#allocation2 + $0x15a] sm:$0xff]
      %v1019 = vld [vmem:[#allocation2 + $0x16a] sm:$0xff]
      %v1020 = vld [vmem:[#allocation2 + $0x172] sm:$0xff]
      %v1021 = vpack.c.bf16 %v990, %v989
      %v1022 = vpack.c.bf16 %v992, %v991
      %v1023 = vpack.c.bf16 %v994, %v993
      %v1024 = vpack.c.bf16 %v996, %v995
      %v1025 = vpack.c.bf16 %v998, %v997
      %v1026 = vpack.c.bf16 %v1000, %v999
      %v1027 = vpack.c.bf16 %v1002, %v1001
      %v1028 = vpack.c.bf16 %v1004, %v1003
      %v1029 = vpack.c.bf16 %v1006, %v1005
      %v1030 = vpack.c.bf16 %v1008, %v1007
      %v1031 = vpack.c.bf16 %v1010, %v1009
      %v1032 = vpack.c.bf16 %v1012, %v1011
      %v1033 = vpack.c.bf16 %v1014, %v1013
      %v1034 = vpack.c.bf16 %v1016, %v1015
      %v1035 = vpack.c.bf16 %v1018, %v1017
      %v1036 = vpack.c.bf16 %v1020, %v1019
      %v1037 = vld [vmem:[%s3 + $0x4] sm:$0x3]
      %v1039 = vsel %vm384, %v1021, 0
      %v1042 = vsel %vm384, %v1022, 0
      %v1045 = vsel %vm384, %v1023, 0
      %v1048 = vsel %vm384, %v1024, 0
      %v1051 = vsel %vm384, %v1025, 0
      %v1054 = vsel %vm384, %v1026, 0
      %v1057 = vsel %vm384, %v1027, 0
      %v1060 = vsel %vm384, %v1028, 0
      %v1063 = vsel %vm384, %v1029, 0
      %v1066 = vsel %vm384, %v1030, 0
      %v1069 = vsel %vm384, %v1031, 0
      %v1072 = vsel %vm384, %v1032, 0
      %v1075 = vsel %vm384, %v1033, 0
      %v1078 = vsel %vm384, %v1034, 0
      %v1081 = vsel %vm384, %v1035, 0
      %v1084 = vsel %vm384, %v1036, 0
      %v1087 = vsel %vm612, %v1037, 0
      %1089 = vmatprep.subr.bf16.mxu0 0
      %1090 = vmatpush1.bf16.msra.mxu0 %v1087
      %1091 = vmatprep.subr.bf16.mxu0 0
      %1092 = vmatpush1.bf16.msra.mxu0 0
      %1093 = vmatprep.subr.bf16.mxu0 0
      %1094 = vmatpush1.bf16.msra.mxu0 0
      %1095 = vmatprep.subr.bf16.mxu0 0
      %1096 = vmatpush1.bf16.msra.mxu0 0
      %1097 = vmatprep.subr.bf16.mxu0 0
      %1098 = vmatpush1.bf16.msra.mxu0 0
      %1099 = vmatprep.subr.bf16.mxu0 0
      %1100 = vmatpush1.bf16.msra.mxu0 0
      %1101 = vmatprep.subr.bf16.mxu0 0
      %1102 = vmatpush1.bf16.msra.mxu0 0
      %1103 = vmatprep.subr.bf16.mxu0 0
      %1104 = vmatpush1.bf16.msra.mxu0 0
      %1105 = vmatprep.subr.bf16.mxu0 0
      %1106 = vmatpush1.bf16.msra.mxu0 0
      %1107 = vmatprep.subr.bf16.mxu0 0
      %1108 = vmatpush1.bf16.msra.mxu0 0
      %1109 = vmatprep.subr.bf16.mxu0 0
      %1110 = vmatpush1.bf16.msra.mxu0 0
      %1111 = vmatprep.subr.bf16.mxu0 0
      %1112 = vmatpush1.bf16.msra.mxu0 0
      %1113 = vmatprep.subr.bf16.mxu0 0
      %1114 = vmatpush1.bf16.msra.mxu0 0
      %1115 = vmatprep.subr.bf16.mxu0 0
      %1116 = vmatpush1.bf16.msra.mxu0 0
      %1117 = vmatprep.subr.bf16.mxu0 0
      %1118 = vmatpush1.bf16.msra.mxu0 0
      %1119 = vmatprep.subr.bf16.mxu0 0
      %1120 = vmatpush1.bf16.msra.mxu0 0
      %1121 = vmatprep.mubr.bf16.mxu0 0
      %1122 = vmatmul.mubr.bf16.gmra.mrb[0].mxu0 %v1039
      %v1123 = vpop.f32.mrb[0].mxu0
      %v1124 = vadd.f32 0.0, %v1123
      %v1125 = vpop.f32.mrb[0].mxu0
      %v1126 = vpop.f32.mrb[0].mxu0
      %v1127 = vadd.f32 0.0, %v1126
      %v1128 = vpop.f32.mrb[0].mxu0
      %1129 = vmatprep.mubr.bf16.mxu0 0
      %1130 = vmatmul.mubr.bf16.gmra.mrb[0].mxu0 %v1042
      %v1131 = vpop.f32.mrb[0].mxu0
      %v1132 = vadd.f32 0.0, %v1131
      %v1133 = vpop.f32.mrb[0].mxu0
      %v1134 = vpop.f32.mrb[0].mxu0
      %v1135 = vadd.f32 0.0, %v1134
      %v1136 = vpop.f32.mrb[0].mxu0
      %1137 = vmatprep.mubr.bf16.mxu0 0
      %1138 = vmatmul.mubr.bf16.gmra.mrb[0].mxu0 %v1045
      %v1139 = vpop.f32.mrb[0].mxu0
      %v1140 = vadd.f32 0.0, %v1139
      %v1141 = vpop.f32.mrb[0].mxu0
      %v1142 = vpop.f32.mrb[0].mxu0
      %v1143 = vadd.f32 0.0, %v1142
      %v1144 = vpop.f32.mrb[0].mxu0
      %1145 = vmatprep.mubr.bf16.mxu0 0
      %1146 = vmatmul.mubr.bf16.gmra.mrb[0].mxu0 %v1048
      %v1147 = vpop.f32.mrb[0].mxu0
      %v1148 = vadd.f32 0.0, %v1147
      %v1149 = vpop.f32.mrb[0].mxu0
      %v1150 = vpop.f32.mrb[0].mxu0
      %v1151 = vadd.f32 0.0, %v1150
      %v1152 = vpop.f32.mrb[0].mxu0
      %1153 = vmatprep.mubr.bf16.mxu0 0
      %1154 = vmatmul.mubr.bf16.gmra.mrb[0].mxu0 %v1051
      %v1155 = vpop.f32.mrb[0].mxu0
      %v1156 = vadd.f32 0.0, %v1155
      %v1157 = vpop.f32.mrb[0].mxu0
      %v1158 = vpop.f32.mrb[0].mxu0
      %v1159 = vadd.f32 0.0, %v1158
      %v1160 = vpop.f32.mrb[0].mxu0
      %1161 = vmatprep.mubr.bf16.mxu0 0
      %1162 = vmatmul.mubr.bf16.gmra.mrb[0].mxu0 %v1054
      %v1163 = vpop.f32.mrb[0].mxu0
      %v1164 = vadd.f32 0.0, %v1163
      %v1165 = vpop.f32.mrb[0].mxu0
      %v1166 = vpop.f32.mrb[0].mxu0
      %v1167 = vadd.f32 0.0, %v1166
      %v1168 = vpop.f32.mrb[0].mxu0
      %1169 = vmatprep.mubr.bf16.mxu0 0
      %1170 = vmatmul.mubr.bf16.gmra.mrb[0].mxu0 %v1057
      %v1171 = vpop.f32.mrb[0].mxu0
      %v1172 = vadd.f32 0.0, %v1171
      %v1173 = vpop.f32.mrb[0].mxu0
      %v1174 = vpop.f32.mrb[0].mxu0
      %v1175 = vadd.f32 0.0, %v1174
      %v1176 = vpop.f32.mrb[0].mxu0
      %1177 = vmatprep.mubr.bf16.mxu0 0
      %1178 = vmatmul.mubr.bf16.gmra.mrb[0].mxu0 %v1060
      %v1179 = vpop.f32.mrb[0].mxu0
      %v1180 = vadd.f32 0.0, %v1179
      %v1181 = vpop.f32.mrb[0].mxu0
      %v1182 = vpop.f32.mrb[0].mxu0
      %v1183 = vadd.f32 0.0, %v1182
      %v1184 = vpop.f32.mrb[0].mxu0
      %1185 = vmatprep.mubr.bf16.mxu0 0
      %1186 = vmatmul.mubr.bf16.gmra.mrb[0].mxu0 %v1063
      %v1187 = vpop.f32.mrb[0].mxu0
      %v1188 = vadd.f32 0.0, %v1187
      %v1189 = vpop.f32.mrb[0].mxu0
      %v1190 = vpop.f32.mrb[0].mxu0
      %v1191 = vadd.f32 0.0, %v1190
      %v1192 = vpop.f32.mrb[0].mxu0
      %1193 = vmatprep.mubr.bf16.mxu0 0
      %1194 = vmatmul.mubr.bf16.gmra.mrb[0].mxu0 %v1066
      %v1195 = vpop.f32.mrb[0].mxu0
      %v1196 = vadd.f32 0.0, %v1195
      %v1197 = vpop.f32.mrb[0].mxu0
      %v1198 = vpop.f32.mrb[0].mxu0
      %v1199 = vadd.f32 0.0, %v1198
      %v1200 = vpop.f32.mrb[0].mxu0
      %1201 = vmatprep.mubr.bf16.mxu0 0
      %1202 = vmatmul.mubr.bf16.gmra.mrb[0].mxu0 %v1069
      %v1203 = vpop.f32.mrb[0].mxu0
      %v1204 = vadd.f32 0.0, %v1203
      %v1205 = vpop.f32.mrb[0].mxu0
      %v1206 = vpop.f32.mrb[0].mxu0
      %v1207 = vadd.f32 0.0, %v1206
      %v1208 = vpop.f32.mrb[0].mxu0
      %1209 = vmatprep.mubr.bf16.mxu0 0
      %1210 = vmatmul.mubr.bf16.gmra.mrb[0].mxu0 %v1072
      %v1211 = vpop.f32.mrb[0].mxu0
      %v1212 = vadd.f32 0.0, %v1211
      %v1213 = vpop.f32.mrb[0].mxu0
      %v1214 = vpop.f32.mrb[0].mxu0
      %v1215 = vadd.f32 0.0, %v1214
      %v1216 = vpop.f32.mrb[0].mxu0
      %1217 = vmatprep.mubr.bf16.mxu0 0
      %1218 = vmatmul.mubr.bf16.gmra.mrb[0].mxu0 %v1075
      %v1219 = vpop.f32.mrb[0].mxu0
      %v1220 = vadd.f32 0.0, %v1219
      %v1221 = vpop.f32.mrb[0].mxu0
      %v1222 = vpop.f32.mrb[0].mxu0
      %v1223 = vadd.f32 0.0, %v1222
      %v1224 = vpop.f32.mrb[0].mxu0
      %1225 = vmatprep.mubr.bf16.mxu0 0
      %1226 = vmatmul.mubr.bf16.gmra.mrb[0].mxu0 %v1078
      %v1227 = vpop.f32.mrb[0].mxu0
      %v1228 = vadd.f32 0.0, %v1227
      %v1229 = vpop.f32.mrb[0].mxu0
      %v1230 = vpop.f32.mrb[0].mxu0
      %v1231 = vadd.f32 0.0, %v1230
      %v1232 = vpop.f32.mrb[0].mxu0
      %1233 = vmatprep.mubr.bf16.mxu0 0
      %1234 = vmatmul.mubr.bf16.gmra.mrb[0].mxu0 %v1081
      %v1235 = vpop.f32.mrb[0].mxu0
      %v1236 = vadd.f32 0.0, %v1235
      %v1237 = vpop.f32.mrb[0].mxu0
      %v1238 = vpop.f32.mrb[0].mxu0
      %v1239 = vadd.f32 0.0, %v1238
      %v1240 = vpop.f32.mrb[0].mxu0
      %1241 = vmatprep.mubr.bf16.mxu0 0
      %1242 = vmatmul.mubr.bf16.gmra.mrb[0].mxu0 %v1084
      %v1243 = vpop.f32.mrb[0].mxu0
      %v1244 = vadd.f32 0.0, %v1243
      %v1245 = vpop.f32.mrb[0].mxu0
      %v1246 = vpop.f32.mrb[0].mxu0
      %v1247 = vadd.f32 0.0, %v1246
      %v1248 = vpop.f32.mrb[0].mxu0
      %1249 = vdwg.mxu0
      %v1250 = vadd.f32 %v863, %v1124
      %v1251 = vadd.f32 %v866, %v1127
      %v1252 = vadd.f32 %v871, %v1132
      %v1253 = vadd.f32 %v874, %v1135
      %v1254 = vadd.f32 %v879, %v1140
      %v1255 = vadd.f32 %v882, %v1143
      %v1256 = vadd.f32 %v887, %v1148
      %v1257 = vadd.f32 %v890, %v1151
      %v1258 = vadd.f32 %v895, %v1156
      %v1259 = vadd.f32 %v898, %v1159
      %v1260 = vadd.f32 %v903, %v1164
      %v1261 = vadd.f32 %v906, %v1167
      %v1262 = vadd.f32 %v911, %v1172
      %v1263 = vadd.f32 %v914, %v1175
      %v1264 = vadd.f32 %v919, %v1180
      %v1265 = vadd.f32 %v922, %v1183
      %v1266 = vadd.f32 %v927, %v1188
      %v1267 = vadd.f32 %v930, %v1191
      %v1268 = vadd.f32 %v935, %v1196
      %v1269 = vadd.f32 %v938, %v1199
      %v1270 = vadd.f32 %v943, %v1204
      %v1271 = vadd.f32 %v946, %v1207
      %v1272 = vadd.f32 %v951, %v1212
      %v1273 = vadd.f32 %v954, %v1215
      %v1274 = vadd.f32 %v959, %v1220
      %v1275 = vadd.f32 %v962, %v1223
      %v1276 = vadd.f32 %v967, %v1228
      %v1277 = vadd.f32 %v970, %v1231
      %v1278 = vadd.f32 %v975, %v1236
      %v1279 = vadd.f32 %v978, %v1239
      %v1280 = vadd.f32 %v983, %v1244
      %v1281 = vadd.f32 %v986, %v1247
      %v1282 = vld [vmem:[%s383] sm:$0xff]
      %v1283 = vld [vmem:[%s383 + $0x8] sm:$0xff]
      %v1284 = vld [vmem:[%s383 + $0x18] sm:$0xff]
      %v1285 = vld [vmem:[%s383 + $0x20] sm:$0xff]
      %v1286 = vld [vmem:[%s383 + $0x30] sm:$0xff]
      %v1287 = vld [vmem:[%s383 + $0x38] sm:$0xff]
      %v1288 = vld [vmem:[%s383 + $0x48] sm:$0xff]
      %v1289 = vld [vmem:[%s383 + $0x50] sm:$0xff]
      %v1290 = vld [vmem:[%s383 + $0x60] sm:$0xff]
      %v1291 = vld [vmem:[%s383 + $0x68] sm:$0xff]
      %v1292 = vld [vmem:[%s383 + $0x78] sm:$0xff]
      %v1293 = vld [vmem:[%s383 + $0x80] sm:$0xff]
      %v1294 = vld [vmem:[%s383 + $0x90] sm:$0xff]
      %v1295 = vld [vmem:[%s383 + $0x98] sm:$0xff]
      %v1296 = vld [vmem:[%s383 + $0xa8] sm:$0xff]
      %v1297 = vld [vmem:[%s383 + $0xb0] sm:$0xff]
      %v1298 = vld [vmem:[%s383 + $0xc0] sm:$0xff]
      %v1299 = vld [vmem:[%s383 + $0xc8] sm:$0xff]
      %v1300 = vld [vmem:[%s383 + $0xd8] sm:$0xff]
      %v1301 = vld [vmem:[%s383 + $0xe0] sm:$0xff]
      %v1302 = vld [vmem:[%s383 + $0xf0] sm:$0xff]
      %v1303 = vld [vmem:[%s383 + $0xf8] sm:$0xff]
      %v1304 = vld [vmem:[%s383 + $0x108] sm:$0xff]
      %v1305 = vld [vmem:[%s383 + $0x110] sm:$0xff]
      %v1306 = vld [vmem:[%s383 + $0x120] sm:$0xff]
      %v1307 = vld [vmem:[%s383 + $0x128] sm:$0xff]
      %v1308 = vld [vmem:[%s383 + $0x138] sm:$0xff]
      %v1309 = vld [vmem:[%s383 + $0x140] sm:$0xff]
      %v1310 = vld [vmem:[%s383 + $0x150] sm:$0xff]
      %v1311 = vld [vmem:[%s383 + $0x158] sm:$0xff]
      %v1312 = vld [vmem:[%s383 + $0x168] sm:$0xff]
      %v1313 = vld [vmem:[%s383 + $0x170] sm:$0xff]
      %v1314 = vpack.c.bf16 %v1283, %v1282
      %v1315 = vpack.c.bf16 %v1285, %v1284
      %v1316 = vpack.c.bf16 %v1287, %v1286
      %v1317 = vpack.c.bf16 %v1289, %v1288
      %v1318 = vpack.c.bf16 %v1291, %v1290
      %v1319 = vpack.c.bf16 %v1293, %v1292
      %v1320 = vpack.c.bf16 %v1295, %v1294
      %v1321 = vpack.c.bf16 %v1297, %v1296
      %v1322 = vpack.c.bf16 %v1299, %v1298
      %v1323 = vpack.c.bf16 %v1301, %v1300
      %v1324 = vpack.c.bf16 %v1303, %v1302
      %v1325 = vpack.c.bf16 %v1305, %v1304
      %v1326 = vpack.c.bf16 %v1307, %v1306
      %v1327 = vpack.c.bf16 %v1309, %v1308
      %v1328 = vpack.c.bf16 %v1311, %v1310
      %v1329 = vpack.c.bf16 %v1313, %v1312
      %v1330 = vld [vmem:[%s3 + $0x4] sm:$0xc]
      %v1332 = vunpack.c.l.b16 %v1330
      %v1333 = vpack.c.b16 %v1332, %v1332
      %v1334 = vrot.slane %v1333, 2
      %v1336 = vsel %vm384, %v1314, 0
      %v1339 = vsel %vm384, %v1315, 0
      %v1342 = vsel %vm384, %v1316, 0
      %v1345 = vsel %vm384, %v1317, 0
      %v1348 = vsel %vm384, %v1318, 0
      %v1351 = vsel %vm384, %v1319, 0
      %v1354 = vsel %vm384, %v1320, 0
      %v1357 = vsel %vm384, %v1321, 0
      %v1360 = vsel %vm384, %v1322, 0
      %v1363 = vsel %vm384, %v1323, 0
      %v1366 = vsel %vm384, %v1324, 0
      %v1369 = vsel %vm384, %v1325, 0
      %v1372 = vsel %vm384, %v1326, 0
      %v1375 = vsel %vm384, %v1327, 0
      %v1378 = vsel %vm384, %v1328, 0
      %v1381 = vsel %vm384, %v1329, 0
      %v1384 = vsel %vm612, %v1334, 0
      %1386 = vmatprep.subr.bf16.mxu0 0
      %1387 = vmatpush1.bf16.msra.mxu0 %v1384
      %1388 = vmatprep.subr.bf16.mxu0 0
      %1389 = vmatpush1.bf16.msra.mxu0 0
      %1390 = vmatprep.subr.bf16.mxu0 0
      %1391 = vmatpush1.bf16.msra.mxu0 0
      %1392 = vmatprep.subr.bf16.mxu0 0
      %1393 = vmatpush1.bf16.msra.mxu0 0
      %1394 = vmatprep.subr.bf16.mxu0 0
      %1395 = vmatpush1.bf16.msra.mxu0 0
      %1396 = vmatprep.subr.bf16.mxu0 0
      %1397 = vmatpush1.bf16.msra.mxu0 0
      %1398 = vmatprep.subr.bf16.mxu0 0
      %1399 = vmatpush1.bf16.msra.mxu0 0
      %1400 = vmatprep.subr.bf16.mxu0 0
      %1401 = vmatpush1.bf16.msra.mxu0 0
      %1402 = vmatprep.subr.bf16.mxu0 0
      %1403 = vmatpush1.bf16.msra.mxu0 0
      %1404 = vmatprep.subr.bf16.mxu0 0
      %1405 = vmatpush1.bf16.msra.mxu0 0
      %1406 = vmatprep.subr.bf16.mxu0 0
      %1407 = vmatpush1.bf16.msra.mxu0 0
      %1408 = vmatprep.subr.bf16.mxu0 0
      %1409 = vmatpush1.bf16.msra.mxu0 0
      %1410 = vmatprep.subr.bf16.mxu0 0
      %1411 = vmatpush1.bf16.msra.mxu0 0
      %1412 = vmatprep.subr.bf16.mxu0 0
      %1413 = vmatpush1.bf16.msra.mxu0 0
      %1414 = vmatprep.subr.bf16.mxu0 0
      %1415 = vmatpush1.bf16.msra.mxu0 0
      %1416 = vmatprep.subr.bf16.mxu0 0
      %1417 = vmatpush1.bf16.msra.mxu0 0
      %1418 = vmatprep.mubr.bf16.mxu0 0
      %1419 = vmatmul.mubr.bf16.gmra.mrb[0].mxu0 %v1336
      %v1420 = vpop.f32.mrb[0].mxu0
      %v1421 = vadd.f32 0.0, %v1420
      %v1422 = vpop.f32.mrb[0].mxu0
      %v1423 = vpop.f32.mrb[0].mxu0
      %v1424 = vadd.f32 0.0, %v1423
      %v1425 = vpop.f32.mrb[0].mxu0
      %1426 = vmatprep.mubr.bf16.mxu0 0
      %1427 = vmatmul.mubr.bf16.gmra.mrb[0].mxu0 %v1339
      %v1428 = vpop.f32.mrb[0].mxu0
      %v1429 = vadd.f32 0.0, %v1428
      %v1430 = vpop.f32.mrb[0].mxu0
      %v1431 = vpop.f32.mrb[0].mxu0
      %v1432 = vadd.f32 0.0, %v1431
      %v1433 = vpop.f32.mrb[0].mxu0
      %1434 = vmatprep.mubr.bf16.mxu0 0
      %1435 = vmatmul.mubr.bf16.gmra.mrb[0].mxu0 %v1342
      %v1436 = vpop.f32.mrb[0].mxu0
      %v1437 = vadd.f32 0.0, %v1436
      %v1438 = vpop.f32.mrb[0].mxu0
      %v1439 = vpop.f32.mrb[0].mxu0
      %v1440 = vadd.f32 0.0, %v1439
      %v1441 = vpop.f32.mrb[0].mxu0
      %1442 = vmatprep.mubr.bf16.mxu0 0
      %1443 = vmatmul.mubr.bf16.gmra.mrb[0].mxu0 %v1345
      %v1444 = vpop.f32.mrb[0].mxu0
      %v1445 = vadd.f32 0.0, %v1444
      %v1446 = vpop.f32.mrb[0].mxu0
      %v1447 = vpop.f32.mrb[0].mxu0
      %v1448 = vadd.f32 0.0, %v1447
      %v1449 = vpop.f32.mrb[0].mxu0
      %1450 = vmatprep.mubr.bf16.mxu0 0
      %1451 = vmatmul.mubr.bf16.gmra.mrb[0].mxu0 %v1348
      %v1452 = vpop.f32.mrb[0].mxu0
      %v1453 = vadd.f32 0.0, %v1452
      %v1454 = vpop.f32.mrb[0].mxu0
      %v1455 = vpop.f32.mrb[0].mxu0
      %v1456 = vadd.f32 0.0, %v1455
      %v1457 = vpop.f32.mrb[0].mxu0
      %1458 = vmatprep.mubr.bf16.mxu0 0
      %1459 = vmatmul.mubr.bf16.gmra.mrb[0].mxu0 %v1351
      %v1460 = vpop.f32.mrb[0].mxu0
      %v1461 = vadd.f32 0.0, %v1460
      %v1462 = vpop.f32.mrb[0].mxu0
      %v1463 = vpop.f32.mrb[0].mxu0
      %v1464 = vadd.f32 0.0, %v1463
      %v1465 = vpop.f32.mrb[0].mxu0
      %1466 = vmatprep.mubr.bf16.mxu0 0
      %1467 = vmatmul.mubr.bf16.gmra.mrb[0].mxu0 %v1354
      %v1468 = vpop.f32.mrb[0].mxu0
      %v1469 = vadd.f32 0.0, %v1468
      %v1470 = vpop.f32.mrb[0].mxu0
      %v1471 = vpop.f32.mrb[0].mxu0
      %v1472 = vadd.f32 0.0, %v1471
      %v1473 = vpop.f32.mrb[0].mxu0
      %1474 = vmatprep.mubr.bf16.mxu0 0
      %1475 = vmatmul.mubr.bf16.gmra.mrb[0].mxu0 %v1357
      %v1476 = vpop.f32.mrb[0].mxu0
      %v1477 = vadd.f32 0.0, %v1476
      %v1478 = vpop.f32.mrb[0].mxu0
      %v1479 = vpop.f32.mrb[0].mxu0
      %v1480 = vadd.f32 0.0, %v1479
      %v1481 = vpop.f32.mrb[0].mxu0
      %1482 = vmatprep.mubr.bf16.mxu0 0
      %1483 = vmatmul.mubr.bf16.gmra.mrb[0].mxu0 %v1360
      %v1484 = vpop.f32.mrb[0].mxu0
      %v1485 = vadd.f32 0.0, %v1484
      %v1486 = vpop.f32.mrb[0].mxu0
      %v1487 = vpop.f32.mrb[0].mxu0
      %v1488 = vadd.f32 0.0, %v1487
      %v1489 = vpop.f32.mrb[0].mxu0
      %1490 = vmatprep.mubr.bf16.mxu0 0
      %1491 = vmatmul.mubr.bf16.gmra.mrb[0].mxu0 %v1363
      %v1492 = vpop.f32.mrb[0].mxu0
      %v1493 = vadd.f32 0.0, %v1492
      %v1494 = vpop.f32.mrb[0].mxu0
      %v1495 = vpop.f32.mrb[0].mxu0
      %v1496 = vadd.f32 0.0, %v1495
      %v1497 = vpop.f32.mrb[0].mxu0
      %1498 = vmatprep.mubr.bf16.mxu0 0
      %1499 = vmatmul.mubr.bf16.gmra.mrb[0].mxu0 %v1366
      %v1500 = vpop.f32.mrb[0].mxu0
      %v1501 = vadd.f32 0.0, %v1500
      %v1502 = vpop.f32.mrb[0].mxu0
      %v1503 = vpop.f32.mrb[0].mxu0
      %v1504 = vadd.f32 0.0, %v1503
      %v1505 = vpop.f32.mrb[0].mxu0
      %1506 = vmatprep.mubr.bf16.mxu0 0
      %1507 = vmatmul.mubr.bf16.gmra.mrb[0].mxu0 %v1369
      %v1508 = vpop.f32.mrb[0].mxu0
      %v1509 = vadd.f32 0.0, %v1508
      %v1510 = vpop.f32.mrb[0].mxu0
      %v1511 = vpop.f32.mrb[0].mxu0
      %v1512 = vadd.f32 0.0, %v1511
      %v1513 = vpop.f32.mrb[0].mxu0
      %1514 = vmatprep.mubr.bf16.mxu0 0
      %1515 = vmatmul.mubr.bf16.gmra.mrb[0].mxu0 %v1372
      %v1516 = vpop.f32.mrb[0].mxu0
      %v1517 = vadd.f32 0.0, %v1516
      %v1518 = vpop.f32.mrb[0].mxu0
      %v1519 = vpop.f32.mrb[0].mxu0
      %v1520 = vadd.f32 0.0, %v1519
      %v1521 = vpop.f32.mrb[0].mxu0
      %1522 = vmatprep.mubr.bf16.mxu0 0
      %1523 = vmatmul.mubr.bf16.gmra.mrb[0].mxu0 %v1375
      %v1524 = vpop.f32.mrb[0].mxu0
      %v1525 = vadd.f32 0.0, %v1524
      %v1526 = vpop.f32.mrb[0].mxu0
      %v1527 = vpop.f32.mrb[0].mxu0
      %v1528 = vadd.f32 0.0, %v1527
      %v1529 = vpop.f32.mrb[0].mxu0
      %1530 = vmatprep.mubr.bf16.mxu0 0
      %1531 = vmatmul.mubr.bf16.gmra.mrb[0].mxu0 %v1378
      %v1532 = vpop.f32.mrb[0].mxu0
      %v1533 = vadd.f32 0.0, %v1532
      %v1534 = vpop.f32.mrb[0].mxu0
      %v1535 = vpop.f32.mrb[0].mxu0
      %v1536 = vadd.f32 0.0, %v1535
      %v1537 = vpop.f32.mrb[0].mxu0
      %1538 = vmatprep.mubr.bf16.mxu0 0
      %1539 = vmatmul.mubr.bf16.gmra.mrb[0].mxu0 %v1381
      %v1540 = vpop.f32.mrb[0].mxu0
      %v1541 = vadd.f32 0.0, %v1540
      %v1542 = vpop.f32.mrb[0].mxu0
      %v1543 = vpop.f32.mrb[0].mxu0
      %v1544 = vadd.f32 0.0, %v1543
      %v1545 = vpop.f32.mrb[0].mxu0
      %1546 = vdwg.mxu0
      %v1547 = vadd.f32 %v1250, %v1421
      %v1548 = vadd.f32 %v1251, %v1424
      %v1549 = vadd.f32 %v1252, %v1429
      %v1550 = vadd.f32 %v1253, %v1432
      %v1551 = vadd.f32 %v1254, %v1437
      %v1552 = vadd.f32 %v1255, %v1440
      %v1553 = vadd.f32 %v1256, %v1445
      %v1554 = vadd.f32 %v1257, %v1448
      %v1555 = vadd.f32 %v1258, %v1453
      %v1556 = vadd.f32 %v1259, %v1456
      %v1557 = vadd.f32 %v1260, %v1461
      %v1558 = vadd.f32 %v1261, %v1464
      %v1559 = vadd.f32 %v1262, %v1469
      %v1560 = vadd.f32 %v1263, %v1472
      %v1561 = vadd.f32 %v1264, %v1477
      %v1562 = vadd.f32 %v1265, %v1480
      %v1563 = vadd.f32 %v1266, %v1485
      %v1564 = vadd.f32 %v1267, %v1488
      %v1565 = vadd.f32 %v1268, %v1493
      %v1566 = vadd.f32 %v1269, %v1496
      %v1567 = vadd.f32 %v1270, %v1501
      %v1568 = vadd.f32 %v1271, %v1504
      %v1569 = vadd.f32 %v1272, %v1509
      %v1570 = vadd.f32 %v1273, %v1512
      %v1571 = vadd.f32 %v1274, %v1517
      %v1572 = vadd.f32 %v1275, %v1520
      %v1573 = vadd.f32 %v1276, %v1525
      %v1574 = vadd.f32 %v1277, %v1528
      %v1575 = vadd.f32 %v1278, %v1533
      %v1576 = vadd.f32 %v1279, %v1536
      %v1577 = vadd.f32 %v1280, %v1541
      %v1578 = vadd.f32 %v1281, %v1544
      %v1579 = vld [vmem:[%s383 + $0x1] sm:$0xff]
      %v1580 = vld [vmem:[%s383 + $0x9] sm:$0xff]
      %v1581 = vld [vmem:[%s383 + $0x19] sm:$0xff]
      %v1582 = vld [vmem:[%s383 + $0x21] sm:$0xff]
      %v1583 = vld [vmem:[%s383 + $0x31] sm:$0xff]
      %v1584 = vld [vmem:[%s383 + $0x39] sm:$0xff]
      %v1585 = vld [vmem:[%s383 + $0x49] sm:$0xff]
      %v1586 = vld [vmem:[%s383 + $0x51] sm:$0xff]
      %v1587 = vld [vmem:[%s383 + $0x61] sm:$0xff]
      %v1588 = vld [vmem:[%s383 + $0x69] sm:$0xff]
      %v1589 = vld [vmem:[%s383 + $0x79] sm:$0xff]
      %v1590 = vld [vmem:[%s383 + $0x81] sm:$0xff]
      %v1591 = vld [vmem:[%s383 + $0x91] sm:$0xff]
      %v1592 = vld [vmem:[%s383 + $0x99] sm:$0xff]
      %v1593 = vld [vmem:[%s383 + $0xa9] sm:$0xff]
      %v1594 = vld [vmem:[%s383 + $0xb1] sm:$0xff]
      %v1595 = vld [vmem:[%s383 + $0xc1] sm:$0xff]
      %v1596 = vld [vmem:[%s383 + $0xc9] sm:$0xff]
      %v1597 = vld [vmem:[%s383 + $0xd9] sm:$0xff]
      %v1598 = vld [vmem:[%s383 + $0xe1] sm:$0xff]
      %v1599 = vld [vmem:[%s383 + $0xf1] sm:$0xff]
      %v1600 = vld [vmem:[%s383 + $0xf9] sm:$0xff]
      %v1601 = vld [vmem:[%s383 + $0x109] sm:$0xff]
      %v1602 = vld [vmem:[%s383 + $0x111] sm:$0xff]
      %v1603 = vld [vmem:[%s383 + $0x121] sm:$0xff]
      %v1604 = vld [vmem:[%s383 + $0x129] sm:$0xff]
      %v1605 = vld [vmem:[%s383 + $0x139] sm:$0xff]
      %v1606 = vld [vmem:[%s383 + $0x141] sm:$0xff]
      %v1607 = vld [vmem:[%s383 + $0x151] sm:$0xff]
      %v1608 = vld [vmem:[%s383 + $0x159] sm:$0xff]
      %v1609 = vld [vmem:[%s383 + $0x169] sm:$0xff]
      %v1610 = vld [vmem:[%s383 + $0x171] sm:$0xff]
      %v1611 = vpack.c.bf16 %v1580, %v1579
      %v1612 = vpack.c.bf16 %v1582, %v1581
      %v1613 = vpack.c.bf16 %v1584, %v1583
      %v1614 = vpack.c.bf16 %v1586, %v1585
      %v1615 = vpack.c.bf16 %v1588, %v1587
      %v1616 = vpack.c.bf16 %v1590, %v1589
      %v1617 = vpack.c.bf16 %v1592, %v1591
      %v1618 = vpack.c.bf16 %v1594, %v1593
      %v1619 = vpack.c.bf16 %v1596, %v1595
      %v1620 = vpack.c.bf16 %v1598, %v1597
      %v1621 = vpack.c.bf16 %v1600, %v1599
      %v1622 = vpack.c.bf16 %v1602, %v1601
      %v1623 = vpack.c.bf16 %v1604, %v1603
      %v1624 = vpack.c.bf16 %v1606, %v1605
      %v1625 = vpack.c.bf16 %v1608, %v1607
      %v1626 = vpack.c.bf16 %v1610, %v1609
      %v1627 = vld [vmem:[%s3 + $0x8] sm:$0x3]
      %v1629 = vsel %vm384, %v1611, 0
      %v1632 = vsel %vm384, %v1612, 0
      %v1635 = vsel %vm384, %v1613, 0
      %v1638 = vsel %vm384, %v1614, 0
      %v1641 = vsel %vm384, %v1615, 0
      %v1644 = vsel %vm384, %v1616, 0
      %v1647 = vsel %vm384, %v1617, 0
      %v1650 = vsel %vm384, %v1618, 0
      %v1653 = vsel %vm384, %v1619, 0
      %v1656 = vsel %vm384, %v1620, 0
      %v1659 = vsel %vm384, %v1621, 0
      %v1662 = vsel %vm384, %v1622, 0
      %v1665 = vsel %vm384, %v1623, 0
      %v1668 = vsel %vm384, %v1624, 0
      %v1671 = vsel %vm384, %v1625, 0
      %v1674 = vsel %vm384, %v1626, 0
      %v1677 = vsel %vm612, %v1627, 0
      %1679 = vmatprep.subr.bf16.mxu0 0
      %1680 = vmatpush1.bf16.msra.mxu0 %v1677
      %1681 = vmatprep.subr.bf16.mxu0 0
      %1682 = vmatpush1.bf16.msra.mxu0 0
      %1683 = vmatprep.subr.bf16.mxu0 0
      %1684 = vmatpush1.bf16.msra.mxu0 0
      %1685 = vmatprep.subr.bf16.mxu0 0
      %1686 = vmatpush1.bf16.msra.mxu0 0
      %1687 = vmatprep.subr.bf16.mxu0 0
      %1688 = vmatpush1.bf16.msra.mxu0 0
      %1689 = vmatprep.subr.bf16.mxu0 0
      %1690 = vmatpush1.bf16.msra.mxu0 0
      %1691 = vmatprep.subr.bf16.mxu0 0
      %1692 = vmatpush1.bf16.msra.mxu0 0
      %1693 = vmatprep.subr.bf16.mxu0 0
      %1694 = vmatpush1.bf16.msra.mxu0 0
      %1695 = vmatprep.subr.bf16.mxu0 0
      %1696 = vmatpush1.bf16.msra.mxu0 0
      %1697 = vmatprep.subr.bf16.mxu0 0
      %1698 = vmatpush1.bf16.msra.mxu0 0
      %1699 = vmatprep.subr.bf16.mxu0 0
      %1700 = vmatpush1.bf16.msra.mxu0 0
      %1701 = vmatprep.subr.bf16.mxu0 0
      %1702 = vmatpush1.bf16.msra.mxu0 0
      %1703 = vmatprep.subr.bf16.mxu0 0
      %1704 = vmatpush1.bf16.msra.mxu0 0
      %1705 = vmatprep.subr.bf16.mxu0 0
      %1706 = vmatpush1.bf16.msra.mxu0 0
      %1707 = vmatprep.subr.bf16.mxu0 0
      %1708 = vmatpush1.bf16.msra.mxu0 0
      %1709 = vmatprep.subr.bf16.mxu0 0
      %1710 = vmatpush1.bf16.msra.mxu0 0
      %1711 = vmatprep.mubr.bf16.mxu0 0
      %1712 = vmatmul.mubr.bf16.gmra.mrb[0].mxu0 %v1629
      %v1713 = vpop.f32.mrb[0].mxu0
      %v1714 = vadd.f32 0.0, %v1713
      %v1715 = vpop.f32.mrb[0].mxu0
      %v1716 = vpop.f32.mrb[0].mxu0
      %v1717 = vadd.f32 0.0, %v1716
      %v1718 = vpop.f32.mrb[0].mxu0
      %1719 = vmatprep.mubr.bf16.mxu0 0
      %1720 = vmatmul.mubr.bf16.gmra.mrb[0].mxu0 %v1632
      %v1721 = vpop.f32.mrb[0].mxu0
      %v1722 = vadd.f32 0.0, %v1721
      %v1723 = vpop.f32.mrb[0].mxu0
      %v1724 = vpop.f32.mrb[0].mxu0
      %v1725 = vadd.f32 0.0, %v1724
      %v1726 = vpop.f32.mrb[0].mxu0
      %1727 = vmatprep.mubr.bf16.mxu0 0
      %1728 = vmatmul.mubr.bf16.gmra.mrb[0].mxu0 %v1635
      %v1729 = vpop.f32.mrb[0].mxu0
      %v1730 = vadd.f32 0.0, %v1729
      %v1731 = vpop.f32.mrb[0].mxu0
      %v1732 = vpop.f32.mrb[0].mxu0
      %v1733 = vadd.f32 0.0, %v1732
      %v1734 = vpop.f32.mrb[0].mxu0
      %1735 = vmatprep.mubr.bf16.mxu0 0
      %1736 = vmatmul.mubr.bf16.gmra.mrb[0].mxu0 %v1638
      %v1737 = vpop.f32.mrb[0].mxu0
      %v1738 = vadd.f32 0.0, %v1737
      %v1739 = vpop.f32.mrb[0].mxu0
      %v1740 = vpop.f32.mrb[0].mxu0
      %v1741 = vadd.f32 0.0, %v1740
      %v1742 = vpop.f32.mrb[0].mxu0
      %1743 = vmatprep.mubr.bf16.mxu0 0
      %1744 = vmatmul.mubr.bf16.gmra.mrb[0].mxu0 %v1641
      %v1745 = vpop.f32.mrb[0].mxu0
      %v1746 = vadd.f32 0.0, %v1745
      %v1747 = vpop.f32.mrb[0].mxu0
      %v1748 = vpop.f32.mrb[0].mxu0
      %v1749 = vadd.f32 0.0, %v1748
      %v1750 = vpop.f32.mrb[0].mxu0
      %1751 = vmatprep.mubr.bf16.mxu0 0
      %1752 = vmatmul.mubr.bf16.gmra.mrb[0].mxu0 %v1644
      %v1753 = vpop.f32.mrb[0].mxu0
      %v1754 = vadd.f32 0.0, %v1753
      %v1755 = vpop.f32.mrb[0].mxu0
      %v1756 = vpop.f32.mrb[0].mxu0
      %v1757 = vadd.f32 0.0, %v1756
      %v1758 = vpop.f32.mrb[0].mxu0
      %1759 = vmatprep.mubr.bf16.mxu0 0
      %1760 = vmatmul.mubr.bf16.gmra.mrb[0].mxu0 %v1647
      %v1761 = vpop.f32.mrb[0].mxu0
      %v1762 = vadd.f32 0.0, %v1761
      %v1763 = vpop.f32.mrb[0].mxu0
      %v1764 = vpop.f32.mrb[0].mxu0
      %v1765 = vadd.f32 0.0, %v1764
      %v1766 = vpop.f32.mrb[0].mxu0
      %1767 = vmatprep.mubr.bf16.mxu0 0
      %1768 = vmatmul.mubr.bf16.gmra.mrb[0].mxu0 %v1650
      %v1769 = vpop.f32.mrb[0].mxu0
      %v1770 = vadd.f32 0.0, %v1769
      %v1771 = vpop.f32.mrb[0].mxu0
      %v1772 = vpop.f32.mrb[0].mxu0
      %v1773 = vadd.f32 0.0, %v1772
      %v1774 = vpop.f32.mrb[0].mxu0
      %1775 = vmatprep.mubr.bf16.mxu0 0
      %1776 = vmatmul.mubr.bf16.gmra.mrb[0].mxu0 %v1653
      %v1777 = vpop.f32.mrb[0].mxu0
      %v1778 = vadd.f32 0.0, %v1777
      %v1779 = vpop.f32.mrb[0].mxu0
      %v1780 = vpop.f32.mrb[0].mxu0
      %v1781 = vadd.f32 0.0, %v1780
      %v1782 = vpop.f32.mrb[0].mxu0
      %1783 = vmatprep.mubr.bf16.mxu0 0
      %1784 = vmatmul.mubr.bf16.gmra.mrb[0].mxu0 %v1656
      %v1785 = vpop.f32.mrb[0].mxu0
      %v1786 = vadd.f32 0.0, %v1785
      %v1787 = vpop.f32.mrb[0].mxu0
      %v1788 = vpop.f32.mrb[0].mxu0
      %v1789 = vadd.f32 0.0, %v1788
      %v1790 = vpop.f32.mrb[0].mxu0
      %1791 = vmatprep.mubr.bf16.mxu0 0
      %1792 = vmatmul.mubr.bf16.gmra.mrb[0].mxu0 %v1659
      %v1793 = vpop.f32.mrb[0].mxu0
      %v1794 = vadd.f32 0.0, %v1793
      %v1795 = vpop.f32.mrb[0].mxu0
      %v1796 = vpop.f32.mrb[0].mxu0
      %v1797 = vadd.f32 0.0, %v1796
      %v1798 = vpop.f32.mrb[0].mxu0
      %1799 = vmatprep.mubr.bf16.mxu0 0
      %1800 = vmatmul.mubr.bf16.gmra.mrb[0].mxu0 %v1662
      %v1801 = vpop.f32.mrb[0].mxu0
      %v1802 = vadd.f32 0.0, %v1801
      %v1803 = vpop.f32.mrb[0].mxu0
      %v1804 = vpop.f32.mrb[0].mxu0
      %v1805 = vadd.f32 0.0, %v1804
      %v1806 = vpop.f32.mrb[0].mxu0
      %1807 = vmatprep.mubr.bf16.mxu0 0
      %1808 = vmatmul.mubr.bf16.gmra.mrb[0].mxu0 %v1665
      %v1809 = vpop.f32.mrb[0].mxu0
      %v1810 = vadd.f32 0.0, %v1809
      %v1811 = vpop.f32.mrb[0].mxu0
      %v1812 = vpop.f32.mrb[0].mxu0
      %v1813 = vadd.f32 0.0, %v1812
      %v1814 = vpop.f32.mrb[0].mxu0
      %1815 = vmatprep.mubr.bf16.mxu0 0
      %1816 = vmatmul.mubr.bf16.gmra.mrb[0].mxu0 %v1668
      %v1817 = vpop.f32.mrb[0].mxu0
      %v1818 = vadd.f32 0.0, %v1817
      %v1819 = vpop.f32.mrb[0].mxu0
      %v1820 = vpop.f32.mrb[0].mxu0
      %v1821 = vadd.f32 0.0, %v1820
      %v1822 = vpop.f32.mrb[0].mxu0
      %1823 = vmatprep.mubr.bf16.mxu0 0
      %1824 = vmatmul.mubr.bf16.gmra.mrb[0].mxu0 %v1671
      %v1825 = vpop.f32.mrb[0].mxu0
      %v1826 = vadd.f32 0.0, %v1825
      %v1827 = vpop.f32.mrb[0].mxu0
      %v1828 = vpop.f32.mrb[0].mxu0
      %v1829 = vadd.f32 0.0, %v1828
      %v1830 = vpop.f32.mrb[0].mxu0
      %1831 = vmatprep.mubr.bf16.mxu0 0
      %1832 = vmatmul.mubr.bf16.gmra.mrb[0].mxu0 %v1674
      %v1833 = vpop.f32.mrb[0].mxu0
      %v1834 = vadd.f32 0.0, %v1833
      %v1835 = vpop.f32.mrb[0].mxu0
      %v1836 = vpop.f32.mrb[0].mxu0
      %v1837 = vadd.f32 0.0, %v1836
      %v1838 = vpop.f32.mrb[0].mxu0
      %1839 = vdwg.mxu0
      %v1840 = vadd.f32 %v1547, %v1714
      %v1841 = vadd.f32 %v1548, %v1717
      %v1842 = vadd.f32 %v1549, %v1722
      %v1843 = vadd.f32 %v1550, %v1725
      %v1844 = vadd.f32 %v1551, %v1730
      %v1845 = vadd.f32 %v1552, %v1733
      %v1846 = vadd.f32 %v1553, %v1738
      %v1847 = vadd.f32 %v1554, %v1741
      %v1848 = vadd.f32 %v1555, %v1746
      %v1849 = vadd.f32 %v1556, %v1749
      %v1850 = vadd.f32 %v1557, %v1754
      %v1851 = vadd.f32 %v1558, %v1757
      %v1852 = vadd.f32 %v1559, %v1762
      %v1853 = vadd.f32 %v1560, %v1765
      %v1854 = vadd.f32 %v1561, %v1770
      %v1855 = vadd.f32 %v1562, %v1773
      %v1856 = vadd.f32 %v1563, %v1778
      %v1857 = vadd.f32 %v1564, %v1781
      %v1858 = vadd.f32 %v1565, %v1786
      %v1859 = vadd.f32 %v1566, %v1789
      %v1860 = vadd.f32 %v1567, %v1794
      %v1861 = vadd.f32 %v1568, %v1797
      %v1862 = vadd.f32 %v1569, %v1802
      %v1863 = vadd.f32 %v1570, %v1805
      %v1864 = vadd.f32 %v1571, %v1810
      %v1865 = vadd.f32 %v1572, %v1813
      %v1866 = vadd.f32 %v1573, %v1818
      %v1867 = vadd.f32 %v1574, %v1821
      %v1868 = vadd.f32 %v1575, %v1826
      %v1869 = vadd.f32 %v1576, %v1829
      %v1870 = vadd.f32 %v1577, %v1834
      %v1871 = vadd.f32 %v1578, %v1837
      %v1872 = vld [vmem:[%s383 + $0x2] sm:$0xff]
      %v1873 = vld [vmem:[%s383 + $0xa] sm:$0xff]
      %v1874 = vld [vmem:[%s383 + $0x1a] sm:$0xff]
      %v1875 = vld [vmem:[%s383 + $0x22] sm:$0xff]
      %v1876 = vld [vmem:[%s383 + $0x32] sm:$0xff]
      %v1877 = vld [vmem:[%s383 + $0x3a] sm:$0xff]
      %v1878 = vld [vmem:[%s383 + $0x4a] sm:$0xff]
      %v1879 = vld [vmem:[%s383 + $0x52] sm:$0xff]
      %v1880 = vld [vmem:[%s383 + $0x62] sm:$0xff]
      %v1881 = vld [vmem:[%s383 + $0x6a] sm:$0xff]
      %v1882 = vld [vmem:[%s383 + $0x7a] sm:$0xff]
      %v1883 = vld [vmem:[%s383 + $0x82] sm:$0xff]
      %v1884 = vld [vmem:[%s383 + $0x92] sm:$0xff]
      %v1885 = vld [vmem:[%s383 + $0x9a] sm:$0xff]
      %v1886 = vld [vmem:[%s383 + $0xaa] sm:$0xff]
      %v1887 = vld [vmem:[%s383 + $0xb2] sm:$0xff]
      %v1888 = vld [vmem:[%s383 + $0xc2] sm:$0xff]
      %v1889 = vld [vmem:[%s383 + $0xca] sm:$0xff]
      %v1890 = vld [vmem:[%s383 + $0xda] sm:$0xff]
      %v1891 = vld [vmem:[%s383 + $0xe2] sm:$0xff]
      %v1892 = vld [vmem:[%s383 + $0xf2] sm:$0xff]
      %v1893 = vld [vmem:[%s383 + $0xfa] sm:$0xff]
      %v1894 = vld [vmem:[%s383 + $0x10a] sm:$0xff]
      %v1895 = vld [vmem:[%s383 + $0x112] sm:$0xff]
      %v1896 = vld [vmem:[%s383 + $0x122] sm:$0xff]
      %v1897 = vld [vmem:[%s383 + $0x12a] sm:$0xff]
      %v1898 = vld [vmem:[%s383 + $0x13a] sm:$0xff]
      %v1899 = vld [vmem:[%s383 + $0x142] sm:$0xff]
      %v1900 = vld [vmem:[%s383 + $0x152] sm:$0xff]
      %v1901 = vld [vmem:[%s383 + $0x15a] sm:$0xff]
      %v1902 = vld [vmem:[%s383 + $0x16a] sm:$0xff]
      %v1903 = vld [vmem:[%s383 + $0x172] sm:$0xff]
      %v1904 = vpack.c.bf16 %v1873, %v1872
      %v1905 = vpack.c.bf16 %v1875, %v1874
      %v1906 = vpack.c.bf16 %v1877, %v1876
      %v1907 = vpack.c.bf16 %v1879, %v1878
      %v1908 = vpack.c.bf16 %v1881, %v1880
      %v1909 = vpack.c.bf16 %v1883, %v1882
      %v1910 = vpack.c.bf16 %v1885, %v1884
      %v1911 = vpack.c.bf16 %v1887, %v1886
      %v1912 = vpack.c.bf16 %v1889, %v1888
      %v1913 = vpack.c.bf16 %v1891, %v1890
      %v1914 = vpack.c.bf16 %v1893, %v1892
      %v1915 = vpack.c.bf16 %v1895, %v1894
      %v1916 = vpack.c.bf16 %v1897, %v1896
      %v1917 = vpack.c.bf16 %v1899, %v1898
      %v1918 = vpack.c.bf16 %v1901, %v1900
      %v1919 = vpack.c.bf16 %v1903, %v1902
      %v1920 = vld [vmem:[%s3 + $0x8] sm:$0xc]
      %v1922 = vunpack.c.l.b16 %v1920
      %v1923 = vpack.c.b16 %v1922, %v1922
      %v1924 = vrot.slane %v1923, 2
      %v1926 = vsel %vm384, %v1904, 0
      %v1929 = vsel %vm384, %v1905, 0
      %v1932 = vsel %vm384, %v1906, 0
      %v1935 = vsel %vm384, %v1907, 0
      %v1938 = vsel %vm384, %v1908, 0
      %v1941 = vsel %vm384, %v1909, 0
      %v1944 = vsel %vm384, %v1910, 0
      %v1947 = vsel %vm384, %v1911, 0
      %v1950 = vsel %vm384, %v1912, 0
      %v1953 = vsel %vm384, %v1913, 0
      %v1956 = vsel %vm384, %v1914, 0
      %v1959 = vsel %vm384, %v1915, 0
      %v1962 = vsel %vm384, %v1916, 0
      %v1965 = vsel %vm384, %v1917, 0
      %v1968 = vsel %vm384, %v1918, 0
      %v1971 = vsel %vm384, %v1919, 0
      %v1974 = vsel %vm612, %v1924, 0
      %1976 = vmatprep.subr.bf16.mxu0 0
      %1977 = vmatpush1.bf16.msra.mxu0 %v1974
      %1978 = vmatprep.subr.bf16.mxu0 0
      %1979 = vmatpush1.bf16.msra.mxu0 0
      %1980 = vmatprep.subr.bf16.mxu0 0
      %1981 = vmatpush1.bf16.msra.mxu0 0
      %1982 = vmatprep.subr.bf16.mxu0 0
      %1983 = vmatpush1.bf16.msra.mxu0 0
      %1984 = vmatprep.subr.bf16.mxu0 0
      %1985 = vmatpush1.bf16.msra.mxu0 0
      %1986 = vmatprep.subr.bf16.mxu0 0
      %1987 = vmatpush1.bf16.msra.mxu0 0
      %1988 = vmatprep.subr.bf16.mxu0 0
      %1989 = vmatpush1.bf16.msra.mxu0 0
      %1990 = vmatprep.subr.bf16.mxu0 0
      %1991 = vmatpush1.bf16.msra.mxu0 0
      %1992 = vmatprep.subr.bf16.mxu0 0
      %1993 = vmatpush1.bf16.msra.mxu0 0
      %1994 = vmatprep.subr.bf16.mxu0 0
      %1995 = vmatpush1.bf16.msra.mxu0 0
      %1996 = vmatprep.subr.bf16.mxu0 0
      %1997 = vmatpush1.bf16.msra.mxu0 0
      %1998 = vmatprep.subr.bf16.mxu0 0
      %1999 = vmatpush1.bf16.msra.mxu0 0
      %2000 = vmatprep.subr.bf16.mxu0 0
      %2001 = vmatpush1.bf16.msra.mxu0 0
      %2002 = vmatprep.subr.bf16.mxu0 0
      %2003 = vmatpush1.bf16.msra.mxu0 0
      %2004 = vmatprep.subr.bf16.mxu0 0
      %2005 = vmatpush1.bf16.msra.mxu0 0
      %2006 = vmatprep.subr.bf16.mxu0 0
      %2007 = vmatpush1.bf16.msra.mxu0 0
      %2008 = vmatprep.mubr.bf16.mxu0 0
      %2009 = vmatmul.mubr.bf16.gmra.mrb[0].mxu0 %v1926
      %v2010 = vpop.f32.mrb[0].mxu0
      %v2011 = vadd.f32 0.0, %v2010
      %v2012 = vpop.f32.mrb[0].mxu0
      %v2013 = vpop.f32.mrb[0].mxu0
      %v2014 = vadd.f32 0.0, %v2013
      %v2015 = vpop.f32.mrb[0].mxu0
      %2016 = vmatprep.mubr.bf16.mxu0 0
      %2017 = vmatmul.mubr.bf16.gmra.mrb[0].mxu0 %v1929
      %v2018 = vpop.f32.mrb[0].mxu0
      %v2019 = vadd.f32 0.0, %v2018
      %v2020 = vpop.f32.mrb[0].mxu0
      %v2021 = vpop.f32.mrb[0].mxu0
      %v2022 = vadd.f32 0.0, %v2021
      %v2023 = vpop.f32.mrb[0].mxu0
      %2024 = vmatprep.mubr.bf16.mxu0 0
      %2025 = vmatmul.mubr.bf16.gmra.mrb[0].mxu0 %v1932
      %v2026 = vpop.f32.mrb[0].mxu0
      %v2027 = vadd.f32 0.0, %v2026
      %v2028 = vpop.f32.mrb[0].mxu0
      %v2029 = vpop.f32.mrb[0].mxu0
      %v2030 = vadd.f32 0.0, %v2029
      %v2031 = vpop.f32.mrb[0].mxu0
      %2032 = vmatprep.mubr.bf16.mxu0 0
      %2033 = vmatmul.mubr.bf16.gmra.mrb[0].mxu0 %v1935
      %v2034 = vpop.f32.mrb[0].mxu0
      %v2035 = vadd.f32 0.0, %v2034
      %v2036 = vpop.f32.mrb[0].mxu0
      %v2037 = vpop.f32.mrb[0].mxu0
      %v2038 = vadd.f32 0.0, %v2037
      %v2039 = vpop.f32.mrb[0].mxu0
      %2040 = vmatprep.mubr.bf16.mxu0 0
      %2041 = vmatmul.mubr.bf16.gmra.mrb[0].mxu0 %v1938
      %v2042 = vpop.f32.mrb[0].mxu0
      %v2043 = vadd.f32 0.0, %v2042
      %v2044 = vpop.f32.mrb[0].mxu0
      %v2045 = vpop.f32.mrb[0].mxu0
      %v2046 = vadd.f32 0.0, %v2045
      %v2047 = vpop.f32.mrb[0].mxu0
      %2048 = vmatprep.mubr.bf16.mxu0 0
      %2049 = vmatmul.mubr.bf16.gmra.mrb[0].mxu0 %v1941
      %v2050 = vpop.f32.mrb[0].mxu0
      %v2051 = vadd.f32 0.0, %v2050
      %v2052 = vpop.f32.mrb[0].mxu0
      %v2053 = vpop.f32.mrb[0].mxu0
      %v2054 = vadd.f32 0.0, %v2053
      %v2055 = vpop.f32.mrb[0].mxu0
      %2056 = vmatprep.mubr.bf16.mxu0 0
      %2057 = vmatmul.mubr.bf16.gmra.mrb[0].mxu0 %v1944
      %v2058 = vpop.f32.mrb[0].mxu0
      %v2059 = vadd.f32 0.0, %v2058
      %v2060 = vpop.f32.mrb[0].mxu0
      %v2061 = vpop.f32.mrb[0].mxu0
      %v2062 = vadd.f32 0.0, %v2061
      %v2063 = vpop.f32.mrb[0].mxu0
      %2064 = vmatprep.mubr.bf16.mxu0 0
      %2065 = vmatmul.mubr.bf16.gmra.mrb[0].mxu0 %v1947
      %v2066 = vpop.f32.mrb[0].mxu0
      %v2067 = vadd.f32 0.0, %v2066
      %v2068 = vpop.f32.mrb[0].mxu0
      %v2069 = vpop.f32.mrb[0].mxu0
      %v2070 = vadd.f32 0.0, %v2069
      %v2071 = vpop.f32.mrb[0].mxu0
      %2072 = vmatprep.mubr.bf16.mxu0 0
      %2073 = vmatmul.mubr.bf16.gmra.mrb[0].mxu0 %v1950
      %v2074 = vpop.f32.mrb[0].mxu0
      %v2075 = vadd.f32 0.0, %v2074
      %v2076 = vpop.f32.mrb[0].mxu0
      %v2077 = vpop.f32.mrb[0].mxu0
      %v2078 = vadd.f32 0.0, %v2077
      %v2079 = vpop.f32.mrb[0].mxu0
      %2080 = vmatprep.mubr.bf16.mxu0 0
      %2081 = vmatmul.mubr.bf16.gmra.mrb[0].mxu0 %v1953
      %v2082 = vpop.f32.mrb[0].mxu0
      %v2083 = vadd.f32 0.0, %v2082
      %v2084 = vpop.f32.mrb[0].mxu0
      %v2085 = vpop.f32.mrb[0].mxu0
      %v2086 = vadd.f32 0.0, %v2085
      %v2087 = vpop.f32.mrb[0].mxu0
      %2088 = vmatprep.mubr.bf16.mxu0 0
      %2089 = vmatmul.mubr.bf16.gmra.mrb[0].mxu0 %v1956
      %v2090 = vpop.f32.mrb[0].mxu0
      %v2091 = vadd.f32 0.0, %v2090
      %v2092 = vpop.f32.mrb[0].mxu0
      %v2093 = vpop.f32.mrb[0].mxu0
      %v2094 = vadd.f32 0.0, %v2093
      %v2095 = vpop.f32.mrb[0].mxu0
      %2096 = vmatprep.mubr.bf16.mxu0 0
      %2097 = vmatmul.mubr.bf16.gmra.mrb[0].mxu0 %v1959
      %v2098 = vpop.f32.mrb[0].mxu0
      %v2099 = vadd.f32 0.0, %v2098
      %v2100 = vpop.f32.mrb[0].mxu0
      %v2101 = vpop.f32.mrb[0].mxu0
      %v2102 = vadd.f32 0.0, %v2101
      %v2103 = vpop.f32.mrb[0].mxu0
      %2104 = vmatprep.mubr.bf16.mxu0 0
      %2105 = vmatmul.mubr.bf16.gmra.mrb[0].mxu0 %v1962
      %v2106 = vpop.f32.mrb[0].mxu0
      %v2107 = vadd.f32 0.0, %v2106
      %v2108 = vpop.f32.mrb[0].mxu0
      %v2109 = vpop.f32.mrb[0].mxu0
      %v2110 = vadd.f32 0.0, %v2109
      %v2111 = vpop.f32.mrb[0].mxu0
      %2112 = vmatprep.mubr.bf16.mxu0 0
      %2113 = vmatmul.mubr.bf16.gmra.mrb[0].mxu0 %v1965
      %v2114 = vpop.f32.mrb[0].mxu0
      %v2115 = vadd.f32 0.0, %v2114
      %v2116 = vpop.f32.mrb[0].mxu0
      %v2117 = vpop.f32.mrb[0].mxu0
      %v2118 = vadd.f32 0.0, %v2117
      %v2119 = vpop.f32.mrb[0].mxu0
      %2120 = vmatprep.mubr.bf16.mxu0 0
      %2121 = vmatmul.mubr.bf16.gmra.mrb[0].mxu0 %v1968
      %v2122 = vpop.f32.mrb[0].mxu0
      %v2123 = vadd.f32 0.0, %v2122
      %v2124 = vpop.f32.mrb[0].mxu0
      %v2125 = vpop.f32.mrb[0].mxu0
      %v2126 = vadd.f32 0.0, %v2125
      %v2127 = vpop.f32.mrb[0].mxu0
      %2128 = vmatprep.mubr.bf16.mxu0 0
      %2129 = vmatmul.mubr.bf16.gmra.mrb[0].mxu0 %v1971
      %v2130 = vpop.f32.mrb[0].mxu0
      %v2131 = vadd.f32 0.0, %v2130
      %v2132 = vpop.f32.mrb[0].mxu0
      %v2133 = vpop.f32.mrb[0].mxu0
      %v2134 = vadd.f32 0.0, %v2133
      %v2135 = vpop.f32.mrb[0].mxu0
      %2136 = vdwg.mxu0
      %v2137 = vadd.f32 %v1840, %v2011
      %v2138 = vadd.f32 %v1841, %v2014
      %v2139 = vadd.f32 %v1842, %v2019
      %v2140 = vadd.f32 %v1843, %v2022
      %v2141 = vadd.f32 %v1844, %v2027
      %v2142 = vadd.f32 %v1845, %v2030
      %v2143 = vadd.f32 %v1846, %v2035
      %v2144 = vadd.f32 %v1847, %v2038
      %v2145 = vadd.f32 %v1848, %v2043
      %v2146 = vadd.f32 %v1849, %v2046
      %v2147 = vadd.f32 %v1850, %v2051
      %v2148 = vadd.f32 %v1851, %v2054
      %v2149 = vadd.f32 %v1852, %v2059
      %v2150 = vadd.f32 %v1853, %v2062
      %v2151 = vadd.f32 %v1854, %v2067
      %v2152 = vadd.f32 %v1855, %v2070
      %v2153 = vadd.f32 %v1856, %v2075
      %v2154 = vadd.f32 %v1857, %v2078
      %v2155 = vadd.f32 %v1858, %v2083
      %v2156 = vadd.f32 %v1859, %v2086
      %v2157 = vadd.f32 %v1860, %v2091
      %v2158 = vadd.f32 %v1861, %v2094
      %v2159 = vadd.f32 %v1862, %v2099
      %v2160 = vadd.f32 %v1863, %v2102
      %v2161 = vadd.f32 %v1864, %v2107
      %v2162 = vadd.f32 %v1865, %v2110
      %v2163 = vadd.f32 %v1866, %v2115
      %v2164 = vadd.f32 %v1867, %v2118
      %v2165 = vadd.f32 %v1868, %v2123
      %v2166 = vadd.f32 %v1869, %v2126
      %v2167 = vadd.f32 %v1870, %v2131
      %v2168 = vadd.f32 %v1871, %v2134
      %s2169 = scalar_lea.vmem [#allocation2], 48
      %v2170 = vld [vmem:[%s2169] sm:$0xff]
      %v2171 = vld [vmem:[%s2169 + $0x8] sm:$0xff]
      %v2172 = vld [vmem:[%s2169 + $0x18] sm:$0xff]
      %v2173 = vld [vmem:[%s2169 + $0x20] sm:$0xff]
      %v2174 = vld [vmem:[%s2169 + $0x30] sm:$0xff]
      %v2175 = vld [vmem:[%s2169 + $0x38] sm:$0xff]
      %v2176 = vld [vmem:[%s2169 + $0x48] sm:$0xff]
      %v2177 = vld [vmem:[%s2169 + $0x50] sm:$0xff]
      %v2178 = vld [vmem:[%s2169 + $0x60] sm:$0xff]
      %v2179 = vld [vmem:[%s2169 + $0x68] sm:$0xff]
      %v2180 = vld [vmem:[%s2169 + $0x78] sm:$0xff]
      %v2181 = vld [vmem:[%s2169 + $0x80] sm:$0xff]
      %v2182 = vld [vmem:[%s2169 + $0x90] sm:$0xff]
      %v2183 = vld [vmem:[%s2169 + $0x98] sm:$0xff]
      %v2184 = vld [vmem:[%s2169 + $0xa8] sm:$0xff]
      %v2185 = vld [vmem:[%s2169 + $0xb0] sm:$0xff]
      %v2186 = vld [vmem:[%s2169 + $0xc0] sm:$0xff]
      %v2187 = vld [vmem:[%s2169 + $0xc8] sm:$0xff]
      %v2188 = vld [vmem:[%s2169 + $0xd8] sm:$0xff]
      %v2189 = vld [vmem:[%s2169 + $0xe0] sm:$0xff]
      %v2190 = vld [vmem:[%s2169 + $0xf0] sm:$0xff]
      %v2191 = vld [vmem:[%s2169 + $0xf8] sm:$0xff]
      %v2192 = vld [vmem:[%s2169 + $0x108] sm:$0xff]
      %v2193 = vld [vmem:[%s2169 + $0x110] sm:$0xff]
      %v2194 = vld [vmem:[%s2169 + $0x120] sm:$0xff]
      %v2195 = vld [vmem:[%s2169 + $0x128] sm:$0xff]
      %v2196 = vld [vmem:[%s2169 + $0x138] sm:$0xff]
      %v2197 = vld [vmem:[%s2169 + $0x140] sm:$0xff]
      %v2198 = vld [vmem:[%s2169 + $0x150] sm:$0xff]
      %v2199 = vld [vmem:[%s2169 + $0x158] sm:$0xff]
      %v2200 = vld [vmem:[%s2169 + $0x168] sm:$0xff]
      %v2201 = vld [vmem:[%s2169 + $0x170] sm:$0xff]
      %v2202 = vpack.c.bf16 %v2171, %v2170
      %v2203 = vpack.c.bf16 %v2173, %v2172
      %v2204 = vpack.c.bf16 %v2175, %v2174
      %v2205 = vpack.c.bf16 %v2177, %v2176
      %v2206 = vpack.c.bf16 %v2179, %v2178
      %v2207 = vpack.c.bf16 %v2181, %v2180
      %v2208 = vpack.c.bf16 %v2183, %v2182
      %v2209 = vpack.c.bf16 %v2185, %v2184
      %v2210 = vpack.c.bf16 %v2187, %v2186
      %v2211 = vpack.c.bf16 %v2189, %v2188
      %v2212 = vpack.c.bf16 %v2191, %v2190
      %v2213 = vpack.c.bf16 %v2193, %v2192
      %v2214 = vpack.c.bf16 %v2195, %v2194
      %v2215 = vpack.c.bf16 %v2197, %v2196
      %v2216 = vpack.c.bf16 %v2199, %v2198
      %v2217 = vpack.c.bf16 %v2201, %v2200
      %v2218 = vld [vmem:[%s3 + $0xc] sm:$0x3]
      %v2220 = vsel %vm384, %v2202, 0
      %v2223 = vsel %vm384, %v2203, 0
      %v2226 = vsel %vm384, %v2204, 0
      %v2229 = vsel %vm384, %v2205, 0
      %v2232 = vsel %vm384, %v2206, 0
      %v2235 = vsel %vm384, %v2207, 0
      %v2238 = vsel %vm384, %v2208, 0
      %v2241 = vsel %vm384, %v2209, 0
      %v2244 = vsel %vm384, %v2210, 0
      %v2247 = vsel %vm384, %v2211, 0
      %v2250 = vsel %vm384, %v2212, 0
      %v2253 = vsel %vm384, %v2213, 0
      %v2256 = vsel %vm384, %v2214, 0
      %v2259 = vsel %vm384, %v2215, 0
      %v2262 = vsel %vm384, %v2216, 0
      %v2265 = vsel %vm384, %v2217, 0
      %v2268 = vsel %vm612, %v2218, 0
      %2270 = vmatprep.subr.bf16.mxu0 0
      %2271 = vmatpush1.bf16.msra.mxu0 %v2268
      %2272 = vmatprep.subr.bf16.mxu0 0
      %2273 = vmatpush1.bf16.msra.mxu0 0
      %2274 = vmatprep.subr.bf16.mxu0 0
      %2275 = vmatpush1.bf16.msra.mxu0 0
      %2276 = vmatprep.subr.bf16.mxu0 0
      %2277 = vmatpush1.bf16.msra.mxu0 0
      %2278 = vmatprep.subr.bf16.mxu0 0
      %2279 = vmatpush1.bf16.msra.mxu0 0
      %2280 = vmatprep.subr.bf16.mxu0 0
      %2281 = vmatpush1.bf16.msra.mxu0 0
      %2282 = vmatprep.subr.bf16.mxu0 0
      %2283 = vmatpush1.bf16.msra.mxu0 0
      %2284 = vmatprep.subr.bf16.mxu0 0
      %2285 = vmatpush1.bf16.msra.mxu0 0
      %2286 = vmatprep.subr.bf16.mxu0 0
      %2287 = vmatpush1.bf16.msra.mxu0 0
      %2288 = vmatprep.subr.bf16.mxu0 0
      %2289 = vmatpush1.bf16.msra.mxu0 0
      %2290 = vmatprep.subr.bf16.mxu0 0
      %2291 = vmatpush1.bf16.msra.mxu0 0
      %2292 = vmatprep.subr.bf16.mxu0 0
      %2293 = vmatpush1.bf16.msra.mxu0 0
      %2294 = vmatprep.subr.bf16.mxu0 0
      %2295 = vmatpush1.bf16.msra.mxu0 0
      %2296 = vmatprep.subr.bf16.mxu0 0
      %2297 = vmatpush1.bf16.msra.mxu0 0
      %2298 = vmatprep.subr.bf16.mxu0 0
      %2299 = vmatpush1.bf16.msra.mxu0 0
      %2300 = vmatprep.subr.bf16.mxu0 0
      %2301 = vmatpush1.bf16.msra.mxu0 0
      %2302 = vmatprep.mubr.bf16.mxu0 0
      %2303 = vmatmul.mubr.bf16.gmra.mrb[0].mxu0 %v2220
      %v2304 = vpop.f32.mrb[0].mxu0
      %v2305 = vadd.f32 0.0, %v2304
      %v2306 = vpop.f32.mrb[0].mxu0
      %v2307 = vpop.f32.mrb[0].mxu0
      %v2308 = vadd.f32 0.0, %v2307
      %v2309 = vpop.f32.mrb[0].mxu0
      %2310 = vmatprep.mubr.bf16.mxu0 0
      %2311 = vmatmul.mubr.bf16.gmra.mrb[0].mxu0 %v2223
      %v2312 = vpop.f32.mrb[0].mxu0
      %v2313 = vadd.f32 0.0, %v2312
      %v2314 = vpop.f32.mrb[0].mxu0
      %v2315 = vpop.f32.mrb[0].mxu0
      %v2316 = vadd.f32 0.0, %v2315
      %v2317 = vpop.f32.mrb[0].mxu0
      %2318 = vmatprep.mubr.bf16.mxu0 0
      %2319 = vmatmul.mubr.bf16.gmra.mrb[0].mxu0 %v2226
      %v2320 = vpop.f32.mrb[0].mxu0
      %v2321 = vadd.f32 0.0, %v2320
      %v2322 = vpop.f32.mrb[0].mxu0
      %v2323 = vpop.f32.mrb[0].mxu0
      %v2324 = vadd.f32 0.0, %v2323
      %v2325 = vpop.f32.mrb[0].mxu0
      %2326 = vmatprep.mubr.bf16.mxu0 0
      %2327 = vmatmul.mubr.bf16.gmra.mrb[0].mxu0 %v2229
      %v2328 = vpop.f32.mrb[0].mxu0
      %v2329 = vadd.f32 0.0, %v2328
      %v2330 = vpop.f32.mrb[0].mxu0
      %v2331 = vpop.f32.mrb[0].mxu0
      %v2332 = vadd.f32 0.0, %v2331
      %v2333 = vpop.f32.mrb[0].mxu0
      %2334 = vmatprep.mubr.bf16.mxu0 0
      %2335 = vmatmul.mubr.bf16.gmra.mrb[0].mxu0 %v2232
      %v2336 = vpop.f32.mrb[0].mxu0
      %v2337 = vadd.f32 0.0, %v2336
      %v2338 = vpop.f32.mrb[0].mxu0
      %v2339 = vpop.f32.mrb[0].mxu0
      %v2340 = vadd.f32 0.0, %v2339
      %v2341 = vpop.f32.mrb[0].mxu0
      %2342 = vmatprep.mubr.bf16.mxu0 0
      %2343 = vmatmul.mubr.bf16.gmra.mrb[0].mxu0 %v2235
      %v2344 = vpop.f32.mrb[0].mxu0
      %v2345 = vadd.f32 0.0, %v2344
      %v2346 = vpop.f32.mrb[0].mxu0
      %v2347 = vpop.f32.mrb[0].mxu0
      %v2348 = vadd.f32 0.0, %v2347
      %v2349 = vpop.f32.mrb[0].mxu0
      %2350 = vmatprep.mubr.bf16.mxu0 0
      %2351 = vmatmul.mubr.bf16.gmra.mrb[0].mxu0 %v2238
      %v2352 = vpop.f32.mrb[0].mxu0
      %v2353 = vadd.f32 0.0, %v2352
      %v2354 = vpop.f32.mrb[0].mxu0
      %v2355 = vpop.f32.mrb[0].mxu0
      %v2356 = vadd.f32 0.0, %v2355
      %v2357 = vpop.f32.mrb[0].mxu0
      %2358 = vmatprep.mubr.bf16.mxu0 0
      %2359 = vmatmul.mubr.bf16.gmra.mrb[0].mxu0 %v2241
      %v2360 = vpop.f32.mrb[0].mxu0
      %v2361 = vadd.f32 0.0, %v2360
      %v2362 = vpop.f32.mrb[0].mxu0
      %v2363 = vpop.f32.mrb[0].mxu0
      %v2364 = vadd.f32 0.0, %v2363
      %v2365 = vpop.f32.mrb[0].mxu0
      %2366 = vmatprep.mubr.bf16.mxu0 0
      %2367 = vmatmul.mubr.bf16.gmra.mrb[0].mxu0 %v2244
      %v2368 = vpop.f32.mrb[0].mxu0
      %v2369 = vadd.f32 0.0, %v2368
      %v2370 = vpop.f32.mrb[0].mxu0
      %v2371 = vpop.f32.mrb[0].mxu0
      %v2372 = vadd.f32 0.0, %v2371
      %v2373 = vpop.f32.mrb[0].mxu0
      %2374 = vmatprep.mubr.bf16.mxu0 0
      %2375 = vmatmul.mubr.bf16.gmra.mrb[0].mxu0 %v2247
      %v2376 = vpop.f32.mrb[0].mxu0
      %v2377 = vadd.f32 0.0, %v2376
      %v2378 = vpop.f32.mrb[0].mxu0
      %v2379 = vpop.f32.mrb[0].mxu0
      %v2380 = vadd.f32 0.0, %v2379
      %v2381 = vpop.f32.mrb[0].mxu0
      %2382 = vmatprep.mubr.bf16.mxu0 0
      %2383 = vmatmul.mubr.bf16.gmra.mrb[0].mxu0 %v2250
      %v2384 = vpop.f32.mrb[0].mxu0
      %v2385 = vadd.f32 0.0, %v2384
      %v2386 = vpop.f32.mrb[0].mxu0
      %v2387 = vpop.f32.mrb[0].mxu0
      %v2388 = vadd.f32 0.0, %v2387
      %v2389 = vpop.f32.mrb[0].mxu0
      %2390 = vmatprep.mubr.bf16.mxu0 0
      %2391 = vmatmul.mubr.bf16.gmra.mrb[0].mxu0 %v2253
      %v2392 = vpop.f32.mrb[0].mxu0
      %v2393 = vadd.f32 0.0, %v2392
      %v2394 = vpop.f32.mrb[0].mxu0
      %v2395 = vpop.f32.mrb[0].mxu0
      %v2396 = vadd.f32 0.0, %v2395
      %v2397 = vpop.f32.mrb[0].mxu0
      %2398 = vmatprep.mubr.bf16.mxu0 0
      %2399 = vmatmul.mubr.bf16.gmra.mrb[0].mxu0 %v2256
      %v2400 = vpop.f32.mrb[0].mxu0
      %v2401 = vadd.f32 0.0, %v2400
      %v2402 = vpop.f32.mrb[0].mxu0
      %v2403 = vpop.f32.mrb[0].mxu0
      %v2404 = vadd.f32 0.0, %v2403
      %v2405 = vpop.f32.mrb[0].mxu0
      %2406 = vmatprep.mubr.bf16.mxu0 0
      %2407 = vmatmul.mubr.bf16.gmra.mrb[0].mxu0 %v2259
      %v2408 = vpop.f32.mrb[0].mxu0
      %v2409 = vadd.f32 0.0, %v2408
      %v2410 = vpop.f32.mrb[0].mxu0
      %v2411 = vpop.f32.mrb[0].mxu0
      %v2412 = vadd.f32 0.0, %v2411
      %v2413 = vpop.f32.mrb[0].mxu0
      %2414 = vmatprep.mubr.bf16.mxu0 0
      %2415 = vmatmul.mubr.bf16.gmra.mrb[0].mxu0 %v2262
      %v2416 = vpop.f32.mrb[0].mxu0
      %v2417 = vadd.f32 0.0, %v2416
      %v2418 = vpop.f32.mrb[0].mxu0
      %v2419 = vpop.f32.mrb[0].mxu0
      %v2420 = vadd.f32 0.0, %v2419
      %v2421 = vpop.f32.mrb[0].mxu0
      %2422 = vmatprep.mubr.bf16.mxu0 0
      %2423 = vmatmul.mubr.bf16.gmra.mrb[0].mxu0 %v2265
      %v2424 = vpop.f32.mrb[0].mxu0
      %v2425 = vadd.f32 0.0, %v2424
      %v2426 = vpop.f32.mrb[0].mxu0
      %v2427 = vpop.f32.mrb[0].mxu0
      %v2428 = vadd.f32 0.0, %v2427
      %v2429 = vpop.f32.mrb[0].mxu0
      %2430 = vdwg.mxu0
      %v2431 = vadd.f32 %v2137, %v2305
      %v2432 = vadd.f32 %v2138, %v2308
      %v2433 = vadd.f32 %v2139, %v2313
      %v2434 = vadd.f32 %v2140, %v2316
      %v2435 = vadd.f32 %v2141, %v2321
      %v2436 = vadd.f32 %v2142, %v2324
      %v2437 = vadd.f32 %v2143, %v2329
      %v2438 = vadd.f32 %v2144, %v2332
      %v2439 = vadd.f32 %v2145, %v2337
      %v2440 = vadd.f32 %v2146, %v2340
      %v2441 = vadd.f32 %v2147, %v2345
      %v2442 = vadd.f32 %v2148, %v2348
      %v2443 = vadd.f32 %v2149, %v2353
      %v2444 = vadd.f32 %v2150, %v2356
      %v2445 = vadd.f32 %v2151, %v2361
      %v2446 = vadd.f32 %v2152, %v2364
      %v2447 = vadd.f32 %v2153, %v2369
      %v2448 = vadd.f32 %v2154, %v2372
      %v2449 = vadd.f32 %v2155, %v2377
      %v2450 = vadd.f32 %v2156, %v2380
      %v2451 = vadd.f32 %v2157, %v2385
      %v2452 = vadd.f32 %v2158, %v2388
      %v2453 = vadd.f32 %v2159, %v2393
      %v2454 = vadd.f32 %v2160, %v2396
      %v2455 = vadd.f32 %v2161, %v2401
      %v2456 = vadd.f32 %v2162, %v2404
      %v2457 = vadd.f32 %v2163, %v2409
      %v2458 = vadd.f32 %v2164, %v2412
      %v2459 = vadd.f32 %v2165, %v2417
      %v2460 = vadd.f32 %v2166, %v2420
      %v2461 = vadd.f32 %v2167, %v2425
      %v2462 = vadd.f32 %v2168, %v2428
      %v2463 = vld [vmem:[%s2169 + $0x1] sm:$0xff]
      %v2464 = vld [vmem:[%s2169 + $0x9] sm:$0xff]
      %v2465 = vld [vmem:[%s2169 + $0x19] sm:$0xff]
      %v2466 = vld [vmem:[%s2169 + $0x21] sm:$0xff]
      %v2467 = vld [vmem:[%s2169 + $0x31] sm:$0xff]
      %v2468 = vld [vmem:[%s2169 + $0x39] sm:$0xff]
      %v2469 = vld [vmem:[%s2169 + $0x49] sm:$0xff]
      %v2470 = vld [vmem:[%s2169 + $0x51] sm:$0xff]
      %v2471 = vld [vmem:[%s2169 + $0x61] sm:$0xff]
      %v2472 = vld [vmem:[%s2169 + $0x69] sm:$0xff]
      %v2473 = vld [vmem:[%s2169 + $0x79] sm:$0xff]
      %v2474 = vld [vmem:[%s2169 + $0x81] sm:$0xff]
      %v2475 = vld [vmem:[%s2169 + $0x91] sm:$0xff]
      %v2476 = vld [vmem:[%s2169 + $0x99] sm:$0xff]
      %v2477 = vld [vmem:[%s2169 + $0xa9] sm:$0xff]
      %v2478 = vld [vmem:[%s2169 + $0xb1] sm:$0xff]
      %v2479 = vld [vmem:[%s2169 + $0xc1] sm:$0xff]
      %v2480 = vld [vmem:[%s2169 + $0xc9] sm:$0xff]
      %v2481 = vld [vmem:[%s2169 + $0xd9] sm:$0xff]
      %v2482 = vld [vmem:[%s2169 + $0xe1] sm:$0xff]
      %v2483 = vld [vmem:[%s2169 + $0xf1] sm:$0xff]
      %v2484 = vld [vmem:[%s2169 + $0xf9] sm:$0xff]
      %v2485 = vld [vmem:[%s2169 + $0x109] sm:$0xff]
      %v2486 = vld [vmem:[%s2169 + $0x111] sm:$0xff]
      %v2487 = vld [vmem:[%s2169 + $0x121] sm:$0xff]
      %v2488 = vld [vmem:[%s2169 + $0x129] sm:$0xff]
      %v2489 = vld [vmem:[%s2169 + $0x139] sm:$0xff]
      %v2490 = vld [vmem:[%s2169 + $0x141] sm:$0xff]
      %v2491 = vld [vmem:[%s2169 + $0x151] sm:$0xff]
      %v2492 = vld [vmem:[%s2169 + $0x159] sm:$0xff]
      %v2493 = vld [vmem:[%s2169 + $0x169] sm:$0xff]
      %v2494 = vld [vmem:[%s2169 + $0x171] sm:$0xff]
      %v2495 = vpack.c.bf16 %v2464, %v2463
      %v2496 = vpack.c.bf16 %v2466, %v2465
      %v2497 = vpack.c.bf16 %v2468, %v2467
      %v2498 = vpack.c.bf16 %v2470, %v2469
      %v2499 = vpack.c.bf16 %v2472, %v2471
      %v2500 = vpack.c.bf16 %v2474, %v2473
      %v2501 = vpack.c.bf16 %v2476, %v2475
      %v2502 = vpack.c.bf16 %v2478, %v2477
      %v2503 = vpack.c.bf16 %v2480, %v2479
      %v2504 = vpack.c.bf16 %v2482, %v2481
      %v2505 = vpack.c.bf16 %v2484, %v2483
      %v2506 = vpack.c.bf16 %v2486, %v2485
      %v2507 = vpack.c.bf16 %v2488, %v2487
      %v2508 = vpack.c.bf16 %v2490, %v2489
      %v2509 = vpack.c.bf16 %v2492, %v2491
      %v2510 = vpack.c.bf16 %v2494, %v2493
      %v2511 = vld [vmem:[%s3 + $0xc] sm:$0xc]
      %v2513 = vunpack.c.l.b16 %v2511
      %v2514 = vpack.c.b16 %v2513, %v2513
      %v2515 = vrot.slane %v2514, 2
      %v2517 = vsel %vm384, %v2495, 0
      %v2520 = vsel %vm384, %v2496, 0
      %v2523 = vsel %vm384, %v2497, 0
      %v2526 = vsel %vm384, %v2498, 0
      %v2529 = vsel %vm384, %v2499, 0
      %v2532 = vsel %vm384, %v2500, 0
      %v2535 = vsel %vm384, %v2501, 0
      %v2538 = vsel %vm384, %v2502, 0
      %v2541 = vsel %vm384, %v2503, 0
      %v2544 = vsel %vm384, %v2504, 0
      %v2547 = vsel %vm384, %v2505, 0
      %v2550 = vsel %vm384, %v2506, 0
      %v2553 = vsel %vm384, %v2507, 0
      %v2556 = vsel %vm384, %v2508, 0
      %v2559 = vsel %vm384, %v2509, 0
      %v2562 = vsel %vm384, %v2510, 0
      %v2565 = vsel %vm612, %v2515, 0
      %2567 = vmatprep.subr.bf16.mxu0 0
      %2568 = vmatpush1.bf16.msra.mxu0 %v2565
      %2569 = vmatprep.subr.bf16.mxu0 0
      %2570 = vmatpush1.bf16.msra.mxu0 0
      %2571 = vmatprep.subr.bf16.mxu0 0
      %2572 = vmatpush1.bf16.msra.mxu0 0
      %2573 = vmatprep.subr.bf16.mxu0 0
      %2574 = vmatpush1.bf16.msra.mxu0 0
      %2575 = vmatprep.subr.bf16.mxu0 0
      %2576 = vmatpush1.bf16.msra.mxu0 0
      %2577 = vmatprep.subr.bf16.mxu0 0
      %2578 = vmatpush1.bf16.msra.mxu0 0
      %2579 = vmatprep.subr.bf16.mxu0 0
      %2580 = vmatpush1.bf16.msra.mxu0 0
      %2581 = vmatprep.subr.bf16.mxu0 0
      %2582 = vmatpush1.bf16.msra.mxu0 0
      %2583 = vmatprep.subr.bf16.mxu0 0
      %2584 = vmatpush1.bf16.msra.mxu0 0
      %2585 = vmatprep.subr.bf16.mxu0 0
      %2586 = vmatpush1.bf16.msra.mxu0 0
      %2587 = vmatprep.subr.bf16.mxu0 0
      %2588 = vmatpush1.bf16.msra.mxu0 0
      %2589 = vmatprep.subr.bf16.mxu0 0
      %2590 = vmatpush1.bf16.msra.mxu0 0
      %2591 = vmatprep.subr.bf16.mxu0 0
      %2592 = vmatpush1.bf16.msra.mxu0 0
      %2593 = vmatprep.subr.bf16.mxu0 0
      %2594 = vmatpush1.bf16.msra.mxu0 0
      %2595 = vmatprep.subr.bf16.mxu0 0
      %2596 = vmatpush1.bf16.msra.mxu0 0
      %2597 = vmatprep.subr.bf16.mxu0 0
      %2598 = vmatpush1.bf16.msra.mxu0 0
      %2599 = vmatprep.mubr.bf16.mxu0 0
      %2600 = vmatmul.mubr.bf16.gmra.mrb[0].mxu0 %v2517
      %v2601 = vpop.f32.mrb[0].mxu0
      %v2602 = vadd.f32 0.0, %v2601
      %v2603 = vpop.f32.mrb[0].mxu0
      %v2604 = vpop.f32.mrb[0].mxu0
      %v2605 = vadd.f32 0.0, %v2604
      %v2606 = vpop.f32.mrb[0].mxu0
      %2607 = vmatprep.mubr.bf16.mxu0 0
      %2608 = vmatmul.mubr.bf16.gmra.mrb[0].mxu0 %v2520
      %v2609 = vpop.f32.mrb[0].mxu0
      %v2610 = vadd.f32 0.0, %v2609
      %v2611 = vpop.f32.mrb[0].mxu0
      %v2612 = vpop.f32.mrb[0].mxu0
      %v2613 = vadd.f32 0.0, %v2612
      %v2614 = vpop.f32.mrb[0].mxu0
      %2615 = vmatprep.mubr.bf16.mxu0 0
      %2616 = vmatmul.mubr.bf16.gmra.mrb[0].mxu0 %v2523
      %v2617 = vpop.f32.mrb[0].mxu0
      %v2618 = vadd.f32 0.0, %v2617
      %v2619 = vpop.f32.mrb[0].mxu0
      %v2620 = vpop.f32.mrb[0].mxu0
      %v2621 = vadd.f32 0.0, %v2620
      %v2622 = vpop.f32.mrb[0].mxu0
      %2623 = vmatprep.mubr.bf16.mxu0 0
      %2624 = vmatmul.mubr.bf16.gmra.mrb[0].mxu0 %v2526
      %v2625 = vpop.f32.mrb[0].mxu0
      %v2626 = vadd.f32 0.0, %v2625
      %v2627 = vpop.f32.mrb[0].mxu0
      %v2628 = vpop.f32.mrb[0].mxu0
      %v2629 = vadd.f32 0.0, %v2628
      %v2630 = vpop.f32.mrb[0].mxu0
      %2631 = vmatprep.mubr.bf16.mxu0 0
      %2632 = vmatmul.mubr.bf16.gmra.mrb[0].mxu0 %v2529
      %v2633 = vpop.f32.mrb[0].mxu0
      %v2634 = vadd.f32 0.0, %v2633
      %v2635 = vpop.f32.mrb[0].mxu0
      %v2636 = vpop.f32.mrb[0].mxu0
      %v2637 = vadd.f32 0.0, %v2636
      %v2638 = vpop.f32.mrb[0].mxu0
      %2639 = vmatprep.mubr.bf16.mxu0 0
      %2640 = vmatmul.mubr.bf16.gmra.mrb[0].mxu0 %v2532
      %v2641 = vpop.f32.mrb[0].mxu0
      %v2642 = vadd.f32 0.0, %v2641
      %v2643 = vpop.f32.mrb[0].mxu0
      %v2644 = vpop.f32.mrb[0].mxu0
      %v2645 = vadd.f32 0.0, %v2644
      %v2646 = vpop.f32.mrb[0].mxu0
      %2647 = vmatprep.mubr.bf16.mxu0 0
      %2648 = vmatmul.mubr.bf16.gmra.mrb[0].mxu0 %v2535
      %v2649 = vpop.f32.mrb[0].mxu0
      %v2650 = vadd.f32 0.0, %v2649
      %v2651 = vpop.f32.mrb[0].mxu0
      %v2652 = vpop.f32.mrb[0].mxu0
      %v2653 = vadd.f32 0.0, %v2652
      %v2654 = vpop.f32.mrb[0].mxu0
      %2655 = vmatprep.mubr.bf16.mxu0 0
      %2656 = vmatmul.mubr.bf16.gmra.mrb[0].mxu0 %v2538
      %v2657 = vpop.f32.mrb[0].mxu0
      %v2658 = vadd.f32 0.0, %v2657
      %v2659 = vpop.f32.mrb[0].mxu0
      %v2660 = vpop.f32.mrb[0].mxu0
      %v2661 = vadd.f32 0.0, %v2660
      %v2662 = vpop.f32.mrb[0].mxu0
      %2663 = vmatprep.mubr.bf16.mxu0 0
      %2664 = vmatmul.mubr.bf16.gmra.mrb[0].mxu0 %v2541
      %v2665 = vpop.f32.mrb[0].mxu0
      %v2666 = vadd.f32 0.0, %v2665
      %v2667 = vpop.f32.mrb[0].mxu0
      %v2668 = vpop.f32.mrb[0].mxu0
      %v2669 = vadd.f32 0.0, %v2668
      %v2670 = vpop.f32.mrb[0].mxu0
      %2671 = vmatprep.mubr.bf16.mxu0 0
      %2672 = vmatmul.mubr.bf16.gmra.mrb[0].mxu0 %v2544
      %v2673 = vpop.f32.mrb[0].mxu0
      %v2674 = vadd.f32 0.0, %v2673
      %v2675 = vpop.f32.mrb[0].mxu0
      %v2676 = vpop.f32.mrb[0].mxu0
      %v2677 = vadd.f32 0.0, %v2676
      %v2678 = vpop.f32.mrb[0].mxu0
      %2679 = vmatprep.mubr.bf16.mxu0 0
      %2680 = vmatmul.mubr.bf16.gmra.mrb[0].mxu0 %v2547
      %v2681 = vpop.f32.mrb[0].mxu0
      %v2682 = vadd.f32 0.0, %v2681
      %v2683 = vpop.f32.mrb[0].mxu0
      %v2684 = vpop.f32.mrb[0].mxu0
      %v2685 = vadd.f32 0.0, %v2684
      %v2686 = vpop.f32.mrb[0].mxu0
      %2687 = vmatprep.mubr.bf16.mxu0 0
      %2688 = vmatmul.mubr.bf16.gmra.mrb[0].mxu0 %v2550
      %v2689 = vpop.f32.mrb[0].mxu0
      %v2690 = vadd.f32 0.0, %v2689
      %v2691 = vpop.f32.mrb[0].mxu0
      %v2692 = vpop.f32.mrb[0].mxu0
      %v2693 = vadd.f32 0.0, %v2692
      %v2694 = vpop.f32.mrb[0].mxu0
      %2695 = vmatprep.mubr.bf16.mxu0 0
      %2696 = vmatmul.mubr.bf16.gmra.mrb[0].mxu0 %v2553
      %v2697 = vpop.f32.mrb[0].mxu0
      %v2698 = vadd.f32 0.0, %v2697
      %v2699 = vpop.f32.mrb[0].mxu0
      %v2700 = vpop.f32.mrb[0].mxu0
      %v2701 = vadd.f32 0.0, %v2700
      %v2702 = vpop.f32.mrb[0].mxu0
      %2703 = vmatprep.mubr.bf16.mxu0 0
      %2704 = vmatmul.mubr.bf16.gmra.mrb[0].mxu0 %v2556
      %v2705 = vpop.f32.mrb[0].mxu0
      %v2706 = vadd.f32 0.0, %v2705
      %v2707 = vpop.f32.mrb[0].mxu0
      %v2708 = vpop.f32.mrb[0].mxu0
      %v2709 = vadd.f32 0.0, %v2708
      %v2710 = vpop.f32.mrb[0].mxu0
      %2711 = vmatprep.mubr.bf16.mxu0 0
      %2712 = vmatmul.mubr.bf16.gmra.mrb[0].mxu0 %v2559
      %v2713 = vpop.f32.mrb[0].mxu0
      %v2714 = vadd.f32 0.0, %v2713
      %v2715 = vpop.f32.mrb[0].mxu0
      %v2716 = vpop.f32.mrb[0].mxu0
      %v2717 = vadd.f32 0.0, %v2716
      %v2718 = vpop.f32.mrb[0].mxu0
      %2719 = vmatprep.mubr.bf16.mxu0 0
      %2720 = vmatmul.mubr.bf16.gmra.mrb[0].mxu0 %v2562
      %v2721 = vpop.f32.mrb[0].mxu0
      %v2722 = vadd.f32 0.0, %v2721
      %v2723 = vpop.f32.mrb[0].mxu0
      %v2724 = vpop.f32.mrb[0].mxu0
      %v2725 = vadd.f32 0.0, %v2724
      %v2726 = vpop.f32.mrb[0].mxu0
      %2727 = vdwg.mxu0
      %v2728 = vadd.f32 %v2431, %v2602
      %v2729 = vadd.f32 %v2432, %v2605
      %v2730 = vadd.f32 %v2433, %v2610
      %v2731 = vadd.f32 %v2434, %v2613
      %v2732 = vadd.f32 %v2435, %v2618
      %v2733 = vadd.f32 %v2436, %v2621
      %v2734 = vadd.f32 %v2437, %v2626
      %v2735 = vadd.f32 %v2438, %v2629
      %v2736 = vadd.f32 %v2439, %v2634
      %v2737 = vadd.f32 %v2440, %v2637
      %v2738 = vadd.f32 %v2441, %v2642
      %v2739 = vadd.f32 %v2442, %v2645
      %v2740 = vadd.f32 %v2443, %v2650
      %v2741 = vadd.f32 %v2444, %v2653
      %v2742 = vadd.f32 %v2445, %v2658
      %v2743 = vadd.f32 %v2446, %v2661
      %v2744 = vadd.f32 %v2447, %v2666
      %v2745 = vadd.f32 %v2448, %v2669
      %v2746 = vadd.f32 %v2449, %v2674
      %v2747 = vadd.f32 %v2450, %v2677
      %v2748 = vadd.f32 %v2451, %v2682
      %v2749 = vadd.f32 %v2452, %v2685
      %v2750 = vadd.f32 %v2453, %v2690
      %v2751 = vadd.f32 %v2454, %v2693
      %v2752 = vadd.f32 %v2455, %v2698
      %v2753 = vadd.f32 %v2456, %v2701
      %v2754 = vadd.f32 %v2457, %v2706
      %v2755 = vadd.f32 %v2458, %v2709
      %v2756 = vadd.f32 %v2459, %v2714
      %v2757 = vadd.f32 %v2460, %v2717
      %v2758 = vadd.f32 %v2461, %v2722
      %v2759 = vadd.f32 %v2462, %v2725
      %v2760 = vld [vmem:[%s2169 + $0x2] sm:$0xff]
      %v2761 = vld [vmem:[%s2169 + $0xa] sm:$0xff]
      %v2762 = vld [vmem:[%s2169 + $0x1a] sm:$0xff]
      %v2763 = vld [vmem:[%s2169 + $0x22] sm:$0xff]
      %v2764 = vld [vmem:[%s2169 + $0x32] sm:$0xff]
      %v2765 = vld [vmem:[%s2169 + $0x3a] sm:$0xff]
      %v2766 = vld [vmem:[%s2169 + $0x4a] sm:$0xff]
      %v2767 = vld [vmem:[%s2169 + $0x52] sm:$0xff]
      %v2768 = vld [vmem:[%s2169 + $0x62] sm:$0xff]
      %v2769 = vld [vmem:[%s2169 + $0x6a] sm:$0xff]
      %v2770 = vld [vmem:[%s2169 + $0x7a] sm:$0xff]
      %v2771 = vld [vmem:[%s2169 + $0x82] sm:$0xff]
      %v2772 = vld [vmem:[%s2169 + $0x92] sm:$0xff]
      %v2773 = vld [vmem:[%s2169 + $0x9a] sm:$0xff]
      %v2774 = vld [vmem:[%s2169 + $0xaa] sm:$0xff]
      %v2775 = vld [vmem:[%s2169 + $0xb2] sm:$0xff]
      %v2776 = vld [vmem:[%s2169 + $0xc2] sm:$0xff]
      %v2777 = vld [vmem:[%s2169 + $0xca] sm:$0xff]
      %v2778 = vld [vmem:[%s2169 + $0xda] sm:$0xff]
      %v2779 = vld [vmem:[%s2169 + $0xe2] sm:$0xff]
      %v2780 = vld [vmem:[%s2169 + $0xf2] sm:$0xff]
      %v2781 = vld [vmem:[%s2169 + $0xfa] sm:$0xff]
      %v2782 = vld [vmem:[%s2169 + $0x10a] sm:$0xff]
      %v2783 = vld [vmem:[%s2169 + $0x112] sm:$0xff]
      %v2784 = vld [vmem:[%s2169 + $0x122] sm:$0xff]
      %v2785 = vld [vmem:[%s2169 + $0x12a] sm:$0xff]
      %v2786 = vld [vmem:[%s2169 + $0x13a] sm:$0xff]
      %v2787 = vld [vmem:[%s2169 + $0x142] sm:$0xff]
      %v2788 = vld [vmem:[%s2169 + $0x152] sm:$0xff]
      %v2789 = vld [vmem:[%s2169 + $0x15a] sm:$0xff]
      %v2790 = vld [vmem:[%s2169 + $0x16a] sm:$0xff]
      %v2791 = vld [vmem:[%s2169 + $0x172] sm:$0xff]
      %v2792 = vpack.c.bf16 %v2761, %v2760
      %v2793 = vpack.c.bf16 %v2763, %v2762
      %v2794 = vpack.c.bf16 %v2765, %v2764
      %v2795 = vpack.c.bf16 %v2767, %v2766
      %v2796 = vpack.c.bf16 %v2769, %v2768
      %v2797 = vpack.c.bf16 %v2771, %v2770
      %v2798 = vpack.c.bf16 %v2773, %v2772
      %v2799 = vpack.c.bf16 %v2775, %v2774
      %v2800 = vpack.c.bf16 %v2777, %v2776
      %v2801 = vpack.c.bf16 %v2779, %v2778
      %v2802 = vpack.c.bf16 %v2781, %v2780
      %v2803 = vpack.c.bf16 %v2783, %v2782
      %v2804 = vpack.c.bf16 %v2785, %v2784
      %v2805 = vpack.c.bf16 %v2787, %v2786
      %v2806 = vpack.c.bf16 %v2789, %v2788
      %v2807 = vpack.c.bf16 %v2791, %v2790
      %v2808 = vld [vmem:[%s3 + $0x10] sm:$0x3]
      %v2810 = vsel %vm384, %v2792, 0
      %v2813 = vsel %vm384, %v2793, 0
      %v2816 = vsel %vm384, %v2794, 0
      %v2819 = vsel %vm384, %v2795, 0
      %v2822 = vsel %vm384, %v2796, 0
      %v2825 = vsel %vm384, %v2797, 0
      %v2828 = vsel %vm384, %v2798, 0
      %v2831 = vsel %vm384, %v2799, 0
      %v2834 = vsel %vm384, %v2800, 0
      %v2837 = vsel %vm384, %v2801, 0
      %v2840 = vsel %vm384, %v2802, 0
      %v2843 = vsel %vm384, %v2803, 0
      %v2846 = vsel %vm384, %v2804, 0
      %v2849 = vsel %vm384, %v2805, 0
      %v2852 = vsel %vm384, %v2806, 0
      %v2855 = vsel %vm384, %v2807, 0
      %v2858 = vsel %vm612, %v2808, 0
      %2860 = vmatprep.subr.bf16.mxu0 0
      %2861 = vmatpush1.bf16.msra.mxu0 %v2858
      %2862 = vmatprep.subr.bf16.mxu0 0
      %2863 = vmatpush1.bf16.msra.mxu0 0
      %2864 = vmatprep.subr.bf16.mxu0 0
      %2865 = vmatpush1.bf16.msra.mxu0 0
      %2866 = vmatprep.subr.bf16.mxu0 0
      %2867 = vmatpush1.bf16.msra.mxu0 0
      %2868 = vmatprep.subr.bf16.mxu0 0
      %2869 = vmatpush1.bf16.msra.mxu0 0
      %2870 = vmatprep.subr.bf16.mxu0 0
      %2871 = vmatpush1.bf16.msra.mxu0 0
      %2872 = vmatprep.subr.bf16.mxu0 0
      %2873 = vmatpush1.bf16.msra.mxu0 0
      %2874 = vmatprep.subr.bf16.mxu0 0
      %2875 = vmatpush1.bf16.msra.mxu0 0
      %2876 = vmatprep.subr.bf16.mxu0 0
      %2877 = vmatpush1.bf16.msra.mxu0 0
      %2878 = vmatprep.subr.bf16.mxu0 0
      %2879 = vmatpush1.bf16.msra.mxu0 0
      %2880 = vmatprep.subr.bf16.mxu0 0
      %2881 = vmatpush1.bf16.msra.mxu0 0
      %2882 = vmatprep.subr.bf16.mxu0 0
      %2883 = vmatpush1.bf16.msra.mxu0 0
      %2884 = vmatprep.subr.bf16.mxu0 0
      %2885 = vmatpush1.bf16.msra.mxu0 0
      %2886 = vmatprep.subr.bf16.mxu0 0
      %2887 = vmatpush1.bf16.msra.mxu0 0
      %2888 = vmatprep.subr.bf16.mxu0 0
      %2889 = vmatpush1.bf16.msra.mxu0 0
      %2890 = vmatprep.subr.bf16.mxu0 0
      %2891 = vmatpush1.bf16.msra.mxu0 0
      %2892 = vmatprep.mubr.bf16.mxu0 0
      %2893 = vmatmul.mubr.bf16.gmra.mrb[0].mxu0 %v2810
      %v2894 = vpop.f32.mrb[0].mxu0
      %v2895 = vadd.f32 0.0, %v2894
      %v2896 = vpop.f32.mrb[0].mxu0
      %v2897 = vpop.f32.mrb[0].mxu0
      %v2898 = vadd.f32 0.0, %v2897
      %v2899 = vpop.f32.mrb[0].mxu0
      %2900 = vmatprep.mubr.bf16.mxu0 0
      %2901 = vmatmul.mubr.bf16.gmra.mrb[0].mxu0 %v2813
      %v2902 = vpop.f32.mrb[0].mxu0
      %v2903 = vadd.f32 0.0, %v2902
      %v2904 = vpop.f32.mrb[0].mxu0
      %v2905 = vpop.f32.mrb[0].mxu0
      %v2906 = vadd.f32 0.0, %v2905
      %v2907 = vpop.f32.mrb[0].mxu0
      %2908 = vmatprep.mubr.bf16.mxu0 0
      %2909 = vmatmul.mubr.bf16.gmra.mrb[0].mxu0 %v2816
      %v2910 = vpop.f32.mrb[0].mxu0
      %v2911 = vadd.f32 0.0, %v2910
      %v2912 = vpop.f32.mrb[0].mxu0
      %v2913 = vpop.f32.mrb[0].mxu0
      %v2914 = vadd.f32 0.0, %v2913
      %v2915 = vpop.f32.mrb[0].mxu0
      %2916 = vmatprep.mubr.bf16.mxu0 0
      %2917 = vmatmul.mubr.bf16.gmra.mrb[0].mxu0 %v2819
      %v2918 = vpop.f32.mrb[0].mxu0
      %v2919 = vadd.f32 0.0, %v2918
      %v2920 = vpop.f32.mrb[0].mxu0
      %v2921 = vpop.f32.mrb[0].mxu0
      %v2922 = vadd.f32 0.0, %v2921
      %v2923 = vpop.f32.mrb[0].mxu0
      %2924 = vmatprep.mubr.bf16.mxu0 0
      %2925 = vmatmul.mubr.bf16.gmra.mrb[0].mxu0 %v2822
      %v2926 = vpop.f32.mrb[0].mxu0
      %v2927 = vadd.f32 0.0, %v2926
      %v2928 = vpop.f32.mrb[0].mxu0
      %v2929 = vpop.f32.mrb[0].mxu0
      %v2930 = vadd.f32 0.0, %v2929
      %v2931 = vpop.f32.mrb[0].mxu0
      %2932 = vmatprep.mubr.bf16.mxu0 0
      %2933 = vmatmul.mubr.bf16.gmra.mrb[0].mxu0 %v2825
      %v2934 = vpop.f32.mrb[0].mxu0
      %v2935 = vadd.f32 0.0, %v2934
      %v2936 = vpop.f32.mrb[0].mxu0
      %v2937 = vpop.f32.mrb[0].mxu0
      %v2938 = vadd.f32 0.0, %v2937
      %v2939 = vpop.f32.mrb[0].mxu0
      %2940 = vmatprep.mubr.bf16.mxu0 0
      %2941 = vmatmul.mubr.bf16.gmra.mrb[0].mxu0 %v2828
      %v2942 = vpop.f32.mrb[0].mxu0
      %v2943 = vadd.f32 0.0, %v2942
      %v2944 = vpop.f32.mrb[0].mxu0
      %v2945 = vpop.f32.mrb[0].mxu0
      %v2946 = vadd.f32 0.0, %v2945
      %v2947 = vpop.f32.mrb[0].mxu0
      %2948 = vmatprep.mubr.bf16.mxu0 0
      %2949 = vmatmul.mubr.bf16.gmra.mrb[0].mxu0 %v2831
      %v2950 = vpop.f32.mrb[0].mxu0
      %v2951 = vadd.f32 0.0, %v2950
      %v2952 = vpop.f32.mrb[0].mxu0
      %v2953 = vpop.f32.mrb[0].mxu0
      %v2954 = vadd.f32 0.0, %v2953
      %v2955 = vpop.f32.mrb[0].mxu0
      %2956 = vmatprep.mubr.bf16.mxu0 0
      %2957 = vmatmul.mubr.bf16.gmra.mrb[0].mxu0 %v2834
      %v2958 = vpop.f32.mrb[0].mxu0
      %v2959 = vadd.f32 0.0, %v2958
      %v2960 = vpop.f32.mrb[0].mxu0
      %v2961 = vpop.f32.mrb[0].mxu0
      %v2962 = vadd.f32 0.0, %v2961
      %v2963 = vpop.f32.mrb[0].mxu0
      %2964 = vmatprep.mubr.bf16.mxu0 0
      %2965 = vmatmul.mubr.bf16.gmra.mrb[0].mxu0 %v2837
      %v2966 = vpop.f32.mrb[0].mxu0
      %v2967 = vadd.f32 0.0, %v2966
      %v2968 = vpop.f32.mrb[0].mxu0
      %v2969 = vpop.f32.mrb[0].mxu0
      %v2970 = vadd.f32 0.0, %v2969
      %v2971 = vpop.f32.mrb[0].mxu0
      %2972 = vmatprep.mubr.bf16.mxu0 0
      %2973 = vmatmul.mubr.bf16.gmra.mrb[0].mxu0 %v2840
      %v2974 = vpop.f32.mrb[0].mxu0
      %v2975 = vadd.f32 0.0, %v2974
      %v2976 = vpop.f32.mrb[0].mxu0
      %v2977 = vpop.f32.mrb[0].mxu0
      %v2978 = vadd.f32 0.0, %v2977
      %v2979 = vpop.f32.mrb[0].mxu0
      %2980 = vmatprep.mubr.bf16.mxu0 0
      %2981 = vmatmul.mubr.bf16.gmra.mrb[0].mxu0 %v2843
      %v2982 = vpop.f32.mrb[0].mxu0
      %v2983 = vadd.f32 0.0, %v2982
      %v2984 = vpop.f32.mrb[0].mxu0
      %v2985 = vpop.f32.mrb[0].mxu0
      %v2986 = vadd.f32 0.0, %v2985
      %v2987 = vpop.f32.mrb[0].mxu0
      %2988 = vmatprep.mubr.bf16.mxu0 0
      %2989 = vmatmul.mubr.bf16.gmra.mrb[0].mxu0 %v2846
      %v2990 = vpop.f32.mrb[0].mxu0
      %v2991 = vadd.f32 0.0, %v2990
      %v2992 = vpop.f32.mrb[0].mxu0
      %v2993 = vpop.f32.mrb[0].mxu0
      %v2994 = vadd.f32 0.0, %v2993
      %v2995 = vpop.f32.mrb[0].mxu0
      %2996 = vmatprep.mubr.bf16.mxu0 0
      %2997 = vmatmul.mubr.bf16.gmra.mrb[0].mxu0 %v2849
      %v2998 = vpop.f32.mrb[0].mxu0
      %v2999 = vadd.f32 0.0, %v2998
      %v3000 = vpop.f32.mrb[0].mxu0
      %v3001 = vpop.f32.mrb[0].mxu0
      %v3002 = vadd.f32 0.0, %v3001
      %v3003 = vpop.f32.mrb[0].mxu0
      %3004 = vmatprep.mubr.bf16.mxu0 0
      %3005 = vmatmul.mubr.bf16.gmra.mrb[0].mxu0 %v2852
      %v3006 = vpop.f32.mrb[0].mxu0
      %v3007 = vadd.f32 0.0, %v3006
      %v3008 = vpop.f32.mrb[0].mxu0
      %v3009 = vpop.f32.mrb[0].mxu0
      %v3010 = vadd.f32 0.0, %v3009
      %v3011 = vpop.f32.mrb[0].mxu0
      %3012 = vmatprep.mubr.bf16.mxu0 0
      %3013 = vmatmul.mubr.bf16.gmra.mrb[0].mxu0 %v2855
      %v3014 = vpop.f32.mrb[0].mxu0
      %v3015 = vadd.f32 0.0, %v3014
      %v3016 = vpop.f32.mrb[0].mxu0
      %v3017 = vpop.f32.mrb[0].mxu0
      %v3018 = vadd.f32 0.0, %v3017
      %v3019 = vpop.f32.mrb[0].mxu0
      %3020 = vdwg.mxu0
      %v3021 = vadd.f32 %v2728, %v2895
      %v3022 = vadd.f32 %v2729, %v2898
      %v3023 = vadd.f32 %v2730, %v2903
      %v3024 = vadd.f32 %v2731, %v2906
      %v3025 = vadd.f32 %v2732, %v2911
      %v3026 = vadd.f32 %v2733, %v2914
      %v3027 = vadd.f32 %v2734, %v2919
      %v3028 = vadd.f32 %v2735, %v2922
      %v3029 = vadd.f32 %v2736, %v2927
      %v3030 = vadd.f32 %v2737, %v2930
      %v3031 = vadd.f32 %v2738, %v2935
      %v3032 = vadd.f32 %v2739, %v2938
      %v3033 = vadd.f32 %v2740, %v2943
      %v3034 = vadd.f32 %v2741, %v2946
      %v3035 = vadd.f32 %v2742, %v2951
      %v3036 = vadd.f32 %v2743, %v2954
      %v3037 = vadd.f32 %v2744, %v2959
      %v3038 = vadd.f32 %v2745, %v2962
      %v3039 = vadd.f32 %v2746, %v2967
      %v3040 = vadd.f32 %v2747, %v2970
      %v3041 = vadd.f32 %v2748, %v2975
      %v3042 = vadd.f32 %v2749, %v2978
      %v3043 = vadd.f32 %v2750, %v2983
      %v3044 = vadd.f32 %v2751, %v2986
      %v3045 = vadd.f32 %v2752, %v2991
      %v3046 = vadd.f32 %v2753, %v2994
      %v3047 = vadd.f32 %v2754, %v2999
      %v3048 = vadd.f32 %v2755, %v3002
      %v3049 = vadd.f32 %v2756, %v3007
      %v3050 = vadd.f32 %v2757, %v3010
      %v3051 = vadd.f32 %v2758, %v3015
      %v3052 = vadd.f32 %v2759, %v3018
      %v3053 = vpack.c.bf16 %v3022, %v3021
      %v3054 = vpack.c.bf16 %v3024, %v3023
      %v3055 = vpack.c.bf16 %v3026, %v3025
      %v3056 = vpack.c.bf16 %v3028, %v3027
      %v3057 = vpack.c.bf16 %v3030, %v3029
      %v3058 = vpack.c.bf16 %v3032, %v3031
      %v3059 = vpack.c.bf16 %v3034, %v3033
      %v3060 = vpack.c.bf16 %v3036, %v3035
      %v3061 = vpack.c.bf16 %v3038, %v3037
      %v3062 = vpack.c.bf16 %v3040, %v3039
      %v3063 = vpack.c.bf16 %v3042, %v3041
      %v3064 = vpack.c.bf16 %v3044, %v3043
      %v3065 = vpack.c.bf16 %v3046, %v3045
      %v3066 = vpack.c.bf16 %v3048, %v3047
      %v3067 = vpack.c.bf16 %v3050, %v3049
      %v3068 = vpack.c.bf16 %v3052, %v3051
      %v3085 = vunpack.c.l.b16 %v3053
      %v3086 = vunpack.c.h.b16 %v3053
      %v3087 = vunpack.c.l.b16 %v3054
      %v3088 = vunpack.c.h.b16 %v3054
      %v3089 = vunpack.c.l.b16 %v3055
      %v3090 = vunpack.c.h.b16 %v3055
      %v3091 = vunpack.c.l.b16 %v3056
      %v3092 = vunpack.c.h.b16 %v3056
      %v3093 = vunpack.c.l.b16 %v3057
      %v3094 = vunpack.c.h.b16 %v3057
      %v3095 = vunpack.c.l.b16 %v3058
      %v3096 = vunpack.c.h.b16 %v3058
      %v3097 = vunpack.c.l.b16 %v3059
      %v3098 = vunpack.c.h.b16 %v3059
      %v3099 = vunpack.c.l.b16 %v3060
      %v3100 = vunpack.c.h.b16 %v3060
      %v3101 = vunpack.c.l.b16 %v3061
      %v3102 = vunpack.c.h.b16 %v3061
      %v3103 = vunpack.c.l.b16 %v3062
      %v3104 = vunpack.c.h.b16 %v3062
      %v3105 = vunpack.c.l.b16 %v3063
      %v3106 = vunpack.c.h.b16 %v3063
      %v3107 = vunpack.c.l.b16 %v3064
      %v3108 = vunpack.c.h.b16 %v3064
      %v3109 = vunpack.c.l.b16 %v3065
      %v3110 = vunpack.c.h.b16 %v3065
      %v3111 = vunpack.c.l.b16 %v3066
      %v3112 = vunpack.c.h.b16 %v3066
      %v3113 = vunpack.c.l.b16 %v3067
      %v3114 = vunpack.c.h.b16 %v3067
      %v3115 = vunpack.c.l.b16 %v3068
      %v3116 = vunpack.c.h.b16 %v3068
      %v3117 = vpack.c.b16 %v3085, %v3085
      %v3118 = vpack.c.b16 %v3086, %v3086
      %v3119 = vpack.c.b16 %v3087, %v3087
      %v3120 = vpack.c.b16 %v3088, %v3088
      %v3121 = vpack.c.b16 %v3089, %v3089
      %v3122 = vpack.c.b16 %v3090, %v3090
      %v3123 = vpack.c.b16 %v3091, %v3091
      %v3124 = vpack.c.b16 %v3092, %v3092
      %v3125 = vpack.c.b16 %v3093, %v3093
      %v3126 = vpack.c.b16 %v3094, %v3094
      %v3127 = vpack.c.b16 %v3095, %v3095
      %v3128 = vpack.c.b16 %v3096, %v3096
      %v3129 = vpack.c.b16 %v3097, %v3097
      %v3130 = vpack.c.b16 %v3098, %v3098
      %v3131 = vpack.c.b16 %v3099, %v3099
      %v3132 = vpack.c.b16 %v3100, %v3100
      %v3133 = vpack.c.b16 %v3101, %v3101
      %v3134 = vpack.c.b16 %v3102, %v3102
      %v3135 = vpack.c.b16 %v3103, %v3103
      %v3136 = vpack.c.b16 %v3104, %v3104
      %v3137 = vpack.c.b16 %v3105, %v3105
      %v3138 = vpack.c.b16 %v3106, %v3106
      %v3139 = vpack.c.b16 %v3107, %v3107
      %v3140 = vpack.c.b16 %v3108, %v3108
      %v3141 = vpack.c.b16 %v3109, %v3109
      %v3142 = vpack.c.b16 %v3110, %v3110
      %v3143 = vpack.c.b16 %v3111, %v3111
      %v3144 = vpack.c.b16 %v3112, %v3112
      %v3145 = vpack.c.b16 %v3113, %v3113
      %v3146 = vpack.c.b16 %v3114, %v3114
      %v3147 = vpack.c.b16 %v3115, %v3115
      %v3148 = vpack.c.b16 %v3116, %v3116
      %vm3181 = vcmask 27648
      %3182 = vst.msk [vmem:[%s231] sm:$0xf] %vm3181, %v3117
      %3183 = vst.msk [vmem:[%s231 + $0x4] sm:$0xf] %vm3181, %v3118
      %3184 = vst.msk [vmem:[%s231 + $0x8] sm:$0xf] %vm3181, %v3119
      %3185 = vst.msk [vmem:[%s231 + $0xc] sm:$0xf] %vm3181, %v3120
      %3186 = vst.msk [vmem:[%s231 + $0x10] sm:$0xf] %vm3181, %v3121
      %3187 = vst.msk [vmem:[%s231 + $0x14] sm:$0xf] %vm3181, %v3122
      %3188 = vst.msk [vmem:[%s231 + $0x18] sm:$0xf] %vm3181, %v3123
      %3189 = vst.msk [vmem:[%s231 + $0x1c] sm:$0xf] %vm3181, %v3124
      %3190 = vst.msk [vmem:[%s231 + $0x20] sm:$0xf] %vm3181, %v3125
      %3191 = vst.msk [vmem:[%s231 + $0x24] sm:$0xf] %vm3181, %v3126
      %3192 = vst.msk [vmem:[%s231 + $0x28] sm:$0xf] %vm3181, %v3127
      %3193 = vst.msk [vmem:[%s231 + $0x2c] sm:$0xf] %vm3181, %v3128
      %3194 = vst.msk [vmem:[%s231 + $0x30] sm:$0xf] %vm3181, %v3129
      %3195 = vst.msk [vmem:[%s231 + $0x34] sm:$0xf] %vm3181, %v3130
      %3196 = vst.msk [vmem:[%s231 + $0x38] sm:$0xf] %vm3181, %v3131
      %3197 = vst.msk [vmem:[%s231 + $0x3c] sm:$0xf] %vm3181, %v3132
      %3198 = vst.msk [vmem:[%s231 + $0x40] sm:$0xf] %vm3181, %v3133
      %3199 = vst.msk [vmem:[%s231 + $0x44] sm:$0xf] %vm3181, %v3134
      %3200 = vst.msk [vmem:[%s231 + $0x48] sm:$0xf] %vm3181, %v3135
      %3201 = vst.msk [vmem:[%s231 + $0x4c] sm:$0xf] %vm3181, %v3136
      %3202 = vst.msk [vmem:[%s231 + $0x50] sm:$0xf] %vm3181, %v3137
      %3203 = vst.msk [vmem:[%s231 + $0x54] sm:$0xf] %vm3181, %v3138
      %3204 = vst.msk [vmem:[%s231 + $0x58] sm:$0xf] %vm3181, %v3139
      %3205 = vst.msk [vmem:[%s231 + $0x5c] sm:$0xf] %vm3181, %v3140
      %3206 = vst.msk [vmem:[%s231 + $0x60] sm:$0xf] %vm3181, %v3141
      %3207 = vst.msk [vmem:[%s231 + $0x64] sm:$0xf] %vm3181, %v3142
      %3208 = vst.msk [vmem:[%s231 + $0x68] sm:$0xf] %vm3181, %v3143
      %3209 = vst.msk [vmem:[%s231 + $0x6c] sm:$0xf] %vm3181, %v3144
      %3210 = vst.msk [vmem:[%s231 + $0x70] sm:$0xf] %vm3181, %v3145
      %3211 = vst.msk [vmem:[%s231 + $0x74] sm:$0xf] %vm3181, %v3146
      %3212 = vst.msk [vmem:[%s231 + $0x78] sm:$0xf] %vm3181, %v3147
      %3213 = vst.msk [vmem:[%s231 + $0x7c] sm:$0xf] %vm3181, %v3148
      %v3214 = vsel %vm384, %v3021, 0.0
      %v3215 = vsel %vm384, %v3022, 0.0
      %v3216 = vadd.f32 %v3214, %v3215
      %v3217 = vsel %vm384, %v3023, 0.0
      %v3218 = vadd.f32 %v3216, %v3217
      %v3219 = vsel %vm384, %v3024, 0.0
      %v3220 = vadd.f32 %v3218, %v3219
      %v3221 = vsel %vm384, %v3025, 0.0
      %v3222 = vadd.f32 %v3220, %v3221
      %v3223 = vsel %vm384, %v3026, 0.0
      %v3224 = vadd.f32 %v3222, %v3223
      %v3225 = vsel %vm384, %v3027, 0.0
      %v3226 = vadd.f32 %v3224, %v3225
      %v3227 = vsel %vm384, %v3028, 0.0
      %v3228 = vadd.f32 %v3226, %v3227
      %v3229 = vsel %vm384, %v3029, 0.0
      %v3230 = vadd.f32 %v3228, %v3229
      %v3231 = vsel %vm384, %v3030, 0.0
      %v3232 = vadd.f32 %v3230, %v3231
      %v3233 = vsel %vm384, %v3031, 0.0
      %v3234 = vadd.f32 %v3232, %v3233
      %v3235 = vsel %vm384, %v3032, 0.0
      %v3236 = vadd.f32 %v3234, %v3235
      %v3237 = vsel %vm384, %v3033, 0.0
      %v3238 = vadd.f32 %v3236, %v3237
      %v3239 = vsel %vm384, %v3034, 0.0
      %v3240 = vadd.f32 %v3238, %v3239
      %v3241 = vsel %vm384, %v3035, 0.0
      %v3242 = vadd.f32 %v3240, %v3241
      %v3243 = vsel %vm384, %v3036, 0.0
      %v3244 = vadd.f32 %v3242, %v3243
      %v3245 = vsel %vm384, %v3037, 0.0
      %v3246 = vadd.f32 %v3244, %v3245
      %v3247 = vsel %vm384, %v3038, 0.0
      %v3248 = vadd.f32 %v3246, %v3247
      %v3249 = vsel %vm384, %v3039, 0.0
      %v3250 = vadd.f32 %v3248, %v3249
      %v3251 = vsel %vm384, %v3040, 0.0
      %v3252 = vadd.f32 %v3250, %v3251
      %v3253 = vsel %vm384, %v3041, 0.0
      %v3254 = vadd.f32 %v3252, %v3253
      %v3255 = vsel %vm384, %v3042, 0.0
      %v3256 = vadd.f32 %v3254, %v3255
      %v3257 = vsel %vm384, %v3043, 0.0
      %v3258 = vadd.f32 %v3256, %v3257
      %v3259 = vsel %vm384, %v3044, 0.0
      %v3260 = vadd.f32 %v3258, %v3259
      %v3261 = vsel %vm384, %v3045, 0.0
      %v3262 = vadd.f32 %v3260, %v3261
      %v3263 = vsel %vm384, %v3046, 0.0
      %v3264 = vadd.f32 %v3262, %v3263
      %v3265 = vsel %vm384, %v3047, 0.0
      %v3266 = vadd.f32 %v3264, %v3265
      %v3267 = vsel %vm384, %v3048, 0.0
      %v3268 = vadd.f32 %v3266, %v3267
      %v3269 = vsel %vm384, %v3049, 0.0
      %v3270 = vadd.f32 %v3268, %v3269
      %v3271 = vsel %vm384, %v3050, 0.0
      %v3272 = vadd.f32 %v3270, %v3271
      %v3273 = vsel %vm384, %v3051, 0.0
      %v3274 = vadd.f32 %v3272, %v3273
      %v3275 = vsel %vm384, %v3052, 0.0
      %v3276 = vadd.f32 %v3274, %v3275
      %v3277 = vrot.slane %v3276, 4
      %v3278 = vadd.f32 %v3276, %v3277
      %v3279 = vrot.slane %v3278, 2
      %v3280 = vadd.f32 %v3278, %v3279
      %v3281 = vrot.slane %v3280, 1
      %v3282 = vadd.f32 %v3280, %v3281
      %v3283 = vmul.f32 %v3021, %v3021
      %v3284 = vmul.f32 %v3022, %v3022
      %v3285 = vmul.f32 %v3023, %v3023
      %v3286 = vmul.f32 %v3024, %v3024
      %v3287 = vmul.f32 %v3025, %v3025
      %v3288 = vmul.f32 %v3026, %v3026
      %v3289 = vmul.f32 %v3027, %v3027
      %v3290 = vmul.f32 %v3028, %v3028
      %v3291 = vmul.f32 %v3029, %v3029
      %v3292 = vmul.f32 %v3030, %v3030
      %v3293 = vmul.f32 %v3031, %v3031
      %v3294 = vmul.f32 %v3032, %v3032
      %v3295 = vmul.f32 %v3033, %v3033
      %v3296 = vmul.f32 %v3034, %v3034
      %v3297 = vmul.f32 %v3035, %v3035
      %v3298 = vmul.f32 %v3036, %v3036
      %v3299 = vmul.f32 %v3037, %v3037
      %v3300 = vmul.f32 %v3038, %v3038
      %v3301 = vmul.f32 %v3039, %v3039
      %v3302 = vmul.f32 %v3040, %v3040
      %v3303 = vmul.f32 %v3041, %v3041
      %v3304 = vmul.f32 %v3042, %v3042
      %v3305 = vmul.f32 %v3043, %v3043
      %v3306 = vmul.f32 %v3044, %v3044
      %v3307 = vmul.f32 %v3045, %v3045
      %v3308 = vmul.f32 %v3046, %v3046
      %v3309 = vmul.f32 %v3047, %v3047
      %v3310 = vmul.f32 %v3048, %v3048
      %v3311 = vmul.f32 %v3049, %v3049
      %v3312 = vmul.f32 %v3050, %v3050
      %v3313 = vmul.f32 %v3051, %v3051
      %v3314 = vmul.f32 %v3052, %v3052
      %v3315 = vsel %vm384, %v3283, 0.0
      %v3316 = vsel %vm384, %v3284, 0.0
      %v3317 = vadd.f32 %v3315, %v3316
      %v3318 = vsel %vm384, %v3285, 0.0
      %v3319 = vadd.f32 %v3317, %v3318
      %v3320 = vsel %vm384, %v3286, 0.0
      %v3321 = vadd.f32 %v3319, %v3320
      %v3322 = vsel %vm384, %v3287, 0.0
      %v3323 = vadd.f32 %v3321, %v3322
      %v3324 = vsel %vm384, %v3288, 0.0
      %v3325 = vadd.f32 %v3323, %v3324
      %v3326 = vsel %vm384, %v3289, 0.0
      %v3327 = vadd.f32 %v3325, %v3326
      %v3328 = vsel %vm384, %v3290, 0.0
      %v3329 = vadd.f32 %v3327, %v3328
      %v3330 = vsel %vm384, %v3291, 0.0
      %v3331 = vadd.f32 %v3329, %v3330
      %v3332 = vsel %vm384, %v3292, 0.0
      %v3333 = vadd.f32 %v3331, %v3332
      %v3334 = vsel %vm384, %v3293, 0.0
      %v3335 = vadd.f32 %v3333, %v3334
      %v3336 = vsel %vm384, %v3294, 0.0
      %v3337 = vadd.f32 %v3335, %v3336
      %v3338 = vsel %vm384, %v3295, 0.0
      %v3339 = vadd.f32 %v3337, %v3338
      %v3340 = vsel %vm384, %v3296, 0.0
      %v3341 = vadd.f32 %v3339, %v3340
      %v3342 = vsel %vm384, %v3297, 0.0
      %v3343 = vadd.f32 %v3341, %v3342
      %v3344 = vsel %vm384, %v3298, 0.0
      %v3345 = vadd.f32 %v3343, %v3344
      %v3346 = vsel %vm384, %v3299, 0.0
      %v3347 = vadd.f32 %v3345, %v3346
      %v3348 = vsel %vm384, %v3300, 0.0
      %v3349 = vadd.f32 %v3347, %v3348
      %v3350 = vsel %vm384, %v3301, 0.0
      %v3351 = vadd.f32 %v3349, %v3350
      %v3352 = vsel %vm384, %v3302, 0.0
      %v3353 = vadd.f32 %v3351, %v3352
      %v3354 = vsel %vm384, %v3303, 0.0
      %v3355 = vadd.f32 %v3353, %v3354
      %v3356 = vsel %vm384, %v3304, 0.0
      %v3357 = vadd.f32 %v3355, %v3356
      %v3358 = vsel %vm384, %v3305, 0.0
      %v3359 = vadd.f32 %v3357, %v3358
      %v3360 = vsel %vm384, %v3306, 0.0
      %v3361 = vadd.f32 %v3359, %v3360
      %v3362 = vsel %vm384, %v3307, 0.0
      %v3363 = vadd.f32 %v3361, %v3362
      %v3364 = vsel %vm384, %v3308, 0.0
      %v3365 = vadd.f32 %v3363, %v3364
      %v3366 = vsel %vm384, %v3309, 0.0
      %v3367 = vadd.f32 %v3365, %v3366
      %v3368 = vsel %vm384, %v3310, 0.0
      %v3369 = vadd.f32 %v3367, %v3368
      %v3370 = vsel %vm384, %v3311, 0.0
      %v3371 = vadd.f32 %v3369, %v3370
      %v3372 = vsel %vm384, %v3312, 0.0
      %v3373 = vadd.f32 %v3371, %v3372
      %v3374 = vsel %vm384, %v3313, 0.0
      %v3375 = vadd.f32 %v3373, %v3374
      %v3376 = vsel %vm384, %v3314, 0.0
      %v3377 = vadd.f32 %v3375, %v3376
      %v3378 = vrot.slane %v3377, 4
      %v3379 = vadd.f32 %v3377, %v3378
      %v3380 = vrot.slane %v3379, 2
      %v3381 = vadd.f32 %v3379, %v3380
      %v3382 = vrot.slane %v3381, 1
      %v3383 = vadd.f32 %v3381, %v3382
      %vm3384 = vcmask 1040384
      %v3385 = vsel %vm3384, %v3282, %v3383
      %3386 = vst.msk [vmem:[%s235] sm:$0x3] %vm419, %v3385
      %p3387 = scmp.lt.s32.totalorder %s17, 1
      %s3388 = scalar_select %p3387, %s17, 1
      %s3389 = smul.addr %s3388, 32
      %s3390 = smul.addr %s3389, 4
      %s3391 = scalar_lea.vmem %s4, %s3390
      %p3392 = scmp.lt.s32.totalorder %s17, 1
      %s3393 = scalar_select %p3392, %s17, 1
      %s3394 = smul.addr %s3393, 2
      %s3395 = scalar_lea.vmem %s5, %s3394
      // Predicated region
      $region37: #{basic_block_forward.3} parent=35 // pred_check
        %p3396 = pneg %p124
      $region38: #{basic_block_forward.3} parent=35 // pred_check_branch
        %3398 = sbr.rel (%p3396) target = $region40
      $region39: #{basic_block_forward.3} parent=35 // pred_region
        _
      $region40: #{basic_block_forward.3} parent=35 // pred_fallthru
        _
      // Predicated region
      $region41: #{basic_block_forward.3} parent=35 // pred_check
        %p3399 = pneg %p150
      $region42: #{basic_block_forward.3} parent=35 // pred_check_branch
        %3401 = sbr.rel (%p3399) target = $region44
      $region43: #{basic_block_forward.3} parent=35 // pred_region
        _
      $region44: #{basic_block_forward.3} parent=35 // pred_fallthru
        _
    $region36: #{basic_block_forward.3} parent=5 // pred_fallthru
      _
    %p3402 = scmp.le.s32.totalorder 2, %s12
    // Predicated region
    $region45: #{basic_block_forward.3} parent=5 // pred_check
      %p3403 = pneg %p3402
    $region46: #{basic_block_forward.3} parent=5 // pred_check_branch
      %3405 = sbr.rel (%p3403) target = $region48
    $region47: #{basic_block_forward.3} parent=5 // pred_region
      %s3406 = ssub.s32 %s12, 2
      // Predicated region
      $region49: #{basic_block_forward.3} parent=47 // pred_check
        %p3407 = pneg %p130
      $region50: #{basic_block_forward.3} parent=47 // pred_check_branch
        %3409 = sbr.rel (%p3407) target = $region52
      $region51: #{basic_block_forward.3} parent=47 // pred_region
        %p3410 = scmp.lt.s32.totalorder %s18, 1
        %s3411 = scalar_select %p3410, %s18, 1
        %s3412 = smul.addr %s3411, 32
        %s3413 = smul.addr %s3412, 4
        %s3414 = scalar_lea.vmem %s4, %s3413
      $region52: #{basic_block_forward.3} parent=47 // pred_fallthru
        _
      // Predicated region
      $region53: #{basic_block_forward.3} parent=47 // pred_check
        %p3415 = pneg %p156
      $region54: #{basic_block_forward.3} parent=47 // pred_check_branch
        %3417 = sbr.rel (%p3415) target = $region56
      $region55: #{basic_block_forward.3} parent=47 // pred_region
        %p3418 = scmp.lt.s32.totalorder %s18, 1
        %s3419 = scalar_select %p3418, %s18, 1
        %s3420 = smul.addr %s3419, 2
        %s3421 = scalar_lea.vmem %s5, %s3420
      $region56: #{basic_block_forward.3} parent=47 // pred_fallthru
        _
    $region48: #{basic_block_forward.3} parent=5 // pred_fallthru
      _
  $region6: #{basic_block_forward.3} parent=0 // loop_footer
    %s16 = sadd.s32 1, %s12
  $region7: #{basic_block_forward.3} parent=0 // loop_footer_branch
    %11 = sbr.rel target = $region3
  $region8: #{basic_block_forward.3} parent=0 // loop_exit
    _

// kernel: basic_block_forward.4
$region0: #{basic_block_forward.4}
  #allocation0 [shape = 'u32[]', space=smem, size = 0x4, offset = 0x4, fixed_abs, tag = 'smem constant byte address 0x4 - core index']
  #allocation1 [shape = 'u32[144,128]{1,0:T(1,128)}', space=vmem, size = 0x12000, scoped, tag = 'internal scratch']
  #allocation2 [shape = 'f32[18,18,4]{2,1,0:T(8,128)}', space=vmem, size = 0x36000, scoped, tag = 'scratch operand']
  %s0 = inlined_call_operand.vmem [shape: bf16[2,256,4], index: 0, kind: input, shape index: {}]
  %s1 = inlined_call_operand.vmem [shape: f32[1,4], index: 1, kind: input, shape index: {}]
  %s2 = inlined_call_operand.vmem [shape: f32[1,4], index: 2, kind: input, shape index: {}]
  %s3 = inlined_call_operand.vmem [shape: bf16[36,4], index: 3, kind: input, shape index: {}]
  %s4 = inlined_call_operand.vmem [shape: bf16[2,256,4], index: 4, kind: output, shape index: {0}]
  %s5 = inlined_call_operand.vmem [shape: f32[2,2,4], index: 5, kind: output, shape index: {1}]
  %6 = xla_tuple %s4, %s5
  %s7 = sld [smem:[#allocation0]]
  $region57: #{basic_block_forward.4} parent=0
    _
  %s9 = ssub.s32 1, %s7
  %s10 = scalar_select 0, %s9, %s7
  loop: start=0, step=1, limit=4
  $region2: #{basic_block_forward.4} parent=0 // loop_pre_header
    _
  $region3: #{basic_block_forward.4} parent=0 // loop_header
    %s12 = sphi 0, %s16
    %p13 = scmp.ge.s32.totalorder %s12, 4
    %s22 = sphi 0, %s24
    %s25 = sphi 0, %s22
    %s26 = sphi 0, %s25
    %s42 = sphi 0, %s26
    %s46 = sphi 0, %s46
    %s48 = sphi 0, %s46
    %s49 = sphi 0, %s48
    %s63 = sphi 0, %s49
    %s67 = sphi 0, %s67
    %s69 = sphi 0, %s67
    %s70 = sphi 0, %s69
    %s84 = sphi 0, %s70
    %s88 = sphi 0, %s88
    %s90 = sphi 0, %s88
    %s91 = sphi 0, %s90
    %s105 = sphi 0, %s91
    %s111 = sphi 0, %s113
    %s114 = sphi 0, %s111
    %s115 = sphi 0, %s114
    %s131 = sphi 0, %s115
    %s137 = sphi 0, %s139
    %s140 = sphi 0, %s137
    %s141 = sphi 0, %s140
    %s157 = sphi 0, %s141
  $region4: #{basic_block_forward.4} parent=0 // loop_header_branch
    %15 = sbr.rel (%p13) target = $region8
  $region5: #{basic_block_forward.4} parent=0 // loop_body
    %s17 = ssub.s32 %s12, 1
    %s18 = ssub.s32 %s12, 2
    %s19 = sadd.s32 %s12, 1
    %s20 = ssub.s32 %s12, %s19
    %p21 = scmp.eq.s32.totalorder %s20, 0
    %s23 = sadd.s32 %s22, 1
    %s24 = scalar_select %p21, %s22, %s23
    %p27 = pneg %p21
    %p28 = scmp.eq.s32.totalorder %s12, 1
    %p29 = por %p27, %p28
    %p30 = scmp.ne.s32.totalorder %s22, %s25
    %p31 = scmp.eq.s32.totalorder %s12, 0
    %p32 = por %p30, %p31
    %p33 = scmp.ne.s32.totalorder %s22, %s25
    %p34 = scmp.eq.s32.totalorder %s17, 1
    %p35 = por %p33, %p34
    %p36 = scmp.ne.s32.totalorder %s25, %s26
    %p37 = scmp.eq.s32.totalorder %s17, 0
    %p38 = por %p36, %p37
    %p39 = scmp.ne.s32.totalorder %s25, %s26
    %p40 = scmp.eq.s32.totalorder %s18, 1
    %p41 = por %p39, %p40
    %p43 = scmp.ne.s32.totalorder %s26, %s42
    %p44 = scmp.eq.s32.totalorder %s18, 0
    %p45 = por %p43, %p44
    %s47 = sadd.s32 %s46, 1
    %p50 = scmp.eq.s32.totalorder %s12, 1
    %p51 = scmp.ne.s32.totalorder %s46, %s48
    %p52 = scmp.eq.s32.totalorder %s12, 0
    %p53 = por %p51, %p52
    %p54 = scmp.ne.s32.totalorder %s46, %s48
    %p55 = scmp.eq.s32.totalorder %s17, 1
    %p56 = por %p54, %p55
    %p57 = scmp.ne.s32.totalorder %s48, %s49
    %p58 = scmp.eq.s32.totalorder %s17, 0
    %p59 = por %p57, %p58
    %p60 = scmp.ne.s32.totalorder %s48, %s49
    %p61 = scmp.eq.s32.totalorder %s18, 1
    %p62 = por %p60, %p61
    %p64 = scmp.ne.s32.totalorder %s49, %s63
    %p65 = scmp.eq.s32.totalorder %s18, 0
    %p66 = por %p64, %p65
    %s68 = sadd.s32 %s67, 1
    %p71 = scmp.eq.s32.totalorder %s12, 1
    %p72 = scmp.ne.s32.totalorder %s67, %s69
    %p73 = scmp.eq.s32.totalorder %s12, 0
    %p74 = por %p72, %p73
    %p75 = scmp.ne.s32.totalorder %s67, %s69
    %p76 = scmp.eq.s32.totalorder %s17, 1
    %p77 = por %p75, %p76
    %p78 = scmp.ne.s32.totalorder %s69, %s70
    %p79 = scmp.eq.s32.totalorder %s17, 0
    %p80 = por %p78, %p79
    %p81 = scmp.ne.s32.totalorder %s69, %s70
    %p82 = scmp.eq.s32.totalorder %s18, 1
    %p83 = por %p81, %p82
    %p85 = scmp.ne.s32.totalorder %s70, %s84
    %p86 = scmp.eq.s32.totalorder %s18, 0
    %p87 = por %p85, %p86
    %s89 = sadd.s32 %s88, 1
    %p92 = scmp.eq.s32.totalorder %s12, 1
    %p93 = scmp.ne.s32.totalorder %s88, %s90
    %p94 = scmp.eq.s32.totalorder %s12, 0
    %p95 = por %p93, %p94
    %p96 = scmp.ne.s32.totalorder %s88, %s90
    %p97 = scmp.eq.s32.totalorder %s17, 1
    %p98 = por %p96, %p97
    %p99 = scmp.ne.s32.totalorder %s90, %s91
    %p100 = scmp.eq.s32.totalorder %s17, 0
    %p101 = por %p99, %p100
    %p102 = scmp.ne.s32.totalorder %s90, %s91
    %p103 = scmp.eq.s32.totalorder %s18, 1
    %p104 = por %p102, %p103
    %p106 = scmp.ne.s32.totalorder %s91, %s105
    %p107 = scmp.eq.s32.totalorder %s18, 0
    %p108 = por %p106, %p107
    %s109 = ssub.s32 %s12, %s19
    %p110 = scmp.eq.s32.totalorder %s109, 0
    %s112 = sadd.s32 %s111, 1
    %s113 = scalar_select %p110, %s111, %s112
    %p116 = pneg %p110
    %p117 = scmp.eq.s32.totalorder %s12, 1
    %p118 = por %p116, %p117
    %p119 = scmp.ne.s32.totalorder %s111, %s114
    %p120 = scmp.eq.s32.totalorder %s12, 0
    %p121 = por %p119, %p120
    %p122 = scmp.ne.s32.totalorder %s111, %s114
    %p123 = scmp.eq.s32.totalorder %s17, 1
    %p124 = por %p122, %p123
    %p125 = scmp.ne.s32.totalorder %s114, %s115
    %p126 = scmp.eq.s32.totalorder %s17, 0
    %p127 = por %p125, %p126
    %p128 = scmp.ne.s32.totalorder %s114, %s115
    %p129 = scmp.eq.s32.totalorder %s18, 1
    %p130 = por %p128, %p129
    %p132 = scmp.ne.s32.totalorder %s115, %s131
    %p133 = scmp.eq.s32.totalorder %s18, 0
    %p134 = por %p132, %p133
    %s135 = ssub.s32 %s12, %s19
    %p136 = scmp.eq.s32.totalorder %s135, 0
    %s138 = sadd.s32 %s137, 1
    %s139 = scalar_select %p136, %s137, %s138
    %p142 = pneg %p136
    %p143 = scmp.eq.s32.totalorder %s12, 1
    %p144 = por %p142, %p143
    %p145 = scmp.ne.s32.totalorder %s137, %s140
    %p146 = scmp.eq.s32.totalorder %s12, 0
    %p147 = por %p145, %p146
    %p148 = scmp.ne.s32.totalorder %s137, %s140
    %p149 = scmp.eq.s32.totalorder %s17, 1
    %p150 = por %p148, %p149
    %p151 = scmp.ne.s32.totalorder %s140, %s141
    %p152 = scmp.eq.s32.totalorder %s17, 0
    %p153 = por %p151, %p152
    %p154 = scmp.ne.s32.totalorder %s140, %s141
    %p155 = scmp.eq.s32.totalorder %s18, 1
    %p156 = por %p154, %p155
    %p158 = scmp.ne.s32.totalorder %s141, %s157
    %p159 = scmp.eq.s32.totalorder %s18, 0
    %p160 = por %p158, %p159
    %p161 = scmp.le.s32.totalorder 1, %s12
    %p162 = scmp.lt.s32.totalorder %s12, 3
    %p163 = pnand %p161, %p162
    %p164 = pneg %p163
    // Predicated region
    $region9: #{basic_block_forward.4} parent=5 // pred_check
      _
    $region10: #{basic_block_forward.4} parent=5 // pred_check_branch
      %166 = sbr.rel (%p163) target = $region12
    $region11: #{basic_block_forward.4} parent=5 // pred_region
      %s167 = ssub.s32 %s12, 1
      // Predicated region
      $region13: #{basic_block_forward.4} parent=11 // pred_check
        %p168 = pneg %p59
      $region14: #{basic_block_forward.4} parent=11 // pred_check_branch
        %170 = sbr.rel (%p168) target = $region16
      $region15: #{basic_block_forward.4} parent=11 // pred_region
        _
      $region16: #{basic_block_forward.4} parent=11 // pred_fallthru
        _
      // Predicated region
      $region17: #{basic_block_forward.4} parent=11 // pred_check
        %p171 = pneg %p80
      $region18: #{basic_block_forward.4} parent=11 // pred_check_branch
        %173 = sbr.rel (%p171) target = $region20
      $region19: #{basic_block_forward.4} parent=11 // pred_region
        _
      $region20: #{basic_block_forward.4} parent=11 // pred_fallthru
        _
      // Predicated region
      $region21: #{basic_block_forward.4} parent=11 // pred_check
        %p174 = pneg %p101
      $region22: #{basic_block_forward.4} parent=11 // pred_check_branch
        %176 = sbr.rel (%p174) target = $region24
      $region23: #{basic_block_forward.4} parent=11 // pred_region
        _
      $region24: #{basic_block_forward.4} parent=11 // pred_fallthru
        _
    $region12: #{basic_block_forward.4} parent=5 // pred_fallthru
      _
    %p177 = scmp.lt.s32.totalorder %s12, 2
    // Predicated region
    $region25: #{basic_block_forward.4} parent=5 // pred_check
      %p178 = pneg %p177
    $region26: #{basic_block_forward.4} parent=5 // pred_check_branch
      %180 = sbr.rel (%p178) target = $region28
    $region27: #{basic_block_forward.4} parent=5 // pred_region
      // Predicated region
      $region29: #{basic_block_forward.4} parent=27 // pred_check
        %p181 = pneg %p32
      $region30: #{basic_block_forward.4} parent=27 // pred_check_branch
        %183 = sbr.rel (%p181) target = $region32
      $region31: #{basic_block_forward.4} parent=27 // pred_region
        %p184 = scmp.lt.s32.totalorder %s12, 1
        %s185 = scalar_select %p184, %s12, 1
        %s186 = smul.addr %s185, 32
        %s187 = smul.addr %s186, 4
        %s188 = scalar_lea.vmem %s0, %s187
      $region32: #{basic_block_forward.4} parent=27 // pred_fallthru
        _
    $region28: #{basic_block_forward.4} parent=5 // pred_fallthru
      _
    %p189 = scmp.le.s32.totalorder 1, %s12
    %p190 = scmp.lt.s32.totalorder %s12, 3
    %p191 = pnand %p189, %p190
    %p192 = pneg %p191
    // Predicated region
    $region33: #{basic_block_forward.4} parent=5 // pred_check
      _
    $region34: #{basic_block_forward.4} parent=5 // pred_check_branch
      %194 = sbr.rel (%p191) target = $region36
    $region35: #{basic_block_forward.4} parent=5 // pred_region
      %s195 = ssub.s32 %s12, 1
      %p196 = scmp.lt.s32.totalorder %s17, 1
      %s197 = scalar_select %p196, %s17, 1
      %s198 = smul.addr %s197, 32
      %s199 = smul.addr %s198, 4
      %s200 = scalar_lea.vmem %s0, %s199
      %p201 = pneg %p38
      %p202 = pneg %p35
      %p203 = pneg %p59
      %p204 = pneg %p56
      %p205 = pneg %p80
      %p206 = pneg %p77
      %p207 = pneg %p101
      %p208 = pneg %p98
      %p209 = pneg %p127
      %p210 = pneg %p124
      %p211 = scmp.lt.s32.totalorder %s17, 1
      %s212 = scalar_select %p211, %s17, 1
      %s213 = smul.addr %s212, 32
      %s214 = smul.addr %s213, 4
      %s215 = scalar_lea.vmem %s4, %s214
      %p216 = pneg %p153
      %p217 = pneg %p150
      %p218 = scmp.lt.s32.totalorder %s17, 1
      %s219 = scalar_select %p218, %s17, 1
      %s220 = smul.addr %s219, 2
      %s221 = scalar_lea.vmem %s5, %s220
      %p222 = scmp.lt.s32.totalorder %s17, 1
      %s223 = scalar_select %p222, %s17, 1
      %s224 = smul.addr %s223, 32
      %s225 = smul.addr %s224, 4
      %s226 = scalar_lea.vmem %s0, %s225
      %p227 = scmp.lt.s32.totalorder %s17, 1
      %s228 = scalar_select %p227, %s17, 1
      %s229 = smul.addr %s228, 32
      %s230 = smul.addr %s229, 4
      %s231 = scalar_lea.vmem %s4, %s230
      %p232 = scmp.lt.s32.totalorder %s17, 1
      %s233 = scalar_select %p232, %s17, 1
      %s234 = smul.addr %s233, 2
      %s235 = scalar_lea.vmem %s5, %s234
      %v237 = vld [vmem:[%s226] sm:$0xf]
      %v238 = vld [vmem:[%s226 + $0x4] sm:$0xf]
      %v239 = vld [vmem:[%s226 + $0x8] sm:$0xf]
      %v240 = vld [vmem:[%s226 + $0xc] sm:$0xf]
      %v241 = vld [vmem:[%s226 + $0x10] sm:$0xf]
      %v242 = vld [vmem:[%s226 + $0x14] sm:$0xf]
      %v243 = vld [vmem:[%s226 + $0x18] sm:$0xf]
      %v244 = vld [vmem:[%s226 + $0x1c] sm:$0xf]
      %v245 = vld [vmem:[%s226 + $0x20] sm:$0xf]
      %v246 = vld [vmem:[%s226 + $0x24] sm:$0xf]
      %v247 = vld [vmem:[%s226 + $0x28] sm:$0xf]
      %v248 = vld [vmem:[%s226 + $0x2c] sm:$0xf]
      %v249 = vld [vmem:[%s226 + $0x30] sm:$0xf]
      %v250 = vld [vmem:[%s226 + $0x34] sm:$0xf]
      %v251 = vld [vmem:[%s226 + $0x38] sm:$0xf]
      %v252 = vld [vmem:[%s226 + $0x3c] sm:$0xf]
      %v253 = vld [vmem:[%s226 + $0x40] sm:$0xf]
      %v254 = vld [vmem:[%s226 + $0x44] sm:$0xf]
      %v255 = vld [vmem:[%s226 + $0x48] sm:$0xf]
      %v256 = vld [vmem:[%s226 + $0x4c] sm:$0xf]
      %v257 = vld [vmem:[%s226 + $0x50] sm:$0xf]
      %v258 = vld [vmem:[%s226 + $0x54] sm:$0xf]
      %v259 = vld [vmem:[%s226 + $0x58] sm:$0xf]
      %v260 = vld [vmem:[%s226 + $0x5c] sm:$0xf]
      %v261 = vld [vmem:[%s226 + $0x60] sm:$0xf]
      %v262 = vld [vmem:[%s226 + $0x64] sm:$0xf]
      %v263 = vld [vmem:[%s226 + $0x68] sm:$0xf]
      %v264 = vld [vmem:[%s226 + $0x6c] sm:$0xf]
      %v265 = vld [vmem:[%s226 + $0x70] sm:$0xf]
      %v266 = vld [vmem:[%s226 + $0x74] sm:$0xf]
      %v267 = vld [vmem:[%s226 + $0x78] sm:$0xf]
      %v268 = vld [vmem:[%s226 + $0x7c] sm:$0xf]
      %v269 = vunpack.c.l.bf16 %v237
      %v270 = vunpack.c.l.bf16 %v238
      %v271 = vunpack.c.l.bf16 %v239
      %v272 = vunpack.c.l.bf16 %v240
      %v273 = vunpack.c.l.bf16 %v241
      %v274 = vunpack.c.l.bf16 %v242
      %v275 = vunpack.c.l.bf16 %v243
      %v276 = vunpack.c.l.bf16 %v244
      %v277 = vunpack.c.l.bf16 %v245
      %v278 = vunpack.c.l.bf16 %v246
      %v279 = vunpack.c.l.bf16 %v247
      %v280 = vunpack.c.l.bf16 %v248
      %v281 = vunpack.c.l.bf16 %v249
      %v282 = vunpack.c.l.bf16 %v250
      %v283 = vunpack.c.l.bf16 %v251
      %v284 = vunpack.c.l.bf16 %v252
      %v285 = vunpack.c.l.bf16 %v253
      %v286 = vunpack.c.l.bf16 %v254
      %v287 = vunpack.c.l.bf16 %v255
      %v288 = vunpack.c.l.bf16 %v256
      %v289 = vunpack.c.l.bf16 %v257
      %v290 = vunpack.c.l.bf16 %v258
      %v291 = vunpack.c.l.bf16 %v259
      %v292 = vunpack.c.l.bf16 %v260
      %v293 = vunpack.c.l.bf16 %v261
      %v294 = vunpack.c.l.bf16 %v262
      %v295 = vunpack.c.l.bf16 %v263
      %v296 = vunpack.c.l.bf16 %v264
      %v297 = vunpack.c.l.bf16 %v265
      %v298 = vunpack.c.l.bf16 %v266
      %v299 = vunpack.c.l.bf16 %v267
      %v300 = vunpack.c.l.bf16 %v268
      %v301 = vld [vmem:[%s1] sm:$0x1]
      %v303 = vlaneseq
      %v304 = vshrl.u32 %v303, 7
      %v305 = vsub.s32 0, %v304
      %v306 = vrot.slane %v301, %v305
      %v308 = vmul.f32 %v269, %v306
      %v309 = vmul.f32 %v270, %v306
      %v310 = vmul.f32 %v271, %v306
      %v311 = vmul.f32 %v272, %v306
      %v312 = vmul.f32 %v273, %v306
      %v313 = vmul.f32 %v274, %v306
      %v314 = vmul.f32 %v275, %v306
      %v315 = vmul.f32 %v276, %v306
      %v316 = vmul.f32 %v277, %v306
      %v317 = vmul.f32 %v278, %v306
      %v318 = vmul.f32 %v279, %v306
      %v319 = vmul.f32 %v280, %v306
      %v320 = vmul.f32 %v281, %v306
      %v321 = vmul.f32 %v282, %v306
      %v322 = vmul.f32 %v283, %v306
      %v323 = vmul.f32 %v284, %v306
      %v324 = vmul.f32 %v285, %v306
      %v325 = vmul.f32 %v286, %v306
      %v326 = vmul.f32 %v287, %v306
      %v327 = vmul.f32 %v288, %v306
      %v328 = vmul.f32 %v289, %v306
      %v329 = vmul.f32 %v290, %v306
      %v330 = vmul.f32 %v291, %v306
      %v331 = vmul.f32 %v292, %v306
      %v332 = vmul.f32 %v293, %v306
      %v333 = vmul.f32 %v294, %v306
      %v334 = vmul.f32 %v295, %v306
      %v335 = vmul.f32 %v296, %v306
      %v336 = vmul.f32 %v297, %v306
      %v337 = vmul.f32 %v298, %v306
      %v338 = vmul.f32 %v299, %v306
      %v339 = vmul.f32 %v300, %v306
      %v340 = vld [vmem:[%s2] sm:$0x1]
      %v342 = vlaneseq
      %v343 = vshrl.u32 %v342, 7
      %v344 = vsub.s32 0, %v343
      %v345 = vrot.slane %v340, %v344
      %v347 = vadd.f32 %v308, %v345
      %v348 = vadd.f32 %v309, %v345
      %v349 = vadd.f32 %v310, %v345
      %v350 = vadd.f32 %v311, %v345
      %v351 = vadd.f32 %v312, %v345
      %v352 = vadd.f32 %v313, %v345
      %v353 = vadd.f32 %v314, %v345
      %v354 = vadd.f32 %v315, %v345
      %v355 = vadd.f32 %v316, %v345
      %v356 = vadd.f32 %v317, %v345
      %v357 = vadd.f32 %v318, %v345
      %v358 = vadd.f32 %v319, %v345
      %v359 = vadd.f32 %v320, %v345
      %v360 = vadd.f32 %v321, %v345
      %v361 = vadd.f32 %v322, %v345
      %v362 = vadd.f32 %v323, %v345
      %v363 = vadd.f32 %v324, %v345
      %v364 = vadd.f32 %v325, %v345
      %v365 = vadd.f32 %v326, %v345
      %v366 = vadd.f32 %v327, %v345
      %v367 = vadd.f32 %v328, %v345
      %v368 = vadd.f32 %v329, %v345
      %v369 = vadd.f32 %v330, %v345
      %v370 = vadd.f32 %v331, %v345
      %v371 = vadd.f32 %v332, %v345
      %v372 = vadd.f32 %v333, %v345
      %v373 = vadd.f32 %v334, %v345
      %v374 = vadd.f32 %v335, %v345
      %v375 = vadd.f32 %v336, %v345
      %v376 = vadd.f32 %v337, %v345
      %v377 = vadd.f32 %v338, %v345
      %v378 = vadd.f32 %v339, %v345
      %v379 = vmax.f32 %v347, 0.0
      %v380 = vmax.f32 %v348, 0.0
      %v381 = vmax.f32 %v349, 0.0
      %v382 = vmax.f32 %v350, 0.0
      %v383 = vmax.f32 %v351, 0.0
      %v384 = vmax.f32 %v352, 0.0
      %v385 = vmax.f32 %v353, 0.0
      %v386 = vmax.f32 %v354, 0.0
      %v387 = vmax.f32 %v355, 0.0
      %v388 = vmax.f32 %v356, 0.0
      %v389 = vmax.f32 %v357, 0.0
      %v390 = vmax.f32 %v358, 0.0
      %v391 = vmax.f32 %v359, 0.0
      %v392 = vmax.f32 %v360, 0.0
      %v393 = vmax.f32 %v361, 0.0
      %v394 = vmax.f32 %v362, 0.0
      %v395 = vmax.f32 %v363, 0.0
      %v396 = vmax.f32 %v364, 0.0
      %v397 = vmax.f32 %v365, 0.0
      %v398 = vmax.f32 %v366, 0.0
      %v399 = vmax.f32 %v367, 0.0
      %v400 = vmax.f32 %v368, 0.0
      %v401 = vmax.f32 %v369, 0.0
      %v402 = vmax.f32 %v370, 0.0
      %v403 = vmax.f32 %v371, 0.0
      %v404 = vmax.f32 %v372, 0.0
      %v405 = vmax.f32 %v373, 0.0
      %v406 = vmax.f32 %v374, 0.0
      %v407 = vmax.f32 %v375, 0.0
      %v408 = vmax.f32 %v376, 0.0
      %v409 = vmax.f32 %v377, 0.0
      %v410 = vmax.f32 %v378, 0.0
      %s411 = scalar_lea.vmem [#allocation2], 24
      %vm412 = vcmask 31744
      %413 = vst.msk [vmem:[%s411 + $0x1] sm:$0xff] %vm412, %v379
      %414 = vst.msk [vmem:[%s411 + $0x9] sm:$0xff] %vm412, %v380
      %415 = vst.msk [vmem:[%s411 + $0x19] sm:$0xff] %vm412, %v381
      %416 = vst.msk [vmem:[%s411 + $0x21] sm:$0xff] %vm412, %v382
      %417 = vst.msk [vmem:[%s411 + $0x31] sm:$0xff] %vm412, %v383
      %418 = vst.msk [vmem:[%s411 + $0x39] sm:$0xff] %vm412, %v384
      %419 = vst.msk [vmem:[%s411 + $0x49] sm:$0xff] %vm412, %v385
      %420 = vst.msk [vmem:[%s411 + $0x51] sm:$0xff] %vm412, %v386
      %421 = vst.msk [vmem:[%s411 + $0x61] sm:$0xff] %vm412, %v387
      %422 = vst.msk [vmem:[%s411 + $0x69] sm:$0xff] %vm412, %v388
      %423 = vst.msk [vmem:[%s411 + $0x79] sm:$0xff] %vm412, %v389
      %424 = vst.msk [vmem:[%s411 + $0x81] sm:$0xff] %vm412, %v390
      %425 = vst.msk [vmem:[%s411 + $0x91] sm:$0xff] %vm412, %v391
      %426 = vst.msk [vmem:[%s411 + $0x99] sm:$0xff] %vm412, %v392
      %427 = vst.msk [vmem:[%s411 + $0xa9] sm:$0xff] %vm412, %v393
      %428 = vst.msk [vmem:[%s411 + $0xb1] sm:$0xff] %vm412, %v394
      %429 = vst.msk [vmem:[%s411 + $0xc1] sm:$0xff] %vm412, %v395
      %430 = vst.msk [vmem:[%s411 + $0xc9] sm:$0xff] %vm412, %v396
      %431 = vst.msk [vmem:[%s411 + $0xd9] sm:$0xff] %vm412, %v397
      %432 = vst.msk [vmem:[%s411 + $0xe1] sm:$0xff] %vm412, %v398
      %433 = vst.msk [vmem:[%s411 + $0xf1] sm:$0xff] %vm412, %v399
      %434 = vst.msk [vmem:[%s411 + $0xf9] sm:$0xff] %vm412, %v400
      %435 = vst.msk [vmem:[%s411 + $0x109] sm:$0xff] %vm412, %v401
      %436 = vst.msk [vmem:[%s411 + $0x111] sm:$0xff] %vm412, %v402
      %437 = vst.msk [vmem:[%s411 + $0x121] sm:$0xff] %vm412, %v403
      %438 = vst.msk [vmem:[%s411 + $0x129] sm:$0xff] %vm412, %v404
      %439 = vst.msk [vmem:[%s411 + $0x139] sm:$0xff] %vm412, %v405
      %440 = vst.msk [vmem:[%s411 + $0x141] sm:$0xff] %vm412, %v406
      %441 = vst.msk [vmem:[%s411 + $0x151] sm:$0xff] %vm412, %v407
      %442 = vst.msk [vmem:[%s411 + $0x159] sm:$0xff] %vm412, %v408
      %443 = vst.msk [vmem:[%s411 + $0x169] sm:$0xff] %vm412, %v409
      %444 = vst.msk [vmem:[%s411 + $0x171] sm:$0xff] %vm412, %v410
      %445 = vst.msk [vmem:[#allocation2] sm:$0xff] %vm412, 0.0
      %446 = vst.msk [vmem:[#allocation2 + $0x8] sm:$0xff] %vm412, 0.0
      %vm447 = vcmask 25600
      %448 = vst.msk [vmem:[#allocation2 + $0x10] sm:$0x3] %vm447, 0.0
      %s449 = scalar_lea.vmem [#allocation2], 408
      %450 = vst.msk [vmem:[%s449] sm:$0xff] %vm412, 0.0
      %451 = vst.msk [vmem:[%s449 + $0x8] sm:$0xff] %vm412, 0.0
      %452 = vst.msk [vmem:[%s449 + $0x10] sm:$0x3] %vm447, 0.0
      %vm453 = vcmask 24576
      %454 = vst.msk [vmem:[#allocation2] sm:$0x1] %vm453, 0.0
      %455 = vst.msk [vmem:[#allocation2 + $0x18] sm:$0x1] %vm453, 0.0
      %456 = vst.msk [vmem:[#allocation2 + $0x30] sm:$0x1] %vm453, 0.0
      %457 = vst.msk [vmem:[#allocation2 + $0x48] sm:$0x1] %vm453, 0.0
      %458 = vst.msk [vmem:[#allocation2 + $0x60] sm:$0x1] %vm453, 0.0
      %459 = vst.msk [vmem:[#allocation2 + $0x78] sm:$0x1] %vm453, 0.0
      %460 = vst.msk [vmem:[#allocation2 + $0x90] sm:$0x1] %vm453, 0.0
      %461 = vst.msk [vmem:[#allocation2 + $0xa8] sm:$0x1] %vm453, 0.0
      %462 = vst.msk [vmem:[#allocation2 + $0xc0] sm:$0x1] %vm453, 0.0
      %463 = vst.msk [vmem:[#allocation2 + $0xd8] sm:$0x1] %vm453, 0.0
      %464 = vst.msk [vmem:[#allocation2 + $0xf0] sm:$0x1] %vm453, 0.0
      %465 = vst.msk [vmem:[#allocation2 + $0x108] sm:$0x1] %vm453, 0.0
      %466 = vst.msk [vmem:[#allocation2 + $0x120] sm:$0x1] %vm453, 0.0
      %467 = vst.msk [vmem:[#allocation2 + $0x138] sm:$0x1] %vm453, 0.0
      %468 = vst.msk [vmem:[#allocation2 + $0x150] sm:$0x1] %vm453, 0.0
      %469 = vst.msk [vmem:[#allocation2 + $0x168] sm:$0x1] %vm453, 0.0
      %470 = vst.msk [vmem:[#allocation2 + $0x180] sm:$0x1] %vm453, 0.0
      %471 = vst.msk [vmem:[#allocation2 + $0x198] sm:$0x1] %vm453, 0.0
      %472 = vst.msk [vmem:[#allocation2 + $0x11] sm:$0x1] %vm453, 0.0
      %473 = vst.msk [vmem:[#allocation2 + $0x29] sm:$0x1] %vm453, 0.0
      %474 = vst.msk [vmem:[#allocation2 + $0x41] sm:$0x1] %vm453, 0.0
      %475 = vst.msk [vmem:[#allocation2 + $0x59] sm:$0x1] %vm453, 0.0
      %476 = vst.msk [vmem:[#allocation2 + $0x71] sm:$0x1] %vm453, 0.0
      %477 = vst.msk [vmem:[#allocation2 + $0x89] sm:$0x1] %vm453, 0.0
      %478 = vst.msk [vmem:[#allocation2 + $0xa1] sm:$0x1] %vm453, 0.0
      %479 = vst.msk [vmem:[#allocation2 + $0xb9] sm:$0x1] %vm453, 0.0
      %480 = vst.msk [vmem:[#allocation2 + $0xd1] sm:$0x1] %vm453, 0.0
      %481 = vst.msk [vmem:[#allocation2 + $0xe9] sm:$0x1] %vm453, 0.0
      %482 = vst.msk [vmem:[#allocation2 + $0x101] sm:$0x1] %vm453, 0.0
      %483 = vst.msk [vmem:[#allocation2 + $0x119] sm:$0x1] %vm453, 0.0
      %484 = vst.msk [vmem:[#allocation2 + $0x131] sm:$0x1] %vm453, 0.0
      %485 = vst.msk [vmem:[#allocation2 + $0x149] sm:$0x1] %vm453, 0.0
      %486 = vst.msk [vmem:[#allocation2 + $0x161] sm:$0x1] %vm453, 0.0
      %487 = vst.msk [vmem:[#allocation2 + $0x179] sm:$0x1] %vm453, 0.0
      %488 = vst.msk [vmem:[#allocation2 + $0x191] sm:$0x1] %vm453, 0.0
      %489 = vst.msk [vmem:[#allocation2 + $0x1a9] sm:$0x1] %vm453, 0.0
      %v490 = vld [vmem:[#allocation2] sm:$0xff]
      %v491 = vld [vmem:[#allocation2 + $0x8] sm:$0xff]
      %v492 = vld [vmem:[#allocation2 + $0x18] sm:$0xff]
      %v493 = vld [vmem:[#allocation2 + $0x20] sm:$0xff]
      %v494 = vld [vmem:[#allocation2 + $0x30] sm:$0xff]
      %v495 = vld [vmem:[#allocation2 + $0x38] sm:$0xff]
      %v496 = vld [vmem:[#allocation2 + $0x48] sm:$0xff]
      %v497 = vld [vmem:[#allocation2 + $0x50] sm:$0xff]
      %v498 = vld [vmem:[#allocation2 + $0x60] sm:$0xff]
      %v499 = vld [vmem:[#allocation2 + $0x68] sm:$0xff]
      %v500 = vld [vmem:[#allocation2 + $0x78] sm:$0xff]
      %v501 = vld [vmem:[#allocation2 + $0x80] sm:$0xff]
      %v502 = vld [vmem:[#allocation2 + $0x90] sm:$0xff]
      %v503 = vld [vmem:[#allocation2 + $0x98] sm:$0xff]
      %v504 = vld [vmem:[#allocation2 + $0xa8] sm:$0xff]
      %v505 = vld [vmem:[#allocation2 + $0xb0] sm:$0xff]
      %v506 = vld [vmem:[#allocation2 + $0xc0] sm:$0xff]
      %v507 = vld [vmem:[#allocation2 + $0xc8] sm:$0xff]
      %v508 = vld [vmem:[#allocation2 + $0xd8] sm:$0xff]
      %v509 = vld [vmem:[#allocation2 + $0xe0] sm:$0xff]
      %v510 = vld [vmem:[#allocation2 + $0xf0] sm:$0xff]
      %v511 = vld [vmem:[#allocation2 + $0xf8] sm:$0xff]
      %v512 = vld [vmem:[#allocation2 + $0x108] sm:$0xff]
      %v513 = vld [vmem:[#allocation2 + $0x110] sm:$0xff]
      %v514 = vld [vmem:[#allocation2 + $0x120] sm:$0xff]
      %v515 = vld [vmem:[#allocation2 + $0x128] sm:$0xff]
      %v516 = vld [vmem:[#allocation2 + $0x138] sm:$0xff]
      %v517 = vld [vmem:[#allocation2 + $0x140] sm:$0xff]
      %v518 = vld [vmem:[#allocation2 + $0x150] sm:$0xff]
      %v519 = vld [vmem:[#allocation2 + $0x158] sm:$0xff]
      %v520 = vld [vmem:[#allocation2 + $0x168] sm:$0xff]
      %v521 = vld [vmem:[#allocation2 + $0x170] sm:$0xff]
      %v522 = vpack.c.bf16 %v491, %v490
      %v523 = vpack.c.bf16 %v493, %v492
      %v524 = vpack.c.bf16 %v495, %v494
      %v525 = vpack.c.bf16 %v497, %v496
      %v526 = vpack.c.bf16 %v499, %v498
      %v527 = vpack.c.bf16 %v501, %v500
      %v528 = vpack.c.bf16 %v503, %v502
      %v529 = vpack.c.bf16 %v505, %v504
      %v530 = vpack.c.bf16 %v507, %v506
      %v531 = vpack.c.bf16 %v509, %v508
      %v532 = vpack.c.bf16 %v511, %v510
      %v533 = vpack.c.bf16 %v513, %v512
      %v534 = vpack.c.bf16 %v515, %v514
      %v535 = vpack.c.bf16 %v517, %v516
      %v536 = vpack.c.bf16 %v519, %v518
      %v537 = vpack.c.bf16 %v521, %v520
      %v538 = vld [vmem:[%s3] sm:$0x3]
      %v539 = vld [vmem:[#allocation2 + $0x1] sm:$0xff]
      %v540 = vld [vmem:[#allocation2 + $0x9] sm:$0xff]
      %v541 = vld [vmem:[#allocation2 + $0x19] sm:$0xff]
      %v542 = vld [vmem:[#allocation2 + $0x21] sm:$0xff]
      %v543 = vld [vmem:[#allocation2 + $0x31] sm:$0xff]
      %v544 = vld [vmem:[#allocation2 + $0x39] sm:$0xff]
      %v545 = vld [vmem:[#allocation2 + $0x49] sm:$0xff]
      %v546 = vld [vmem:[#allocation2 + $0x51] sm:$0xff]
      %v547 = vld [vmem:[#allocation2 + $0x61] sm:$0xff]
      %v548 = vld [vmem:[#allocation2 + $0x69] sm:$0xff]
      %v549 = vld [vmem:[#allocation2 + $0x79] sm:$0xff]
      %v550 = vld [vmem:[#allocation2 + $0x81] sm:$0xff]
      %v551 = vld [vmem:[#allocation2 + $0x91] sm:$0xff]
      %v552 = vld [vmem:[#allocation2 + $0x99] sm:$0xff]
      %v553 = vld [vmem:[#allocation2 + $0xa9] sm:$0xff]
      %v554 = vld [vmem:[#allocation2 + $0xb1] sm:$0xff]
      %v555 = vld [vmem:[#allocation2 + $0xc1] sm:$0xff]
      %v556 = vld [vmem:[#allocation2 + $0xc9] sm:$0xff]
      %v557 = vld [vmem:[#allocation2 + $0xd9] sm:$0xff]
      %v558 = vld [vmem:[#allocation2 + $0xe1] sm:$0xff]
      %v559 = vld [vmem:[#allocation2 + $0xf1] sm:$0xff]
      %v560 = vld [vmem:[#allocation2 + $0xf9] sm:$0xff]
      %v561 = vld [vmem:[#allocation2 + $0x109] sm:$0xff]
      %v562 = vld [vmem:[#allocation2 + $0x111] sm:$0xff]
      %v563 = vld [vmem:[#allocation2 + $0x121] sm:$0xff]
      %v564 = vld [vmem:[#allocation2 + $0x129] sm:$0xff]
      %v565 = vld [vmem:[#allocation2 + $0x139] sm:$0xff]
      %v566 = vld [vmem:[#allocation2 + $0x141] sm:$0xff]
      %v567 = vld [vmem:[#allocation2 + $0x151] sm:$0xff]
      %v568 = vld [vmem:[#allocation2 + $0x159] sm:$0xff]
      %v569 = vld [vmem:[#allocation2 + $0x169] sm:$0xff]
      %v570 = vld [vmem:[#allocation2 + $0x171] sm:$0xff]
      %v571 = vpack.c.bf16 %v540, %v539
      %v572 = vpack.c.bf16 %v542, %v541
      %v573 = vpack.c.bf16 %v544, %v543
      %v574 = vpack.c.bf16 %v546, %v545
      %v575 = vpack.c.bf16 %v548, %v547
      %v576 = vpack.c.bf16 %v550, %v549
      %v577 = vpack.c.bf16 %v552, %v551
      %v578 = vpack.c.bf16 %v554, %v553
      %v579 = vpack.c.bf16 %v556, %v555
      %v580 = vpack.c.bf16 %v558, %v557
      %v581 = vpack.c.bf16 %v560, %v559
      %v582 = vpack.c.bf16 %v562, %v561
      %v583 = vpack.c.bf16 %v564, %v563
      %v584 = vpack.c.bf16 %v566, %v565
      %v585 = vpack.c.bf16 %v568, %v567
      %v586 = vpack.c.bf16 %v570, %v569
      %v587 = vld [vmem:[%s3] sm:$0xc]
      %v589 = vunpack.c.l.b16 %v587
      %v590 = vpack.c.b16 %v589, %v589
      %v591 = vrot.slane %v590, 2
      %v593 = vsel %vm412, %v571, 0
      %v596 = vsel %vm412, %v572, 0
      %v599 = vsel %vm412, %v573, 0
      %v602 = vsel %vm412, %v574, 0
      %v605 = vsel %vm412, %v575, 0
      %v608 = vsel %vm412, %v576, 0
      %v611 = vsel %vm412, %v577, 0
      %v614 = vsel %vm412, %v578, 0
      %v617 = vsel %vm412, %v579, 0
      %v620 = vsel %vm412, %v580, 0
      %v623 = vsel %vm412, %v581, 0
      %v626 = vsel %vm412, %v582, 0
      %v629 = vsel %vm412, %v583, 0
      %v632 = vsel %vm412, %v584, 0
      %v635 = vsel %vm412, %v585, 0
      %v638 = vsel %vm412, %v586, 0
      %vm640 = vcmask 1041408
      %v642 = vsel %vm640, %v591, 0
      %644 = vmatprep.subr.bf16.mxu0 0
      %645 = vmatpush1.bf16.msra.mxu0 %v642
      %646 = vmatprep.subr.bf16.mxu0 0
      %647 = vmatpush1.bf16.msra.mxu0 0
      %648 = vmatprep.subr.bf16.mxu0 0
      %649 = vmatpush1.bf16.msra.mxu0 0
      %650 = vmatprep.subr.bf16.mxu0 0
      %651 = vmatpush1.bf16.msra.mxu0 0
      %652 = vmatprep.subr.bf16.mxu0 0
      %653 = vmatpush1.bf16.msra.mxu0 0
      %654 = vmatprep.subr.bf16.mxu0 0
      %655 = vmatpush1.bf16.msra.mxu0 0
      %656 = vmatprep.subr.bf16.mxu0 0
      %657 = vmatpush1.bf16.msra.mxu0 0
      %658 = vmatprep.subr.bf16.mxu0 0
      %659 = vmatpush1.bf16.msra.mxu0 0
      %660 = vmatprep.subr.bf16.mxu0 0
      %661 = vmatpush1.bf16.msra.mxu0 0
      %662 = vmatprep.subr.bf16.mxu0 0
      %663 = vmatpush1.bf16.msra.mxu0 0
      %664 = vmatprep.subr.bf16.mxu0 0
      %665 = vmatpush1.bf16.msra.mxu0 0
      %666 = vmatprep.subr.bf16.mxu0 0
      %667 = vmatpush1.bf16.msra.mxu0 0
      %668 = vmatprep.subr.bf16.mxu0 0
      %669 = vmatpush1.bf16.msra.mxu0 0
      %670 = vmatprep.subr.bf16.mxu0 0
      %671 = vmatpush1.bf16.msra.mxu0 0
      %672 = vmatprep.subr.bf16.mxu0 0
      %673 = vmatpush1.bf16.msra.mxu0 0
      %674 = vmatprep.subr.bf16.mxu0 0
      %675 = vmatpush1.bf16.msra.mxu0 0
      %676 = vmatprep.mubr.bf16.mxu0 0
      %677 = vmatmul.mubr.bf16.gmra.mrb[0].mxu0 %v593
      %v678 = vpop.f32.mrb[0].mxu0
      %v679 = vadd.f32 0.0, %v678
      %v680 = vpop.f32.mrb[0].mxu0
      %v681 = vpop.f32.mrb[0].mxu0
      %v682 = vadd.f32 0.0, %v681
      %v683 = vpop.f32.mrb[0].mxu0
      %684 = vmatprep.mubr.bf16.mxu0 0
      %685 = vmatmul.mubr.bf16.gmra.mrb[0].mxu0 %v596
      %v686 = vpop.f32.mrb[0].mxu0
      %v687 = vadd.f32 0.0, %v686
      %v688 = vpop.f32.mrb[0].mxu0
      %v689 = vpop.f32.mrb[0].mxu0
      %v690 = vadd.f32 0.0, %v689
      %v691 = vpop.f32.mrb[0].mxu0
      %692 = vmatprep.mubr.bf16.mxu0 0
      %693 = vmatmul.mubr.bf16.gmra.mrb[0].mxu0 %v599
      %v694 = vpop.f32.mrb[0].mxu0
      %v695 = vadd.f32 0.0, %v694
      %v696 = vpop.f32.mrb[0].mxu0
      %v697 = vpop.f32.mrb[0].mxu0
      %v698 = vadd.f32 0.0, %v697
      %v699 = vpop.f32.mrb[0].mxu0
      %700 = vmatprep.mubr.bf16.mxu0 0
      %701 = vmatmul.mubr.bf16.gmra.mrb[0].mxu0 %v602
      %v702 = vpop.f32.mrb[0].mxu0
      %v703 = vadd.f32 0.0, %v702
      %v704 = vpop.f32.mrb[0].mxu0
      %v705 = vpop.f32.mrb[0].mxu0
      %v706 = vadd.f32 0.0, %v705
      %v707 = vpop.f32.mrb[0].mxu0
      %708 = vmatprep.mubr.bf16.mxu0 0
      %709 = vmatmul.mubr.bf16.gmra.mrb[0].mxu0 %v605
      %v710 = vpop.f32.mrb[0].mxu0
      %v711 = vadd.f32 0.0, %v710
      %v712 = vpop.f32.mrb[0].mxu0
      %v713 = vpop.f32.mrb[0].mxu0
      %v714 = vadd.f32 0.0, %v713
      %v715 = vpop.f32.mrb[0].mxu0
      %716 = vmatprep.mubr.bf16.mxu0 0
      %717 = vmatmul.mubr.bf16.gmra.mrb[0].mxu0 %v608
      %v718 = vpop.f32.mrb[0].mxu0
      %v719 = vadd.f32 0.0, %v718
      %v720 = vpop.f32.mrb[0].mxu0
      %v721 = vpop.f32.mrb[0].mxu0
      %v722 = vadd.f32 0.0, %v721
      %v723 = vpop.f32.mrb[0].mxu0
      %724 = vmatprep.mubr.bf16.mxu0 0
      %725 = vmatmul.mubr.bf16.gmra.mrb[0].mxu0 %v611
      %v726 = vpop.f32.mrb[0].mxu0
      %v727 = vadd.f32 0.0, %v726
      %v728 = vpop.f32.mrb[0].mxu0
      %v729 = vpop.f32.mrb[0].mxu0
      %v730 = vadd.f32 0.0, %v729
      %v731 = vpop.f32.mrb[0].mxu0
      %732 = vmatprep.mubr.bf16.mxu0 0
      %733 = vmatmul.mubr.bf16.gmra.mrb[0].mxu0 %v614
      %v734 = vpop.f32.mrb[0].mxu0
      %v735 = vadd.f32 0.0, %v734
      %v736 = vpop.f32.mrb[0].mxu0
      %v737 = vpop.f32.mrb[0].mxu0
      %v738 = vadd.f32 0.0, %v737
      %v739 = vpop.f32.mrb[0].mxu0
      %740 = vmatprep.mubr.bf16.mxu0 0
      %741 = vmatmul.mubr.bf16.gmra.mrb[0].mxu0 %v617
      %v742 = vpop.f32.mrb[0].mxu0
      %v743 = vadd.f32 0.0, %v742
      %v744 = vpop.f32.mrb[0].mxu0
      %v745 = vpop.f32.mrb[0].mxu0
      %v746 = vadd.f32 0.0, %v745
      %v747 = vpop.f32.mrb[0].mxu0
      %748 = vmatprep.mubr.bf16.mxu0 0
      %749 = vmatmul.mubr.bf16.gmra.mrb[0].mxu0 %v620
      %v750 = vpop.f32.mrb[0].mxu0
      %v751 = vadd.f32 0.0, %v750
      %v752 = vpop.f32.mrb[0].mxu0
      %v753 = vpop.f32.mrb[0].mxu0
      %v754 = vadd.f32 0.0, %v753
      %v755 = vpop.f32.mrb[0].mxu0
      %756 = vmatprep.mubr.bf16.mxu0 0
      %757 = vmatmul.mubr.bf16.gmra.mrb[0].mxu0 %v623
      %v758 = vpop.f32.mrb[0].mxu0
      %v759 = vadd.f32 0.0, %v758
      %v760 = vpop.f32.mrb[0].mxu0
      %v761 = vpop.f32.mrb[0].mxu0
      %v762 = vadd.f32 0.0, %v761
      %v763 = vpop.f32.mrb[0].mxu0
      %764 = vmatprep.mubr.bf16.mxu0 0
      %765 = vmatmul.mubr.bf16.gmra.mrb[0].mxu0 %v626
      %v766 = vpop.f32.mrb[0].mxu0
      %v767 = vadd.f32 0.0, %v766
      %v768 = vpop.f32.mrb[0].mxu0
      %v769 = vpop.f32.mrb[0].mxu0
      %v770 = vadd.f32 0.0, %v769
      %v771 = vpop.f32.mrb[0].mxu0
      %772 = vmatprep.mubr.bf16.mxu0 0
      %773 = vmatmul.mubr.bf16.gmra.mrb[0].mxu0 %v629
      %v774 = vpop.f32.mrb[0].mxu0
      %v775 = vadd.f32 0.0, %v774
      %v776 = vpop.f32.mrb[0].mxu0
      %v777 = vpop.f32.mrb[0].mxu0
      %v778 = vadd.f32 0.0, %v777
      %v779 = vpop.f32.mrb[0].mxu0
      %780 = vmatprep.mubr.bf16.mxu0 0
      %781 = vmatmul.mubr.bf16.gmra.mrb[0].mxu0 %v632
      %v782 = vpop.f32.mrb[0].mxu0
      %v783 = vadd.f32 0.0, %v782
      %v784 = vpop.f32.mrb[0].mxu0
      %v785 = vpop.f32.mrb[0].mxu0
      %v786 = vadd.f32 0.0, %v785
      %v787 = vpop.f32.mrb[0].mxu0
      %788 = vmatprep.mubr.bf16.mxu0 0
      %789 = vmatmul.mubr.bf16.gmra.mrb[0].mxu0 %v635
      %v790 = vpop.f32.mrb[0].mxu0
      %v791 = vadd.f32 0.0, %v790
      %v792 = vpop.f32.mrb[0].mxu0
      %v793 = vpop.f32.mrb[0].mxu0
      %v794 = vadd.f32 0.0, %v793
      %v795 = vpop.f32.mrb[0].mxu0
      %796 = vmatprep.mubr.bf16.mxu0 0
      %797 = vmatmul.mubr.bf16.gmra.mrb[0].mxu0 %v638
      %v798 = vpop.f32.mrb[0].mxu0
      %v799 = vadd.f32 0.0, %v798
      %v800 = vpop.f32.mrb[0].mxu0
      %v801 = vpop.f32.mrb[0].mxu0
      %v802 = vadd.f32 0.0, %v801
      %v803 = vpop.f32.mrb[0].mxu0
      %804 = vdwg.mxu0
      %v806 = vsel %vm412, %v522, 0
      %v809 = vsel %vm412, %v523, 0
      %v812 = vsel %vm412, %v524, 0
      %v815 = vsel %vm412, %v525, 0
      %v818 = vsel %vm412, %v526, 0
      %v821 = vsel %vm412, %v527, 0
      %v824 = vsel %vm412, %v528, 0
      %v827 = vsel %vm412, %v529, 0
      %v830 = vsel %vm412, %v530, 0
      %v833 = vsel %vm412, %v531, 0
      %v836 = vsel %vm412, %v532, 0
      %v839 = vsel %vm412, %v533, 0
      %v842 = vsel %vm412, %v534, 0
      %v845 = vsel %vm412, %v535, 0
      %v848 = vsel %vm412, %v536, 0
      %v851 = vsel %vm412, %v537, 0
      %v854 = vsel %vm640, %v538, 0
      %856 = vmatprep.subr.bf16.mxu0 0
      %857 = vmatpush1.bf16.msra.mxu0 %v854
      %858 = vmatprep.subr.bf16.mxu0 0
      %859 = vmatpush1.bf16.msra.mxu0 0
      %860 = vmatprep.subr.bf16.mxu0 0
      %861 = vmatpush1.bf16.msra.mxu0 0
      %862 = vmatprep.subr.bf16.mxu0 0
      %863 = vmatpush1.bf16.msra.mxu0 0
      %864 = vmatprep.subr.bf16.mxu0 0
      %865 = vmatpush1.bf16.msra.mxu0 0
      %866 = vmatprep.subr.bf16.mxu0 0
      %867 = vmatpush1.bf16.msra.mxu0 0
      %868 = vmatprep.subr.bf16.mxu0 0
      %869 = vmatpush1.bf16.msra.mxu0 0
      %870 = vmatprep.subr.bf16.mxu0 0
      %871 = vmatpush1.bf16.msra.mxu0 0
      %872 = vmatprep.subr.bf16.mxu0 0
      %873 = vmatpush1.bf16.msra.mxu0 0
      %874 = vmatprep.subr.bf16.mxu0 0
      %875 = vmatpush1.bf16.msra.mxu0 0
      %876 = vmatprep.subr.bf16.mxu0 0
      %877 = vmatpush1.bf16.msra.mxu0 0
      %878 = vmatprep.subr.bf16.mxu0 0
      %879 = vmatpush1.bf16.msra.mxu0 0
      %880 = vmatprep.subr.bf16.mxu0 0
      %881 = vmatpush1.bf16.msra.mxu0 0
      %882 = vmatprep.subr.bf16.mxu0 0
      %883 = vmatpush1.bf16.msra.mxu0 0
      %884 = vmatprep.subr.bf16.mxu0 0
      %885 = vmatpush1.bf16.msra.mxu0 0
      %886 = vmatprep.subr.bf16.mxu0 0
      %887 = vmatpush1.bf16.msra.mxu0 0
      %888 = vmatprep.mubr.bf16.mxu0 0
      %889 = vmatmul.mubr.bf16.gmra.mrb[0].mxu0 %v806
      %v890 = vpop.f32.mrb[0].mxu0
      %v891 = vadd.f32 %v679, %v890
      %v892 = vpop.f32.mrb[0].mxu0
      %v893 = vpop.f32.mrb[0].mxu0
      %v894 = vadd.f32 %v682, %v893
      %v895 = vpop.f32.mrb[0].mxu0
      %896 = vmatprep.mubr.bf16.mxu0 0
      %897 = vmatmul.mubr.bf16.gmra.mrb[0].mxu0 %v809
      %v898 = vpop.f32.mrb[0].mxu0
      %v899 = vadd.f32 %v687, %v898
      %v900 = vpop.f32.mrb[0].mxu0
      %v901 = vpop.f32.mrb[0].mxu0
      %v902 = vadd.f32 %v690, %v901
      %v903 = vpop.f32.mrb[0].mxu0
      %904 = vmatprep.mubr.bf16.mxu0 0
      %905 = vmatmul.mubr.bf16.gmra.mrb[0].mxu0 %v812
      %v906 = vpop.f32.mrb[0].mxu0
      %v907 = vadd.f32 %v695, %v906
      %v908 = vpop.f32.mrb[0].mxu0
      %v909 = vpop.f32.mrb[0].mxu0
      %v910 = vadd.f32 %v698, %v909
      %v911 = vpop.f32.mrb[0].mxu0
      %912 = vmatprep.mubr.bf16.mxu0 0
      %913 = vmatmul.mubr.bf16.gmra.mrb[0].mxu0 %v815
      %v914 = vpop.f32.mrb[0].mxu0
      %v915 = vadd.f32 %v703, %v914
      %v916 = vpop.f32.mrb[0].mxu0
      %v917 = vpop.f32.mrb[0].mxu0
      %v918 = vadd.f32 %v706, %v917
      %v919 = vpop.f32.mrb[0].mxu0
      %920 = vmatprep.mubr.bf16.mxu0 0
      %921 = vmatmul.mubr.bf16.gmra.mrb[0].mxu0 %v818
      %v922 = vpop.f32.mrb[0].mxu0
      %v923 = vadd.f32 %v711, %v922
      %v924 = vpop.f32.mrb[0].mxu0
      %v925 = vpop.f32.mrb[0].mxu0
      %v926 = vadd.f32 %v714, %v925
      %v927 = vpop.f32.mrb[0].mxu0
      %928 = vmatprep.mubr.bf16.mxu0 0
      %929 = vmatmul.mubr.bf16.gmra.mrb[0].mxu0 %v821
      %v930 = vpop.f32.mrb[0].mxu0
      %v931 = vadd.f32 %v719, %v930
      %v932 = vpop.f32.mrb[0].mxu0
      %v933 = vpop.f32.mrb[0].mxu0
      %v934 = vadd.f32 %v722, %v933
      %v935 = vpop.f32.mrb[0].mxu0
      %936 = vmatprep.mubr.bf16.mxu0 0
      %937 = vmatmul.mubr.bf16.gmra.mrb[0].mxu0 %v824
      %v938 = vpop.f32.mrb[0].mxu0
      %v939 = vadd.f32 %v727, %v938
      %v940 = vpop.f32.mrb[0].mxu0
      %v941 = vpop.f32.mrb[0].mxu0
      %v942 = vadd.f32 %v730, %v941
      %v943 = vpop.f32.mrb[0].mxu0
      %944 = vmatprep.mubr.bf16.mxu0 0
      %945 = vmatmul.mubr.bf16.gmra.mrb[0].mxu0 %v827
      %v946 = vpop.f32.mrb[0].mxu0
      %v947 = vadd.f32 %v735, %v946
      %v948 = vpop.f32.mrb[0].mxu0
      %v949 = vpop.f32.mrb[0].mxu0
      %v950 = vadd.f32 %v738, %v949
      %v951 = vpop.f32.mrb[0].mxu0
      %952 = vmatprep.mubr.bf16.mxu0 0
      %953 = vmatmul.mubr.bf16.gmra.mrb[0].mxu0 %v830
      %v954 = vpop.f32.mrb[0].mxu0
      %v955 = vadd.f32 %v743, %v954
      %v956 = vpop.f32.mrb[0].mxu0
      %v957 = vpop.f32.mrb[0].mxu0
      %v958 = vadd.f32 %v746, %v957
      %v959 = vpop.f32.mrb[0].mxu0
      %960 = vmatprep.mubr.bf16.mxu0 0
      %961 = vmatmul.mubr.bf16.gmra.mrb[0].mxu0 %v833
      %v962 = vpop.f32.mrb[0].mxu0
      %v963 = vadd.f32 %v751, %v962
      %v964 = vpop.f32.mrb[0].mxu0
      %v965 = vpop.f32.mrb[0].mxu0
      %v966 = vadd.f32 %v754, %v965
      %v967 = vpop.f32.mrb[0].mxu0
      %968 = vmatprep.mubr.bf16.mxu0 0
      %969 = vmatmul.mubr.bf16.gmra.mrb[0].mxu0 %v836
      %v970 = vpop.f32.mrb[0].mxu0
      %v971 = vadd.f32 %v759, %v970
      %v972 = vpop.f32.mrb[0].mxu0
      %v973 = vpop.f32.mrb[0].mxu0
      %v974 = vadd.f32 %v762, %v973
      %v975 = vpop.f32.mrb[0].mxu0
      %976 = vmatprep.mubr.bf16.mxu0 0
      %977 = vmatmul.mubr.bf16.gmra.mrb[0].mxu0 %v839
      %v978 = vpop.f32.mrb[0].mxu0
      %v979 = vadd.f32 %v767, %v978
      %v980 = vpop.f32.mrb[0].mxu0
      %v981 = vpop.f32.mrb[0].mxu0
      %v982 = vadd.f32 %v770, %v981
      %v983 = vpop.f32.mrb[0].mxu0
      %984 = vmatprep.mubr.bf16.mxu0 0
      %985 = vmatmul.mubr.bf16.gmra.mrb[0].mxu0 %v842
      %v986 = vpop.f32.mrb[0].mxu0
      %v987 = vadd.f32 %v775, %v986
      %v988 = vpop.f32.mrb[0].mxu0
      %v989 = vpop.f32.mrb[0].mxu0
      %v990 = vadd.f32 %v778, %v989
      %v991 = vpop.f32.mrb[0].mxu0
      %992 = vmatprep.mubr.bf16.mxu0 0
      %993 = vmatmul.mubr.bf16.gmra.mrb[0].mxu0 %v845
      %v994 = vpop.f32.mrb[0].mxu0
      %v995 = vadd.f32 %v783, %v994
      %v996 = vpop.f32.mrb[0].mxu0
      %v997 = vpop.f32.mrb[0].mxu0
      %v998 = vadd.f32 %v786, %v997
      %v999 = vpop.f32.mrb[0].mxu0
      %1000 = vmatprep.mubr.bf16.mxu0 0
      %1001 = vmatmul.mubr.bf16.gmra.mrb[0].mxu0 %v848
      %v1002 = vpop.f32.mrb[0].mxu0
      %v1003 = vadd.f32 %v791, %v1002
      %v1004 = vpop.f32.mrb[0].mxu0
      %v1005 = vpop.f32.mrb[0].mxu0
      %v1006 = vadd.f32 %v794, %v1005
      %v1007 = vpop.f32.mrb[0].mxu0
      %1008 = vmatprep.mubr.bf16.mxu0 0
      %1009 = vmatmul.mubr.bf16.gmra.mrb[0].mxu0 %v851
      %v1010 = vpop.f32.mrb[0].mxu0
      %v1011 = vadd.f32 %v799, %v1010
      %v1012 = vpop.f32.mrb[0].mxu0
      %v1013 = vpop.f32.mrb[0].mxu0
      %v1014 = vadd.f32 %v802, %v1013
      %v1015 = vpop.f32.mrb[0].mxu0
      %1016 = vdwg.mxu0
      %v1017 = vld [vmem:[#allocation2 + $0x2] sm:$0xff]
      %v1018 = vld [vmem:[#allocation2 + $0xa] sm:$0xff]
      %v1019 = vld [vmem:[#allocation2 + $0x1a] sm:$0xff]
      %v1020 = vld [vmem:[#allocation2 + $0x22] sm:$0xff]
      %v1021 = vld [vmem:[#allocation2 + $0x32] sm:$0xff]
      %v1022 = vld [vmem:[#allocation2 + $0x3a] sm:$0xff]
      %v1023 = vld [vmem:[#allocation2 + $0x4a] sm:$0xff]
      %v1024 = vld [vmem:[#allocation2 + $0x52] sm:$0xff]
      %v1025 = vld [vmem:[#allocation2 + $0x62] sm:$0xff]
      %v1026 = vld [vmem:[#allocation2 + $0x6a] sm:$0xff]
      %v1027 = vld [vmem:[#allocation2 + $0x7a] sm:$0xff]
      %v1028 = vld [vmem:[#allocation2 + $0x82] sm:$0xff]
      %v1029 = vld [vmem:[#allocation2 + $0x92] sm:$0xff]
      %v1030 = vld [vmem:[#allocation2 + $0x9a] sm:$0xff]
      %v1031 = vld [vmem:[#allocation2 + $0xaa] sm:$0xff]
      %v1032 = vld [vmem:[#allocation2 + $0xb2] sm:$0xff]
      %v1033 = vld [vmem:[#allocation2 + $0xc2] sm:$0xff]
      %v1034 = vld [vmem:[#allocation2 + $0xca] sm:$0xff]
      %v1035 = vld [vmem:[#allocation2 + $0xda] sm:$0xff]
      %v1036 = vld [vmem:[#allocation2 + $0xe2] sm:$0xff]
      %v1037 = vld [vmem:[#allocation2 + $0xf2] sm:$0xff]
      %v1038 = vld [vmem:[#allocation2 + $0xfa] sm:$0xff]
      %v1039 = vld [vmem:[#allocation2 + $0x10a] sm:$0xff]
      %v1040 = vld [vmem:[#allocation2 + $0x112] sm:$0xff]
      %v1041 = vld [vmem:[#allocation2 + $0x122] sm:$0xff]
      %v1042 = vld [vmem:[#allocation2 + $0x12a] sm:$0xff]
      %v1043 = vld [vmem:[#allocation2 + $0x13a] sm:$0xff]
      %v1044 = vld [vmem:[#allocation2 + $0x142] sm:$0xff]
      %v1045 = vld [vmem:[#allocation2 + $0x152] sm:$0xff]
      %v1046 = vld [vmem:[#allocation2 + $0x15a] sm:$0xff]
      %v1047 = vld [vmem:[#allocation2 + $0x16a] sm:$0xff]
      %v1048 = vld [vmem:[#allocation2 + $0x172] sm:$0xff]
      %v1049 = vpack.c.bf16 %v1018, %v1017
      %v1050 = vpack.c.bf16 %v1020, %v1019
      %v1051 = vpack.c.bf16 %v1022, %v1021
      %v1052 = vpack.c.bf16 %v1024, %v1023
      %v1053 = vpack.c.bf16 %v1026, %v1025
      %v1054 = vpack.c.bf16 %v1028, %v1027
      %v1055 = vpack.c.bf16 %v1030, %v1029
      %v1056 = vpack.c.bf16 %v1032, %v1031
      %v1057 = vpack.c.bf16 %v1034, %v1033
      %v1058 = vpack.c.bf16 %v1036, %v1035
      %v1059 = vpack.c.bf16 %v1038, %v1037
      %v1060 = vpack.c.bf16 %v1040, %v1039
      %v1061 = vpack.c.bf16 %v1042, %v1041
      %v1062 = vpack.c.bf16 %v1044, %v1043
      %v1063 = vpack.c.bf16 %v1046, %v1045
      %v1064 = vpack.c.bf16 %v1048, %v1047
      %v1065 = vld [vmem:[%s3 + $0x4] sm:$0x3]
      %v1067 = vsel %vm412, %v1049, 0
      %v1070 = vsel %vm412, %v1050, 0
      %v1073 = vsel %vm412, %v1051, 0
      %v1076 = vsel %vm412, %v1052, 0
      %v1079 = vsel %vm412, %v1053, 0
      %v1082 = vsel %vm412, %v1054, 0
      %v1085 = vsel %vm412, %v1055, 0
      %v1088 = vsel %vm412, %v1056, 0
      %v1091 = vsel %vm412, %v1057, 0
      %v1094 = vsel %vm412, %v1058, 0
      %v1097 = vsel %vm412, %v1059, 0
      %v1100 = vsel %vm412, %v1060, 0
      %v1103 = vsel %vm412, %v1061, 0
      %v1106 = vsel %vm412, %v1062, 0
      %v1109 = vsel %vm412, %v1063, 0
      %v1112 = vsel %vm412, %v1064, 0
      %v1115 = vsel %vm640, %v1065, 0
      %1117 = vmatprep.subr.bf16.mxu0 0
      %1118 = vmatpush1.bf16.msra.mxu0 %v1115
      %1119 = vmatprep.subr.bf16.mxu0 0
      %1120 = vmatpush1.bf16.msra.mxu0 0
      %1121 = vmatprep.subr.bf16.mxu0 0
      %1122 = vmatpush1.bf16.msra.mxu0 0
      %1123 = vmatprep.subr.bf16.mxu0 0
      %1124 = vmatpush1.bf16.msra.mxu0 0
      %1125 = vmatprep.subr.bf16.mxu0 0
      %1126 = vmatpush1.bf16.msra.mxu0 0
      %1127 = vmatprep.subr.bf16.mxu0 0
      %1128 = vmatpush1.bf16.msra.mxu0 0
      %1129 = vmatprep.subr.bf16.mxu0 0
      %1130 = vmatpush1.bf16.msra.mxu0 0
      %1131 = vmatprep.subr.bf16.mxu0 0
      %1132 = vmatpush1.bf16.msra.mxu0 0
      %1133 = vmatprep.subr.bf16.mxu0 0
      %1134 = vmatpush1.bf16.msra.mxu0 0
      %1135 = vmatprep.subr.bf16.mxu0 0
      %1136 = vmatpush1.bf16.msra.mxu0 0
      %1137 = vmatprep.subr.bf16.mxu0 0
      %1138 = vmatpush1.bf16.msra.mxu0 0
      %1139 = vmatprep.subr.bf16.mxu0 0
      %1140 = vmatpush1.bf16.msra.mxu0 0
      %1141 = vmatprep.subr.bf16.mxu0 0
      %1142 = vmatpush1.bf16.msra.mxu0 0
      %1143 = vmatprep.subr.bf16.mxu0 0
      %1144 = vmatpush1.bf16.msra.mxu0 0
      %1145 = vmatprep.subr.bf16.mxu0 0
      %1146 = vmatpush1.bf16.msra.mxu0 0
      %1147 = vmatprep.subr.bf16.mxu0 0
      %1148 = vmatpush1.bf16.msra.mxu0 0
      %1149 = vmatprep.mubr.bf16.mxu0 0
      %1150 = vmatmul.mubr.bf16.gmra.mrb[0].mxu0 %v1067
      %v1151 = vpop.f32.mrb[0].mxu0
      %v1152 = vadd.f32 0.0, %v1151
      %v1153 = vpop.f32.mrb[0].mxu0
      %v1154 = vpop.f32.mrb[0].mxu0
      %v1155 = vadd.f32 0.0, %v1154
      %v1156 = vpop.f32.mrb[0].mxu0
      %1157 = vmatprep.mubr.bf16.mxu0 0
      %1158 = vmatmul.mubr.bf16.gmra.mrb[0].mxu0 %v1070
      %v1159 = vpop.f32.mrb[0].mxu0
      %v1160 = vadd.f32 0.0, %v1159
      %v1161 = vpop.f32.mrb[0].mxu0
      %v1162 = vpop.f32.mrb[0].mxu0
      %v1163 = vadd.f32 0.0, %v1162
      %v1164 = vpop.f32.mrb[0].mxu0
      %1165 = vmatprep.mubr.bf16.mxu0 0
      %1166 = vmatmul.mubr.bf16.gmra.mrb[0].mxu0 %v1073
      %v1167 = vpop.f32.mrb[0].mxu0
      %v1168 = vadd.f32 0.0, %v1167
      %v1169 = vpop.f32.mrb[0].mxu0
      %v1170 = vpop.f32.mrb[0].mxu0
      %v1171 = vadd.f32 0.0, %v1170
      %v1172 = vpop.f32.mrb[0].mxu0
      %1173 = vmatprep.mubr.bf16.mxu0 0
      %1174 = vmatmul.mubr.bf16.gmra.mrb[0].mxu0 %v1076
      %v1175 = vpop.f32.mrb[0].mxu0
      %v1176 = vadd.f32 0.0, %v1175
      %v1177 = vpop.f32.mrb[0].mxu0
      %v1178 = vpop.f32.mrb[0].mxu0
      %v1179 = vadd.f32 0.0, %v1178
      %v1180 = vpop.f32.mrb[0].mxu0
      %1181 = vmatprep.mubr.bf16.mxu0 0
      %1182 = vmatmul.mubr.bf16.gmra.mrb[0].mxu0 %v1079
      %v1183 = vpop.f32.mrb[0].mxu0
      %v1184 = vadd.f32 0.0, %v1183
      %v1185 = vpop.f32.mrb[0].mxu0
      %v1186 = vpop.f32.mrb[0].mxu0
      %v1187 = vadd.f32 0.0, %v1186
      %v1188 = vpop.f32.mrb[0].mxu0
      %1189 = vmatprep.mubr.bf16.mxu0 0
      %1190 = vmatmul.mubr.bf16.gmra.mrb[0].mxu0 %v1082
      %v1191 = vpop.f32.mrb[0].mxu0
      %v1192 = vadd.f32 0.0, %v1191
      %v1193 = vpop.f32.mrb[0].mxu0
      %v1194 = vpop.f32.mrb[0].mxu0
      %v1195 = vadd.f32 0.0, %v1194
      %v1196 = vpop.f32.mrb[0].mxu0
      %1197 = vmatprep.mubr.bf16.mxu0 0
      %1198 = vmatmul.mubr.bf16.gmra.mrb[0].mxu0 %v1085
      %v1199 = vpop.f32.mrb[0].mxu0
      %v1200 = vadd.f32 0.0, %v1199
      %v1201 = vpop.f32.mrb[0].mxu0
      %v1202 = vpop.f32.mrb[0].mxu0
      %v1203 = vadd.f32 0.0, %v1202
      %v1204 = vpop.f32.mrb[0].mxu0
      %1205 = vmatprep.mubr.bf16.mxu0 0
      %1206 = vmatmul.mubr.bf16.gmra.mrb[0].mxu0 %v1088
      %v1207 = vpop.f32.mrb[0].mxu0
      %v1208 = vadd.f32 0.0, %v1207
      %v1209 = vpop.f32.mrb[0].mxu0
      %v1210 = vpop.f32.mrb[0].mxu0
      %v1211 = vadd.f32 0.0, %v1210
      %v1212 = vpop.f32.mrb[0].mxu0
      %1213 = vmatprep.mubr.bf16.mxu0 0
      %1214 = vmatmul.mubr.bf16.gmra.mrb[0].mxu0 %v1091
      %v1215 = vpop.f32.mrb[0].mxu0
      %v1216 = vadd.f32 0.0, %v1215
      %v1217 = vpop.f32.mrb[0].mxu0
      %v1218 = vpop.f32.mrb[0].mxu0
      %v1219 = vadd.f32 0.0, %v1218
      %v1220 = vpop.f32.mrb[0].mxu0
      %1221 = vmatprep.mubr.bf16.mxu0 0
      %1222 = vmatmul.mubr.bf16.gmra.mrb[0].mxu0 %v1094
      %v1223 = vpop.f32.mrb[0].mxu0
      %v1224 = vadd.f32 0.0, %v1223
      %v1225 = vpop.f32.mrb[0].mxu0
      %v1226 = vpop.f32.mrb[0].mxu0
      %v1227 = vadd.f32 0.0, %v1226
      %v1228 = vpop.f32.mrb[0].mxu0
      %1229 = vmatprep.mubr.bf16.mxu0 0
      %1230 = vmatmul.mubr.bf16.gmra.mrb[0].mxu0 %v1097
      %v1231 = vpop.f32.mrb[0].mxu0
      %v1232 = vadd.f32 0.0, %v1231
      %v1233 = vpop.f32.mrb[0].mxu0
      %v1234 = vpop.f32.mrb[0].mxu0
      %v1235 = vadd.f32 0.0, %v1234
      %v1236 = vpop.f32.mrb[0].mxu0
      %1237 = vmatprep.mubr.bf16.mxu0 0
      %1238 = vmatmul.mubr.bf16.gmra.mrb[0].mxu0 %v1100
      %v1239 = vpop.f32.mrb[0].mxu0
      %v1240 = vadd.f32 0.0, %v1239
      %v1241 = vpop.f32.mrb[0].mxu0
      %v1242 = vpop.f32.mrb[0].mxu0
      %v1243 = vadd.f32 0.0, %v1242
      %v1244 = vpop.f32.mrb[0].mxu0
      %1245 = vmatprep.mubr.bf16.mxu0 0
      %1246 = vmatmul.mubr.bf16.gmra.mrb[0].mxu0 %v1103
      %v1247 = vpop.f32.mrb[0].mxu0
      %v1248 = vadd.f32 0.0, %v1247
      %v1249 = vpop.f32.mrb[0].mxu0
      %v1250 = vpop.f32.mrb[0].mxu0
      %v1251 = vadd.f32 0.0, %v1250
      %v1252 = vpop.f32.mrb[0].mxu0
      %1253 = vmatprep.mubr.bf16.mxu0 0
      %1254 = vmatmul.mubr.bf16.gmra.mrb[0].mxu0 %v1106
      %v1255 = vpop.f32.mrb[0].mxu0
      %v1256 = vadd.f32 0.0, %v1255
      %v1257 = vpop.f32.mrb[0].mxu0
      %v1258 = vpop.f32.mrb[0].mxu0
      %v1259 = vadd.f32 0.0, %v1258
      %v1260 = vpop.f32.mrb[0].mxu0
      %1261 = vmatprep.mubr.bf16.mxu0 0
      %1262 = vmatmul.mubr.bf16.gmra.mrb[0].mxu0 %v1109
      %v1263 = vpop.f32.mrb[0].mxu0
      %v1264 = vadd.f32 0.0, %v1263
      %v1265 = vpop.f32.mrb[0].mxu0
      %v1266 = vpop.f32.mrb[0].mxu0
      %v1267 = vadd.f32 0.0, %v1266
      %v1268 = vpop.f32.mrb[0].mxu0
      %1269 = vmatprep.mubr.bf16.mxu0 0
      %1270 = vmatmul.mubr.bf16.gmra.mrb[0].mxu0 %v1112
      %v1271 = vpop.f32.mrb[0].mxu0
      %v1272 = vadd.f32 0.0, %v1271
      %v1273 = vpop.f32.mrb[0].mxu0
      %v1274 = vpop.f32.mrb[0].mxu0
      %v1275 = vadd.f32 0.0, %v1274
      %v1276 = vpop.f32.mrb[0].mxu0
      %1277 = vdwg.mxu0
      %v1278 = vadd.f32 %v891, %v1152
      %v1279 = vadd.f32 %v894, %v1155
      %v1280 = vadd.f32 %v899, %v1160
      %v1281 = vadd.f32 %v902, %v1163
      %v1282 = vadd.f32 %v907, %v1168
      %v1283 = vadd.f32 %v910, %v1171
      %v1284 = vadd.f32 %v915, %v1176
      %v1285 = vadd.f32 %v918, %v1179
      %v1286 = vadd.f32 %v923, %v1184
      %v1287 = vadd.f32 %v926, %v1187
      %v1288 = vadd.f32 %v931, %v1192
      %v1289 = vadd.f32 %v934, %v1195
      %v1290 = vadd.f32 %v939, %v1200
      %v1291 = vadd.f32 %v942, %v1203
      %v1292 = vadd.f32 %v947, %v1208
      %v1293 = vadd.f32 %v950, %v1211
      %v1294 = vadd.f32 %v955, %v1216
      %v1295 = vadd.f32 %v958, %v1219
      %v1296 = vadd.f32 %v963, %v1224
      %v1297 = vadd.f32 %v966, %v1227
      %v1298 = vadd.f32 %v971, %v1232
      %v1299 = vadd.f32 %v974, %v1235
      %v1300 = vadd.f32 %v979, %v1240
      %v1301 = vadd.f32 %v982, %v1243
      %v1302 = vadd.f32 %v987, %v1248
      %v1303 = vadd.f32 %v990, %v1251
      %v1304 = vadd.f32 %v995, %v1256
      %v1305 = vadd.f32 %v998, %v1259
      %v1306 = vadd.f32 %v1003, %v1264
      %v1307 = vadd.f32 %v1006, %v1267
      %v1308 = vadd.f32 %v1011, %v1272
      %v1309 = vadd.f32 %v1014, %v1275
      %v1310 = vld [vmem:[%s411] sm:$0xff]
      %v1311 = vld [vmem:[%s411 + $0x8] sm:$0xff]
      %v1312 = vld [vmem:[%s411 + $0x18] sm:$0xff]
      %v1313 = vld [vmem:[%s411 + $0x20] sm:$0xff]
      %v1314 = vld [vmem:[%s411 + $0x30] sm:$0xff]
      %v1315 = vld [vmem:[%s411 + $0x38] sm:$0xff]
      %v1316 = vld [vmem:[%s411 + $0x48] sm:$0xff]
      %v1317 = vld [vmem:[%s411 + $0x50] sm:$0xff]
      %v1318 = vld [vmem:[%s411 + $0x60] sm:$0xff]
      %v1319 = vld [vmem:[%s411 + $0x68] sm:$0xff]
      %v1320 = vld [vmem:[%s411 + $0x78] sm:$0xff]
      %v1321 = vld [vmem:[%s411 + $0x80] sm:$0xff]
      %v1322 = vld [vmem:[%s411 + $0x90] sm:$0xff]
      %v1323 = vld [vmem:[%s411 + $0x98] sm:$0xff]
      %v1324 = vld [vmem:[%s411 + $0xa8] sm:$0xff]
      %v1325 = vld [vmem:[%s411 + $0xb0] sm:$0xff]
      %v1326 = vld [vmem:[%s411 + $0xc0] sm:$0xff]
      %v1327 = vld [vmem:[%s411 + $0xc8] sm:$0xff]
      %v1328 = vld [vmem:[%s411 + $0xd8] sm:$0xff]
      %v1329 = vld [vmem:[%s411 + $0xe0] sm:$0xff]
      %v1330 = vld [vmem:[%s411 + $0xf0] sm:$0xff]
      %v1331 = vld [vmem:[%s411 + $0xf8] sm:$0xff]
      %v1332 = vld [vmem:[%s411 + $0x108] sm:$0xff]
      %v1333 = vld [vmem:[%s411 + $0x110] sm:$0xff]
      %v1334 = vld [vmem:[%s411 + $0x120] sm:$0xff]
      %v1335 = vld [vmem:[%s411 + $0x128] sm:$0xff]
      %v1336 = vld [vmem:[%s411 + $0x138] sm:$0xff]
      %v1337 = vld [vmem:[%s411 + $0x140] sm:$0xff]
      %v1338 = vld [vmem:[%s411 + $0x150] sm:$0xff]
      %v1339 = vld [vmem:[%s411 + $0x158] sm:$0xff]
      %v1340 = vld [vmem:[%s411 + $0x168] sm:$0xff]
      %v1341 = vld [vmem:[%s411 + $0x170] sm:$0xff]
      %v1342 = vpack.c.bf16 %v1311, %v1310
      %v1343 = vpack.c.bf16 %v1313, %v1312
      %v1344 = vpack.c.bf16 %v1315, %v1314
      %v1345 = vpack.c.bf16 %v1317, %v1316
      %v1346 = vpack.c.bf16 %v1319, %v1318
      %v1347 = vpack.c.bf16 %v1321, %v1320
      %v1348 = vpack.c.bf16 %v1323, %v1322
      %v1349 = vpack.c.bf16 %v1325, %v1324
      %v1350 = vpack.c.bf16 %v1327, %v1326
      %v1351 = vpack.c.bf16 %v1329, %v1328
      %v1352 = vpack.c.bf16 %v1331, %v1330
      %v1353 = vpack.c.bf16 %v1333, %v1332
      %v1354 = vpack.c.bf16 %v1335, %v1334
      %v1355 = vpack.c.bf16 %v1337, %v1336
      %v1356 = vpack.c.bf16 %v1339, %v1338
      %v1357 = vpack.c.bf16 %v1341, %v1340
      %v1358 = vld [vmem:[%s3 + $0x4] sm:$0xc]
      %v1360 = vunpack.c.l.b16 %v1358
      %v1361 = vpack.c.b16 %v1360, %v1360
      %v1362 = vrot.slane %v1361, 2
      %v1364 = vsel %vm412, %v1342, 0
      %v1367 = vsel %vm412, %v1343, 0
      %v1370 = vsel %vm412, %v1344, 0
      %v1373 = vsel %vm412, %v1345, 0
      %v1376 = vsel %vm412, %v1346, 0
      %v1379 = vsel %vm412, %v1347, 0
      %v1382 = vsel %vm412, %v1348, 0
      %v1385 = vsel %vm412, %v1349, 0
      %v1388 = vsel %vm412, %v1350, 0
      %v1391 = vsel %vm412, %v1351, 0
      %v1394 = vsel %vm412, %v1352, 0
      %v1397 = vsel %vm412, %v1353, 0
      %v1400 = vsel %vm412, %v1354, 0
      %v1403 = vsel %vm412, %v1355, 0
      %v1406 = vsel %vm412, %v1356, 0
      %v1409 = vsel %vm412, %v1357, 0
      %v1412 = vsel %vm640, %v1362, 0
      %1414 = vmatprep.subr.bf16.mxu0 0
      %1415 = vmatpush1.bf16.msra.mxu0 %v1412
      %1416 = vmatprep.subr.bf16.mxu0 0
      %1417 = vmatpush1.bf16.msra.mxu0 0
      %1418 = vmatprep.subr.bf16.mxu0 0
      %1419 = vmatpush1.bf16.msra.mxu0 0
      %1420 = vmatprep.subr.bf16.mxu0 0
      %1421 = vmatpush1.bf16.msra.mxu0 0
      %1422 = vmatprep.subr.bf16.mxu0 0
      %1423 = vmatpush1.bf16.msra.mxu0 0
      %1424 = vmatprep.subr.bf16.mxu0 0
      %1425 = vmatpush1.bf16.msra.mxu0 0
      %1426 = vmatprep.subr.bf16.mxu0 0
      %1427 = vmatpush1.bf16.msra.mxu0 0
      %1428 = vmatprep.subr.bf16.mxu0 0
      %1429 = vmatpush1.bf16.msra.mxu0 0
      %1430 = vmatprep.subr.bf16.mxu0 0
      %1431 = vmatpush1.bf16.msra.mxu0 0
      %1432 = vmatprep.subr.bf16.mxu0 0
      %1433 = vmatpush1.bf16.msra.mxu0 0
      %1434 = vmatprep.subr.bf16.mxu0 0
      %1435 = vmatpush1.bf16.msra.mxu0 0
      %1436 = vmatprep.subr.bf16.mxu0 0
      %1437 = vmatpush1.bf16.msra.mxu0 0
      %1438 = vmatprep.subr.bf16.mxu0 0
      %1439 = vmatpush1.bf16.msra.mxu0 0
      %1440 = vmatprep.subr.bf16.mxu0 0
      %1441 = vmatpush1.bf16.msra.mxu0 0
      %1442 = vmatprep.subr.bf16.mxu0 0
      %1443 = vmatpush1.bf16.msra.mxu0 0
      %1444 = vmatprep.subr.bf16.mxu0 0
      %1445 = vmatpush1.bf16.msra.mxu0 0
      %1446 = vmatprep.mubr.bf16.mxu0 0
      %1447 = vmatmul.mubr.bf16.gmra.mrb[0].mxu0 %v1364
      %v1448 = vpop.f32.mrb[0].mxu0
      %v1449 = vadd.f32 0.0, %v1448
      %v1450 = vpop.f32.mrb[0].mxu0
      %v1451 = vpop.f32.mrb[0].mxu0
      %v1452 = vadd.f32 0.0, %v1451
      %v1453 = vpop.f32.mrb[0].mxu0
      %1454 = vmatprep.mubr.bf16.mxu0 0
      %1455 = vmatmul.mubr.bf16.gmra.mrb[0].mxu0 %v1367
      %v1456 = vpop.f32.mrb[0].mxu0
      %v1457 = vadd.f32 0.0, %v1456
      %v1458 = vpop.f32.mrb[0].mxu0
      %v1459 = vpop.f32.mrb[0].mxu0
      %v1460 = vadd.f32 0.0, %v1459
      %v1461 = vpop.f32.mrb[0].mxu0
      %1462 = vmatprep.mubr.bf16.mxu0 0
      %1463 = vmatmul.mubr.bf16.gmra.mrb[0].mxu0 %v1370
      %v1464 = vpop.f32.mrb[0].mxu0
      %v1465 = vadd.f32 0.0, %v1464
      %v1466 = vpop.f32.mrb[0].mxu0
      %v1467 = vpop.f32.mrb[0].mxu0
      %v1468 = vadd.f32 0.0, %v1467
      %v1469 = vpop.f32.mrb[0].mxu0
      %1470 = vmatprep.mubr.bf16.mxu0 0
      %1471 = vmatmul.mubr.bf16.gmra.mrb[0].mxu0 %v1373
      %v1472 = vpop.f32.mrb[0].mxu0
      %v1473 = vadd.f32 0.0, %v1472
      %v1474 = vpop.f32.mrb[0].mxu0
      %v1475 = vpop.f32.mrb[0].mxu0
      %v1476 = vadd.f32 0.0, %v1475
      %v1477 = vpop.f32.mrb[0].mxu0
      %1478 = vmatprep.mubr.bf16.mxu0 0
      %1479 = vmatmul.mubr.bf16.gmra.mrb[0].mxu0 %v1376
      %v1480 = vpop.f32.mrb[0].mxu0
      %v1481 = vadd.f32 0.0, %v1480
      %v1482 = vpop.f32.mrb[0].mxu0
      %v1483 = vpop.f32.mrb[0].mxu0
      %v1484 = vadd.f32 0.0, %v1483
      %v1485 = vpop.f32.mrb[0].mxu0
      %1486 = vmatprep.mubr.bf16.mxu0 0
      %1487 = vmatmul.mubr.bf16.gmra.mrb[0].mxu0 %v1379
      %v1488 = vpop.f32.mrb[0].mxu0
      %v1489 = vadd.f32 0.0, %v1488
      %v1490 = vpop.f32.mrb[0].mxu0
      %v1491 = vpop.f32.mrb[0].mxu0
      %v1492 = vadd.f32 0.0, %v1491
      %v1493 = vpop.f32.mrb[0].mxu0
      %1494 = vmatprep.mubr.bf16.mxu0 0
      %1495 = vmatmul.mubr.bf16.gmra.mrb[0].mxu0 %v1382
      %v1496 = vpop.f32.mrb[0].mxu0
      %v1497 = vadd.f32 0.0, %v1496
      %v1498 = vpop.f32.mrb[0].mxu0
      %v1499 = vpop.f32.mrb[0].mxu0
      %v1500 = vadd.f32 0.0, %v1499
      %v1501 = vpop.f32.mrb[0].mxu0
      %1502 = vmatprep.mubr.bf16.mxu0 0
      %1503 = vmatmul.mubr.bf16.gmra.mrb[0].mxu0 %v1385
      %v1504 = vpop.f32.mrb[0].mxu0
      %v1505 = vadd.f32 0.0, %v1504
      %v1506 = vpop.f32.mrb[0].mxu0
      %v1507 = vpop.f32.mrb[0].mxu0
      %v1508 = vadd.f32 0.0, %v1507
      %v1509 = vpop.f32.mrb[0].mxu0
      %1510 = vmatprep.mubr.bf16.mxu0 0
      %1511 = vmatmul.mubr.bf16.gmra.mrb[0].mxu0 %v1388
      %v1512 = vpop.f32.mrb[0].mxu0
      %v1513 = vadd.f32 0.0, %v1512
      %v1514 = vpop.f32.mrb[0].mxu0
      %v1515 = vpop.f32.mrb[0].mxu0
      %v1516 = vadd.f32 0.0, %v1515
      %v1517 = vpop.f32.mrb[0].mxu0
      %1518 = vmatprep.mubr.bf16.mxu0 0
      %1519 = vmatmul.mubr.bf16.gmra.mrb[0].mxu0 %v1391
      %v1520 = vpop.f32.mrb[0].mxu0
      %v1521 = vadd.f32 0.0, %v1520
      %v1522 = vpop.f32.mrb[0].mxu0
      %v1523 = vpop.f32.mrb[0].mxu0
      %v1524 = vadd.f32 0.0, %v1523
      %v1525 = vpop.f32.mrb[0].mxu0
      %1526 = vmatprep.mubr.bf16.mxu0 0
      %1527 = vmatmul.mubr.bf16.gmra.mrb[0].mxu0 %v1394
      %v1528 = vpop.f32.mrb[0].mxu0
      %v1529 = vadd.f32 0.0, %v1528
      %v1530 = vpop.f32.mrb[0].mxu0
      %v1531 = vpop.f32.mrb[0].mxu0
      %v1532 = vadd.f32 0.0, %v1531
      %v1533 = vpop.f32.mrb[0].mxu0
      %1534 = vmatprep.mubr.bf16.mxu0 0
      %1535 = vmatmul.mubr.bf16.gmra.mrb[0].mxu0 %v1397
      %v1536 = vpop.f32.mrb[0].mxu0
      %v1537 = vadd.f32 0.0, %v1536
      %v1538 = vpop.f32.mrb[0].mxu0
      %v1539 = vpop.f32.mrb[0].mxu0
      %v1540 = vadd.f32 0.0, %v1539
      %v1541 = vpop.f32.mrb[0].mxu0
      %1542 = vmatprep.mubr.bf16.mxu0 0
      %1543 = vmatmul.mubr.bf16.gmra.mrb[0].mxu0 %v1400
      %v1544 = vpop.f32.mrb[0].mxu0
      %v1545 = vadd.f32 0.0, %v1544
      %v1546 = vpop.f32.mrb[0].mxu0
      %v1547 = vpop.f32.mrb[0].mxu0
      %v1548 = vadd.f32 0.0, %v1547
      %v1549 = vpop.f32.mrb[0].mxu0
      %1550 = vmatprep.mubr.bf16.mxu0 0
      %1551 = vmatmul.mubr.bf16.gmra.mrb[0].mxu0 %v1403
      %v1552 = vpop.f32.mrb[0].mxu0
      %v1553 = vadd.f32 0.0, %v1552
      %v1554 = vpop.f32.mrb[0].mxu0
      %v1555 = vpop.f32.mrb[0].mxu0
      %v1556 = vadd.f32 0.0, %v1555
      %v1557 = vpop.f32.mrb[0].mxu0
      %1558 = vmatprep.mubr.bf16.mxu0 0
      %1559 = vmatmul.mubr.bf16.gmra.mrb[0].mxu0 %v1406
      %v1560 = vpop.f32.mrb[0].mxu0
      %v1561 = vadd.f32 0.0, %v1560
      %v1562 = vpop.f32.mrb[0].mxu0
      %v1563 = vpop.f32.mrb[0].mxu0
      %v1564 = vadd.f32 0.0, %v1563
      %v1565 = vpop.f32.mrb[0].mxu0
      %1566 = vmatprep.mubr.bf16.mxu0 0
      %1567 = vmatmul.mubr.bf16.gmra.mrb[0].mxu0 %v1409
      %v1568 = vpop.f32.mrb[0].mxu0
      %v1569 = vadd.f32 0.0, %v1568
      %v1570 = vpop.f32.mrb[0].mxu0
      %v1571 = vpop.f32.mrb[0].mxu0
      %v1572 = vadd.f32 0.0, %v1571
      %v1573 = vpop.f32.mrb[0].mxu0
      %1574 = vdwg.mxu0
      %v1575 = vadd.f32 %v1278, %v1449
      %v1576 = vadd.f32 %v1279, %v1452
      %v1577 = vadd.f32 %v1280, %v1457
      %v1578 = vadd.f32 %v1281, %v1460
      %v1579 = vadd.f32 %v1282, %v1465
      %v1580 = vadd.f32 %v1283, %v1468
      %v1581 = vadd.f32 %v1284, %v1473
      %v1582 = vadd.f32 %v1285, %v1476
      %v1583 = vadd.f32 %v1286, %v1481
      %v1584 = vadd.f32 %v1287, %v1484
      %v1585 = vadd.f32 %v1288, %v1489
      %v1586 = vadd.f32 %v1289, %v1492
      %v1587 = vadd.f32 %v1290, %v1497
      %v1588 = vadd.f32 %v1291, %v1500
      %v1589 = vadd.f32 %v1292, %v1505
      %v1590 = vadd.f32 %v1293, %v1508
      %v1591 = vadd.f32 %v1294, %v1513
      %v1592 = vadd.f32 %v1295, %v1516
      %v1593 = vadd.f32 %v1296, %v1521
      %v1594 = vadd.f32 %v1297, %v1524
      %v1595 = vadd.f32 %v1298, %v1529
      %v1596 = vadd.f32 %v1299, %v1532
      %v1597 = vadd.f32 %v1300, %v1537
      %v1598 = vadd.f32 %v1301, %v1540
      %v1599 = vadd.f32 %v1302, %v1545
      %v1600 = vadd.f32 %v1303, %v1548
      %v1601 = vadd.f32 %v1304, %v1553
      %v1602 = vadd.f32 %v1305, %v1556
      %v1603 = vadd.f32 %v1306, %v1561
      %v1604 = vadd.f32 %v1307, %v1564
      %v1605 = vadd.f32 %v1308, %v1569
      %v1606 = vadd.f32 %v1309, %v1572
      %v1607 = vld [vmem:[%s411 + $0x1] sm:$0xff]
      %v1608 = vld [vmem:[%s411 + $0x9] sm:$0xff]
      %v1609 = vld [vmem:[%s411 + $0x19] sm:$0xff]
      %v1610 = vld [vmem:[%s411 + $0x21] sm:$0xff]
      %v1611 = vld [vmem:[%s411 + $0x31] sm:$0xff]
      %v1612 = vld [vmem:[%s411 + $0x39] sm:$0xff]
      %v1613 = vld [vmem:[%s411 + $0x49] sm:$0xff]
      %v1614 = vld [vmem:[%s411 + $0x51] sm:$0xff]
      %v1615 = vld [vmem:[%s411 + $0x61] sm:$0xff]
      %v1616 = vld [vmem:[%s411 + $0x69] sm:$0xff]
      %v1617 = vld [vmem:[%s411 + $0x79] sm:$0xff]
      %v1618 = vld [vmem:[%s411 + $0x81] sm:$0xff]
      %v1619 = vld [vmem:[%s411 + $0x91] sm:$0xff]
      %v1620 = vld [vmem:[%s411 + $0x99] sm:$0xff]
      %v1621 = vld [vmem:[%s411 + $0xa9] sm:$0xff]
      %v1622 = vld [vmem:[%s411 + $0xb1] sm:$0xff]
      %v1623 = vld [vmem:[%s411 + $0xc1] sm:$0xff]
      %v1624 = vld [vmem:[%s411 + $0xc9] sm:$0xff]
      %v1625 = vld [vmem:[%s411 + $0xd9] sm:$0xff]
      %v1626 = vld [vmem:[%s411 + $0xe1] sm:$0xff]
      %v1627 = vld [vmem:[%s411 + $0xf1] sm:$0xff]
      %v1628 = vld [vmem:[%s411 + $0xf9] sm:$0xff]
      %v1629 = vld [vmem:[%s411 + $0x109] sm:$0xff]
      %v1630 = vld [vmem:[%s411 + $0x111] sm:$0xff]
      %v1631 = vld [vmem:[%s411 + $0x121] sm:$0xff]
      %v1632 = vld [vmem:[%s411 + $0x129] sm:$0xff]
      %v1633 = vld [vmem:[%s411 + $0x139] sm:$0xff]
      %v1634 = vld [vmem:[%s411 + $0x141] sm:$0xff]
      %v1635 = vld [vmem:[%s411 + $0x151] sm:$0xff]
      %v1636 = vld [vmem:[%s411 + $0x159] sm:$0xff]
      %v1637 = vld [vmem:[%s411 + $0x169] sm:$0xff]
      %v1638 = vld [vmem:[%s411 + $0x171] sm:$0xff]
      %v1639 = vpack.c.bf16 %v1608, %v1607
      %v1640 = vpack.c.bf16 %v1610, %v1609
      %v1641 = vpack.c.bf16 %v1612, %v1611
      %v1642 = vpack.c.bf16 %v1614, %v1613
      %v1643 = vpack.c.bf16 %v1616, %v1615
      %v1644 = vpack.c.bf16 %v1618, %v1617
      %v1645 = vpack.c.bf16 %v1620, %v1619
      %v1646 = vpack.c.bf16 %v1622, %v1621
      %v1647 = vpack.c.bf16 %v1624, %v1623
      %v1648 = vpack.c.bf16 %v1626, %v1625
      %v1649 = vpack.c.bf16 %v1628, %v1627
      %v1650 = vpack.c.bf16 %v1630, %v1629
      %v1651 = vpack.c.bf16 %v1632, %v1631
      %v1652 = vpack.c.bf16 %v1634, %v1633
      %v1653 = vpack.c.bf16 %v1636, %v1635
      %v1654 = vpack.c.bf16 %v1638, %v1637
      %v1655 = vld [vmem:[%s3 + $0x8] sm:$0x3]
      %v1657 = vsel %vm412, %v1639, 0
      %v1660 = vsel %vm412, %v1640, 0
      %v1663 = vsel %vm412, %v1641, 0
      %v1666 = vsel %vm412, %v1642, 0
      %v1669 = vsel %vm412, %v1643, 0
      %v1672 = vsel %vm412, %v1644, 0
      %v1675 = vsel %vm412, %v1645, 0
      %v1678 = vsel %vm412, %v1646, 0
      %v1681 = vsel %vm412, %v1647, 0
      %v1684 = vsel %vm412, %v1648, 0
      %v1687 = vsel %vm412, %v1649, 0
      %v1690 = vsel %vm412, %v1650, 0
      %v1693 = vsel %vm412, %v1651, 0
      %v1696 = vsel %vm412, %v1652, 0
      %v1699 = vsel %vm412, %v1653, 0
      %v1702 = vsel %vm412, %v1654, 0
      %v1705 = vsel %vm640, %v1655, 0
      %1707 = vmatprep.subr.bf16.mxu0 0
      %1708 = vmatpush1.bf16.msra.mxu0 %v1705
      %1709 = vmatprep.subr.bf16.mxu0 0
      %1710 = vmatpush1.bf16.msra.mxu0 0
      %1711 = vmatprep.subr.bf16.mxu0 0
      %1712 = vmatpush1.bf16.msra.mxu0 0
      %1713 = vmatprep.subr.bf16.mxu0 0
      %1714 = vmatpush1.bf16.msra.mxu0 0
      %1715 = vmatprep.subr.bf16.mxu0 0
      %1716 = vmatpush1.bf16.msra.mxu0 0
      %1717 = vmatprep.subr.bf16.mxu0 0
      %1718 = vmatpush1.bf16.msra.mxu0 0
      %1719 = vmatprep.subr.bf16.mxu0 0
      %1720 = vmatpush1.bf16.msra.mxu0 0
      %1721 = vmatprep.subr.bf16.mxu0 0
      %1722 = vmatpush1.bf16.msra.mxu0 0
      %1723 = vmatprep.subr.bf16.mxu0 0
      %1724 = vmatpush1.bf16.msra.mxu0 0
      %1725 = vmatprep.subr.bf16.mxu0 0
      %1726 = vmatpush1.bf16.msra.mxu0 0
      %1727 = vmatprep.subr.bf16.mxu0 0
      %1728 = vmatpush1.bf16.msra.mxu0 0
      %1729 = vmatprep.subr.bf16.mxu0 0
      %1730 = vmatpush1.bf16.msra.mxu0 0
      %1731 = vmatprep.subr.bf16.mxu0 0
      %1732 = vmatpush1.bf16.msra.mxu0 0
      %1733 = vmatprep.subr.bf16.mxu0 0
      %1734 = vmatpush1.bf16.msra.mxu0 0
      %1735 = vmatprep.subr.bf16.mxu0 0
      %1736 = vmatpush1.bf16.msra.mxu0 0
      %1737 = vmatprep.subr.bf16.mxu0 0
      %1738 = vmatpush1.bf16.msra.mxu0 0
      %1739 = vmatprep.mubr.bf16.mxu0 0
      %1740 = vmatmul.mubr.bf16.gmra.mrb[0].mxu0 %v1657
      %v1741 = vpop.f32.mrb[0].mxu0
      %v1742 = vadd.f32 0.0, %v1741
      %v1743 = vpop.f32.mrb[0].mxu0
      %v1744 = vpop.f32.mrb[0].mxu0
      %v1745 = vadd.f32 0.0, %v1744
      %v1746 = vpop.f32.mrb[0].mxu0
      %1747 = vmatprep.mubr.bf16.mxu0 0
      %1748 = vmatmul.mubr.bf16.gmra.mrb[0].mxu0 %v1660
      %v1749 = vpop.f32.mrb[0].mxu0
      %v1750 = vadd.f32 0.0, %v1749
      %v1751 = vpop.f32.mrb[0].mxu0
      %v1752 = vpop.f32.mrb[0].mxu0
      %v1753 = vadd.f32 0.0, %v1752
      %v1754 = vpop.f32.mrb[0].mxu0
      %1755 = vmatprep.mubr.bf16.mxu0 0
      %1756 = vmatmul.mubr.bf16.gmra.mrb[0].mxu0 %v1663
      %v1757 = vpop.f32.mrb[0].mxu0
      %v1758 = vadd.f32 0.0, %v1757
      %v1759 = vpop.f32.mrb[0].mxu0
      %v1760 = vpop.f32.mrb[0].mxu0
      %v1761 = vadd.f32 0.0, %v1760
      %v1762 = vpop.f32.mrb[0].mxu0
      %1763 = vmatprep.mubr.bf16.mxu0 0
      %1764 = vmatmul.mubr.bf16.gmra.mrb[0].mxu0 %v1666
      %v1765 = vpop.f32.mrb[0].mxu0
      %v1766 = vadd.f32 0.0, %v1765
      %v1767 = vpop.f32.mrb[0].mxu0
      %v1768 = vpop.f32.mrb[0].mxu0
      %v1769 = vadd.f32 0.0, %v1768
      %v1770 = vpop.f32.mrb[0].mxu0
      %1771 = vmatprep.mubr.bf16.mxu0 0
      %1772 = vmatmul.mubr.bf16.gmra.mrb[0].mxu0 %v1669
      %v1773 = vpop.f32.mrb[0].mxu0
      %v1774 = vadd.f32 0.0, %v1773
      %v1775 = vpop.f32.mrb[0].mxu0
      %v1776 = vpop.f32.mrb[0].mxu0
      %v1777 = vadd.f32 0.0, %v1776
      %v1778 = vpop.f32.mrb[0].mxu0
      %1779 = vmatprep.mubr.bf16.mxu0 0
      %1780 = vmatmul.mubr.bf16.gmra.mrb[0].mxu0 %v1672
      %v1781 = vpop.f32.mrb[0].mxu0
      %v1782 = vadd.f32 0.0, %v1781
      %v1783 = vpop.f32.mrb[0].mxu0
      %v1784 = vpop.f32.mrb[0].mxu0
      %v1785 = vadd.f32 0.0, %v1784
      %v1786 = vpop.f32.mrb[0].mxu0
      %1787 = vmatprep.mubr.bf16.mxu0 0
      %1788 = vmatmul.mubr.bf16.gmra.mrb[0].mxu0 %v1675
      %v1789 = vpop.f32.mrb[0].mxu0
      %v1790 = vadd.f32 0.0, %v1789
      %v1791 = vpop.f32.mrb[0].mxu0
      %v1792 = vpop.f32.mrb[0].mxu0
      %v1793 = vadd.f32 0.0, %v1792
      %v1794 = vpop.f32.mrb[0].mxu0
      %1795 = vmatprep.mubr.bf16.mxu0 0
      %1796 = vmatmul.mubr.bf16.gmra.mrb[0].mxu0 %v1678
      %v1797 = vpop.f32.mrb[0].mxu0
      %v1798 = vadd.f32 0.0, %v1797
      %v1799 = vpop.f32.mrb[0].mxu0
      %v1800 = vpop.f32.mrb[0].mxu0
      %v1801 = vadd.f32 0.0, %v1800
      %v1802 = vpop.f32.mrb[0].mxu0
      %1803 = vmatprep.mubr.bf16.mxu0 0
      %1804 = vmatmul.mubr.bf16.gmra.mrb[0].mxu0 %v1681
      %v1805 = vpop.f32.mrb[0].mxu0
      %v1806 = vadd.f32 0.0, %v1805
      %v1807 = vpop.f32.mrb[0].mxu0
      %v1808 = vpop.f32.mrb[0].mxu0
      %v1809 = vadd.f32 0.0, %v1808
      %v1810 = vpop.f32.mrb[0].mxu0
      %1811 = vmatprep.mubr.bf16.mxu0 0
      %1812 = vmatmul.mubr.bf16.gmra.mrb[0].mxu0 %v1684
      %v1813 = vpop.f32.mrb[0].mxu0
      %v1814 = vadd.f32 0.0, %v1813
      %v1815 = vpop.f32.mrb[0].mxu0
      %v1816 = vpop.f32.mrb[0].mxu0
      %v1817 = vadd.f32 0.0, %v1816
      %v1818 = vpop.f32.mrb[0].mxu0
      %1819 = vmatprep.mubr.bf16.mxu0 0
      %1820 = vmatmul.mubr.bf16.gmra.mrb[0].mxu0 %v1687
      %v1821 = vpop.f32.mrb[0].mxu0
      %v1822 = vadd.f32 0.0, %v1821
      %v1823 = vpop.f32.mrb[0].mxu0
      %v1824 = vpop.f32.mrb[0].mxu0
      %v1825 = vadd.f32 0.0, %v1824
      %v1826 = vpop.f32.mrb[0].mxu0
      %1827 = vmatprep.mubr.bf16.mxu0 0
      %1828 = vmatmul.mubr.bf16.gmra.mrb[0].mxu0 %v1690
      %v1829 = vpop.f32.mrb[0].mxu0
      %v1830 = vadd.f32 0.0, %v1829
      %v1831 = vpop.f32.mrb[0].mxu0
      %v1832 = vpop.f32.mrb[0].mxu0
      %v1833 = vadd.f32 0.0, %v1832
      %v1834 = vpop.f32.mrb[0].mxu0
      %1835 = vmatprep.mubr.bf16.mxu0 0
      %1836 = vmatmul.mubr.bf16.gmra.mrb[0].mxu0 %v1693
      %v1837 = vpop.f32.mrb[0].mxu0
      %v1838 = vadd.f32 0.0, %v1837
      %v1839 = vpop.f32.mrb[0].mxu0
      %v1840 = vpop.f32.mrb[0].mxu0
      %v1841 = vadd.f32 0.0, %v1840
      %v1842 = vpop.f32.mrb[0].mxu0
      %1843 = vmatprep.mubr.bf16.mxu0 0
      %1844 = vmatmul.mubr.bf16.gmra.mrb[0].mxu0 %v1696
      %v1845 = vpop.f32.mrb[0].mxu0
      %v1846 = vadd.f32 0.0, %v1845
      %v1847 = vpop.f32.mrb[0].mxu0
      %v1848 = vpop.f32.mrb[0].mxu0
      %v1849 = vadd.f32 0.0, %v1848
      %v1850 = vpop.f32.mrb[0].mxu0
      %1851 = vmatprep.mubr.bf16.mxu0 0
      %1852 = vmatmul.mubr.bf16.gmra.mrb[0].mxu0 %v1699
      %v1853 = vpop.f32.mrb[0].mxu0
      %v1854 = vadd.f32 0.0, %v1853
      %v1855 = vpop.f32.mrb[0].mxu0
      %v1856 = vpop.f32.mrb[0].mxu0
      %v1857 = vadd.f32 0.0, %v1856
      %v1858 = vpop.f32.mrb[0].mxu0
      %1859 = vmatprep.mubr.bf16.mxu0 0
      %1860 = vmatmul.mubr.bf16.gmra.mrb[0].mxu0 %v1702
      %v1861 = vpop.f32.mrb[0].mxu0
      %v1862 = vadd.f32 0.0, %v1861
      %v1863 = vpop.f32.mrb[0].mxu0
      %v1864 = vpop.f32.mrb[0].mxu0
      %v1865 = vadd.f32 0.0, %v1864
      %v1866 = vpop.f32.mrb[0].mxu0
      %1867 = vdwg.mxu0
      %v1868 = vadd.f32 %v1575, %v1742
      %v1869 = vadd.f32 %v1576, %v1745
      %v1870 = vadd.f32 %v1577, %v1750
      %v1871 = vadd.f32 %v1578, %v1753
      %v1872 = vadd.f32 %v1579, %v1758
      %v1873 = vadd.f32 %v1580, %v1761
      %v1874 = vadd.f32 %v1581, %v1766
      %v1875 = vadd.f32 %v1582, %v1769
      %v1876 = vadd.f32 %v1583, %v1774
      %v1877 = vadd.f32 %v1584, %v1777
      %v1878 = vadd.f32 %v1585, %v1782
      %v1879 = vadd.f32 %v1586, %v1785
      %v1880 = vadd.f32 %v1587, %v1790
      %v1881 = vadd.f32 %v1588, %v1793
      %v1882 = vadd.f32 %v1589, %v1798
      %v1883 = vadd.f32 %v1590, %v1801
      %v1884 = vadd.f32 %v1591, %v1806
      %v1885 = vadd.f32 %v1592, %v1809
      %v1886 = vadd.f32 %v1593, %v1814
      %v1887 = vadd.f32 %v1594, %v1817
      %v1888 = vadd.f32 %v1595, %v1822
      %v1889 = vadd.f32 %v1596, %v1825
      %v1890 = vadd.f32 %v1597, %v1830
      %v1891 = vadd.f32 %v1598, %v1833
      %v1892 = vadd.f32 %v1599, %v1838
      %v1893 = vadd.f32 %v1600, %v1841
      %v1894 = vadd.f32 %v1601, %v1846
      %v1895 = vadd.f32 %v1602, %v1849
      %v1896 = vadd.f32 %v1603, %v1854
      %v1897 = vadd.f32 %v1604, %v1857
      %v1898 = vadd.f32 %v1605, %v1862
      %v1899 = vadd.f32 %v1606, %v1865
      %v1900 = vld [vmem:[%s411 + $0x2] sm:$0xff]
      %v1901 = vld [vmem:[%s411 + $0xa] sm:$0xff]
      %v1902 = vld [vmem:[%s411 + $0x1a] sm:$0xff]
      %v1903 = vld [vmem:[%s411 + $0x22] sm:$0xff]
      %v1904 = vld [vmem:[%s411 + $0x32] sm:$0xff]
      %v1905 = vld [vmem:[%s411 + $0x3a] sm:$0xff]
      %v1906 = vld [vmem:[%s411 + $0x4a] sm:$0xff]
      %v1907 = vld [vmem:[%s411 + $0x52] sm:$0xff]
      %v1908 = vld [vmem:[%s411 + $0x62] sm:$0xff]
      %v1909 = vld [vmem:[%s411 + $0x6a] sm:$0xff]
      %v1910 = vld [vmem:[%s411 + $0x7a] sm:$0xff]
      %v1911 = vld [vmem:[%s411 + $0x82] sm:$0xff]
      %v1912 = vld [vmem:[%s411 + $0x92] sm:$0xff]
      %v1913 = vld [vmem:[%s411 + $0x9a] sm:$0xff]
      %v1914 = vld [vmem:[%s411 + $0xaa] sm:$0xff]
      %v1915 = vld [vmem:[%s411 + $0xb2] sm:$0xff]
      %v1916 = vld [vmem:[%s411 + $0xc2] sm:$0xff]
      %v1917 = vld [vmem:[%s411 + $0xca] sm:$0xff]
      %v1918 = vld [vmem:[%s411 + $0xda] sm:$0xff]
      %v1919 = vld [vmem:[%s411 + $0xe2] sm:$0xff]
      %v1920 = vld [vmem:[%s411 + $0xf2] sm:$0xff]
      %v1921 = vld [vmem:[%s411 + $0xfa] sm:$0xff]
      %v1922 = vld [vmem:[%s411 + $0x10a] sm:$0xff]
      %v1923 = vld [vmem:[%s411 + $0x112] sm:$0xff]
      %v1924 = vld [vmem:[%s411 + $0x122] sm:$0xff]
      %v1925 = vld [vmem:[%s411 + $0x12a] sm:$0xff]
      %v1926 = vld [vmem:[%s411 + $0x13a] sm:$0xff]
      %v1927 = vld [vmem:[%s411 + $0x142] sm:$0xff]
      %v1928 = vld [vmem:[%s411 + $0x152] sm:$0xff]
      %v1929 = vld [vmem:[%s411 + $0x15a] sm:$0xff]
      %v1930 = vld [vmem:[%s411 + $0x16a] sm:$0xff]
      %v1931 = vld [vmem:[%s411 + $0x172] sm:$0xff]
      %v1932 = vpack.c.bf16 %v1901, %v1900
      %v1933 = vpack.c.bf16 %v1903, %v1902
      %v1934 = vpack.c.bf16 %v1905, %v1904
      %v1935 = vpack.c.bf16 %v1907, %v1906
      %v1936 = vpack.c.bf16 %v1909, %v1908
      %v1937 = vpack.c.bf16 %v1911, %v1910
      %v1938 = vpack.c.bf16 %v1913, %v1912
      %v1939 = vpack.c.bf16 %v1915, %v1914
      %v1940 = vpack.c.bf16 %v1917, %v1916
      %v1941 = vpack.c.bf16 %v1919, %v1918
      %v1942 = vpack.c.bf16 %v1921, %v1920
      %v1943 = vpack.c.bf16 %v1923, %v1922
      %v1944 = vpack.c.bf16 %v1925, %v1924
      %v1945 = vpack.c.bf16 %v1927, %v1926
      %v1946 = vpack.c.bf16 %v1929, %v1928
      %v1947 = vpack.c.bf16 %v1931, %v1930
      %v1948 = vld [vmem:[%s3 + $0x8] sm:$0xc]
      %v1950 = vunpack.c.l.b16 %v1948
      %v1951 = vpack.c.b16 %v1950, %v1950
      %v1952 = vrot.slane %v1951, 2
      %v1954 = vsel %vm412, %v1932, 0
      %v1957 = vsel %vm412, %v1933, 0
      %v1960 = vsel %vm412, %v1934, 0
      %v1963 = vsel %vm412, %v1935, 0
      %v1966 = vsel %vm412, %v1936, 0
      %v1969 = vsel %vm412, %v1937, 0
      %v1972 = vsel %vm412, %v1938, 0
      %v1975 = vsel %vm412, %v1939, 0
      %v1978 = vsel %vm412, %v1940, 0
      %v1981 = vsel %vm412, %v1941, 0
      %v1984 = vsel %vm412, %v1942, 0
      %v1987 = vsel %vm412, %v1943, 0
      %v1990 = vsel %vm412, %v1944, 0
      %v1993 = vsel %vm412, %v1945, 0
      %v1996 = vsel %vm412, %v1946, 0
      %v1999 = vsel %vm412, %v1947, 0
      %v2002 = vsel %vm640, %v1952, 0
      %2004 = vmatprep.subr.bf16.mxu0 0
      %2005 = vmatpush1.bf16.msra.mxu0 %v2002
      %2006 = vmatprep.subr.bf16.mxu0 0
      %2007 = vmatpush1.bf16.msra.mxu0 0
      %2008 = vmatprep.subr.bf16.mxu0 0
      %2009 = vmatpush1.bf16.msra.mxu0 0
      %2010 = vmatprep.subr.bf16.mxu0 0
      %2011 = vmatpush1.bf16.msra.mxu0 0
      %2012 = vmatprep.subr.bf16.mxu0 0
      %2013 = vmatpush1.bf16.msra.mxu0 0
      %2014 = vmatprep.subr.bf16.mxu0 0
      %2015 = vmatpush1.bf16.msra.mxu0 0
      %2016 = vmatprep.subr.bf16.mxu0 0
      %2017 = vmatpush1.bf16.msra.mxu0 0
      %2018 = vmatprep.subr.bf16.mxu0 0
      %2019 = vmatpush1.bf16.msra.mxu0 0
      %2020 = vmatprep.subr.bf16.mxu0 0
      %2021 = vmatpush1.bf16.msra.mxu0 0
      %2022 = vmatprep.subr.bf16.mxu0 0
      %2023 = vmatpush1.bf16.msra.mxu0 0
      %2024 = vmatprep.subr.bf16.mxu0 0
      %2025 = vmatpush1.bf16.msra.mxu0 0
      %2026 = vmatprep.subr.bf16.mxu0 0
      %2027 = vmatpush1.bf16.msra.mxu0 0
      %2028 = vmatprep.subr.bf16.mxu0 0
      %2029 = vmatpush1.bf16.msra.mxu0 0
      %2030 = vmatprep.subr.bf16.mxu0 0
      %2031 = vmatpush1.bf16.msra.mxu0 0
      %2032 = vmatprep.subr.bf16.mxu0 0
      %2033 = vmatpush1.bf16.msra.mxu0 0
      %2034 = vmatprep.subr.bf16.mxu0 0
      %2035 = vmatpush1.bf16.msra.mxu0 0
      %2036 = vmatprep.mubr.bf16.mxu0 0
      %2037 = vmatmul.mubr.bf16.gmra.mrb[0].mxu0 %v1954
      %v2038 = vpop.f32.mrb[0].mxu0
      %v2039 = vadd.f32 0.0, %v2038
      %v2040 = vpop.f32.mrb[0].mxu0
      %v2041 = vpop.f32.mrb[0].mxu0
      %v2042 = vadd.f32 0.0, %v2041
      %v2043 = vpop.f32.mrb[0].mxu0
      %2044 = vmatprep.mubr.bf16.mxu0 0
      %2045 = vmatmul.mubr.bf16.gmra.mrb[0].mxu0 %v1957
      %v2046 = vpop.f32.mrb[0].mxu0
      %v2047 = vadd.f32 0.0, %v2046
      %v2048 = vpop.f32.mrb[0].mxu0
      %v2049 = vpop.f32.mrb[0].mxu0
      %v2050 = vadd.f32 0.0, %v2049
      %v2051 = vpop.f32.mrb[0].mxu0
      %2052 = vmatprep.mubr.bf16.mxu0 0
      %2053 = vmatmul.mubr.bf16.gmra.mrb[0].mxu0 %v1960
      %v2054 = vpop.f32.mrb[0].mxu0
      %v2055 = vadd.f32 0.0, %v2054
      %v2056 = vpop.f32.mrb[0].mxu0
      %v2057 = vpop.f32.mrb[0].mxu0
      %v2058 = vadd.f32 0.0, %v2057
      %v2059 = vpop.f32.mrb[0].mxu0
      %2060 = vmatprep.mubr.bf16.mxu0 0
      %2061 = vmatmul.mubr.bf16.gmra.mrb[0].mxu0 %v1963
      %v2062 = vpop.f32.mrb[0].mxu0
      %v2063 = vadd.f32 0.0, %v2062
      %v2064 = vpop.f32.mrb[0].mxu0
      %v2065 = vpop.f32.mrb[0].mxu0
      %v2066 = vadd.f32 0.0, %v2065
      %v2067 = vpop.f32.mrb[0].mxu0
      %2068 = vmatprep.mubr.bf16.mxu0 0
      %2069 = vmatmul.mubr.bf16.gmra.mrb[0].mxu0 %v1966
      %v2070 = vpop.f32.mrb[0].mxu0
      %v2071 = vadd.f32 0.0, %v2070
      %v2072 = vpop.f32.mrb[0].mxu0
      %v2073 = vpop.f32.mrb[0].mxu0
      %v2074 = vadd.f32 0.0, %v2073
      %v2075 = vpop.f32.mrb[0].mxu0
      %2076 = vmatprep.mubr.bf16.mxu0 0
      %2077 = vmatmul.mubr.bf16.gmra.mrb[0].mxu0 %v1969
      %v2078 = vpop.f32.mrb[0].mxu0
      %v2079 = vadd.f32 0.0, %v2078
      %v2080 = vpop.f32.mrb[0].mxu0
      %v2081 = vpop.f32.mrb[0].mxu0
      %v2082 = vadd.f32 0.0, %v2081
      %v2083 = vpop.f32.mrb[0].mxu0
      %2084 = vmatprep.mubr.bf16.mxu0 0
      %2085 = vmatmul.mubr.bf16.gmra.mrb[0].mxu0 %v1972
      %v2086 = vpop.f32.mrb[0].mxu0
      %v2087 = vadd.f32 0.0, %v2086
      %v2088 = vpop.f32.mrb[0].mxu0
      %v2089 = vpop.f32.mrb[0].mxu0
      %v2090 = vadd.f32 0.0, %v2089
      %v2091 = vpop.f32.mrb[0].mxu0
      %2092 = vmatprep.mubr.bf16.mxu0 0
      %2093 = vmatmul.mubr.bf16.gmra.mrb[0].mxu0 %v1975
      %v2094 = vpop.f32.mrb[0].mxu0
      %v2095 = vadd.f32 0.0, %v2094
      %v2096 = vpop.f32.mrb[0].mxu0
      %v2097 = vpop.f32.mrb[0].mxu0
      %v2098 = vadd.f32 0.0, %v2097
      %v2099 = vpop.f32.mrb[0].mxu0
      %2100 = vmatprep.mubr.bf16.mxu0 0
      %2101 = vmatmul.mubr.bf16.gmra.mrb[0].mxu0 %v1978
      %v2102 = vpop.f32.mrb[0].mxu0
      %v2103 = vadd.f32 0.0, %v2102
      %v2104 = vpop.f32.mrb[0].mxu0
      %v2105 = vpop.f32.mrb[0].mxu0
      %v2106 = vadd.f32 0.0, %v2105
      %v2107 = vpop.f32.mrb[0].mxu0
      %2108 = vmatprep.mubr.bf16.mxu0 0
      %2109 = vmatmul.mubr.bf16.gmra.mrb[0].mxu0 %v1981
      %v2110 = vpop.f32.mrb[0].mxu0
      %v2111 = vadd.f32 0.0, %v2110
      %v2112 = vpop.f32.mrb[0].mxu0
      %v2113 = vpop.f32.mrb[0].mxu0
      %v2114 = vadd.f32 0.0, %v2113
      %v2115 = vpop.f32.mrb[0].mxu0
      %2116 = vmatprep.mubr.bf16.mxu0 0
      %2117 = vmatmul.mubr.bf16.gmra.mrb[0].mxu0 %v1984
      %v2118 = vpop.f32.mrb[0].mxu0
      %v2119 = vadd.f32 0.0, %v2118
      %v2120 = vpop.f32.mrb[0].mxu0
      %v2121 = vpop.f32.mrb[0].mxu0
      %v2122 = vadd.f32 0.0, %v2121
      %v2123 = vpop.f32.mrb[0].mxu0
      %2124 = vmatprep.mubr.bf16.mxu0 0
      %2125 = vmatmul.mubr.bf16.gmra.mrb[0].mxu0 %v1987
      %v2126 = vpop.f32.mrb[0].mxu0
      %v2127 = vadd.f32 0.0, %v2126
      %v2128 = vpop.f32.mrb[0].mxu0
      %v2129 = vpop.f32.mrb[0].mxu0
      %v2130 = vadd.f32 0.0, %v2129
      %v2131 = vpop.f32.mrb[0].mxu0
      %2132 = vmatprep.mubr.bf16.mxu0 0
      %2133 = vmatmul.mubr.bf16.gmra.mrb[0].mxu0 %v1990
      %v2134 = vpop.f32.mrb[0].mxu0
      %v2135 = vadd.f32 0.0, %v2134
      %v2136 = vpop.f32.mrb[0].mxu0
      %v2137 = vpop.f32.mrb[0].mxu0
      %v2138 = vadd.f32 0.0, %v2137
      %v2139 = vpop.f32.mrb[0].mxu0
      %2140 = vmatprep.mubr.bf16.mxu0 0
      %2141 = vmatmul.mubr.bf16.gmra.mrb[0].mxu0 %v1993
      %v2142 = vpop.f32.mrb[0].mxu0
      %v2143 = vadd.f32 0.0, %v2142
      %v2144 = vpop.f32.mrb[0].mxu0
      %v2145 = vpop.f32.mrb[0].mxu0
      %v2146 = vadd.f32 0.0, %v2145
      %v2147 = vpop.f32.mrb[0].mxu0
      %2148 = vmatprep.mubr.bf16.mxu0 0
      %2149 = vmatmul.mubr.bf16.gmra.mrb[0].mxu0 %v1996
      %v2150 = vpop.f32.mrb[0].mxu0
      %v2151 = vadd.f32 0.0, %v2150
      %v2152 = vpop.f32.mrb[0].mxu0
      %v2153 = vpop.f32.mrb[0].mxu0
      %v2154 = vadd.f32 0.0, %v2153
      %v2155 = vpop.f32.mrb[0].mxu0
      %2156 = vmatprep.mubr.bf16.mxu0 0
      %2157 = vmatmul.mubr.bf16.gmra.mrb[0].mxu0 %v1999
      %v2158 = vpop.f32.mrb[0].mxu0
      %v2159 = vadd.f32 0.0, %v2158
      %v2160 = vpop.f32.mrb[0].mxu0
      %v2161 = vpop.f32.mrb[0].mxu0
      %v2162 = vadd.f32 0.0, %v2161
      %v2163 = vpop.f32.mrb[0].mxu0
      %2164 = vdwg.mxu0
      %v2165 = vadd.f32 %v1868, %v2039
      %v2166 = vadd.f32 %v1869, %v2042
      %v2167 = vadd.f32 %v1870, %v2047
      %v2168 = vadd.f32 %v1871, %v2050
      %v2169 = vadd.f32 %v1872, %v2055
      %v2170 = vadd.f32 %v1873, %v2058
      %v2171 = vadd.f32 %v1874, %v2063
      %v2172 = vadd.f32 %v1875, %v2066
      %v2173 = vadd.f32 %v1876, %v2071
      %v2174 = vadd.f32 %v1877, %v2074
      %v2175 = vadd.f32 %v1878, %v2079
      %v2176 = vadd.f32 %v1879, %v2082
      %v2177 = vadd.f32 %v1880, %v2087
      %v2178 = vadd.f32 %v1881, %v2090
      %v2179 = vadd.f32 %v1882, %v2095
      %v2180 = vadd.f32 %v1883, %v2098
      %v2181 = vadd.f32 %v1884, %v2103
      %v2182 = vadd.f32 %v1885, %v2106
      %v2183 = vadd.f32 %v1886, %v2111
      %v2184 = vadd.f32 %v1887, %v2114
      %v2185 = vadd.f32 %v1888, %v2119
      %v2186 = vadd.f32 %v1889, %v2122
      %v2187 = vadd.f32 %v1890, %v2127
      %v2188 = vadd.f32 %v1891, %v2130
      %v2189 = vadd.f32 %v1892, %v2135
      %v2190 = vadd.f32 %v1893, %v2138
      %v2191 = vadd.f32 %v1894, %v2143
      %v2192 = vadd.f32 %v1895, %v2146
      %v2193 = vadd.f32 %v1896, %v2151
      %v2194 = vadd.f32 %v1897, %v2154
      %v2195 = vadd.f32 %v1898, %v2159
      %v2196 = vadd.f32 %v1899, %v2162
      %s2197 = scalar_lea.vmem [#allocation2], 48
      %v2198 = vld [vmem:[%s2197] sm:$0xff]
      %v2199 = vld [vmem:[%s2197 + $0x8] sm:$0xff]
      %v2200 = vld [vmem:[%s2197 + $0x18] sm:$0xff]
      %v2201 = vld [vmem:[%s2197 + $0x20] sm:$0xff]
      %v2202 = vld [vmem:[%s2197 + $0x30] sm:$0xff]
      %v2203 = vld [vmem:[%s2197 + $0x38] sm:$0xff]
      %v2204 = vld [vmem:[%s2197 + $0x48] sm:$0xff]
      %v2205 = vld [vmem:[%s2197 + $0x50] sm:$0xff]
      %v2206 = vld [vmem:[%s2197 + $0x60] sm:$0xff]
      %v2207 = vld [vmem:[%s2197 + $0x68] sm:$0xff]
      %v2208 = vld [vmem:[%s2197 + $0x78] sm:$0xff]
      %v2209 = vld [vmem:[%s2197 + $0x80] sm:$0xff]
      %v2210 = vld [vmem:[%s2197 + $0x90] sm:$0xff]
      %v2211 = vld [vmem:[%s2197 + $0x98] sm:$0xff]
      %v2212 = vld [vmem:[%s2197 + $0xa8] sm:$0xff]
      %v2213 = vld [vmem:[%s2197 + $0xb0] sm:$0xff]
      %v2214 = vld [vmem:[%s2197 + $0xc0] sm:$0xff]
      %v2215 = vld [vmem:[%s2197 + $0xc8] sm:$0xff]
      %v2216 = vld [vmem:[%s2197 + $0xd8] sm:$0xff]
      %v2217 = vld [vmem:[%s2197 + $0xe0] sm:$0xff]
      %v2218 = vld [vmem:[%s2197 + $0xf0] sm:$0xff]
      %v2219 = vld [vmem:[%s2197 + $0xf8] sm:$0xff]
      %v2220 = vld [vmem:[%s2197 + $0x108] sm:$0xff]
      %v2221 = vld [vmem:[%s2197 + $0x110] sm:$0xff]
      %v2222 = vld [vmem:[%s2197 + $0x120] sm:$0xff]
      %v2223 = vld [vmem:[%s2197 + $0x128] sm:$0xff]
      %v2224 = vld [vmem:[%s2197 + $0x138] sm:$0xff]
      %v2225 = vld [vmem:[%s2197 + $0x140] sm:$0xff]
      %v2226 = vld [vmem:[%s2197 + $0x150] sm:$0xff]
      %v2227 = vld [vmem:[%s2197 + $0x158] sm:$0xff]
      %v2228 = vld [vmem:[%s2197 + $0x168] sm:$0xff]
      %v2229 = vld [vmem:[%s2197 + $0x170] sm:$0xff]
      %v2230 = vpack.c.bf16 %v2199, %v2198
      %v2231 = vpack.c.bf16 %v2201, %v2200
      %v2232 = vpack.c.bf16 %v2203, %v2202
      %v2233 = vpack.c.bf16 %v2205, %v2204
      %v2234 = vpack.c.bf16 %v2207, %v2206
      %v2235 = vpack.c.bf16 %v2209, %v2208
      %v2236 = vpack.c.bf16 %v2211, %v2210
      %v2237 = vpack.c.bf16 %v2213, %v2212
      %v2238 = vpack.c.bf16 %v2215, %v2214
      %v2239 = vpack.c.bf16 %v2217, %v2216
      %v2240 = vpack.c.bf16 %v2219, %v2218
      %v2241 = vpack.c.bf16 %v2221, %v2220
      %v2242 = vpack.c.bf16 %v2223, %v2222
      %v2243 = vpack.c.bf16 %v2225, %v2224
      %v2244 = vpack.c.bf16 %v2227, %v2226
      %v2245 = vpack.c.bf16 %v2229, %v2228
      %v2246 = vld [vmem:[%s3 + $0xc] sm:$0x3]
      %v2248 = vsel %vm412, %v2230, 0
      %v2251 = vsel %vm412, %v2231, 0
      %v2254 = vsel %vm412, %v2232, 0
      %v2257 = vsel %vm412, %v2233, 0
      %v2260 = vsel %vm412, %v2234, 0
      %v2263 = vsel %vm412, %v2235, 0
      %v2266 = vsel %vm412, %v2236, 0
      %v2269 = vsel %vm412, %v2237, 0
      %v2272 = vsel %vm412, %v2238, 0
      %v2275 = vsel %vm412, %v2239, 0
      %v2278 = vsel %vm412, %v2240, 0
      %v2281 = vsel %vm412, %v2241, 0
      %v2284 = vsel %vm412, %v2242, 0
      %v2287 = vsel %vm412, %v2243, 0
      %v2290 = vsel %vm412, %v2244, 0
      %v2293 = vsel %vm412, %v2245, 0
      %v2296 = vsel %vm640, %v2246, 0
      %2298 = vmatprep.subr.bf16.mxu0 0
      %2299 = vmatpush1.bf16.msra.mxu0 %v2296
      %2300 = vmatprep.subr.bf16.mxu0 0
      %2301 = vmatpush1.bf16.msra.mxu0 0
      %2302 = vmatprep.subr.bf16.mxu0 0
      %2303 = vmatpush1.bf16.msra.mxu0 0
      %2304 = vmatprep.subr.bf16.mxu0 0
      %2305 = vmatpush1.bf16.msra.mxu0 0
      %2306 = vmatprep.subr.bf16.mxu0 0
      %2307 = vmatpush1.bf16.msra.mxu0 0
      %2308 = vmatprep.subr.bf16.mxu0 0
      %2309 = vmatpush1.bf16.msra.mxu0 0
      %2310 = vmatprep.subr.bf16.mxu0 0
      %2311 = vmatpush1.bf16.msra.mxu0 0
      %2312 = vmatprep.subr.bf16.mxu0 0
      %2313 = vmatpush1.bf16.msra.mxu0 0
      %2314 = vmatprep.subr.bf16.mxu0 0
      %2315 = vmatpush1.bf16.msra.mxu0 0
      %2316 = vmatprep.subr.bf16.mxu0 0
      %2317 = vmatpush1.bf16.msra.mxu0 0
      %2318 = vmatprep.subr.bf16.mxu0 0
      %2319 = vmatpush1.bf16.msra.mxu0 0
      %2320 = vmatprep.subr.bf16.mxu0 0
      %2321 = vmatpush1.bf16.msra.mxu0 0
      %2322 = vmatprep.subr.bf16.mxu0 0
      %2323 = vmatpush1.bf16.msra.mxu0 0
      %2324 = vmatprep.subr.bf16.mxu0 0
      %2325 = vmatpush1.bf16.msra.mxu0 0
      %2326 = vmatprep.subr.bf16.mxu0 0
      %2327 = vmatpush1.bf16.msra.mxu0 0
      %2328 = vmatprep.subr.bf16.mxu0 0
      %2329 = vmatpush1.bf16.msra.mxu0 0
      %2330 = vmatprep.mubr.bf16.mxu0 0
      %2331 = vmatmul.mubr.bf16.gmra.mrb[0].mxu0 %v2248
      %v2332 = vpop.f32.mrb[0].mxu0
      %v2333 = vadd.f32 0.0, %v2332
      %v2334 = vpop.f32.mrb[0].mxu0
      %v2335 = vpop.f32.mrb[0].mxu0
      %v2336 = vadd.f32 0.0, %v2335
      %v2337 = vpop.f32.mrb[0].mxu0
      %2338 = vmatprep.mubr.bf16.mxu0 0
      %2339 = vmatmul.mubr.bf16.gmra.mrb[0].mxu0 %v2251
      %v2340 = vpop.f32.mrb[0].mxu0
      %v2341 = vadd.f32 0.0, %v2340
      %v2342 = vpop.f32.mrb[0].mxu0
      %v2343 = vpop.f32.mrb[0].mxu0
      %v2344 = vadd.f32 0.0, %v2343
      %v2345 = vpop.f32.mrb[0].mxu0
      %2346 = vmatprep.mubr.bf16.mxu0 0
      %2347 = vmatmul.mubr.bf16.gmra.mrb[0].mxu0 %v2254
      %v2348 = vpop.f32.mrb[0].mxu0
      %v2349 = vadd.f32 0.0, %v2348
      %v2350 = vpop.f32.mrb[0].mxu0
      %v2351 = vpop.f32.mrb[0].mxu0
      %v2352 = vadd.f32 0.0, %v2351
      %v2353 = vpop.f32.mrb[0].mxu0
      %2354 = vmatprep.mubr.bf16.mxu0 0
      %2355 = vmatmul.mubr.bf16.gmra.mrb[0].mxu0 %v2257
      %v2356 = vpop.f32.mrb[0].mxu0
      %v2357 = vadd.f32 0.0, %v2356
      %v2358 = vpop.f32.mrb[0].mxu0
      %v2359 = vpop.f32.mrb[0].mxu0
      %v2360 = vadd.f32 0.0, %v2359
      %v2361 = vpop.f32.mrb[0].mxu0
      %2362 = vmatprep.mubr.bf16.mxu0 0
      %2363 = vmatmul.mubr.bf16.gmra.mrb[0].mxu0 %v2260
      %v2364 = vpop.f32.mrb[0].mxu0
      %v2365 = vadd.f32 0.0, %v2364
      %v2366 = vpop.f32.mrb[0].mxu0
      %v2367 = vpop.f32.mrb[0].mxu0
      %v2368 = vadd.f32 0.0, %v2367
      %v2369 = vpop.f32.mrb[0].mxu0
      %2370 = vmatprep.mubr.bf16.mxu0 0
      %2371 = vmatmul.mubr.bf16.gmra.mrb[0].mxu0 %v2263
      %v2372 = vpop.f32.mrb[0].mxu0
      %v2373 = vadd.f32 0.0, %v2372
      %v2374 = vpop.f32.mrb[0].mxu0
      %v2375 = vpop.f32.mrb[0].mxu0
      %v2376 = vadd.f32 0.0, %v2375
      %v2377 = vpop.f32.mrb[0].mxu0
      %2378 = vmatprep.mubr.bf16.mxu0 0
      %2379 = vmatmul.mubr.bf16.gmra.mrb[0].mxu0 %v2266
      %v2380 = vpop.f32.mrb[0].mxu0
      %v2381 = vadd.f32 0.0, %v2380
      %v2382 = vpop.f32.mrb[0].mxu0
      %v2383 = vpop.f32.mrb[0].mxu0
      %v2384 = vadd.f32 0.0, %v2383
      %v2385 = vpop.f32.mrb[0].mxu0
      %2386 = vmatprep.mubr.bf16.mxu0 0
      %2387 = vmatmul.mubr.bf16.gmra.mrb[0].mxu0 %v2269
      %v2388 = vpop.f32.mrb[0].mxu0
      %v2389 = vadd.f32 0.0, %v2388
      %v2390 = vpop.f32.mrb[0].mxu0
      %v2391 = vpop.f32.mrb[0].mxu0
      %v2392 = vadd.f32 0.0, %v2391
      %v2393 = vpop.f32.mrb[0].mxu0
      %2394 = vmatprep.mubr.bf16.mxu0 0
      %2395 = vmatmul.mubr.bf16.gmra.mrb[0].mxu0 %v2272
      %v2396 = vpop.f32.mrb[0].mxu0
      %v2397 = vadd.f32 0.0, %v2396
      %v2398 = vpop.f32.mrb[0].mxu0
      %v2399 = vpop.f32.mrb[0].mxu0
      %v2400 = vadd.f32 0.0, %v2399
      %v2401 = vpop.f32.mrb[0].mxu0
      %2402 = vmatprep.mubr.bf16.mxu0 0
      %2403 = vmatmul.mubr.bf16.gmra.mrb[0].mxu0 %v2275
      %v2404 = vpop.f32.mrb[0].mxu0
      %v2405 = vadd.f32 0.0, %v2404
      %v2406 = vpop.f32.mrb[0].mxu0
      %v2407 = vpop.f32.mrb[0].mxu0
      %v2408 = vadd.f32 0.0, %v2407
      %v2409 = vpop.f32.mrb[0].mxu0
      %2410 = vmatprep.mubr.bf16.mxu0 0
      %2411 = vmatmul.mubr.bf16.gmra.mrb[0].mxu0 %v2278
      %v2412 = vpop.f32.mrb[0].mxu0
      %v2413 = vadd.f32 0.0, %v2412
      %v2414 = vpop.f32.mrb[0].mxu0
      %v2415 = vpop.f32.mrb[0].mxu0
      %v2416 = vadd.f32 0.0, %v2415
      %v2417 = vpop.f32.mrb[0].mxu0
      %2418 = vmatprep.mubr.bf16.mxu0 0
      %2419 = vmatmul.mubr.bf16.gmra.mrb[0].mxu0 %v2281
      %v2420 = vpop.f32.mrb[0].mxu0
      %v2421 = vadd.f32 0.0, %v2420
      %v2422 = vpop.f32.mrb[0].mxu0
      %v2423 = vpop.f32.mrb[0].mxu0
      %v2424 = vadd.f32 0.0, %v2423
      %v2425 = vpop.f32.mrb[0].mxu0
      %2426 = vmatprep.mubr.bf16.mxu0 0
      %2427 = vmatmul.mubr.bf16.gmra.mrb[0].mxu0 %v2284
      %v2428 = vpop.f32.mrb[0].mxu0
      %v2429 = vadd.f32 0.0, %v2428
      %v2430 = vpop.f32.mrb[0].mxu0
      %v2431 = vpop.f32.mrb[0].mxu0
      %v2432 = vadd.f32 0.0, %v2431
      %v2433 = vpop.f32.mrb[0].mxu0
      %2434 = vmatprep.mubr.bf16.mxu0 0
      %2435 = vmatmul.mubr.bf16.gmra.mrb[0].mxu0 %v2287
      %v2436 = vpop.f32.mrb[0].mxu0
      %v2437 = vadd.f32 0.0, %v2436
      %v2438 = vpop.f32.mrb[0].mxu0
      %v2439 = vpop.f32.mrb[0].mxu0
      %v2440 = vadd.f32 0.0, %v2439
      %v2441 = vpop.f32.mrb[0].mxu0
      %2442 = vmatprep.mubr.bf16.mxu0 0
      %2443 = vmatmul.mubr.bf16.gmra.mrb[0].mxu0 %v2290
      %v2444 = vpop.f32.mrb[0].mxu0
      %v2445 = vadd.f32 0.0, %v2444
      %v2446 = vpop.f32.mrb[0].mxu0
      %v2447 = vpop.f32.mrb[0].mxu0
      %v2448 = vadd.f32 0.0, %v2447
      %v2449 = vpop.f32.mrb[0].mxu0
      %2450 = vmatprep.mubr.bf16.mxu0 0
      %2451 = vmatmul.mubr.bf16.gmra.mrb[0].mxu0 %v2293
      %v2452 = vpop.f32.mrb[0].mxu0
      %v2453 = vadd.f32 0.0, %v2452
      %v2454 = vpop.f32.mrb[0].mxu0
      %v2455 = vpop.f32.mrb[0].mxu0
      %v2456 = vadd.f32 0.0, %v2455
      %v2457 = vpop.f32.mrb[0].mxu0
      %2458 = vdwg.mxu0
      %v2459 = vadd.f32 %v2165, %v2333
      %v2460 = vadd.f32 %v2166, %v2336
      %v2461 = vadd.f32 %v2167, %v2341
      %v2462 = vadd.f32 %v2168, %v2344
      %v2463 = vadd.f32 %v2169, %v2349
      %v2464 = vadd.f32 %v2170, %v2352
      %v2465 = vadd.f32 %v2171, %v2357
      %v2466 = vadd.f32 %v2172, %v2360
      %v2467 = vadd.f32 %v2173, %v2365
      %v2468 = vadd.f32 %v2174, %v2368
      %v2469 = vadd.f32 %v2175, %v2373
      %v2470 = vadd.f32 %v2176, %v2376
      %v2471 = vadd.f32 %v2177, %v2381
      %v2472 = vadd.f32 %v2178, %v2384
      %v2473 = vadd.f32 %v2179, %v2389
      %v2474 = vadd.f32 %v2180, %v2392
      %v2475 = vadd.f32 %v2181, %v2397
      %v2476 = vadd.f32 %v2182, %v2400
      %v2477 = vadd.f32 %v2183, %v2405
      %v2478 = vadd.f32 %v2184, %v2408
      %v2479 = vadd.f32 %v2185, %v2413
      %v2480 = vadd.f32 %v2186, %v2416
      %v2481 = vadd.f32 %v2187, %v2421
      %v2482 = vadd.f32 %v2188, %v2424
      %v2483 = vadd.f32 %v2189, %v2429
      %v2484 = vadd.f32 %v2190, %v2432
      %v2485 = vadd.f32 %v2191, %v2437
      %v2486 = vadd.f32 %v2192, %v2440
      %v2487 = vadd.f32 %v2193, %v2445
      %v2488 = vadd.f32 %v2194, %v2448
      %v2489 = vadd.f32 %v2195, %v2453
      %v2490 = vadd.f32 %v2196, %v2456
      %v2491 = vld [vmem:[%s2197 + $0x1] sm:$0xff]
      %v2492 = vld [vmem:[%s2197 + $0x9] sm:$0xff]
      %v2493 = vld [vmem:[%s2197 + $0x19] sm:$0xff]
      %v2494 = vld [vmem:[%s2197 + $0x21] sm:$0xff]
      %v2495 = vld [vmem:[%s2197 + $0x31] sm:$0xff]
      %v2496 = vld [vmem:[%s2197 + $0x39] sm:$0xff]
      %v2497 = vld [vmem:[%s2197 + $0x49] sm:$0xff]
      %v2498 = vld [vmem:[%s2197 + $0x51] sm:$0xff]
      %v2499 = vld [vmem:[%s2197 + $0x61] sm:$0xff]
      %v2500 = vld [vmem:[%s2197 + $0x69] sm:$0xff]
      %v2501 = vld [vmem:[%s2197 + $0x79] sm:$0xff]
      %v2502 = vld [vmem:[%s2197 + $0x81] sm:$0xff]
      %v2503 = vld [vmem:[%s2197 + $0x91] sm:$0xff]
      %v2504 = vld [vmem:[%s2197 + $0x99] sm:$0xff]
      %v2505 = vld [vmem:[%s2197 + $0xa9] sm:$0xff]
      %v2506 = vld [vmem:[%s2197 + $0xb1] sm:$0xff]
      %v2507 = vld [vmem:[%s2197 + $0xc1] sm:$0xff]
      %v2508 = vld [vmem:[%s2197 + $0xc9] sm:$0xff]
      %v2509 = vld [vmem:[%s2197 + $0xd9] sm:$0xff]
      %v2510 = vld [vmem:[%s2197 + $0xe1] sm:$0xff]
      %v2511 = vld [vmem:[%s2197 + $0xf1] sm:$0xff]
      %v2512 = vld [vmem:[%s2197 + $0xf9] sm:$0xff]
      %v2513 = vld [vmem:[%s2197 + $0x109] sm:$0xff]
      %v2514 = vld [vmem:[%s2197 + $0x111] sm:$0xff]
      %v2515 = vld [vmem:[%s2197 + $0x121] sm:$0xff]
      %v2516 = vld [vmem:[%s2197 + $0x129] sm:$0xff]
      %v2517 = vld [vmem:[%s2197 + $0x139] sm:$0xff]
      %v2518 = vld [vmem:[%s2197 + $0x141] sm:$0xff]
      %v2519 = vld [vmem:[%s2197 + $0x151] sm:$0xff]
      %v2520 = vld [vmem:[%s2197 + $0x159] sm:$0xff]
      %v2521 = vld [vmem:[%s2197 + $0x169] sm:$0xff]
      %v2522 = vld [vmem:[%s2197 + $0x171] sm:$0xff]
      %v2523 = vpack.c.bf16 %v2492, %v2491
      %v2524 = vpack.c.bf16 %v2494, %v2493
      %v2525 = vpack.c.bf16 %v2496, %v2495
      %v2526 = vpack.c.bf16 %v2498, %v2497
      %v2527 = vpack.c.bf16 %v2500, %v2499
      %v2528 = vpack.c.bf16 %v2502, %v2501
      %v2529 = vpack.c.bf16 %v2504, %v2503
      %v2530 = vpack.c.bf16 %v2506, %v2505
      %v2531 = vpack.c.bf16 %v2508, %v2507
      %v2532 = vpack.c.bf16 %v2510, %v2509
      %v2533 = vpack.c.bf16 %v2512, %v2511
      %v2534 = vpack.c.bf16 %v2514, %v2513
      %v2535 = vpack.c.bf16 %v2516, %v2515
      %v2536 = vpack.c.bf16 %v2518, %v2517
      %v2537 = vpack.c.bf16 %v2520, %v2519
      %v2538 = vpack.c.bf16 %v2522, %v2521
      %v2539 = vld [vmem:[%s3 + $0xc] sm:$0xc]
      %v2541 = vunpack.c.l.b16 %v2539
      %v2542 = vpack.c.b16 %v2541, %v2541
      %v2543 = vrot.slane %v2542, 2
      %v2545 = vsel %vm412, %v2523, 0
      %v2548 = vsel %vm412, %v2524, 0
      %v2551 = vsel %vm412, %v2525, 0
      %v2554 = vsel %vm412, %v2526, 0
      %v2557 = vsel %vm412, %v2527, 0
      %v2560 = vsel %vm412, %v2528, 0
      %v2563 = vsel %vm412, %v2529, 0
      %v2566 = vsel %vm412, %v2530, 0
      %v2569 = vsel %vm412, %v2531, 0
      %v2572 = vsel %vm412, %v2532, 0
      %v2575 = vsel %vm412, %v2533, 0
      %v2578 = vsel %vm412, %v2534, 0
      %v2581 = vsel %vm412, %v2535, 0
      %v2584 = vsel %vm412, %v2536, 0
      %v2587 = vsel %vm412, %v2537, 0
      %v2590 = vsel %vm412, %v2538, 0
      %v2593 = vsel %vm640, %v2543, 0
      %2595 = vmatprep.subr.bf16.mxu0 0
      %2596 = vmatpush1.bf16.msra.mxu0 %v2593
      %2597 = vmatprep.subr.bf16.mxu0 0
      %2598 = vmatpush1.bf16.msra.mxu0 0
      %2599 = vmatprep.subr.bf16.mxu0 0
      %2600 = vmatpush1.bf16.msra.mxu0 0
      %2601 = vmatprep.subr.bf16.mxu0 0
      %2602 = vmatpush1.bf16.msra.mxu0 0
      %2603 = vmatprep.subr.bf16.mxu0 0
      %2604 = vmatpush1.bf16.msra.mxu0 0
      %2605 = vmatprep.subr.bf16.mxu0 0
      %2606 = vmatpush1.bf16.msra.mxu0 0
      %2607 = vmatprep.subr.bf16.mxu0 0
      %2608 = vmatpush1.bf16.msra.mxu0 0
      %2609 = vmatprep.subr.bf16.mxu0 0
      %2610 = vmatpush1.bf16.msra.mxu0 0
      %2611 = vmatprep.subr.bf16.mxu0 0
      %2612 = vmatpush1.bf16.msra.mxu0 0
      %2613 = vmatprep.subr.bf16.mxu0 0
      %2614 = vmatpush1.bf16.msra.mxu0 0
      %2615 = vmatprep.subr.bf16.mxu0 0
      %2616 = vmatpush1.bf16.msra.mxu0 0
      %2617 = vmatprep.subr.bf16.mxu0 0
      %2618 = vmatpush1.bf16.msra.mxu0 0
      %2619 = vmatprep.subr.bf16.mxu0 0
      %2620 = vmatpush1.bf16.msra.mxu0 0
      %2621 = vmatprep.subr.bf16.mxu0 0
      %2622 = vmatpush1.bf16.msra.mxu0 0
      %2623 = vmatprep.subr.bf16.mxu0 0
      %2624 = vmatpush1.bf16.msra.mxu0 0
      %2625 = vmatprep.subr.bf16.mxu0 0
      %2626 = vmatpush1.bf16.msra.mxu0 0
      %2627 = vmatprep.mubr.bf16.mxu0 0
      %2628 = vmatmul.mubr.bf16.gmra.mrb[0].mxu0 %v2545
      %v2629 = vpop.f32.mrb[0].mxu0
      %v2630 = vadd.f32 0.0, %v2629
      %v2631 = vpop.f32.mrb[0].mxu0
      %v2632 = vpop.f32.mrb[0].mxu0
      %v2633 = vadd.f32 0.0, %v2632
      %v2634 = vpop.f32.mrb[0].mxu0
      %2635 = vmatprep.mubr.bf16.mxu0 0
      %2636 = vmatmul.mubr.bf16.gmra.mrb[0].mxu0 %v2548
      %v2637 = vpop.f32.mrb[0].mxu0
      %v2638 = vadd.f32 0.0, %v2637
      %v2639 = vpop.f32.mrb[0].mxu0
      %v2640 = vpop.f32.mrb[0].mxu0
      %v2641 = vadd.f32 0.0, %v2640
      %v2642 = vpop.f32.mrb[0].mxu0
      %2643 = vmatprep.mubr.bf16.mxu0 0
      %2644 = vmatmul.mubr.bf16.gmra.mrb[0].mxu0 %v2551
      %v2645 = vpop.f32.mrb[0].mxu0
      %v2646 = vadd.f32 0.0, %v2645
      %v2647 = vpop.f32.mrb[0].mxu0
      %v2648 = vpop.f32.mrb[0].mxu0
      %v2649 = vadd.f32 0.0, %v2648
      %v2650 = vpop.f32.mrb[0].mxu0
      %2651 = vmatprep.mubr.bf16.mxu0 0
      %2652 = vmatmul.mubr.bf16.gmra.mrb[0].mxu0 %v2554
      %v2653 = vpop.f32.mrb[0].mxu0
      %v2654 = vadd.f32 0.0, %v2653
      %v2655 = vpop.f32.mrb[0].mxu0
      %v2656 = vpop.f32.mrb[0].mxu0
      %v2657 = vadd.f32 0.0, %v2656
      %v2658 = vpop.f32.mrb[0].mxu0
      %2659 = vmatprep.mubr.bf16.mxu0 0
      %2660 = vmatmul.mubr.bf16.gmra.mrb[0].mxu0 %v2557
      %v2661 = vpop.f32.mrb[0].mxu0
      %v2662 = vadd.f32 0.0, %v2661
      %v2663 = vpop.f32.mrb[0].mxu0
      %v2664 = vpop.f32.mrb[0].mxu0
      %v2665 = vadd.f32 0.0, %v2664
      %v2666 = vpop.f32.mrb[0].mxu0
      %2667 = vmatprep.mubr.bf16.mxu0 0
      %2668 = vmatmul.mubr.bf16.gmra.mrb[0].mxu0 %v2560
      %v2669 = vpop.f32.mrb[0].mxu0
      %v2670 = vadd.f32 0.0, %v2669
      %v2671 = vpop.f32.mrb[0].mxu0
      %v2672 = vpop.f32.mrb[0].mxu0
      %v2673 = vadd.f32 0.0, %v2672
      %v2674 = vpop.f32.mrb[0].mxu0
      %2675 = vmatprep.mubr.bf16.mxu0 0
      %2676 = vmatmul.mubr.bf16.gmra.mrb[0].mxu0 %v2563
      %v2677 = vpop.f32.mrb[0].mxu0
      %v2678 = vadd.f32 0.0, %v2677
      %v2679 = vpop.f32.mrb[0].mxu0
      %v2680 = vpop.f32.mrb[0].mxu0
      %v2681 = vadd.f32 0.0, %v2680
      %v2682 = vpop.f32.mrb[0].mxu0
      %2683 = vmatprep.mubr.bf16.mxu0 0
      %2684 = vmatmul.mubr.bf16.gmra.mrb[0].mxu0 %v2566
      %v2685 = vpop.f32.mrb[0].mxu0
      %v2686 = vadd.f32 0.0, %v2685
      %v2687 = vpop.f32.mrb[0].mxu0
      %v2688 = vpop.f32.mrb[0].mxu0
      %v2689 = vadd.f32 0.0, %v2688
      %v2690 = vpop.f32.mrb[0].mxu0
      %2691 = vmatprep.mubr.bf16.mxu0 0
      %2692 = vmatmul.mubr.bf16.gmra.mrb[0].mxu0 %v2569
      %v2693 = vpop.f32.mrb[0].mxu0
      %v2694 = vadd.f32 0.0, %v2693
      %v2695 = vpop.f32.mrb[0].mxu0
      %v2696 = vpop.f32.mrb[0].mxu0
      %v2697 = vadd.f32 0.0, %v2696
      %v2698 = vpop.f32.mrb[0].mxu0
      %2699 = vmatprep.mubr.bf16.mxu0 0
      %2700 = vmatmul.mubr.bf16.gmra.mrb[0].mxu0 %v2572
      %v2701 = vpop.f32.mrb[0].mxu0
      %v2702 = vadd.f32 0.0, %v2701
      %v2703 = vpop.f32.mrb[0].mxu0
      %v2704 = vpop.f32.mrb[0].mxu0
      %v2705 = vadd.f32 0.0, %v2704
      %v2706 = vpop.f32.mrb[0].mxu0
      %2707 = vmatprep.mubr.bf16.mxu0 0
      %2708 = vmatmul.mubr.bf16.gmra.mrb[0].mxu0 %v2575
      %v2709 = vpop.f32.mrb[0].mxu0
      %v2710 = vadd.f32 0.0, %v2709
      %v2711 = vpop.f32.mrb[0].mxu0
      %v2712 = vpop.f32.mrb[0].mxu0
      %v2713 = vadd.f32 0.0, %v2712
      %v2714 = vpop.f32.mrb[0].mxu0
      %2715 = vmatprep.mubr.bf16.mxu0 0
      %2716 = vmatmul.mubr.bf16.gmra.mrb[0].mxu0 %v2578
      %v2717 = vpop.f32.mrb[0].mxu0
      %v2718 = vadd.f32 0.0, %v2717
      %v2719 = vpop.f32.mrb[0].mxu0
      %v2720 = vpop.f32.mrb[0].mxu0
      %v2721 = vadd.f32 0.0, %v2720
      %v2722 = vpop.f32.mrb[0].mxu0
      %2723 = vmatprep.mubr.bf16.mxu0 0
      %2724 = vmatmul.mubr.bf16.gmra.mrb[0].mxu0 %v2581
      %v2725 = vpop.f32.mrb[0].mxu0
      %v2726 = vadd.f32 0.0, %v2725
      %v2727 = vpop.f32.mrb[0].mxu0
      %v2728 = vpop.f32.mrb[0].mxu0
      %v2729 = vadd.f32 0.0, %v2728
      %v2730 = vpop.f32.mrb[0].mxu0
      %2731 = vmatprep.mubr.bf16.mxu0 0
      %2732 = vmatmul.mubr.bf16.gmra.mrb[0].mxu0 %v2584
      %v2733 = vpop.f32.mrb[0].mxu0
      %v2734 = vadd.f32 0.0, %v2733
      %v2735 = vpop.f32.mrb[0].mxu0
      %v2736 = vpop.f32.mrb[0].mxu0
      %v2737 = vadd.f32 0.0, %v2736
      %v2738 = vpop.f32.mrb[0].mxu0
      %2739 = vmatprep.mubr.bf16.mxu0 0
      %2740 = vmatmul.mubr.bf16.gmra.mrb[0].mxu0 %v2587
      %v2741 = vpop.f32.mrb[0].mxu0
      %v2742 = vadd.f32 0.0, %v2741
      %v2743 = vpop.f32.mrb[0].mxu0
      %v2744 = vpop.f32.mrb[0].mxu0
      %v2745 = vadd.f32 0.0, %v2744
      %v2746 = vpop.f32.mrb[0].mxu0
      %2747 = vmatprep.mubr.bf16.mxu0 0
      %2748 = vmatmul.mubr.bf16.gmra.mrb[0].mxu0 %v2590
      %v2749 = vpop.f32.mrb[0].mxu0
      %v2750 = vadd.f32 0.0, %v2749
      %v2751 = vpop.f32.mrb[0].mxu0
      %v2752 = vpop.f32.mrb[0].mxu0
      %v2753 = vadd.f32 0.0, %v2752
      %v2754 = vpop.f32.mrb[0].mxu0
      %2755 = vdwg.mxu0
      %v2756 = vadd.f32 %v2459, %v2630
      %v2757 = vadd.f32 %v2460, %v2633
      %v2758 = vadd.f32 %v2461, %v2638
      %v2759 = vadd.f32 %v2462, %v2641
      %v2760 = vadd.f32 %v2463, %v2646
      %v2761 = vadd.f32 %v2464, %v2649
      %v2762 = vadd.f32 %v2465, %v2654
      %v2763 = vadd.f32 %v2466, %v2657
      %v2764 = vadd.f32 %v2467, %v2662
      %v2765 = vadd.f32 %v2468, %v2665
      %v2766 = vadd.f32 %v2469, %v2670
      %v2767 = vadd.f32 %v2470, %v2673
      %v2768 = vadd.f32 %v2471, %v2678
      %v2769 = vadd.f32 %v2472, %v2681
      %v2770 = vadd.f32 %v2473, %v2686
      %v2771 = vadd.f32 %v2474, %v2689
      %v2772 = vadd.f32 %v2475, %v2694
      %v2773 = vadd.f32 %v2476, %v2697
      %v2774 = vadd.f32 %v2477, %v2702
      %v2775 = vadd.f32 %v2478, %v2705
      %v2776 = vadd.f32 %v2479, %v2710
      %v2777 = vadd.f32 %v2480, %v2713
      %v2778 = vadd.f32 %v2481, %v2718
      %v2779 = vadd.f32 %v2482, %v2721
      %v2780 = vadd.f32 %v2483, %v2726
      %v2781 = vadd.f32 %v2484, %v2729
      %v2782 = vadd.f32 %v2485, %v2734
      %v2783 = vadd.f32 %v2486, %v2737
      %v2784 = vadd.f32 %v2487, %v2742
      %v2785 = vadd.f32 %v2488, %v2745
      %v2786 = vadd.f32 %v2489, %v2750
      %v2787 = vadd.f32 %v2490, %v2753
      %v2788 = vld [vmem:[%s2197 + $0x2] sm:$0xff]
      %v2789 = vld [vmem:[%s2197 + $0xa] sm:$0xff]
      %v2790 = vld [vmem:[%s2197 + $0x1a] sm:$0xff]
      %v2791 = vld [vmem:[%s2197 + $0x22] sm:$0xff]
      %v2792 = vld [vmem:[%s2197 + $0x32] sm:$0xff]
      %v2793 = vld [vmem:[%s2197 + $0x3a] sm:$0xff]
      %v2794 = vld [vmem:[%s2197 + $0x4a] sm:$0xff]
      %v2795 = vld [vmem:[%s2197 + $0x52] sm:$0xff]
      %v2796 = vld [vmem:[%s2197 + $0x62] sm:$0xff]
      %v2797 = vld [vmem:[%s2197 + $0x6a] sm:$0xff]
      %v2798 = vld [vmem:[%s2197 + $0x7a] sm:$0xff]
      %v2799 = vld [vmem:[%s2197 + $0x82] sm:$0xff]
      %v2800 = vld [vmem:[%s2197 + $0x92] sm:$0xff]
      %v2801 = vld [vmem:[%s2197 + $0x9a] sm:$0xff]
      %v2802 = vld [vmem:[%s2197 + $0xaa] sm:$0xff]
      %v2803 = vld [vmem:[%s2197 + $0xb2] sm:$0xff]
      %v2804 = vld [vmem:[%s2197 + $0xc2] sm:$0xff]
      %v2805 = vld [vmem:[%s2197 + $0xca] sm:$0xff]
      %v2806 = vld [vmem:[%s2197 + $0xda] sm:$0xff]
      %v2807 = vld [vmem:[%s2197 + $0xe2] sm:$0xff]
      %v2808 = vld [vmem:[%s2197 + $0xf2] sm:$0xff]
      %v2809 = vld [vmem:[%s2197 + $0xfa] sm:$0xff]
      %v2810 = vld [vmem:[%s2197 + $0x10a] sm:$0xff]
      %v2811 = vld [vmem:[%s2197 + $0x112] sm:$0xff]
      %v2812 = vld [vmem:[%s2197 + $0x122] sm:$0xff]
      %v2813 = vld [vmem:[%s2197 + $0x12a] sm:$0xff]
      %v2814 = vld [vmem:[%s2197 + $0x13a] sm:$0xff]
      %v2815 = vld [vmem:[%s2197 + $0x142] sm:$0xff]
      %v2816 = vld [vmem:[%s2197 + $0x152] sm:$0xff]
      %v2817 = vld [vmem:[%s2197 + $0x15a] sm:$0xff]
      %v2818 = vld [vmem:[%s2197 + $0x16a] sm:$0xff]
      %v2819 = vld [vmem:[%s2197 + $0x172] sm:$0xff]
      %v2820 = vpack.c.bf16 %v2789, %v2788
      %v2821 = vpack.c.bf16 %v2791, %v2790
      %v2822 = vpack.c.bf16 %v2793, %v2792
      %v2823 = vpack.c.bf16 %v2795, %v2794
      %v2824 = vpack.c.bf16 %v2797, %v2796
      %v2825 = vpack.c.bf16 %v2799, %v2798
      %v2826 = vpack.c.bf16 %v2801, %v2800
      %v2827 = vpack.c.bf16 %v2803, %v2802
      %v2828 = vpack.c.bf16 %v2805, %v2804
      %v2829 = vpack.c.bf16 %v2807, %v2806
      %v2830 = vpack.c.bf16 %v2809, %v2808
      %v2831 = vpack.c.bf16 %v2811, %v2810
      %v2832 = vpack.c.bf16 %v2813, %v2812
      %v2833 = vpack.c.bf16 %v2815, %v2814
      %v2834 = vpack.c.bf16 %v2817, %v2816
      %v2835 = vpack.c.bf16 %v2819, %v2818
      %v2836 = vld [vmem:[%s3 + $0x10] sm:$0x3]
      %v2838 = vsel %vm412, %v2820, 0
      %v2841 = vsel %vm412, %v2821, 0
      %v2844 = vsel %vm412, %v2822, 0
      %v2847 = vsel %vm412, %v2823, 0
      %v2850 = vsel %vm412, %v2824, 0
      %v2853 = vsel %vm412, %v2825, 0
      %v2856 = vsel %vm412, %v2826, 0
      %v2859 = vsel %vm412, %v2827, 0
      %v2862 = vsel %vm412, %v2828, 0
      %v2865 = vsel %vm412, %v2829, 0
      %v2868 = vsel %vm412, %v2830, 0
      %v2871 = vsel %vm412, %v2831, 0
      %v2874 = vsel %vm412, %v2832, 0
      %v2877 = vsel %vm412, %v2833, 0
      %v2880 = vsel %vm412, %v2834, 0
      %v2883 = vsel %vm412, %v2835, 0
      %v2886 = vsel %vm640, %v2836, 0
      %2888 = vmatprep.subr.bf16.mxu0 0
      %2889 = vmatpush1.bf16.msra.mxu0 %v2886
      %2890 = vmatprep.subr.bf16.mxu0 0
      %2891 = vmatpush1.bf16.msra.mxu0 0
      %2892 = vmatprep.subr.bf16.mxu0 0
      %2893 = vmatpush1.bf16.msra.mxu0 0
      %2894 = vmatprep.subr.bf16.mxu0 0
      %2895 = vmatpush1.bf16.msra.mxu0 0
      %2896 = vmatprep.subr.bf16.mxu0 0
      %2897 = vmatpush1.bf16.msra.mxu0 0
      %2898 = vmatprep.subr.bf16.mxu0 0
      %2899 = vmatpush1.bf16.msra.mxu0 0
      %2900 = vmatprep.subr.bf16.mxu0 0
      %2901 = vmatpush1.bf16.msra.mxu0 0
      %2902 = vmatprep.subr.bf16.mxu0 0
      %2903 = vmatpush1.bf16.msra.mxu0 0
      %2904 = vmatprep.subr.bf16.mxu0 0
      %2905 = vmatpush1.bf16.msra.mxu0 0
      %2906 = vmatprep.subr.bf16.mxu0 0
      %2907 = vmatpush1.bf16.msra.mxu0 0
      %2908 = vmatprep.subr.bf16.mxu0 0
      %2909 = vmatpush1.bf16.msra.mxu0 0
      %2910 = vmatprep.subr.bf16.mxu0 0
      %2911 = vmatpush1.bf16.msra.mxu0 0
      %2912 = vmatprep.subr.bf16.mxu0 0
      %2913 = vmatpush1.bf16.msra.mxu0 0
      %2914 = vmatprep.subr.bf16.mxu0 0
      %2915 = vmatpush1.bf16.msra.mxu0 0
      %2916 = vmatprep.subr.bf16.mxu0 0
      %2917 = vmatpush1.bf16.msra.mxu0 0
      %2918 = vmatprep.subr.bf16.mxu0 0
      %2919 = vmatpush1.bf16.msra.mxu0 0
      %2920 = vmatprep.mubr.bf16.mxu0 0
      %2921 = vmatmul.mubr.bf16.gmra.mrb[0].mxu0 %v2838
      %v2922 = vpop.f32.mrb[0].mxu0
      %v2923 = vadd.f32 0.0, %v2922
      %v2924 = vpop.f32.mrb[0].mxu0
      %v2925 = vpop.f32.mrb[0].mxu0
      %v2926 = vadd.f32 0.0, %v2925
      %v2927 = vpop.f32.mrb[0].mxu0
      %2928 = vmatprep.mubr.bf16.mxu0 0
      %2929 = vmatmul.mubr.bf16.gmra.mrb[0].mxu0 %v2841
      %v2930 = vpop.f32.mrb[0].mxu0
      %v2931 = vadd.f32 0.0, %v2930
      %v2932 = vpop.f32.mrb[0].mxu0
      %v2933 = vpop.f32.mrb[0].mxu0
      %v2934 = vadd.f32 0.0, %v2933
      %v2935 = vpop.f32.mrb[0].mxu0
      %2936 = vmatprep.mubr.bf16.mxu0 0
      %2937 = vmatmul.mubr.bf16.gmra.mrb[0].mxu0 %v2844
      %v2938 = vpop.f32.mrb[0].mxu0
      %v2939 = vadd.f32 0.0, %v2938
      %v2940 = vpop.f32.mrb[0].mxu0
      %v2941 = vpop.f32.mrb[0].mxu0
      %v2942 = vadd.f32 0.0, %v2941
      %v2943 = vpop.f32.mrb[0].mxu0
      %2944 = vmatprep.mubr.bf16.mxu0 0
      %2945 = vmatmul.mubr.bf16.gmra.mrb[0].mxu0 %v2847
      %v2946 = vpop.f32.mrb[0].mxu0
      %v2947 = vadd.f32 0.0, %v2946
      %v2948 = vpop.f32.mrb[0].mxu0
      %v2949 = vpop.f32.mrb[0].mxu0
      %v2950 = vadd.f32 0.0, %v2949
      %v2951 = vpop.f32.mrb[0].mxu0
      %2952 = vmatprep.mubr.bf16.mxu0 0
      %2953 = vmatmul.mubr.bf16.gmra.mrb[0].mxu0 %v2850
      %v2954 = vpop.f32.mrb[0].mxu0
      %v2955 = vadd.f32 0.0, %v2954
      %v2956 = vpop.f32.mrb[0].mxu0
      %v2957 = vpop.f32.mrb[0].mxu0
      %v2958 = vadd.f32 0.0, %v2957
      %v2959 = vpop.f32.mrb[0].mxu0
      %2960 = vmatprep.mubr.bf16.mxu0 0
      %2961 = vmatmul.mubr.bf16.gmra.mrb[0].mxu0 %v2853
      %v2962 = vpop.f32.mrb[0].mxu0
      %v2963 = vadd.f32 0.0, %v2962
      %v2964 = vpop.f32.mrb[0].mxu0
      %v2965 = vpop.f32.mrb[0].mxu0
      %v2966 = vadd.f32 0.0, %v2965
      %v2967 = vpop.f32.mrb[0].mxu0
      %2968 = vmatprep.mubr.bf16.mxu0 0
      %2969 = vmatmul.mubr.bf16.gmra.mrb[0].mxu0 %v2856
      %v2970 = vpop.f32.mrb[0].mxu0
      %v2971 = vadd.f32 0.0, %v2970
      %v2972 = vpop.f32.mrb[0].mxu0
      %v2973 = vpop.f32.mrb[0].mxu0
      %v2974 = vadd.f32 0.0, %v2973
      %v2975 = vpop.f32.mrb[0].mxu0
      %2976 = vmatprep.mubr.bf16.mxu0 0
      %2977 = vmatmul.mubr.bf16.gmra.mrb[0].mxu0 %v2859
      %v2978 = vpop.f32.mrb[0].mxu0
      %v2979 = vadd.f32 0.0, %v2978
      %v2980 = vpop.f32.mrb[0].mxu0
      %v2981 = vpop.f32.mrb[0].mxu0
      %v2982 = vadd.f32 0.0, %v2981
      %v2983 = vpop.f32.mrb[0].mxu0
      %2984 = vmatprep.mubr.bf16.mxu0 0
      %2985 = vmatmul.mubr.bf16.gmra.mrb[0].mxu0 %v2862
      %v2986 = vpop.f32.mrb[0].mxu0
      %v2987 = vadd.f32 0.0, %v2986
      %v2988 = vpop.f32.mrb[0].mxu0
      %v2989 = vpop.f32.mrb[0].mxu0
      %v2990 = vadd.f32 0.0, %v2989
      %v2991 = vpop.f32.mrb[0].mxu0
      %2992 = vmatprep.mubr.bf16.mxu0 0
      %2993 = vmatmul.mubr.bf16.gmra.mrb[0].mxu0 %v2865
      %v2994 = vpop.f32.mrb[0].mxu0
      %v2995 = vadd.f32 0.0, %v2994
      %v2996 = vpop.f32.mrb[0].mxu0
      %v2997 = vpop.f32.mrb[0].mxu0
      %v2998 = vadd.f32 0.0, %v2997
      %v2999 = vpop.f32.mrb[0].mxu0
      %3000 = vmatprep.mubr.bf16.mxu0 0
      %3001 = vmatmul.mubr.bf16.gmra.mrb[0].mxu0 %v2868
      %v3002 = vpop.f32.mrb[0].mxu0
      %v3003 = vadd.f32 0.0, %v3002
      %v3004 = vpop.f32.mrb[0].mxu0
      %v3005 = vpop.f32.mrb[0].mxu0
      %v3006 = vadd.f32 0.0, %v3005
      %v3007 = vpop.f32.mrb[0].mxu0
      %3008 = vmatprep.mubr.bf16.mxu0 0
      %3009 = vmatmul.mubr.bf16.gmra.mrb[0].mxu0 %v2871
      %v3010 = vpop.f32.mrb[0].mxu0
      %v3011 = vadd.f32 0.0, %v3010
      %v3012 = vpop.f32.mrb[0].mxu0
      %v3013 = vpop.f32.mrb[0].mxu0
      %v3014 = vadd.f32 0.0, %v3013
      %v3015 = vpop.f32.mrb[0].mxu0
      %3016 = vmatprep.mubr.bf16.mxu0 0
      %3017 = vmatmul.mubr.bf16.gmra.mrb[0].mxu0 %v2874
      %v3018 = vpop.f32.mrb[0].mxu0
      %v3019 = vadd.f32 0.0, %v3018
      %v3020 = vpop.f32.mrb[0].mxu0
      %v3021 = vpop.f32.mrb[0].mxu0
      %v3022 = vadd.f32 0.0, %v3021
      %v3023 = vpop.f32.mrb[0].mxu0
      %3024 = vmatprep.mubr.bf16.mxu0 0
      %3025 = vmatmul.mubr.bf16.gmra.mrb[0].mxu0 %v2877
      %v3026 = vpop.f32.mrb[0].mxu0
      %v3027 = vadd.f32 0.0, %v3026
      %v3028 = vpop.f32.mrb[0].mxu0
      %v3029 = vpop.f32.mrb[0].mxu0
      %v3030 = vadd.f32 0.0, %v3029
      %v3031 = vpop.f32.mrb[0].mxu0
      %3032 = vmatprep.mubr.bf16.mxu0 0
      %3033 = vmatmul.mubr.bf16.gmra.mrb[0].mxu0 %v2880
      %v3034 = vpop.f32.mrb[0].mxu0
      %v3035 = vadd.f32 0.0, %v3034
      %v3036 = vpop.f32.mrb[0].mxu0
      %v3037 = vpop.f32.mrb[0].mxu0
      %v3038 = vadd.f32 0.0, %v3037
      %v3039 = vpop.f32.mrb[0].mxu0
      %3040 = vmatprep.mubr.bf16.mxu0 0
      %3041 = vmatmul.mubr.bf16.gmra.mrb[0].mxu0 %v2883
      %v3042 = vpop.f32.mrb[0].mxu0
      %v3043 = vadd.f32 0.0, %v3042
      %v3044 = vpop.f32.mrb[0].mxu0
      %v3045 = vpop.f32.mrb[0].mxu0
      %v3046 = vadd.f32 0.0, %v3045
      %v3047 = vpop.f32.mrb[0].mxu0
      %3048 = vdwg.mxu0
      %v3049 = vadd.f32 %v2756, %v2923
      %v3050 = vadd.f32 %v2757, %v2926
      %v3051 = vadd.f32 %v2758, %v2931
      %v3052 = vadd.f32 %v2759, %v2934
      %v3053 = vadd.f32 %v2760, %v2939
      %v3054 = vadd.f32 %v2761, %v2942
      %v3055 = vadd.f32 %v2762, %v2947
      %v3056 = vadd.f32 %v2763, %v2950
      %v3057 = vadd.f32 %v2764, %v2955
      %v3058 = vadd.f32 %v2765, %v2958
      %v3059 = vadd.f32 %v2766, %v2963
      %v3060 = vadd.f32 %v2767, %v2966
      %v3061 = vadd.f32 %v2768, %v2971
      %v3062 = vadd.f32 %v2769, %v2974
      %v3063 = vadd.f32 %v2770, %v2979
      %v3064 = vadd.f32 %v2771, %v2982
      %v3065 = vadd.f32 %v2772, %v2987
      %v3066 = vadd.f32 %v2773, %v2990
      %v3067 = vadd.f32 %v2774, %v2995
      %v3068 = vadd.f32 %v2775, %v2998
      %v3069 = vadd.f32 %v2776, %v3003
      %v3070 = vadd.f32 %v2777, %v3006
      %v3071 = vadd.f32 %v2778, %v3011
      %v3072 = vadd.f32 %v2779, %v3014
      %v3073 = vadd.f32 %v2780, %v3019
      %v3074 = vadd.f32 %v2781, %v3022
      %v3075 = vadd.f32 %v2782, %v3027
      %v3076 = vadd.f32 %v2783, %v3030
      %v3077 = vadd.f32 %v2784, %v3035
      %v3078 = vadd.f32 %v2785, %v3038
      %v3079 = vadd.f32 %v2786, %v3043
      %v3080 = vadd.f32 %v2787, %v3046
      %v3081 = vpack.c.bf16 %v3050, %v3049
      %v3082 = vpack.c.bf16 %v3052, %v3051
      %v3083 = vpack.c.bf16 %v3054, %v3053
      %v3084 = vpack.c.bf16 %v3056, %v3055
      %v3085 = vpack.c.bf16 %v3058, %v3057
      %v3086 = vpack.c.bf16 %v3060, %v3059
      %v3087 = vpack.c.bf16 %v3062, %v3061
      %v3088 = vpack.c.bf16 %v3064, %v3063
      %v3089 = vpack.c.bf16 %v3066, %v3065
      %v3090 = vpack.c.bf16 %v3068, %v3067
      %v3091 = vpack.c.bf16 %v3070, %v3069
      %v3092 = vpack.c.bf16 %v3072, %v3071
      %v3093 = vpack.c.bf16 %v3074, %v3073
      %v3094 = vpack.c.bf16 %v3076, %v3075
      %v3095 = vpack.c.bf16 %v3078, %v3077
      %v3096 = vpack.c.bf16 %v3080, %v3079
      %v3113 = vunpack.c.l.b16 %v3081
      %v3114 = vunpack.c.h.b16 %v3081
      %v3115 = vunpack.c.l.b16 %v3082
      %v3116 = vunpack.c.h.b16 %v3082
      %v3117 = vunpack.c.l.b16 %v3083
      %v3118 = vunpack.c.h.b16 %v3083
      %v3119 = vunpack.c.l.b16 %v3084
      %v3120 = vunpack.c.h.b16 %v3084
      %v3121 = vunpack.c.l.b16 %v3085
      %v3122 = vunpack.c.h.b16 %v3085
      %v3123 = vunpack.c.l.b16 %v3086
      %v3124 = vunpack.c.h.b16 %v3086
      %v3125 = vunpack.c.l.b16 %v3087
      %v3126 = vunpack.c.h.b16 %v3087
      %v3127 = vunpack.c.l.b16 %v3088
      %v3128 = vunpack.c.h.b16 %v3088
      %v3129 = vunpack.c.l.b16 %v3089
      %v3130 = vunpack.c.h.b16 %v3089
      %v3131 = vunpack.c.l.b16 %v3090
      %v3132 = vunpack.c.h.b16 %v3090
      %v3133 = vunpack.c.l.b16 %v3091
      %v3134 = vunpack.c.h.b16 %v3091
      %v3135 = vunpack.c.l.b16 %v3092
      %v3136 = vunpack.c.h.b16 %v3092
      %v3137 = vunpack.c.l.b16 %v3093
      %v3138 = vunpack.c.h.b16 %v3093
      %v3139 = vunpack.c.l.b16 %v3094
      %v3140 = vunpack.c.h.b16 %v3094
      %v3141 = vunpack.c.l.b16 %v3095
      %v3142 = vunpack.c.h.b16 %v3095
      %v3143 = vunpack.c.l.b16 %v3096
      %v3144 = vunpack.c.h.b16 %v3096
      %v3145 = vpack.c.b16 %v3113, %v3113
      %v3146 = vpack.c.b16 %v3114, %v3114
      %v3147 = vpack.c.b16 %v3115, %v3115
      %v3148 = vpack.c.b16 %v3116, %v3116
      %v3149 = vpack.c.b16 %v3117, %v3117
      %v3150 = vpack.c.b16 %v3118, %v3118
      %v3151 = vpack.c.b16 %v3119, %v3119
      %v3152 = vpack.c.b16 %v3120, %v3120
      %v3153 = vpack.c.b16 %v3121, %v3121
      %v3154 = vpack.c.b16 %v3122, %v3122
      %v3155 = vpack.c.b16 %v3123, %v3123
      %v3156 = vpack.c.b16 %v3124, %v3124
      %v3157 = vpack.c.b16 %v3125, %v3125
      %v3158 = vpack.c.b16 %v3126, %v3126
      %v3159 = vpack.c.b16 %v3127, %v3127
      %v3160 = vpack.c.b16 %v3128, %v3128
      %v3161 = vpack.c.b16 %v3129, %v3129
      %v3162 = vpack.c.b16 %v3130, %v3130
      %v3163 = vpack.c.b16 %v3131, %v3131
      %v3164 = vpack.c.b16 %v3132, %v3132
      %v3165 = vpack.c.b16 %v3133, %v3133
      %v3166 = vpack.c.b16 %v3134, %v3134
      %v3167 = vpack.c.b16 %v3135, %v3135
      %v3168 = vpack.c.b16 %v3136, %v3136
      %v3169 = vpack.c.b16 %v3137, %v3137
      %v3170 = vpack.c.b16 %v3138, %v3138
      %v3171 = vpack.c.b16 %v3139, %v3139
      %v3172 = vpack.c.b16 %v3140, %v3140
      %v3173 = vpack.c.b16 %v3141, %v3141
      %v3174 = vpack.c.b16 %v3142, %v3142
      %v3175 = vpack.c.b16 %v3143, %v3143
      %v3176 = vpack.c.b16 %v3144, %v3144
      %vm3209 = vcmask 27648
      %3210 = vst.msk [vmem:[%s231] sm:$0xf] %vm3209, %v3145
      %3211 = vst.msk [vmem:[%s231 + $0x4] sm:$0xf] %vm3209, %v3146
      %3212 = vst.msk [vmem:[%s231 + $0x8] sm:$0xf] %vm3209, %v3147
      %3213 = vst.msk [vmem:[%s231 + $0xc] sm:$0xf] %vm3209, %v3148
      %3214 = vst.msk [vmem:[%s231 + $0x10] sm:$0xf] %vm3209, %v3149
      %3215 = vst.msk [vmem:[%s231 + $0x14] sm:$0xf] %vm3209, %v3150
      %3216 = vst.msk [vmem:[%s231 + $0x18] sm:$0xf] %vm3209, %v3151
      %3217 = vst.msk [vmem:[%s231 + $0x1c] sm:$0xf] %vm3209, %v3152
      %3218 = vst.msk [vmem:[%s231 + $0x20] sm:$0xf] %vm3209, %v3153
      %3219 = vst.msk [vmem:[%s231 + $0x24] sm:$0xf] %vm3209, %v3154
      %3220 = vst.msk [vmem:[%s231 + $0x28] sm:$0xf] %vm3209, %v3155
      %3221 = vst.msk [vmem:[%s231 + $0x2c] sm:$0xf] %vm3209, %v3156
      %3222 = vst.msk [vmem:[%s231 + $0x30] sm:$0xf] %vm3209, %v3157
      %3223 = vst.msk [vmem:[%s231 + $0x34] sm:$0xf] %vm3209, %v3158
      %3224 = vst.msk [vmem:[%s231 + $0x38] sm:$0xf] %vm3209, %v3159
      %3225 = vst.msk [vmem:[%s231 + $0x3c] sm:$0xf] %vm3209, %v3160
      %3226 = vst.msk [vmem:[%s231 + $0x40] sm:$0xf] %vm3209, %v3161
      %3227 = vst.msk [vmem:[%s231 + $0x44] sm:$0xf] %vm3209, %v3162
      %3228 = vst.msk [vmem:[%s231 + $0x48] sm:$0xf] %vm3209, %v3163
      %3229 = vst.msk [vmem:[%s231 + $0x4c] sm:$0xf] %vm3209, %v3164
      %3230 = vst.msk [vmem:[%s231 + $0x50] sm:$0xf] %vm3209, %v3165
      %3231 = vst.msk [vmem:[%s231 + $0x54] sm:$0xf] %vm3209, %v3166
      %3232 = vst.msk [vmem:[%s231 + $0x58] sm:$0xf] %vm3209, %v3167
      %3233 = vst.msk [vmem:[%s231 + $0x5c] sm:$0xf] %vm3209, %v3168
      %3234 = vst.msk [vmem:[%s231 + $0x60] sm:$0xf] %vm3209, %v3169
      %3235 = vst.msk [vmem:[%s231 + $0x64] sm:$0xf] %vm3209, %v3170
      %3236 = vst.msk [vmem:[%s231 + $0x68] sm:$0xf] %vm3209, %v3171
      %3237 = vst.msk [vmem:[%s231 + $0x6c] sm:$0xf] %vm3209, %v3172
      %3238 = vst.msk [vmem:[%s231 + $0x70] sm:$0xf] %vm3209, %v3173
      %3239 = vst.msk [vmem:[%s231 + $0x74] sm:$0xf] %vm3209, %v3174
      %3240 = vst.msk [vmem:[%s231 + $0x78] sm:$0xf] %vm3209, %v3175
      %3241 = vst.msk [vmem:[%s231 + $0x7c] sm:$0xf] %vm3209, %v3176
      %v3242 = vsel %vm412, %v3049, 0.0
      %v3243 = vsel %vm412, %v3050, 0.0
      %v3244 = vadd.f32 %v3242, %v3243
      %v3245 = vsel %vm412, %v3051, 0.0
      %v3246 = vadd.f32 %v3244, %v3245
      %v3247 = vsel %vm412, %v3052, 0.0
      %v3248 = vadd.f32 %v3246, %v3247
      %v3249 = vsel %vm412, %v3053, 0.0
      %v3250 = vadd.f32 %v3248, %v3249
      %v3251 = vsel %vm412, %v3054, 0.0
      %v3252 = vadd.f32 %v3250, %v3251
      %v3253 = vsel %vm412, %v3055, 0.0
      %v3254 = vadd.f32 %v3252, %v3253
      %v3255 = vsel %vm412, %v3056, 0.0
      %v3256 = vadd.f32 %v3254, %v3255
      %v3257 = vsel %vm412, %v3057, 0.0
      %v3258 = vadd.f32 %v3256, %v3257
      %v3259 = vsel %vm412, %v3058, 0.0
      %v3260 = vadd.f32 %v3258, %v3259
      %v3261 = vsel %vm412, %v3059, 0.0
      %v3262 = vadd.f32 %v3260, %v3261
      %v3263 = vsel %vm412, %v3060, 0.0
      %v3264 = vadd.f32 %v3262, %v3263
      %v3265 = vsel %vm412, %v3061, 0.0
      %v3266 = vadd.f32 %v3264, %v3265
      %v3267 = vsel %vm412, %v3062, 0.0
      %v3268 = vadd.f32 %v3266, %v3267
      %v3269 = vsel %vm412, %v3063, 0.0
      %v3270 = vadd.f32 %v3268, %v3269
      %v3271 = vsel %vm412, %v3064, 0.0
      %v3272 = vadd.f32 %v3270, %v3271
      %v3273 = vsel %vm412, %v3065, 0.0
      %v3274 = vadd.f32 %v3272, %v3273
      %v3275 = vsel %vm412, %v3066, 0.0
      %v3276 = vadd.f32 %v3274, %v3275
      %v3277 = vsel %vm412, %v3067, 0.0
      %v3278 = vadd.f32 %v3276, %v3277
      %v3279 = vsel %vm412, %v3068, 0.0
      %v3280 = vadd.f32 %v3278, %v3279
      %v3281 = vsel %vm412, %v3069, 0.0
      %v3282 = vadd.f32 %v3280, %v3281
      %v3283 = vsel %vm412, %v3070, 0.0
      %v3284 = vadd.f32 %v3282, %v3283
      %v3285 = vsel %vm412, %v3071, 0.0
      %v3286 = vadd.f32 %v3284, %v3285
      %v3287 = vsel %vm412, %v3072, 0.0
      %v3288 = vadd.f32 %v3286, %v3287
      %v3289 = vsel %vm412, %v3073, 0.0
      %v3290 = vadd.f32 %v3288, %v3289
      %v3291 = vsel %vm412, %v3074, 0.0
      %v3292 = vadd.f32 %v3290, %v3291
      %v3293 = vsel %vm412, %v3075, 0.0
      %v3294 = vadd.f32 %v3292, %v3293
      %v3295 = vsel %vm412, %v3076, 0.0
      %v3296 = vadd.f32 %v3294, %v3295
      %v3297 = vsel %vm412, %v3077, 0.0
      %v3298 = vadd.f32 %v3296, %v3297
      %v3299 = vsel %vm412, %v3078, 0.0
      %v3300 = vadd.f32 %v3298, %v3299
      %v3301 = vsel %vm412, %v3079, 0.0
      %v3302 = vadd.f32 %v3300, %v3301
      %v3303 = vsel %vm412, %v3080, 0.0
      %v3304 = vadd.f32 %v3302, %v3303
      %v3305 = vrot.slane %v3304, 4
      %v3306 = vadd.f32 %v3304, %v3305
      %v3307 = vrot.slane %v3306, 2
      %v3308 = vadd.f32 %v3306, %v3307
      %v3309 = vrot.slane %v3308, 1
      %v3310 = vadd.f32 %v3308, %v3309
      %v3311 = vmul.f32 %v3049, %v3049
      %v3312 = vmul.f32 %v3050, %v3050
      %v3313 = vmul.f32 %v3051, %v3051
      %v3314 = vmul.f32 %v3052, %v3052
      %v3315 = vmul.f32 %v3053, %v3053
      %v3316 = vmul.f32 %v3054, %v3054
      %v3317 = vmul.f32 %v3055, %v3055
      %v3318 = vmul.f32 %v3056, %v3056
      %v3319 = vmul.f32 %v3057, %v3057
      %v3320 = vmul.f32 %v3058, %v3058
      %v3321 = vmul.f32 %v3059, %v3059
      %v3322 = vmul.f32 %v3060, %v3060
      %v3323 = vmul.f32 %v3061, %v3061
      %v3324 = vmul.f32 %v3062, %v3062
      %v3325 = vmul.f32 %v3063, %v3063
      %v3326 = vmul.f32 %v3064, %v3064
      %v3327 = vmul.f32 %v3065, %v3065
      %v3328 = vmul.f32 %v3066, %v3066
      %v3329 = vmul.f32 %v3067, %v3067
      %v3330 = vmul.f32 %v3068, %v3068
      %v3331 = vmul.f32 %v3069, %v3069
      %v3332 = vmul.f32 %v3070, %v3070
      %v3333 = vmul.f32 %v3071, %v3071
      %v3334 = vmul.f32 %v3072, %v3072
      %v3335 = vmul.f32 %v3073, %v3073
      %v3336 = vmul.f32 %v3074, %v3074
      %v3337 = vmul.f32 %v3075, %v3075
      %v3338 = vmul.f32 %v3076, %v3076
      %v3339 = vmul.f32 %v3077, %v3077
      %v3340 = vmul.f32 %v3078, %v3078
      %v3341 = vmul.f32 %v3079, %v3079
      %v3342 = vmul.f32 %v3080, %v3080
      %v3343 = vsel %vm412, %v3311, 0.0
      %v3344 = vsel %vm412, %v3312, 0.0
      %v3345 = vadd.f32 %v3343, %v3344
      %v3346 = vsel %vm412, %v3313, 0.0
      %v3347 = vadd.f32 %v3345, %v3346
      %v3348 = vsel %vm412, %v3314, 0.0
      %v3349 = vadd.f32 %v3347, %v3348
      %v3350 = vsel %vm412, %v3315, 0.0
      %v3351 = vadd.f32 %v3349, %v3350
      %v3352 = vsel %vm412, %v3316, 0.0
      %v3353 = vadd.f32 %v3351, %v3352
      %v3354 = vsel %vm412, %v3317, 0.0
      %v3355 = vadd.f32 %v3353, %v3354
      %v3356 = vsel %vm412, %v3318, 0.0
      %v3357 = vadd.f32 %v3355, %v3356
      %v3358 = vsel %vm412, %v3319, 0.0
      %v3359 = vadd.f32 %v3357, %v3358
      %v3360 = vsel %vm412, %v3320, 0.0
      %v3361 = vadd.f32 %v3359, %v3360
      %v3362 = vsel %vm412, %v3321, 0.0
      %v3363 = vadd.f32 %v3361, %v3362
      %v3364 = vsel %vm412, %v3322, 0.0
      %v3365 = vadd.f32 %v3363, %v3364
      %v3366 = vsel %vm412, %v3323, 0.0
      %v3367 = vadd.f32 %v3365, %v3366
      %v3368 = vsel %vm412, %v3324, 0.0
      %v3369 = vadd.f32 %v3367, %v3368
      %v3370 = vsel %vm412, %v3325, 0.0
      %v3371 = vadd.f32 %v3369, %v3370
      %v3372 = vsel %vm412, %v3326, 0.0
      %v3373 = vadd.f32 %v3371, %v3372
      %v3374 = vsel %vm412, %v3327, 0.0
      %v3375 = vadd.f32 %v3373, %v3374
      %v3376 = vsel %vm412, %v3328, 0.0
      %v3377 = vadd.f32 %v3375, %v3376
      %v3378 = vsel %vm412, %v3329, 0.0
      %v3379 = vadd.f32 %v3377, %v3378
      %v3380 = vsel %vm412, %v3330, 0.0
      %v3381 = vadd.f32 %v3379, %v3380
      %v3382 = vsel %vm412, %v3331, 0.0
      %v3383 = vadd.f32 %v3381, %v3382
      %v3384 = vsel %vm412, %v3332, 0.0
      %v3385 = vadd.f32 %v3383, %v3384
      %v3386 = vsel %vm412, %v3333, 0.0
      %v3387 = vadd.f32 %v3385, %v3386
      %v3388 = vsel %vm412, %v3334, 0.0
      %v3389 = vadd.f32 %v3387, %v3388
      %v3390 = vsel %vm412, %v3335, 0.0
      %v3391 = vadd.f32 %v3389, %v3390
      %v3392 = vsel %vm412, %v3336, 0.0
      %v3393 = vadd.f32 %v3391, %v3392
      %v3394 = vsel %vm412, %v3337, 0.0
      %v3395 = vadd.f32 %v3393, %v3394
      %v3396 = vsel %vm412, %v3338, 0.0
      %v3397 = vadd.f32 %v3395, %v3396
      %v3398 = vsel %vm412, %v3339, 0.0
      %v3399 = vadd.f32 %v3397, %v3398
      %v3400 = vsel %vm412, %v3340, 0.0
      %v3401 = vadd.f32 %v3399, %v3400
      %v3402 = vsel %vm412, %v3341, 0.0
      %v3403 = vadd.f32 %v3401, %v3402
      %v3404 = vsel %vm412, %v3342, 0.0
      %v3405 = vadd.f32 %v3403, %v3404
      %v3406 = vrot.slane %v3405, 4
      %v3407 = vadd.f32 %v3405, %v3406
      %v3408 = vrot.slane %v3407, 2
      %v3409 = vadd.f32 %v3407, %v3408
      %v3410 = vrot.slane %v3409, 1
      %v3411 = vadd.f32 %v3409, %v3410
      %vm3412 = vcmask 1040384
      %v3413 = vsel %vm3412, %v3310, %v3411
      %3414 = vst.msk [vmem:[%s235] sm:$0x3] %vm447, %v3413
      %p3415 = scmp.lt.s32.totalorder %s17, 1
      %s3416 = scalar_select %p3415, %s17, 1
      %s3417 = smul.addr %s3416, 32
      %s3418 = smul.addr %s3417, 4
      %s3419 = scalar_lea.vmem %s4, %s3418
      %p3420 = scmp.lt.s32.totalorder %s17, 1
      %s3421 = scalar_select %p3420, %s17, 1
      %s3422 = smul.addr %s3421, 2
      %s3423 = scalar_lea.vmem %s5, %s3422
      // Predicated region
      $region37: #{basic_block_forward.4} parent=35 // pred_check
        %p3424 = pneg %p124
      $region38: #{basic_block_forward.4} parent=35 // pred_check_branch
        %3426 = sbr.rel (%p3424) target = $region40
      $region39: #{basic_block_forward.4} parent=35 // pred_region
        _
      $region40: #{basic_block_forward.4} parent=35 // pred_fallthru
        _
      // Predicated region
      $region41: #{basic_block_forward.4} parent=35 // pred_check
        %p3427 = pneg %p150
      $region42: #{basic_block_forward.4} parent=35 // pred_check_branch
        %3429 = sbr.rel (%p3427) target = $region44
      $region43: #{basic_block_forward.4} parent=35 // pred_region
        _
      $region44: #{basic_block_forward.4} parent=35 // pred_fallthru
        _
    $region36: #{basic_block_forward.4} parent=5 // pred_fallthru
      _
    %p3430 = scmp.le.s32.totalorder 2, %s12
    // Predicated region
    $region45: #{basic_block_forward.4} parent=5 // pred_check
      %p3431 = pneg %p3430
    $region46: #{basic_block_forward.4} parent=5 // pred_check_branch
      %3433 = sbr.rel (%p3431) target = $region48
    $region47: #{basic_block_forward.4} parent=5 // pred_region
      %s3434 = ssub.s32 %s12, 2
      // Predicated region
      $region49: #{basic_block_forward.4} parent=47 // pred_check
        %p3435 = pneg %p130
      $region50: #{basic_block_forward.4} parent=47 // pred_check_branch
        %3437 = sbr.rel (%p3435) target = $region52
      $region51: #{basic_block_forward.4} parent=47 // pred_region
        %p3438 = scmp.lt.s32.totalorder %s18, 1
        %s3439 = scalar_select %p3438, %s18, 1
        %s3440 = smul.addr %s3439, 32
        %s3441 = smul.addr %s3440, 4
        %s3442 = scalar_lea.vmem %s4, %s3441
      $region52: #{basic_block_forward.4} parent=47 // pred_fallthru
        _
      // Predicated region
      $region53: #{basic_block_forward.4} parent=47 // pred_check
        %p3443 = pneg %p156
      $region54: #{basic_block_forward.4} parent=47 // pred_check_branch
        %3445 = sbr.rel (%p3443) target = $region56
      $region55: #{basic_block_forward.4} parent=47 // pred_region
        %p3446 = scmp.lt.s32.totalorder %s18, 1
        %s3447 = scalar_select %p3446, %s18, 1
        %s3448 = smul.addr %s3447, 2
        %s3449 = scalar_lea.vmem %s5, %s3448
      $region56: #{basic_block_forward.4} parent=47 // pred_fallthru
        _
    $region48: #{basic_block_forward.4} parent=5 // pred_fallthru
      _
  $region6: #{basic_block_forward.4} parent=0 // loop_footer
    %s16 = sadd.s32 1, %s12
  $region7: #{basic_block_forward.4} parent=0 // loop_footer_branch
    %11 = sbr.rel target = $region3
  $region8: #{basic_block_forward.4} parent=0 // loop_exit
    _

</llo_original>
